<compile_context>
chip_gen: v5e
topology: v5e:2x2
jax: 0.10.0
libtpu: 0.0.40
codegen_flags: <defaults>
</compile_context>

<pallas_src>
import jax
import jax.numpy as jnp
from jax import lax
from jax.experimental import pallas as pl
from jax.experimental.pallas import tpu as pltpu

# ----------------------------- model sizes -----------------------------
F_IN = 80            # encoder_input_size
H = 256              # encoder_rnn_hidden_size == decoder_hidden_size
E = 300              # decoder_embedding_size
A = 84               # decoder_attn_size
V = 1000             # vocab_size
PAD_ID = 6
SOS_ID = 1
EOS_ID = 2

# lane/sublane padded sizes
F_PAD = 128
A_PAD = 128
E_PAD = 384
V_PAD = 1024
B_PAD = 8

_VMEM_LIMIT = 32 * 1024 * 1024


def _const_spec(shape):
    """BlockSpec that keeps a full array resident in VMEM across the (1-D) grid."""
    n = len(shape)
    return pl.BlockSpec(shape, lambda i, n=n: (0,) * n)


# ============================= fused encoder kernel =============================
def _encoder_kernel(lens_ref, x_ref, wproj_ref, bproj_ref,
                    wih_ref, whh_ref, bih_ref, bhh_ref,
                    wh2d_ref, bh2d_ref, wk_ref,
                    enc_out_ref, keys_ref, h0_ref,
                    h_scr, hlast_scr):
    t = pl.program_id(0)
    T = pl.num_programs(0)

    @pl.when(t == 0)
    def _():
        h_scr[...] = jnp.zeros_like(h_scr)
        hlast_scr[...] = jnp.zeros_like(hlast_scr)

    # input projection + fused ReLU
    xt = x_ref[0]                                                        # (B_PAD, F_PAD)
    proj = jnp.maximum(
        jnp.dot(xt, wproj_ref[...], preferred_element_type=jnp.float32) + bproj_ref[...],
        0.0)                                                             # (B_PAD, H)

    # GRU cell (weights stay resident in VMEM across the whole time loop)
    h = h_scr[...]
    gi = jnp.dot(proj, wih_ref[...], preferred_element_type=jnp.float32) + bih_ref[...]
    gh = jnp.dot(h, whh_ref[...], preferred_element_type=jnp.float32) + bhh_ref[...]
    r = jax.nn.sigmoid(gi[:, 0:H] + gh[:, 0:H])
    z = jax.nn.sigmoid(gi[:, H:2 * H] + gh[:, H:2 * H])
    n = jnp.tanh(gi[:, 2 * H:3 * H] + r * gh[:, 2 * H:3 * H])
    h_new = (1.0 - z) * n + z * h
    h_scr[...] = h_new

    # pack_padded_sequence semantics: keep the hidden state at each sequence's true length
    is_last = lens_ref[...] == (t + 1)                                   # (B_PAD, 1)
    hlast_scr[...] = jnp.where(is_last, h_new, hlast_scr[...])

    enc_out_ref[0] = h_new
    # hoisted attention key projection (independent of decoder state)
    keys_ref[0] = jnp.dot(h_new, wk_ref[...], preferred_element_type=jnp.float32)

    @pl.when(t == T - 1)
    def _():
        h0_ref[...] = jnp.tanh(
            jnp.dot(hlast_scr[...], wh2d_ref[...], preferred_element_type=jnp.float32)
            + bh2d_ref[...])


def run_encoder(params, x_tm_pad, lens_pad):
    T = x_tm_pad.shape[0]
    in_specs = [
        _const_spec((B_PAD, 1)),                                 # lens
        pl.BlockSpec((1, B_PAD, F_PAD), lambda t: (t, 0, 0)),    # x (time-sliced)
        _const_spec((F_PAD, H)), _const_spec((1, H)),            # projection
        _const_spec((H, 3 * H)), _const_spec((H, 3 * H)),        # GRU weights
        _const_spec((1, 3 * H)), _const_spec((1, 3 * H)),        # GRU biases
        _const_spec((H, H)), _const_spec((1, H)),                # hidden -> decoder init
        _const_spec((H, A_PAD)),                                 # attention key projection
    ]
    out_specs = [
        pl.BlockSpec((1, B_PAD, H), lambda t: (t, 0, 0)),
        pl.BlockSpec((1, B_PAD, A_PAD), lambda t: (t, 0, 0)),
        pl.BlockSpec((B_PAD, H), lambda t: (0, 0)),
    ]
    out_shape = (
        jax.ShapeDtypeStruct((T, B_PAD, H), jnp.float32),
        jax.ShapeDtypeStruct((T, B_PAD, A_PAD), jnp.float32),
        jax.ShapeDtypeStruct((B_PAD, H), jnp.float32),
    )
    return pl.pallas_call(
        _encoder_kernel,
        grid=(T,),
        in_specs=in_specs,
        out_specs=out_specs,
        out_shape=out_shape,
        scratch_shapes=[pltpu.VMEM((B_PAD, H), jnp.float32),
                        pltpu.VMEM((B_PAD, H), jnp.float32)],
        compiler_params=pltpu.CompilerParams(
            dimension_semantics=("arbitrary",),
            vmem_limit_bytes=_VMEM_LIMIT),
    )(lens_pad, x_tm_pad,
      params["enc_wproj"], params["enc_bproj"],
      params["enc_wih"], params["enc_whh"], params["enc_bih"], params["enc_bhh"],
      params["w_h2d"], params["b_h2d"], params["wk"])


# ============================= fused decoder kernel =============================
def _decoder_kernel(init_oh_ref, h0_ref, enc_ref, keys_ref, mask_ref,
                    emb_ref, wq_ref, v_ref,
                    wih_e_ref, wih_c_ref, whh_ref, bih_ref, bhh_ref,
                    wout_h_ref, wout_c_ref, bout_ref,
                    logits_ref, h_scr, oh_scr):
    s = pl.program_id(0)

    @pl.when(s == 0)
    def _():
        h_scr[...] = h0_ref[...]
        oh_scr[...] = init_oh_ref[...]

    h = h_scr[...]                                                       # (B_PAD, H)

    # ---- additive attention (keys precomputed by the encoder kernel) ----
    q = jnp.dot(h, wq_ref[...], preferred_element_type=jnp.float32)     # (B_PAD, A_PAD)
    e = jnp.tanh(keys_ref[...] + q[None, :, :])                          # (T, B_PAD, A_PAD)
    scores = jnp.sum(e * v_ref[...], axis=-1)                            # (T, B_PAD)
    mask = mask_ref[...]                                                  # (T, B_PAD)
    scores = jnp.where(mask > 0.0, scores, -1e30)
    smax = jnp.max(scores, axis=0, keepdims=True)
    wgt = jnp.exp(scores - smax) * mask
    wgt = wgt / jnp.sum(wgt, axis=0, keepdims=True)
    ctx = jnp.sum(wgt[:, :, None] * enc_ref[...], axis=0)                # (B_PAD, H)

    # ---- embedding lookup via one-hot matmul (no dynamic gather) ----
    emb = jnp.dot(oh_scr[...], emb_ref[...], preferred_element_type=jnp.float32)  # (B_PAD, E_PAD)

    # ---- GRU cell (concat eliminated by split input weights) ----
    gi = (jnp.dot(emb, wih_e_ref[...], preferred_element_type=jnp.float32)
          + jnp.dot(ctx, wih_c_ref[...], preferred_element_type=jnp.float32)
          + bih_ref[...])
    gh = jnp.dot(h, whh_ref[...], preferred_element_type=jnp.float32) + bhh_ref[...]
    r = jax.nn.sigmoid(gi[:, 0:H] + gh[:, 0:H])
    z = jax.nn.sigmoid(gi[:, H:2 * H] + gh[:, H:2 * H])
    n = jnp.tanh(gi[:, 2 * H:3 * H] + r * gh[:, 2 * H:3 * H])
    h_new = (1.0 - z) * n + z * h
    h_scr[...] = h_new

    # ---- vocab projection (concat eliminated) ----
    logits = (jnp.dot(h_new, wout_h_ref[...], preferred_element_type=jnp.float32)
              + jnp.dot(ctx, wout_c_ref[...], preferred_element_type=jnp.float32)
              + bout_ref[...])                                           # (B_PAD, V_PAD)
    logits_ref[0] = logits

    # ---- greedy feeding: argmax over the REAL vocab lanes -> one-hot for next embedding ----
    iota_v = lax.broadcasted_iota(jnp.int32, (B_PAD, V_PAD), 1)
    masked = jnp.where(iota_v < V, logits, -1e30)
    rowmax = jnp.max(masked, axis=-1, keepdims=True)
    first = jnp.min(jnp.where(masked == rowmax, iota_v, V_PAD),
                    axis=-1, keepdims=True)                               # first-max index
    oh_scr[...] = (iota_v == first).astype(jnp.float32)


def run_decoder(params, init_oh, h0, enc_out, keys, mask, steps):
    in_specs = [
        _const_spec((B_PAD, V_PAD)),        # initial one-hot token
        _const_spec((B_PAD, H)),            # decoder init hidden
        _const_spec(enc_out.shape),         # encoder outputs (resident)
        _const_spec(keys.shape),            # precomputed attention keys (resident)
        _const_spec(mask.shape),            # length mask
        _const_spec((V_PAD, E_PAD)),        # embedding table
        _const_spec((H, A_PAD)), _const_spec((1, A_PAD)),
        _const_spec((E_PAD, 3 * H)), _const_spec((H, 3 * H)), _const_spec((H, 3 * H)),
        _const_spec((1, 3 * H)), _const_spec((1, 3 * H)),
        _const_spec((H, V_PAD)), _const_spec((H, V_PAD)), _const_spec((1, V_PAD)),
    ]
    out_specs = pl.BlockSpec((1, B_PAD, V_PAD), lambda s: (s, 0, 0))
    return pl.pallas_call(
        _decoder_kernel,
        grid=(steps,),
        in_specs=in_specs,
        out_specs=out_specs,
        out_shape=jax.ShapeDtypeStruct((steps, B_PAD, V_PAD), jnp.float32),
        scratch_shapes=[pltpu.VMEM((B_PAD, H), jnp.float32),
                        pltpu.VMEM((B_PAD, V_PAD), jnp.float32)],
        compiler_params=pltpu.CompilerParams(
            dimension_semantics=("arbitrary",),
            vmem_limit_bytes=_VMEM_LIMIT),
    )(init_oh, h0, enc_out, keys, mask,
      params["emb"], params["wq"], params["v_a"],
      params["dec_wih_e"], params["dec_wih_c"], params["dec_whh"],
      params["dec_bih"], params["dec_bhh"],
      params["w_out_h"], params["w_out_c"], params["b_out"])


# ============================= forward =============================
def forward(params, x, x_lens, y, y_lens):
    B, T, F = x.shape

    # time-major, batch/feature-padded source (zero padding)
    x_tm = jnp.transpose(x, (1, 0, 2))                                   # (T, B, F)
    x_pad = jnp.zeros((T, B_PAD, F_PAD), jnp.float32).at[:, :B, :F].set(x_tm)
    lens_pad = jnp.full((B_PAD,), T, jnp.int32).at[:B].set(x_lens.astype(jnp.int32))

    enc_out, keys, h0 = run_encoder(params, x_pad, lens_pad.reshape(B_PAD, 1))

    mask = (jnp.arange(T, dtype=jnp.int32)[:, None] < lens_pad[None, :]).astype(jnp.float32)

    y = jnp.where(y == EOS_ID, PAD_ID, y)                                # y[y == eos] = padding_idx
    tok0 = jnp.full((B_PAD,), PAD_ID, jnp.int32).at[:B].set(y[:, 0].astype(jnp.int32))
    init_oh = jax.nn.one_hot(tok0, V_PAD, dtype=jnp.float32)

    steps = y.shape[-1] - 1
    logits_all = run_decoder(params, init_oh, h0, enc_out, keys, mask, steps)

    # predicted_tensor (steps, B, V) -> permute(1, 0, 2) == (B, steps, V); strip padding
    return jnp.transpose(logits_all, (1, 0, 2))[:B, :, :V]


# ============================= deterministic params =============================
def init_params(key):
    ks = iter(jax.random.split(key, 32))

    def w(shape, scale=0.06):
        return scale * jax.random.normal(next(ks), shape, dtype=jnp.float32)

    def pad2(a, rows, cols):
        return jnp.pad(a, ((0, rows - a.shape[0]), (0, cols - a.shape[1])))

    emb = w((V, E))
    emb = emb.at[PAD_ID].set(0.0)            # nn.Embedding(padding_idx=PAD_ID) semantics
    emb = pad2(emb, V_PAD, E_PAD)            # padded rows / cols are zero

    return {
        # encoder
        "enc_wproj": pad2(w((F_IN, H)), F_PAD, H),
        "enc_bproj": w((1, H)),
        "enc_wih": w((H, 3 * H)), "enc_whh": w((H, 3 * H)),
        "enc_bih": w((1, 3 * H)), "enc_bhh": w((1, 3 * H)),
        "w_h2d": w((H, H)), "b_h2d": w((1, H)),
        # attention (key proj shared / hoisted into the encoder kernel)
        "wk": pad2(w((H, A)), H, A_PAD),
        "wq": pad2(w((H, A)), H, A_PAD),
        "v_a": pad2(w((1, A)), 1, A_PAD),                 # zero-padded lanes -> no effect
        # decoder
        "emb": emb,
        "dec_wih_e": pad2(w((E, 3 * H)), E_PAD, 3 * H),   # split of concat([emb, ctx]) weight
        "dec_wih_c": w((H, 3 * H)),
        "dec_whh": w((H, 3 * H)),
        "dec_bih": w((1, 3 * H)), "dec_bhh": w((1, 3 * H)),
        "w_out_h": pad2(w((H, V)), H, V_PAD),             # split of concat([h, ctx]) weight
        "w_out_c": pad2(w((H, V)), H, V_PAD),
        "b_out": pad2(w((1, V)), 1, V_PAD),
    }


# ============================= main =============================
if __name__ == "__main__":
    key = jax.random.PRNGKey(0)
    kx, ky, kp = jax.random.split(key, 3)

    B, T_SRC, T_TGT = 2, 16, 8
    x = jax.random.normal(kx, (B, T_SRC, F_IN), dtype=jnp.float32)
    x_lens = jnp.array([16, 12], dtype=jnp.int32)
    y = jax.random.randint(ky, (B, T_TGT), 0, V).astype(jnp.int32)
    y = y.at[:, 0].set(SOS_ID)
    y = y.at[0, 6].set(EOS_ID)
    y_lens = jnp.array([7, 8], dtype=jnp.int32)

    params = init_params(kp)

    out = jax.jit(forward)(params, x, x_lens, y, y_lens)
    out = jax.block_until_ready(out)

    assert out.shape == (B, T_TGT - 1, V), out.shape
    assert out.dtype == jnp.float32
    assert bool(jnp.all(jnp.isfinite(out)))
    print("KERNEL_OK")
</pallas_src>

<mosaic_0001>
module attributes {stable_mosaic.version = 11 : i64} {
  func.func @_encoder_kernel(%arg0: i32, %arg1: memref<8x1xi32, #tpu.memory_space<vmem>>, %arg2: memref<1x8x128xf32, #tpu.memory_space<vmem>>, %arg3: memref<128x256xf32, #tpu.memory_space<vmem>>, %arg4: memref<1x256xf32, #tpu.memory_space<vmem>>, %arg5: memref<256x768xf32, #tpu.memory_space<vmem>>, %arg6: memref<256x768xf32, #tpu.memory_space<vmem>>, %arg7: memref<1x768xf32, #tpu.memory_space<vmem>>, %arg8: memref<1x768xf32, #tpu.memory_space<vmem>>, %arg9: memref<256x256xf32, #tpu.memory_space<vmem>>, %arg10: memref<1x256xf32, #tpu.memory_space<vmem>>, %arg11: memref<256x128xf32, #tpu.memory_space<vmem>>, %arg12: memref<1x8x256xf32, #tpu.memory_space<vmem>>, %arg13: memref<1x8x128xf32, #tpu.memory_space<vmem>>, %arg14: memref<8x256xf32, #tpu.memory_space<vmem>>, %arg15: memref<8x256xf32, #tpu.memory_space<vmem>>, %arg16: memref<8x256xf32, #tpu.memory_space<vmem>>) attributes {dimension_semantics = [#tpu.dimension_semantics<arbitrary>], iteration_bounds = array<i64: 16>, scalar_prefetch = 0 : i64, scratch_operands = 2 : i64, tpu.core_type = #tpu.core_type<tc>, window_params = [{pipeline_mode = #tpu.pipeline_mode<synchronous>, transform_indices = @transform_0, window_bounds = array<i64: 8, 1>}, {transform_indices = @transform_1, window_bounds = array<i64: 1, 8, 128>}, {pipeline_mode = #tpu.pipeline_mode<synchronous>, transform_indices = @transform_2, window_bounds = array<i64: 128, 256>}, {pipeline_mode = #tpu.pipeline_mode<synchronous>, transform_indices = @transform_3, window_bounds = array<i64: 1, 256>}, {pipeline_mode = #tpu.pipeline_mode<synchronous>, transform_indices = @transform_4, window_bounds = array<i64: 256, 768>}, {pipeline_mode = #tpu.pipeline_mode<synchronous>, transform_indices = @transform_5, window_bounds = array<i64: 256, 768>}, {pipeline_mode = #tpu.pipeline_mode<synchronous>, transform_indices = @transform_6, window_bounds = array<i64: 1, 768>}, {pipeline_mode = #tpu.pipeline_mode<synchronous>, transform_indices = @transform_7, window_bounds = array<i64: 1, 768>}, {pipeline_mode = #tpu.pipeline_mode<synchronous>, transform_indices = @transform_8, window_bounds = array<i64: 256, 256>}, {pipeline_mode = #tpu.pipeline_mode<synchronous>, transform_indices = @transform_9, window_bounds = array<i64: 1, 256>}, {pipeline_mode = #tpu.pipeline_mode<synchronous>, transform_indices = @transform_10, window_bounds = array<i64: 256, 128>}, {transform_indices = @transform_11, window_bounds = array<i64: 1, 8, 256>}, {transform_indices = @transform_12, window_bounds = array<i64: 1, 8, 128>}, {pipeline_mode = #tpu.pipeline_mode<synchronous>, transform_indices = @transform_13, window_bounds = array<i64: 8, 256>}]} {
    %c0_i32 = arith.constant 0 : i32
    %0 = arith.cmpi eq, %arg0, %c0_i32 : i32
    %1 = arith.extui %0 : i1 to i32
    %c0_i32_0 = arith.constant 0 : i32
    %2 = arith.cmpi ne, %1, %c0_i32_0 : i32
    scf.if %2 {
      %cst_41 = arith.constant 0.000000e+00 : f32
      %70 = vector.broadcast %cst_41 : f32 to vector<8x256xf32>
      %c0_42 = arith.constant 0 : index
      %c0_43 = arith.constant 0 : index
      %71 = vector.load %arg15[%c0_42, %c0_43] : memref<8x256xf32, #tpu.memory_space<vmem>>, vector<8x256xf32>
      tpu.vector_store %arg15[%c0_42, %c0_43], %70 {strides = array<i32>} : memref<8x256xf32, #tpu.memory_space<vmem>>, vector<8x256xf32>,
      %cst_44 = arith.constant 0.000000e+00 : f32
      %72 = vector.broadcast %cst_44 : f32 to vector<8x256xf32>
      %c0_45 = arith.constant 0 : index
      %c0_46 = arith.constant 0 : index
      %73 = vector.load %arg16[%c0_45, %c0_46] : memref<8x256xf32, #tpu.memory_space<vmem>>, vector<8x256xf32>
      tpu.vector_store %arg16[%c0_45, %c0_46], %72 {strides = array<i32>} : memref<8x256xf32, #tpu.memory_space<vmem>>, vector<8x256xf32>,
    } else {
    }
    %c0 = arith.constant 0 : index
    %c0_1 = arith.constant 0 : index
    %c0_2 = arith.constant 0 : index
    %3 = vector.load %arg2[%c0, %c0_1, %c0_2] : memref<1x8x128xf32, #tpu.memory_space<vmem>>, vector<1x8x128xf32>
    %4 = vector.shape_cast %3 : vector<1x8x128xf32> to vector<8x128xf32>
    %c0_3 = arith.constant 0 : index
    %c0_4 = arith.constant 0 : index
    %5 = vector.load %arg3[%c0_3, %c0_4] : memref<128x256xf32, #tpu.memory_space<vmem>>, vector<128x256xf32>
    %cst = arith.constant dense<0.000000e+00> : vector<8x256xf32>
    %6 = tpu.matmul %4, %5, %cst {dimension_numbers = #tpu.dot_dimension_numbers<[1], [0], [0], [1], [0, 0, 1, 1], [], []>} : vector<8x128xf32>, vector<128x256xf32>, vector<8x256xf32> -> vector<8x256xf32>
    %c0_5 = arith.constant 0 : index
    %c0_6 = arith.constant 0 : index
    %7 = vector.load %arg4[%c0_5, %c0_6] : memref<1x256xf32, #tpu.memory_space<vmem>>, vector<1x256xf32>
    %8 = vector.broadcast %7 : vector<1x256xf32> to vector<8x256xf32>
    %9 = arith.addf %6, %8 : vector<8x256xf32>
    %cst_7 = arith.constant 0.000000e+00 : f32
    %10 = vector.broadcast %cst_7 : f32 to vector<8x256xf32>
    %11 = arith.maximumf %9, %10 : vector<8x256xf32>
    %c0_8 = arith.constant 0 : index
    %c0_9 = arith.constant 0 : index
    %12 = vector.load %arg15[%c0_8, %c0_9] : memref<8x256xf32, #tpu.memory_space<vmem>>, vector<8x256xf32>
    %c0_10 = arith.constant 0 : index
    %c0_11 = arith.constant 0 : index
    %13 = vector.load %arg5[%c0_10, %c0_11] : memref<256x768xf32, #tpu.memory_space<vmem>>, vector<256x768xf32>
    %cst_12 = arith.constant dense<0.000000e+00> : vector<8x768xf32>
    %14 = tpu.matmul %11, %13, %cst_12 {dimension_numbers = #tpu.dot_dimension_numbers<[1], [0], [0], [1], [0, 0, 1, 1], [], []>} : vector<8x256xf32>, vector<256x768xf32>, vector<8x768xf32> -> vector<8x768xf32>
    %c0_13 = arith.constant 0 : index
    %c0_14 = arith.constant 0 : index
    %15 = vector.load %arg7[%c0_13, %c0_14] : memref<1x768xf32, #tpu.memory_space<vmem>>, vector<1x768xf32>
    %16 = vector.broadcast %15 : vector<1x768xf32> to vector<8x768xf32>
    %17 = arith.addf %14, %16 : vector<8x768xf32>
    %c0_15 = arith.constant 0 : index
    %c0_16 = arith.constant 0 : index
    %18 = vector.load %arg6[%c0_15, %c0_16] : memref<256x768xf32, #tpu.memory_space<vmem>>, vector<256x768xf32>
    %cst_17 = arith.constant dense<0.000000e+00> : vector<8x768xf32>
    %19 = tpu.matmul %12, %18, %cst_17 {dimension_numbers = #tpu.dot_dimension_numbers<[1], [0], [0], [1], [0, 0, 1, 1], [], []>} : vector<8x256xf32>, vector<256x768xf32>, vector<8x768xf32> -> vector<8x768xf32>
    %c0_18 = arith.constant 0 : index
    %c0_19 = arith.constant 0 : index
    %20 = vector.load %arg8[%c0_18, %c0_19] : memref<1x768xf32, #tpu.memory_space<vmem>>, vector<1x768xf32>
    %21 = vector.broadcast %20 : vector<1x768xf32> to vector<8x768xf32>
    %22 = arith.addf %19, %21 : vector<8x768xf32>
    %23 = vector.extract_strided_slice %17 {offsets = [0, 0], sizes = [8, 256], strides = [1, 1]} : vector<8x768xf32> to vector<8x256xf32>
    %24 = vector.extract_strided_slice %22 {offsets = [0, 0], sizes = [8, 256], strides = [1, 1]} : vector<8x768xf32> to vector<8x256xf32>
    %25 = arith.addf %23, %24 : vector<8x256xf32>
    %26 = arith.negf %25 : vector<8x256xf32>
    %27 = math.exp %26 : vector<8x256xf32>
    %cst_20 = arith.constant 1.000000e+00 : f32
    %28 = vector.broadcast %cst_20 : f32 to vector<8x256xf32>
    %29 = arith.addf %28, %27 : vector<8x256xf32>
    %30 = arith.divf %28, %29 : vector<8x256xf32>
    %31 = vector.extract_strided_slice %17 {offsets = [0, 256], sizes = [8, 256], strides = [1, 1]} : vector<8x768xf32> to vector<8x256xf32>
    %32 = vector.extract_strided_slice %22 {offsets = [0, 256], sizes = [8, 256], strides = [1, 1]} : vector<8x768xf32> to vector<8x256xf32>
    %33 = arith.addf %31, %32 : vector<8x256xf32>
    %34 = arith.negf %33 : vector<8x256xf32>
    %35 = math.exp %34 : vector<8x256xf32>
    %cst_21 = arith.constant 1.000000e+00 : f32
    %36 = vector.broadcast %cst_21 : f32 to vector<8x256xf32>
    %37 = arith.addf %36, %35 : vector<8x256xf32>
    %38 = arith.divf %36, %37 : vector<8x256xf32>
    %39 = vector.extract_strided_slice %17 {offsets = [0, 512], sizes = [8, 256], strides = [1, 1]} : vector<8x768xf32> to vector<8x256xf32>
    %40 = vector.extract_strided_slice %22 {offsets = [0, 512], sizes = [8, 256], strides = [1, 1]} : vector<8x768xf32> to vector<8x256xf32>
    %41 = arith.mulf %30, %40 : vector<8x256xf32>
    %42 = arith.addf %39, %41 : vector<8x256xf32>
    %43 = math.tanh %42 : vector<8x256xf32>
    %cst_22 = arith.constant 1.000000e+00 : f32
    %44 = vector.broadcast %cst_22 : f32 to vector<8x256xf32>
    %45 = arith.subf %44, %38 : vector<8x256xf32>
    %46 = arith.mulf %45, %43 : vector<8x256xf32>
    %47 = arith.mulf %38, %12 : vector<8x256xf32>
    %48 = arith.addf %46, %47 : vector<8x256xf32>
    %c0_23 = arith.constant 0 : index
    %c0_24 = arith.constant 0 : index
    %49 = vector.load %arg15[%c0_23, %c0_24] : memref<8x256xf32, #tpu.memory_space<vmem>>, vector<8x256xf32>
    tpu.vector_store %arg15[%c0_23, %c0_24], %48 {strides = array<i32>} : memref<8x256xf32, #tpu.memory_space<vmem>>, vector<8x256xf32>,
    %c0_25 = arith.constant 0 : index
    %c0_26 = arith.constant 0 : index
    %50 = vector.load %arg1[%c0_25, %c0_26] : memref<8x1xi32, #tpu.memory_space<vmem>>, vector<8x1xi32>
    %c1_i32 = arith.constant 1 : i32
    %51 = arith.addi %arg0, %c1_i32 : i32
    %52 = vector.broadcast %51 : i32 to vector<8x1xi32>
    %53 = arith.cmpi eq, %50, %52 : vector<8x1xi32>
    %c0_27 = arith.constant 0 : index
    %c0_28 = arith.constant 0 : index
    %54 = vector.load %arg16[%c0_27, %c0_28] : memref<8x256xf32, #tpu.memory_space<vmem>>, vector<8x256xf32>
    %55 = vector.shape_cast %53 : vector<8x1xi1> to vector<8x1xi1>
    %56 = vector.broadcast %55 : vector<8x1xi1> to vector<8x256xi1>
    %57 = arith.select %56, %48, %54 : vector<8x256xi1>, vector<8x256xf32>
    %c0_29 = arith.constant 0 : index
    %c0_30 = arith.constant 0 : index
    %58 = vector.load %arg16[%c0_29, %c0_30] : memref<8x256xf32, #tpu.memory_space<vmem>>, vector<8x256xf32>
    tpu.vector_store %arg16[%c0_29, %c0_30], %57 {strides = array<i32>} : memref<8x256xf32, #tpu.memory_space<vmem>>, vector<8x256xf32>,
    %c0_31 = arith.constant 0 : index
    %c0_32 = arith.constant 0 : index
    %c0_33 = arith.constant 0 : index
    %59 = vector.load %arg12[%c0_31, %c0_32, %c0_33] : memref<1x8x256xf32, #tpu.memory_space<vmem>>, vector<1x8x256xf32>
    %60 = vector.shape_cast %59 : vector<1x8x256xf32> to vector<8x256xf32>
    %61 = vector.shape_cast %48 : vector<8x256xf32> to vector<1x8x256xf32>
    tpu.vector_store %arg12[%c0_31, %c0_32, %c0_33], %61 {strides = array<i32>} : memref<1x8x256xf32, #tpu.memory_space<vmem>>, vector<1x8x256xf32>,
    %c0_34 = arith.constant 0 : index
    %c0_35 = arith.constant 0 : index
    %62 = vector.load %arg11[%c0_34, %c0_35] : memref<256x128xf32, #tpu.memory_space<vmem>>, vector<256x128xf32>
    %cst_36 = arith.constant dense<0.000000e+00> : vector<8x128xf32>
    %63 = tpu.matmul %48, %62, %cst_36 {dimension_numbers = #tpu.dot_dimension_numbers<[1], [0], [0], [1], [0, 0, 1, 1], [], []>} : vector<8x256xf32>, vector<256x128xf32>, vector<8x128xf32> -> vector<8x128xf32>
    %c0_37 = arith.constant 0 : index
    %c0_38 = arith.constant 0 : index
    %c0_39 = arith.constant 0 : index
    %64 = vector.load %arg13[%c0_37, %c0_38, %c0_39] : memref<1x8x128xf32, #tpu.memory_space<vmem>>, vector<1x8x128xf32>
    %65 = vector.shape_cast %64 : vector<1x8x128xf32> to vector<8x128xf32>
    %66 = vector.shape_cast %63 : vector<8x128xf32> to vector<1x8x128xf32>
    tpu.vector_store %arg13[%c0_37, %c0_38, %c0_39], %66 {strides = array<i32>} : memref<1x8x128xf32, #tpu.memory_space<vmem>>, vector<1x8x128xf32>,
    %c15_i32 = arith.constant 15 : i32
    %67 = arith.cmpi eq, %arg0, %c15_i32 : i32
    %68 = arith.extui %67 : i1 to i32
    %c0_i32_40 = arith.constant 0 : i32
    %69 = arith.cmpi ne, %68, %c0_i32_40 : i32
    scf.if %69 {
      %c0_41 = arith.constant 0 : index
      %c0_42 = arith.constant 0 : index
      %70 = vector.load %arg16[%c0_41, %c0_42] : memref<8x256xf32, #tpu.memory_space<vmem>>, vector<8x256xf32>
      %c0_43 = arith.constant 0 : index
      %c0_44 = arith.constant 0 : index
      %71 = vector.load %arg9[%c0_43, %c0_44] : memref<256x256xf32, #tpu.memory_space<vmem>>, vector<256x256xf32>
      %cst_45 = arith.constant dense<0.000000e+00> : vector<8x256xf32>
      %72 = tpu.matmul %70, %71, %cst_45 {dimension_numbers = #tpu.dot_dimension_numbers<[1], [0], [0], [1], [0, 0, 1, 1], [], []>} : vector<8x256xf32>, vector<256x256xf32>, vector<8x256xf32> -> vector<8x256xf32>
      %c0_46 = arith.constant 0 : index
      %c0_47 = arith.constant 0 : index
      %73 = vector.load %arg10[%c0_46, %c0_47] : memref<1x256xf32, #tpu.memory_space<vmem>>, vector<1x256xf32>
      %74 = vector.broadcast %73 : vector<1x256xf32> to vector<8x256xf32>
      %75 = arith.addf %72, %74 : vector<8x256xf32>
      %76 = math.tanh %75 : vector<8x256xf32>
      %c0_48 = arith.constant 0 : index
      %c0_49 = arith.constant 0 : index
      %77 = vector.load %arg14[%c0_48, %c0_49] : memref<8x256xf32, #tpu.memory_space<vmem>>, vector<8x256xf32>
      tpu.vector_store %arg14[%c0_48, %c0_49], %76 {strides = array<i32>} : memref<8x256xf32, #tpu.memory_space<vmem>>, vector<8x256xf32>,
    } else {
    }
    return
  }
  func.func @transform_0(%arg0: i32) -> (i32, i32) {
    %c0_i32 = arith.constant 0 : i32
    %c0_i32_0 = arith.constant 0 : i32
    %c0_i32_1 = arith.constant 0 : i32
    return %c0_i32, %c0_i32_0 : i32, i32
  }
  func.func @transform_1(%arg0: i32) -> (i32, i32, i32) {
    %c0_i32 = arith.constant 0 : i32
    %c0_i32_0 = arith.constant 0 : i32
    %c0_i32_1 = arith.constant 0 : i32
    return %arg0, %c0_i32, %c0_i32_0 : i32, i32, i32
  }
  func.func @transform_2(%arg0: i32) -> (i32, i32) {
    %c0_i32 = arith.constant 0 : i32
    %c0_i32_0 = arith.constant 0 : i32
    %c0_i32_1 = arith.constant 0 : i32
    return %c0_i32, %c0_i32_0 : i32, i32
  }
  func.func @transform_3(%arg0: i32) -> (i32, i32) {
    %c0_i32 = arith.constant 0 : i32
    %c0_i32_0 = arith.constant 0 : i32
    %c0_i32_1 = arith.constant 0 : i32
    return %c0_i32, %c0_i32_0 : i32, i32
  }
  func.func @transform_4(%arg0: i32) -> (i32, i32) {
    %c0_i32 = arith.constant 0 : i32
    %c0_i32_0 = arith.constant 0 : i32
    %c0_i32_1 = arith.constant 0 : i32
    return %c0_i32, %c0_i32_0 : i32, i32
  }
  func.func @transform_5(%arg0: i32) -> (i32, i32) {
    %c0_i32 = arith.constant 0 : i32
    %c0_i32_0 = arith.constant 0 : i32
    %c0_i32_1 = arith.constant 0 : i32
    return %c0_i32, %c0_i32_0 : i32, i32
  }
  func.func @transform_6(%arg0: i32) -> (i32, i32) {
    %c0_i32 = arith.constant 0 : i32
    %c0_i32_0 = arith.constant 0 : i32
    %c0_i32_1 = arith.constant 0 : i32
    return %c0_i32, %c0_i32_0 : i32, i32
  }
  func.func @transform_7(%arg0: i32) -> (i32, i32) {
    %c0_i32 = arith.constant 0 : i32
    %c0_i32_0 = arith.constant 0 : i32
    %c0_i32_1 = arith.constant 0 : i32
    return %c0_i32, %c0_i32_0 : i32, i32
  }
  func.func @transform_8(%arg0: i32) -> (i32, i32) {
    %c0_i32 = arith.constant 0 : i32
    %c0_i32_0 = arith.constant 0 : i32
    %c0_i32_1 = arith.constant 0 : i32
    return %c0_i32, %c0_i32_0 : i32, i32
  }
  func.func @transform_9(%arg0: i32) -> (i32, i32) {
    %c0_i32 = arith.constant 0 : i32
    %c0_i32_0 = arith.constant 0 : i32
    %c0_i32_1 = arith.constant 0 : i32
    return %c0_i32, %c0_i32_0 : i32, i32
  }
  func.func @transform_10(%arg0: i32) -> (i32, i32) {
    %c0_i32 = arith.constant 0 : i32
    %c0_i32_0 = arith.constant 0 : i32
    %c0_i32_1 = arith.constant 0 : i32
    return %c0_i32, %c0_i32_0 : i32, i32
  }
  func.func @transform_11(%arg0: i32) -> (i32, i32, i32) {
    %c0_i32 = arith.constant 0 : i32
    %c0_i32_0 = arith.constant 0 : i32
    %c0_i32_1 = arith.constant 0 : i32
    return %arg0, %c0_i32, %c0_i32_0 : i32, i32, i32
  }
  func.func @transform_12(%arg0: i32) -> (i32, i32, i32) {
    %c0_i32 = arith.constant 0 : i32
    %c0_i32_0 = arith.constant 0 : i32
    %c0_i32_1 = arith.constant 0 : i32
    return %arg0, %c0_i32, %c0_i32_0 : i32, i32, i32
  }
  func.func @transform_13(%arg0: i32) -> (i32, i32) {
    %c0_i32 = arith.constant 0 : i32
    %c0_i32_0 = arith.constant 0 : i32
    %c0_i32_1 = arith.constant 0 : i32
    return %c0_i32, %c0_i32_0 : i32, i32
  }
}

module attributes {stable_mosaic.version = 11 : i64} {
  func.func @_decoder_kernel(%arg0: i32, %arg1: memref<8x1024xf32, #tpu.memory_space<vmem>>, %arg2: memref<8x256xf32, #tpu.memory_space<vmem>>, %arg3: memref<16x8x256xf32, #tpu.memory_space<vmem>>, %arg4: memref<16x8x128xf32, #tpu.memory_space<vmem>>, %arg5: memref<16x8xf32, #tpu.memory_space<vmem>>, %arg6: memref<1024x384xf32, #tpu.memory_space<vmem>>, %arg7: memref<256x128xf32, #tpu.memory_space<vmem>>, %arg8: memref<1x128xf32, #tpu.memory_space<vmem>>, %arg9: memref<384x768xf32, #tpu.memory_space<vmem>>, %arg10: memref<256x768xf32, #tpu.memory_space<vmem>>, %arg11: memref<256x768xf32, #tpu.memory_space<vmem>>, %arg12: memref<1x768xf32, #tpu.memory_space<vmem>>, %arg13: memref<1x768xf32, #tpu.memory_space<vmem>>, %arg14: memref<256x1024xf32, #tpu.memory_space<vmem>>, %arg15: memref<256x1024xf32, #tpu.memory_space<vmem>>, %arg16: memref<1x1024xf32, #tpu.memory_space<vmem>>, %arg17: memref<1x8x1024xf32, #tpu.memory_space<vmem>>, %arg18: memref<8x256xf32, #tpu.memory_space<vmem>>, %arg19: memref<8x1024xf32, #tpu.memory_space<vmem>>) attributes {dimension_semantics = [#tpu.dimension_semantics<arbitrary>], iteration_bounds = array<i64: 7>, scalar_prefetch = 0 : i64, scratch_operands = 2 : i64, tpu.core_type = #tpu.core_type<tc>, window_params = [{pipeline_mode = #tpu.pipeline_mode<synchronous>, transform_indices = @transform_0, window_bounds = array<i64: 8, 1024>}, {pipeline_mode = #tpu.pipeline_mode<synchronous>, transform_indices = @transform_1, window_bounds = array<i64: 8, 256>}, {pipeline_mode = #tpu.pipeline_mode<synchronous>, transform_indices = @transform_2, window_bounds = array<i64: 16, 8, 256>}, {pipeline_mode = #tpu.pipeline_mode<synchronous>, transform_indices = @transform_3, window_bounds = array<i64: 16, 8, 128>}, {pipeline_mode = #tpu.pipeline_mode<synchronous>, transform_indices = @transform_4, window_bounds = array<i64: 16, 8>}, {pipeline_mode = #tpu.pipeline_mode<synchronous>, transform_indices = @transform_5, window_bounds = array<i64: 1024, 384>}, {pipeline_mode = #tpu.pipeline_mode<synchronous>, transform_indices = @transform_6, window_bounds = array<i64: 256, 128>}, {pipeline_mode = #tpu.pipeline_mode<synchronous>, transform_indices = @transform_7, window_bounds = array<i64: 1, 128>}, {pipeline_mode = #tpu.pipeline_mode<synchronous>, transform_indices = @transform_8, window_bounds = array<i64: 384, 768>}, {pipeline_mode = #tpu.pipeline_mode<synchronous>, transform_indices = @transform_9, window_bounds = array<i64: 256, 768>}, {pipeline_mode = #tpu.pipeline_mode<synchronous>, transform_indices = @transform_10, window_bounds = array<i64: 256, 768>}, {pipeline_mode = #tpu.pipeline_mode<synchronous>, transform_indices = @transform_11, window_bounds = array<i64: 1, 768>}, {pipeline_mode = #tpu.pipeline_mode<synchronous>, transform_indices = @transform_12, window_bounds = array<i64: 1, 768>}, {pipeline_mode = #tpu.pipeline_mode<synchronous>, transform_indices = @transform_13, window_bounds = array<i64: 256, 1024>}, {pipeline_mode = #tpu.pipeline_mode<synchronous>, transform_indices = @transform_14, window_bounds = array<i64: 256, 1024>}, {pipeline_mode = #tpu.pipeline_mode<synchronous>, transform_indices = @transform_15, window_bounds = array<i64: 1, 1024>}, {transform_indices = @transform_16, window_bounds = array<i64: 1, 8, 1024>}]} {
    %c0_i32 = arith.constant 0 : i32
    %0 = arith.cmpi eq, %arg0, %c0_i32 : i32
    %1 = arith.extui %0 : i1 to i32
    %c0_i32_0 = arith.constant 0 : i32
    %2 = arith.cmpi ne, %1, %c0_i32_0 : i32
    scf.if %2 {
      %c0_59 = arith.constant 0 : index
      %c0_60 = arith.constant 0 : index
      %108 = vector.load %arg2[%c0_59, %c0_60] : memref<8x256xf32, #tpu.memory_space<vmem>>, vector<8x256xf32>
      %c0_61 = arith.constant 0 : index
      %c0_62 = arith.constant 0 : index
      %109 = vector.load %arg18[%c0_61, %c0_62] : memref<8x256xf32, #tpu.memory_space<vmem>>, vector<8x256xf32>
      tpu.vector_store %arg18[%c0_61, %c0_62], %108 {strides = array<i32>} : memref<8x256xf32, #tpu.memory_space<vmem>>, vector<8x256xf32>,
      %c0_63 = arith.constant 0 : index
      %c0_64 = arith.constant 0 : index
      %110 = vector.load %arg1[%c0_63, %c0_64] : memref<8x1024xf32, #tpu.memory_space<vmem>>, vector<8x1024xf32>
      %c0_65 = arith.constant 0 : index
      %c0_66 = arith.constant 0 : index
      %111 = vector.load %arg19[%c0_65, %c0_66] : memref<8x1024xf32, #tpu.memory_space<vmem>>, vector<8x1024xf32>
      tpu.vector_store %arg19[%c0_65, %c0_66], %110 {strides = array<i32>} : memref<8x1024xf32, #tpu.memory_space<vmem>>, vector<8x1024xf32>,
    } else {
    }
    %c0 = arith.constant 0 : index
    %c0_1 = arith.constant 0 : index
    %3 = vector.load %arg18[%c0, %c0_1] : memref<8x256xf32, #tpu.memory_space<vmem>>, vector<8x256xf32>
    %c0_2 = arith.constant 0 : index
    %c0_3 = arith.constant 0 : index
    %4 = vector.load %arg7[%c0_2, %c0_3] : memref<256x128xf32, #tpu.memory_space<vmem>>, vector<256x128xf32>
    %cst = arith.constant dense<0.000000e+00> : vector<8x128xf32>
    %5 = tpu.matmul %3, %4, %cst {dimension_numbers = #tpu.dot_dimension_numbers<[1], [0], [0], [1], [0, 0, 1, 1], [], []>} : vector<8x256xf32>, vector<256x128xf32>, vector<8x128xf32> -> vector<8x128xf32>
    %c0_4 = arith.constant 0 : index
    %c0_5 = arith.constant 0 : index
    %c0_6 = arith.constant 0 : index
    %6 = vector.load %arg4[%c0_4, %c0_5, %c0_6] : memref<16x8x128xf32, #tpu.memory_space<vmem>>, vector<16x8x128xf32>
    %7 = vector.shape_cast %5 : vector<8x128xf32> to vector<1x8x128xf32>
    %8 = vector.broadcast %7 : vector<1x8x128xf32> to vector<16x8x128xf32>
    %9 = arith.addf %6, %8 : vector<16x8x128xf32>
    %10 = math.tanh %9 : vector<16x8x128xf32>
    %c0_7 = arith.constant 0 : index
    %c0_8 = arith.constant 0 : index
    %11 = vector.load %arg8[%c0_7, %c0_8] : memref<1x128xf32, #tpu.memory_space<vmem>>, vector<1x128xf32>
    %12 = vector.shape_cast %11 : vector<1x128xf32> to vector<1x1x128xf32>
    %13 = vector.broadcast %12 : vector<1x1x128xf32> to vector<16x8x128xf32>
    %14 = arith.mulf %10, %13 : vector<16x8x128xf32>
    %cst_9 = arith.constant dense<0.000000e+00> : vector<16x8xf32>
    %15 = vector.multi_reduction <add>, %14, %cst_9 [2] : vector<16x8x128xf32> to vector<16x8xf32>
    %c0_10 = arith.constant 0 : index
    %c0_11 = arith.constant 0 : index
    %16 = vector.load %arg5[%c0_10, %c0_11] : memref<16x8xf32, #tpu.memory_space<vmem>>, vector<16x8xf32>
    %cst_12 = arith.constant 0.000000e+00 : f32
    %17 = vector.broadcast %cst_12 : f32 to vector<16x8xf32>
    %18 = arith.cmpf ogt, %16, %17 : vector<16x8xf32>
    %cst_13 = arith.constant -1.000000e+30 : f32
    %19 = vector.broadcast %cst_13 : f32 to vector<16x8xf32>
    %20 = arith.select %18, %15, %19 : vector<16x8xi1>, vector<16x8xf32>
    %cst_14 = arith.constant dense<0xFF800000> : vector<8xf32>
    %21 = vector.multi_reduction <maximumf>, %20, %cst_14 [0] : vector<16x8xf32> to vector<8xf32>
    %22 = vector.shape_cast %21 : vector<8xf32> to vector<1x8xf32>
    %23 = vector.broadcast %22 : vector<1x8xf32> to vector<16x8xf32>
    %24 = arith.subf %20, %23 : vector<16x8xf32>
    %25 = math.exp %24 : vector<16x8xf32>
    %26 = arith.mulf %25, %16 : vector<16x8xf32>
    %cst_15 = arith.constant dense<0.000000e+00> : vector<8xf32>
    %27 = vector.multi_reduction <add>, %26, %cst_15 [0] : vector<16x8xf32> to vector<8xf32>
    %28 = vector.shape_cast %27 : vector<8xf32> to vector<1x8xf32>
    %29 = vector.broadcast %28 : vector<1x8xf32> to vector<16x8xf32>
    %30 = arith.divf %26, %29 : vector<16x8xf32>
    %31 = vector.shape_cast %30 : vector<16x8xf32> to vector<16x8x1xf32>
    %c0_16 = arith.constant 0 : index
    %c0_17 = arith.constant 0 : index
    %c0_18 = arith.constant 0 : index
    %32 = vector.load %arg3[%c0_16, %c0_17, %c0_18] : memref<16x8x256xf32, #tpu.memory_space<vmem>>, vector<16x8x256xf32>
    %33 = vector.broadcast %31 : vector<16x8x1xf32> to vector<16x8x256xf32>
    %34 = arith.mulf %33, %32 : vector<16x8x256xf32>
    %cst_19 = arith.constant dense<0.000000e+00> : vector<8x256xf32>
    %35 = vector.multi_reduction <add>, %34, %cst_19 [0] : vector<16x8x256xf32> to vector<8x256xf32>
    %c0_20 = arith.constant 0 : index
    %c0_21 = arith.constant 0 : index
    %36 = vector.load %arg19[%c0_20, %c0_21] : memref<8x1024xf32, #tpu.memory_space<vmem>>, vector<8x1024xf32>
    %c0_22 = arith.constant 0 : index
    %c0_23 = arith.constant 0 : index
    %37 = vector.load %arg6[%c0_22, %c0_23] : memref<1024x384xf32, #tpu.memory_space<vmem>>, vector<1024x384xf32>
    %cst_24 = arith.constant dense<0.000000e+00> : vector<8x384xf32>
    %38 = tpu.matmul %36, %37, %cst_24 {dimension_numbers = #tpu.dot_dimension_numbers<[1], [0], [0], [1], [0, 0, 1, 1], [], []>} : vector<8x1024xf32>, vector<1024x384xf32>, vector<8x384xf32> -> vector<8x384xf32>
    %c0_25 = arith.constant 0 : index
    %c0_26 = arith.constant 0 : index
    %39 = vector.load %arg9[%c0_25, %c0_26] : memref<384x768xf32, #tpu.memory_space<vmem>>, vector<384x768xf32>
    %cst_27 = arith.constant dense<0.000000e+00> : vector<8x768xf32>
    %40 = tpu.matmul %38, %39, %cst_27 {dimension_numbers = #tpu.dot_dimension_numbers<[1], [0], [0], [1], [0, 0, 1, 1], [], []>} : vector<8x384xf32>, vector<384x768xf32>, vector<8x768xf32> -> vector<8x768xf32>
    %c0_28 = arith.constant 0 : index
    %c0_29 = arith.constant 0 : index
    %41 = vector.load %arg10[%c0_28, %c0_29] : memref<256x768xf32, #tpu.memory_space<vmem>>, vector<256x768xf32>
    %cst_30 = arith.constant dense<0.000000e+00> : vector<8x768xf32>
    %42 = tpu.matmul %35, %41, %cst_30 {dimension_numbers = #tpu.dot_dimension_numbers<[1], [0], [0], [1], [0, 0, 1, 1], [], []>} : vector<8x256xf32>, vector<256x768xf32>, vector<8x768xf32> -> vector<8x768xf32>
    %43 = arith.addf %40, %42 : vector<8x768xf32>
    %c0_31 = arith.constant 0 : index
    %c0_32 = arith.constant 0 : index
    %44 = vector.load %arg12[%c0_31, %c0_32] : memref<1x768xf32, #tpu.memory_space<vmem>>, vector<1x768xf32>
    %45 = vector.broadcast %44 : vector<1x768xf32> to vector<8x768xf32>
    %46 = arith.addf %43, %45 : vector<8x768xf32>
    %c0_33 = arith.constant 0 : index
    %c0_34 = arith.constant 0 : index
    %47 = vector.load %arg11[%c0_33, %c0_34] : memref<256x768xf32, #tpu.memory_space<vmem>>, vector<256x768xf32>
    %cst_35 = arith.constant dense<0.000000e+00> : vector<8x768xf32>
    %48 = tpu.matmul %3, %47, %cst_35 {dimension_numbers = #tpu.dot_dimension_numbers<[1], [0], [0], [1], [0, 0, 1, 1], [], []>} : vector<8x256xf32>, vector<256x768xf32>, vector<8x768xf32> -> vector<8x768xf32>
    %c0_36 = arith.constant 0 : index
    %c0_37 = arith.constant 0 : index
    %49 = vector.load %arg13[%c0_36, %c0_37] : memref<1x768xf32, #tpu.memory_space<vmem>>, vector<1x768xf32>
    %50 = vector.broadcast %49 : vector<1x768xf32> to vector<8x768xf32>
    %51 = arith.addf %48, %50 : vector<8x768xf32>
    %52 = vector.extract_strided_slice %46 {offsets = [0, 0], sizes = [8, 256], strides = [1, 1]} : vector<8x768xf32> to vector<8x256xf32>
    %53 = vector.extract_strided_slice %51 {offsets = [0, 0], sizes = [8, 256], strides = [1, 1]} : vector<8x768xf32> to vector<8x256xf32>
    %54 = arith.addf %52, %53 : vector<8x256xf32>
    %55 = arith.negf %54 : vector<8x256xf32>
    %56 = math.exp %55 : vector<8x256xf32>
    %cst_38 = arith.constant 1.000000e+00 : f32
    %57 = vector.broadcast %cst_38 : f32 to vector<8x256xf32>
    %58 = arith.addf %57, %56 : vector<8x256xf32>
    %59 = arith.divf %57, %58 : vector<8x256xf32>
    %60 = vector.extract_strided_slice %46 {offsets = [0, 256], sizes = [8, 256], strides = [1, 1]} : vector<8x768xf32> to vector<8x256xf32>
    %61 = vector.extract_strided_slice %51 {offsets = [0, 256], sizes = [8, 256], strides = [1, 1]} : vector<8x768xf32> to vector<8x256xf32>
    %62 = arith.addf %60, %61 : vector<8x256xf32>
    %63 = arith.negf %62 : vector<8x256xf32>
    %64 = math.exp %63 : vector<8x256xf32>
    %cst_39 = arith.constant 1.000000e+00 : f32
    %65 = vector.broadcast %cst_39 : f32 to vector<8x256xf32>
    %66 = arith.addf %65, %64 : vector<8x256xf32>
    %67 = arith.divf %65, %66 : vector<8x256xf32>
    %68 = vector.extract_strided_slice %46 {offsets = [0, 512], sizes = [8, 256], strides = [1, 1]} : vector<8x768xf32> to vector<8x256xf32>
    %69 = vector.extract_strided_slice %51 {offsets = [0, 512], sizes = [8, 256], strides = [1, 1]} : vector<8x768xf32> to vector<8x256xf32>
    %70 = arith.mulf %59, %69 : vector<8x256xf32>
    %71 = arith.addf %68, %70 : vector<8x256xf32>
    %72 = math.tanh %71 : vector<8x256xf32>
    %cst_40 = arith.constant 1.000000e+00 : f32
    %73 = vector.broadcast %cst_40 : f32 to vector<8x256xf32>
    %74 = arith.subf %73, %67 : vector<8x256xf32>
    %75 = arith.mulf %74, %72 : vector<8x256xf32>
    %76 = arith.mulf %67, %3 : vector<8x256xf32>
    %77 = arith.addf %75, %76 : vector<8x256xf32>
    %c0_41 = arith.constant 0 : index
    %c0_42 = arith.constant 0 : index
    %78 = vector.load %arg18[%c0_41, %c0_42] : memref<8x256xf32, #tpu.memory_space<vmem>>, vector<8x256xf32>
    tpu.vector_store %arg18[%c0_41, %c0_42], %77 {strides = array<i32>} : memref<8x256xf32, #tpu.memory_space<vmem>>, vector<8x256xf32>,
    %c0_43 = arith.constant 0 : index
    %c0_44 = arith.constant 0 : index
    %79 = vector.load %arg14[%c0_43, %c0_44] : memref<256x1024xf32, #tpu.memory_space<vmem>>, vector<256x1024xf32>
    %cst_45 = arith.constant dense<0.000000e+00> : vector<8x1024xf32>
    %80 = tpu.matmul %77, %79, %cst_45 {dimension_numbers = #tpu.dot_dimension_numbers<[1], [0], [0], [1], [0, 0, 1, 1], [], []>} : vector<8x256xf32>, vector<256x1024xf32>, vector<8x1024xf32> -> vector<8x1024xf32>
    %c0_46 = arith.constant 0 : index
    %c0_47 = arith.constant 0 : index
    %81 = vector.load %arg15[%c0_46, %c0_47] : memref<256x1024xf32, #tpu.memory_space<vmem>>, vector<256x1024xf32>
    %cst_48 = arith.constant dense<0.000000e+00> : vector<8x1024xf32>
    %82 = tpu.matmul %35, %81, %cst_48 {dimension_numbers = #tpu.dot_dimension_numbers<[1], [0], [0], [1], [0, 0, 1, 1], [], []>} : vector<8x256xf32>, vector<256x1024xf32>, vector<8x1024xf32> -> vector<8x1024xf32>
    %83 = arith.addf %80, %82 : vector<8x1024xf32>
    %c0_49 = arith.constant 0 : index
    %c0_50 = arith.constant 0 : index
    %84 = vector.load %arg16[%c0_49, %c0_50] : memref<1x1024xf32, #tpu.memory_space<vmem>>, vector<1x1024xf32>
    %85 = vector.broadcast %84 : vector<1x1024xf32> to vector<8x1024xf32>
    %86 = arith.addf %83, %85 : vector<8x1024xf32>
    %c0_51 = arith.constant 0 : index
    %c0_52 = arith.constant 0 : index
    %c0_53 = arith.constant 0 : index
    %87 = vector.load %arg17[%c0_51, %c0_52, %c0_53] : memref<1x8x1024xf32, #tpu.memory_space<vmem>>, vector<1x8x1024xf32>
    %88 = vector.shape_cast %87 : vector<1x8x1024xf32> to vector<8x1024xf32>
    %89 = vector.shape_cast %86 : vector<8x1024xf32> to vector<1x8x1024xf32>
    tpu.vector_store %arg17[%c0_51, %c0_52, %c0_53], %89 {strides = array<i32>} : memref<1x8x1024xf32, #tpu.memory_space<vmem>>, vector<1x8x1024xf32>,
    %90 = tpu.iota {dimensions = array<i32: 1>} : vector<8x1024xi32>
    %c1000_i32 = arith.constant 1000 : i32
    %91 = vector.broadcast %c1000_i32 : i32 to vector<8x1024xi32>
    %92 = arith.cmpi slt, %90, %91 : vector<8x1024xi32>
    %cst_54 = arith.constant -1.000000e+30 : f32
    %93 = vector.broadcast %cst_54 : f32 to vector<8x1024xf32>
    %94 = arith.select %92, %86, %93 : vector<8x1024xi1>, vector<8x1024xf32>
    %cst_55 = arith.constant dense<0xFF800000> : vector<8xf32>
    %95 = vector.multi_reduction <maximumf>, %94, %cst_55 [1] : vector<8x1024xf32> to vector<8xf32>
    %96 = vector.shape_cast %95 : vector<8xf32> to vector<8x1xf32>
    %97 = vector.broadcast %96 : vector<8x1xf32> to vector<8x1024xf32>
    %98 = arith.cmpf oeq, %94, %97 : vector<8x1024xf32>
    %c1024_i32 = arith.constant 1024 : i32
    %99 = vector.broadcast %c1024_i32 : i32 to vector<8x1024xi32>
    %100 = arith.select %98, %90, %99 : vector<8x1024xi1>, vector<8x1024xi32>
    %cst_56 = arith.constant dense<2147483647> : vector<8xi32>
    %101 = vector.multi_reduction <minsi>, %100, %cst_56 [1] : vector<8x1024xi32> to vector<8xi32>
    %102 = vector.shape_cast %101 : vector<8xi32> to vector<8x1xi32>
    %103 = vector.broadcast %102 : vector<8x1xi32> to vector<8x1024xi32>
    %104 = arith.cmpi eq, %90, %103 : vector<8x1024xi32>
    %105 = arith.extui %104 : vector<8x1024xi1> to vector<8x1024xi32>
    %106 = arith.sitofp %105 : vector<8x1024xi32> to vector<8x1024xf32>
    %c0_57 = arith.constant 0 : index
    %c0_58 = arith.constant 0 : index
    %107 = vector.load %arg19[%c0_57, %c0_58] : memref<8x1024xf32, #tpu.memory_space<vmem>>, vector<8x1024xf32>
    tpu.vector_store %arg19[%c0_57, %c0_58], %106 {strides = array<i32>} : memref<8x1024xf32, #tpu.memory_space<vmem>>, vector<8x1024xf32>,
    return
  }
  func.func @transform_0(%arg0: i32) -> (i32, i32) {
    %c0_i32 = arith.constant 0 : i32
    %c0_i32_0 = arith.constant 0 : i32
    %c0_i32_1 = arith.constant 0 : i32
    return %c0_i32, %c0_i32_0 : i32, i32
  }
  func.func @transform_1(%arg0: i32) -> (i32, i32) {
    %c0_i32 = arith.constant 0 : i32
    %c0_i32_0 = arith.constant 0 : i32
    %c0_i32_1 = arith.constant 0 : i32
    return %c0_i32, %c0_i32_0 : i32, i32
  }
  func.func @transform_2(%arg0: i32) -> (i32, i32, i32) {
    %c0_i32 = arith.constant 0 : i32
    %c0_i32_0 = arith.constant 0 : i32
    %c0_i32_1 = arith.constant 0 : i32
    %c0_i32_2 = arith.constant 0 : i32
    return %c0_i32, %c0_i32_0, %c0_i32_1 : i32, i32, i32
  }
  func.func @transform_3(%arg0: i32) -> (i32, i32, i32) {
    %c0_i32 = arith.constant 0 : i32
    %c0_i32_0 = arith.constant 0 : i32
    %c0_i32_1 = arith.constant 0 : i32
    %c0_i32_2 = arith.constant 0 : i32
    return %c0_i32, %c0_i32_0, %c0_i32_1 : i32, i32, i32
  }
  func.func @transform_4(%arg0: i32) -> (i32, i32) {
    %c0_i32 = arith.constant 0 : i32
    %c0_i32_0 = arith.constant 0 : i32
    %c0_i32_1 = arith.constant 0 : i32
    return %c0_i32, %c0_i32_0 : i32, i32
  }
  func.func @transform_5(%arg0: i32) -> (i32, i32) {
    %c0_i32 = arith.constant 0 : i32
    %c0_i32_0 = arith.constant 0 : i32
    %c0_i32_1 = arith.constant 0 : i32
    return %c0_i32, %c0_i32_0 : i32, i32
  }
  func.func @transform_6(%arg0: i32) -> (i32, i32) {
    %c0_i32 = arith.constant 0 : i32
    %c0_i32_0 = arith.constant 0 : i32
    %c0_i32_1 = arith.constant 0 : i32
    return %c0_i32, %c0_i32_0 : i32, i32
  }
  func.func @transform_7(%arg0: i32) -> (i32, i32) {
    %c0_i32 = arith.constant 0 : i32
    %c0_i32_0 = arith.constant 0 : i32
    %c0_i32_1 = arith.constant 0 : i32
    return %c0_i32, %c0_i32_0 : i32, i32
  }
  func.func @transform_8(%arg0: i32) -> (i32, i32) {
    %c0_i32 = arith.constant 0 : i32
    %c0_i32_0 = arith.constant 0 : i32
    %c0_i32_1 = arith.constant 0 : i32
    return %c0_i32, %c0_i32_0 : i32, i32
  }
  func.func @transform_9(%arg0: i32) -> (i32, i32) {
    %c0_i32 = arith.constant 0 : i32
    %c0_i32_0 = arith.constant 0 : i32
    %c0_i32_1 = arith.constant 0 : i32
    return %c0_i32, %c0_i32_0 : i32, i32
  }
  func.func @transform_10(%arg0: i32) -> (i32, i32) {
    %c0_i32 = arith.constant 0 : i32
    %c0_i32_0 = arith.constant 0 : i32
    %c0_i32_1 = arith.constant 0 : i32
    return %c0_i32, %c0_i32_0 : i32, i32
  }
  func.func @transform_11(%arg0: i32) -> (i32, i32) {
    %c0_i32 = arith.constant 0 : i32
    %c0_i32_0 = arith.constant 0 : i32
    %c0_i32_1 = arith.constant 0 : i32
    return %c0_i32, %c0_i32_0 : i32, i32
  }
  func.func @transform_12(%arg0: i32) -> (i32, i32) {
    %c0_i32 = arith.constant 0 : i32
    %c0_i32_0 = arith.constant 0 : i32
    %c0_i32_1 = arith.constant 0 : i32
    return %c0_i32, %c0_i32_0 : i32, i32
  }
  func.func @transform_13(%arg0: i32) -> (i32, i32) {
    %c0_i32 = arith.constant 0 : i32
    %c0_i32_0 = arith.constant 0 : i32
    %c0_i32_1 = arith.constant 0 : i32
    return %c0_i32, %c0_i32_0 : i32, i32
  }
  func.func @transform_14(%arg0: i32) -> (i32, i32) {
    %c0_i32 = arith.constant 0 : i32
    %c0_i32_0 = arith.constant 0 : i32
    %c0_i32_1 = arith.constant 0 : i32
    return %c0_i32, %c0_i32_0 : i32, i32
  }
  func.func @transform_15(%arg0: i32) -> (i32, i32) {
    %c0_i32 = arith.constant 0 : i32
    %c0_i32_0 = arith.constant 0 : i32
    %c0_i32_1 = arith.constant 0 : i32
    return %c0_i32, %c0_i32_0 : i32, i32
  }
  func.func @transform_16(%arg0: i32) -> (i32, i32, i32) {
    %c0_i32 = arith.constant 0 : i32
    %c0_i32_0 = arith.constant 0 : i32
    %c0_i32_1 = arith.constant 0 : i32
    return %arg0, %c0_i32, %c0_i32_0 : i32, i32, i32
  }
}

</mosaic_0001>

<llo_original>
// kernel: forward.2
$region0: #{forward.2}
  #allocation0 [shape = 'u32[]', space=smem, size = 0x4, offset = 0x4, fixed_abs, tag = 'smem constant byte address 0x4 - core index']
  #allocation1 [shape = 'u32[72,128]{1,0:T(1,128)}', space=vmem, size = 0x9000, scoped, tag = 'internal scratch']
  #allocation2 [shape = 'f32[8,256]{1,0:T(8,128)}', space=vmem, size = 0x2000, scoped, tag = 'scratch operand']
  #allocation3 [shape = 'f32[8,256]{1,0:T(8,128)}', space=vmem, size = 0x2000, scoped, tag = 'scratch operand']
  %s0 = inlined_call_operand.vmem [shape: s32[8,1], index: 0, kind: input, shape index: {}]
  %s1 = inlined_call_operand.vmem [shape: f32[16,8,128], index: 1, kind: input, shape index: {}]
  %s2 = inlined_call_operand.hbm [shape: f32[128,256], index: 2, kind: input, shape index: {}]
  %s3 = inlined_call_operand.hbm [shape: f32[1,256], index: 3, kind: input, shape index: {}]
  %s4 = inlined_call_operand.hbm [shape: f32[256,768], index: 4, kind: input, shape index: {}]
  %s5 = inlined_call_operand.hbm [shape: f32[256,768], index: 5, kind: input, shape index: {}]
  %s6 = inlined_call_operand.hbm [shape: f32[1,768], index: 6, kind: input, shape index: {}]
  %s7 = inlined_call_operand.hbm [shape: f32[1,768], index: 7, kind: input, shape index: {}]
  %s8 = inlined_call_operand.hbm [shape: f32[256,256], index: 8, kind: input, shape index: {}]
  %s9 = inlined_call_operand.hbm [shape: f32[1,256], index: 9, kind: input, shape index: {}]
  %s10 = inlined_call_operand.hbm [shape: f32[256,128], index: 10, kind: input, shape index: {}]
  %s11 = inlined_call_operand.vmem [shape: f32[16,8,256], index: 11, kind: output, shape index: {0}]
  %s12 = inlined_call_operand.vmem [shape: f32[16,8,128], index: 12, kind: output, shape index: {1}]
  %s13 = inlined_call_operand.vmem [shape: f32[8,256], index: 13, kind: output, shape index: {2}]
  %14 = xla_tuple %s11, %s12, %s13
  %s15 = sld [smem:[#allocation0]]
  $region137: #{forward.2} parent=0
    _
  %s17 = ssub.s32 1, %s15
  %s18 = scalar_select 0, %s17, %s15
  $region1: #{forward.2} parent=0
    #allocation4 [shape = 'u8[131072]{0}', space=vmem, size = 0x20000, scoped, tag = 'input window, operand 2, single buffered']
    #allocation5 [shape = 's32[2]{0}', space=sflag, size = 0x8, scoped, tag = 'scoped memory for forward.2']
    #allocation6 [shape = 'u8[1024]{0}', space=vmem, size = 0x400, scoped, tag = 'input window, operand 3, single buffered']
    #allocation7 [shape = 's32[1]{0}', space=sflag, size = 0x4, scoped, tag = 'scoped memory for forward.2']
    #allocation8 [shape = 'u8[786432]{0}', space=vmem, size = 0xc0000, scoped, tag = 'input window, operand 4, single buffered']
    #allocation9 [shape = 'u8[786432]{0}', space=vmem, size = 0xc0000, scoped, tag = 'input window, operand 5, single buffered']
    #allocation10 [shape = 's32[1]{0}', space=sflag, size = 0x4, scoped, tag = 'scoped memory for forward.2']
    #allocation11 [shape = 'u8[3072]{0}', space=vmem, size = 0xc00, scoped, tag = 'input window, operand 6, single buffered']
    #allocation12 [shape = 'u8[3072]{0}', space=vmem, size = 0xc00, scoped, tag = 'input window, operand 7, single buffered']
    #allocation13 [shape = 's32[1]{0}', space=sflag, size = 0x4, scoped, tag = 'scoped memory for forward.2']
    #allocation14 [shape = 'u8[262144]{0}', space=vmem, size = 0x40000, scoped, tag = 'input window, operand 8, single buffered']
    #allocation15 [shape = 'u8[1024]{0}', space=vmem, size = 0x400, scoped, tag = 'input window, operand 9, single buffered']
    #allocation16 [shape = 's32[1]{0}', space=sflag, size = 0x4, scoped, tag = 'scoped memory for forward.2']
    #allocation17 [shape = 'u8[131072]{0}', space=vmem, size = 0x20000, scoped, tag = 'input window, operand 10, single buffered']
    %19 = vsyncpa [#allocation5], 0
    %20 = vsyncpa [#allocation7], 0
    %21 = vsyncpa [#allocation10], 0
    %22 = vsyncpa [#allocation13], 0
    %23 = vsyncpa [#allocation16], 0
    loop: start=0, step=1, limit=18
    $region2: #{forward.2} parent=1 // loop_pre_header
      _
    $region3: #{forward.2} parent=1 // loop_header
      %s25 = sphi 0, %s29
      %p26 = scmp.ge.s32.totalorder %s25, 18
      %s33 = sphi 0, %s33
      %s35 = sphi 0, %s33
      %s36 = sphi 0, %s35
      %s50 = sphi 0, %s36
      %s56 = sphi 0, %s58
      %s59 = sphi 0, %s56
      %s60 = sphi 0, %s59
      %s76 = sphi 0, %s60
      %s80 = sphi 0, %s80
      %s82 = sphi 0, %s80
      %s83 = sphi 0, %s82
      %s97 = sphi 0, %s83
      %s101 = sphi 0, %s101
      %s103 = sphi 0, %s101
      %s104 = sphi 0, %s103
      %s118 = sphi 0, %s104
      %s122 = sphi 0, %s122
      %s124 = sphi 0, %s122
      %s125 = sphi 0, %s124
      %s139 = sphi 0, %s125
      %s143 = sphi 0, %s143
      %s145 = sphi 0, %s143
      %s146 = sphi 0, %s145
      %s160 = sphi 0, %s146
      %s164 = sphi 0, %s164
      %s166 = sphi 0, %s164
      %s167 = sphi 0, %s166
      %s181 = sphi 0, %s167
      %s185 = sphi 0, %s185
      %s187 = sphi 0, %s185
      %s188 = sphi 0, %s187
      %s202 = sphi 0, %s188
      %s206 = sphi 0, %s206
      %s208 = sphi 0, %s206
      %s209 = sphi 0, %s208
      %s223 = sphi 0, %s209
      %s227 = sphi 0, %s227
      %s229 = sphi 0, %s227
      %s230 = sphi 0, %s229
      %s244 = sphi 0, %s230
      %s248 = sphi 0, %s248
      %s250 = sphi 0, %s248
      %s251 = sphi 0, %s250
      %s265 = sphi 0, %s251
      %s271 = sphi 0, %s273
      %s274 = sphi 0, %s271
      %s275 = sphi 0, %s274
      %s291 = sphi 0, %s275
      %s297 = sphi 0, %s299
      %s300 = sphi 0, %s297
      %s301 = sphi 0, %s300
      %s317 = sphi 0, %s301
      %s321 = sphi 0, %s321
      %s323 = sphi 0, %s321
      %s324 = sphi 0, %s323
      %s338 = sphi 0, %s324
    $region4: #{forward.2} parent=1 // loop_header_branch
      %28 = sbr.rel (%p26) target = $region8
    $region5: #{forward.2} parent=1 // loop_body
      %s30 = ssub.s32 %s25, 1
      %s31 = ssub.s32 %s25, 2
      %s32 = sadd.s32 %s25, 1
      %s34 = sadd.s32 %s33, 1
      %p37 = scmp.eq.s32.totalorder %s25, 15
      %p38 = scmp.ne.s32.totalorder %s33, %s35
      %p39 = scmp.eq.s32.totalorder %s25, 0
      %p40 = por %p38, %p39
      %p41 = scmp.ne.s32.totalorder %s33, %s35
      %p42 = scmp.eq.s32.totalorder %s30, 15
      %p43 = por %p41, %p42
      %p44 = scmp.ne.s32.totalorder %s35, %s36
      %p45 = scmp.eq.s32.totalorder %s30, 0
      %p46 = por %p44, %p45
      %p47 = scmp.ne.s32.totalorder %s35, %s36
      %p48 = scmp.eq.s32.totalorder %s31, 15
      %p49 = por %p47, %p48
      %p51 = scmp.ne.s32.totalorder %s36, %s50
      %p52 = scmp.eq.s32.totalorder %s31, 0
      %p53 = por %p51, %p52
      %s54 = ssub.s32 %s25, %s32
      %p55 = scmp.eq.s32.totalorder %s54, 0
      %s57 = sadd.s32 %s56, 1
      %s58 = scalar_select %p55, %s56, %s57
      %p61 = pneg %p55
      %p62 = scmp.eq.s32.totalorder %s25, 15
      %p63 = por %p61, %p62
      %p64 = scmp.ne.s32.totalorder %s56, %s59
      %p65 = scmp.eq.s32.totalorder %s25, 0
      %p66 = por %p64, %p65
      %p67 = scmp.ne.s32.totalorder %s56, %s59
      %p68 = scmp.eq.s32.totalorder %s30, 15
      %p69 = por %p67, %p68
      %p70 = scmp.ne.s32.totalorder %s59, %s60
      %p71 = scmp.eq.s32.totalorder %s30, 0
      %p72 = por %p70, %p71
      %p73 = scmp.ne.s32.totalorder %s59, %s60
      %p74 = scmp.eq.s32.totalorder %s31, 15
      %p75 = por %p73, %p74
      %p77 = scmp.ne.s32.totalorder %s60, %s76
      %p78 = scmp.eq.s32.totalorder %s31, 0
      %p79 = por %p77, %p78
      %s81 = sadd.s32 %s80, 1
      %p84 = scmp.eq.s32.totalorder %s25, 15
      %p85 = scmp.ne.s32.totalorder %s80, %s82
      %p86 = scmp.eq.s32.totalorder %s25, 0
      %p87 = por %p85, %p86
      %p88 = scmp.ne.s32.totalorder %s80, %s82
      %p89 = scmp.eq.s32.totalorder %s30, 15
      %p90 = por %p88, %p89
      %p91 = scmp.ne.s32.totalorder %s82, %s83
      %p92 = scmp.eq.s32.totalorder %s30, 0
      %p93 = por %p91, %p92
      %p94 = scmp.ne.s32.totalorder %s82, %s83
      %p95 = scmp.eq.s32.totalorder %s31, 15
      %p96 = por %p94, %p95
      %p98 = scmp.ne.s32.totalorder %s83, %s97
      %p99 = scmp.eq.s32.totalorder %s31, 0
      %p100 = por %p98, %p99
      %s102 = sadd.s32 %s101, 1
      %p105 = scmp.eq.s32.totalorder %s25, 15
      %p106 = scmp.ne.s32.totalorder %s101, %s103
      %p107 = scmp.eq.s32.totalorder %s25, 0
      %p108 = por %p106, %p107
      %p109 = scmp.ne.s32.totalorder %s101, %s103
      %p110 = scmp.eq.s32.totalorder %s30, 15
      %p111 = por %p109, %p110
      %p112 = scmp.ne.s32.totalorder %s103, %s104
      %p113 = scmp.eq.s32.totalorder %s30, 0
      %p114 = por %p112, %p113
      %p115 = scmp.ne.s32.totalorder %s103, %s104
      %p116 = scmp.eq.s32.totalorder %s31, 15
      %p117 = por %p115, %p116
      %p119 = scmp.ne.s32.totalorder %s104, %s118
      %p120 = scmp.eq.s32.totalorder %s31, 0
      %p121 = por %p119, %p120
      %s123 = sadd.s32 %s122, 1
      %p126 = scmp.eq.s32.totalorder %s25, 15
      %p127 = scmp.ne.s32.totalorder %s122, %s124
      %p128 = scmp.eq.s32.totalorder %s25, 0
      %p129 = por %p127, %p128
      %p130 = scmp.ne.s32.totalorder %s122, %s124
      %p131 = scmp.eq.s32.totalorder %s30, 15
      %p132 = por %p130, %p131
      %p133 = scmp.ne.s32.totalorder %s124, %s125
      %p134 = scmp.eq.s32.totalorder %s30, 0
      %p135 = por %p133, %p134
      %p136 = scmp.ne.s32.totalorder %s124, %s125
      %p137 = scmp.eq.s32.totalorder %s31, 15
      %p138 = por %p136, %p137
      %p140 = scmp.ne.s32.totalorder %s125, %s139
      %p141 = scmp.eq.s32.totalorder %s31, 0
      %p142 = por %p140, %p141
      %s144 = sadd.s32 %s143, 1
      %p147 = scmp.eq.s32.totalorder %s25, 15
      %p148 = scmp.ne.s32.totalorder %s143, %s145
      %p149 = scmp.eq.s32.totalorder %s25, 0
      %p150 = por %p148, %p149
      %p151 = scmp.ne.s32.totalorder %s143, %s145
      %p152 = scmp.eq.s32.totalorder %s30, 15
      %p153 = por %p151, %p152
      %p154 = scmp.ne.s32.totalorder %s145, %s146
      %p155 = scmp.eq.s32.totalorder %s30, 0
      %p156 = por %p154, %p155
      %p157 = scmp.ne.s32.totalorder %s145, %s146
      %p158 = scmp.eq.s32.totalorder %s31, 15
      %p159 = por %p157, %p158
      %p161 = scmp.ne.s32.totalorder %s146, %s160
      %p162 = scmp.eq.s32.totalorder %s31, 0
      %p163 = por %p161, %p162
      %s165 = sadd.s32 %s164, 1
      %p168 = scmp.eq.s32.totalorder %s25, 15
      %p169 = scmp.ne.s32.totalorder %s164, %s166
      %p170 = scmp.eq.s32.totalorder %s25, 0
      %p171 = por %p169, %p170
      %p172 = scmp.ne.s32.totalorder %s164, %s166
      %p173 = scmp.eq.s32.totalorder %s30, 15
      %p174 = por %p172, %p173
      %p175 = scmp.ne.s32.totalorder %s166, %s167
      %p176 = scmp.eq.s32.totalorder %s30, 0
      %p177 = por %p175, %p176
      %p178 = scmp.ne.s32.totalorder %s166, %s167
      %p179 = scmp.eq.s32.totalorder %s31, 15
      %p180 = por %p178, %p179
      %p182 = scmp.ne.s32.totalorder %s167, %s181
      %p183 = scmp.eq.s32.totalorder %s31, 0
      %p184 = por %p182, %p183
      %s186 = sadd.s32 %s185, 1
      %p189 = scmp.eq.s32.totalorder %s25, 15
      %p190 = scmp.ne.s32.totalorder %s185, %s187
      %p191 = scmp.eq.s32.totalorder %s25, 0
      %p192 = por %p190, %p191
      %p193 = scmp.ne.s32.totalorder %s185, %s187
      %p194 = scmp.eq.s32.totalorder %s30, 15
      %p195 = por %p193, %p194
      %p196 = scmp.ne.s32.totalorder %s187, %s188
      %p197 = scmp.eq.s32.totalorder %s30, 0
      %p198 = por %p196, %p197
      %p199 = scmp.ne.s32.totalorder %s187, %s188
      %p200 = scmp.eq.s32.totalorder %s31, 15
      %p201 = por %p199, %p200
      %p203 = scmp.ne.s32.totalorder %s188, %s202
      %p204 = scmp.eq.s32.totalorder %s31, 0
      %p205 = por %p203, %p204
      %s207 = sadd.s32 %s206, 1
      %p210 = scmp.eq.s32.totalorder %s25, 15
      %p211 = scmp.ne.s32.totalorder %s206, %s208
      %p212 = scmp.eq.s32.totalorder %s25, 0
      %p213 = por %p211, %p212
      %p214 = scmp.ne.s32.totalorder %s206, %s208
      %p215 = scmp.eq.s32.totalorder %s30, 15
      %p216 = por %p214, %p215
      %p217 = scmp.ne.s32.totalorder %s208, %s209
      %p218 = scmp.eq.s32.totalorder %s30, 0
      %p219 = por %p217, %p218
      %p220 = scmp.ne.s32.totalorder %s208, %s209
      %p221 = scmp.eq.s32.totalorder %s31, 15
      %p222 = por %p220, %p221
      %p224 = scmp.ne.s32.totalorder %s209, %s223
      %p225 = scmp.eq.s32.totalorder %s31, 0
      %p226 = por %p224, %p225
      %s228 = sadd.s32 %s227, 1
      %p231 = scmp.eq.s32.totalorder %s25, 15
      %p232 = scmp.ne.s32.totalorder %s227, %s229
      %p233 = scmp.eq.s32.totalorder %s25, 0
      %p234 = por %p232, %p233
      %p235 = scmp.ne.s32.totalorder %s227, %s229
      %p236 = scmp.eq.s32.totalorder %s30, 15
      %p237 = por %p235, %p236
      %p238 = scmp.ne.s32.totalorder %s229, %s230
      %p239 = scmp.eq.s32.totalorder %s30, 0
      %p240 = por %p238, %p239
      %p241 = scmp.ne.s32.totalorder %s229, %s230
      %p242 = scmp.eq.s32.totalorder %s31, 15
      %p243 = por %p241, %p242
      %p245 = scmp.ne.s32.totalorder %s230, %s244
      %p246 = scmp.eq.s32.totalorder %s31, 0
      %p247 = por %p245, %p246
      %s249 = sadd.s32 %s248, 1
      %p252 = scmp.eq.s32.totalorder %s25, 15
      %p253 = scmp.ne.s32.totalorder %s248, %s250
      %p254 = scmp.eq.s32.totalorder %s25, 0
      %p255 = por %p253, %p254
      %p256 = scmp.ne.s32.totalorder %s248, %s250
      %p257 = scmp.eq.s32.totalorder %s30, 15
      %p258 = por %p256, %p257
      %p259 = scmp.ne.s32.totalorder %s250, %s251
      %p260 = scmp.eq.s32.totalorder %s30, 0
      %p261 = por %p259, %p260
      %p262 = scmp.ne.s32.totalorder %s250, %s251
      %p263 = scmp.eq.s32.totalorder %s31, 15
      %p264 = por %p262, %p263
      %p266 = scmp.ne.s32.totalorder %s251, %s265
      %p267 = scmp.eq.s32.totalorder %s31, 0
      %p268 = por %p266, %p267
      %s269 = ssub.s32 %s25, %s32
      %p270 = scmp.eq.s32.totalorder %s269, 0
      %s272 = sadd.s32 %s271, 1
      %s273 = scalar_select %p270, %s271, %s272
      %p276 = pneg %p270
      %p277 = scmp.eq.s32.totalorder %s25, 15
      %p278 = por %p276, %p277
      %p279 = scmp.ne.s32.totalorder %s271, %s274
      %p280 = scmp.eq.s32.totalorder %s25, 0
      %p281 = por %p279, %p280
      %p282 = scmp.ne.s32.totalorder %s271, %s274
      %p283 = scmp.eq.s32.totalorder %s30, 15
      %p284 = por %p282, %p283
      %p285 = scmp.ne.s32.totalorder %s274, %s275
      %p286 = scmp.eq.s32.totalorder %s30, 0
      %p287 = por %p285, %p286
      %p288 = scmp.ne.s32.totalorder %s274, %s275
      %p289 = scmp.eq.s32.totalorder %s31, 15
      %p290 = por %p288, %p289
      %p292 = scmp.ne.s32.totalorder %s275, %s291
      %p293 = scmp.eq.s32.totalorder %s31, 0
      %p294 = por %p292, %p293
      %s295 = ssub.s32 %s25, %s32
      %p296 = scmp.eq.s32.totalorder %s295, 0
      %s298 = sadd.s32 %s297, 1
      %s299 = scalar_select %p296, %s297, %s298
      %p302 = pneg %p296
      %p303 = scmp.eq.s32.totalorder %s25, 15
      %p304 = por %p302, %p303
      %p305 = scmp.ne.s32.totalorder %s297, %s300
      %p306 = scmp.eq.s32.totalorder %s25, 0
      %p307 = por %p305, %p306
      %p308 = scmp.ne.s32.totalorder %s297, %s300
      %p309 = scmp.eq.s32.totalorder %s30, 15
      %p310 = por %p308, %p309
      %p311 = scmp.ne.s32.totalorder %s300, %s301
      %p312 = scmp.eq.s32.totalorder %s30, 0
      %p313 = por %p311, %p312
      %p314 = scmp.ne.s32.totalorder %s300, %s301
      %p315 = scmp.eq.s32.totalorder %s31, 15
      %p316 = por %p314, %p315
      %p318 = scmp.ne.s32.totalorder %s301, %s317
      %p319 = scmp.eq.s32.totalorder %s31, 0
      %p320 = por %p318, %p319
      %s322 = sadd.s32 %s321, 1
      %p325 = scmp.eq.s32.totalorder %s25, 15
      %p326 = scmp.ne.s32.totalorder %s321, %s323
      %p327 = scmp.eq.s32.totalorder %s25, 0
      %p328 = por %p326, %p327
      %p329 = scmp.ne.s32.totalorder %s321, %s323
      %p330 = scmp.eq.s32.totalorder %s30, 15
      %p331 = por %p329, %p330
      %p332 = scmp.ne.s32.totalorder %s323, %s324
      %p333 = scmp.eq.s32.totalorder %s30, 0
      %p334 = por %p332, %p333
      %p335 = scmp.ne.s32.totalorder %s323, %s324
      %p336 = scmp.eq.s32.totalorder %s31, 15
      %p337 = por %p335, %p336
      %p339 = scmp.ne.s32.totalorder %s324, %s338
      %p340 = scmp.eq.s32.totalorder %s31, 0
      %p341 = por %p339, %p340
      %p342 = scmp.le.s32.totalorder 1, %s25
      %p343 = scmp.lt.s32.totalorder %s25, 17
      %p344 = pnand %p342, %p343
      %p345 = pneg %p344
      // Predicated region
      $region9: #{forward.2} parent=5 // pred_check
        _
      $region10: #{forward.2} parent=5 // pred_check_branch
        %347 = sbr.rel (%p344) target = $region12
      $region11: #{forward.2} parent=5 // pred_region
        %s348 = ssub.s32 %s25, 1
        // Predicated region
        $region13: #{forward.2} parent=11 // pred_check
          %p349 = pneg %p46
        $region14: #{forward.2} parent=11 // pred_check_branch
          %351 = sbr.rel (%p349) target = $region16
        $region15: #{forward.2} parent=11 // pred_region
          _
        $region16: #{forward.2} parent=11 // pred_fallthru
          _
        // Predicated region
        $region17: #{forward.2} parent=11 // pred_check
          %p352 = pneg %p93
        $region18: #{forward.2} parent=11 // pred_check_branch
          %354 = sbr.rel (%p352) target = $region20
        $region19: #{forward.2} parent=11 // pred_region
          %356 = vsyncadd [#allocation5], 0
          %s357 = sshll.u32 %s2, 4
          %s358 = int_to_ptr.hbm [resolvable:$true] %s357
          %s359 = sshll.u32 [#allocation4], 4
          %s360 = int_to_ptr.vmem [resolvable:$true] %s359
          %365 = dma.hbm_to_vmem [thread:$0]  %s358, 4096, %s360, [#allocation5], 256, 256, 16
        $region20: #{forward.2} parent=11 // pred_fallthru
          _
        // Predicated region
        $region21: #{forward.2} parent=11 // pred_check
          %p366 = pneg %p114
        $region22: #{forward.2} parent=11 // pred_check_branch
          %368 = sbr.rel (%p366) target = $region24
        $region23: #{forward.2} parent=11 // pred_region
          %370 = vsyncadd [#allocation7], 0
          %s372 = sshll.u32 %s3, 4
          %s373 = int_to_ptr.hbm [resolvable:$true] %s372
          %s374 = sshll.u32 [#allocation6], 4
          %s375 = int_to_ptr.vmem [resolvable:$true] %s374
          %377 = dma.hbm_to_vmem [thread:$0]  %s373, 32, %s375, [#allocation7]
        $region24: #{forward.2} parent=11 // pred_fallthru
          _
        // Predicated region
        $region25: #{forward.2} parent=11 // pred_check
          %p378 = pneg %p135
        $region26: #{forward.2} parent=11 // pred_check_branch
          %380 = sbr.rel (%p378) target = $region28
        $region27: #{forward.2} parent=11 // pred_region
          %382 = vsyncadd [#allocation7], 0
          %s383 = sshll.u32 %s4, 4
          %s384 = int_to_ptr.hbm [resolvable:$true] %s383
          %s385 = sshll.u32 [#allocation8], 4
          %s386 = int_to_ptr.vmem [resolvable:$true] %s385
          %391 = dma.hbm_to_vmem [thread:$0]  %s384, 24576, %s386, [#allocation7], 768, 768, 48
        $region28: #{forward.2} parent=11 // pred_fallthru
          _
        // Predicated region
        $region29: #{forward.2} parent=11 // pred_check
          %p392 = pneg %p156
        $region30: #{forward.2} parent=11 // pred_check_branch
          %394 = sbr.rel (%p392) target = $region32
        $region31: #{forward.2} parent=11 // pred_region
          %396 = vsyncadd [#allocation10], 0
          %s397 = sshll.u32 %s5, 4
          %s398 = int_to_ptr.hbm [resolvable:$true] %s397
          %s399 = sshll.u32 [#allocation9], 4
          %s400 = int_to_ptr.vmem [resolvable:$true] %s399
          %405 = dma.hbm_to_vmem [thread:$0]  %s398, 24576, %s400, [#allocation10], 768, 768, 48
        $region32: #{forward.2} parent=11 // pred_fallthru
          _
        // Predicated region
        $region33: #{forward.2} parent=11 // pred_check
          %p406 = pneg %p177
        $region34: #{forward.2} parent=11 // pred_check_branch
          %408 = sbr.rel (%p406) target = $region36
        $region35: #{forward.2} parent=11 // pred_region
          %410 = vsyncadd [#allocation10], 0
          %s412 = sshll.u32 %s6, 4
          %s413 = int_to_ptr.hbm [resolvable:$true] %s412
          %s414 = sshll.u32 [#allocation11], 4
          %s415 = int_to_ptr.vmem [resolvable:$true] %s414
          %417 = dma.hbm_to_vmem [thread:$0]  %s413, 96, %s415, [#allocation10]
        $region36: #{forward.2} parent=11 // pred_fallthru
          _
        // Predicated region
        $region37: #{forward.2} parent=11 // pred_check
          %p418 = pneg %p198
        $region38: #{forward.2} parent=11 // pred_check_branch
          %420 = sbr.rel (%p418) target = $region40
        $region39: #{forward.2} parent=11 // pred_region
          %422 = vsyncadd [#allocation13], 0
          %s424 = sshll.u32 %s7, 4
          %s425 = int_to_ptr.hbm [resolvable:$true] %s424
          %s426 = sshll.u32 [#allocation12], 4
          %s427 = int_to_ptr.vmem [resolvable:$true] %s426
          %429 = dma.hbm_to_vmem [thread:$0]  %s425, 96, %s427, [#allocation13]
        $region40: #{forward.2} parent=11 // pred_fallthru
          _
        // Predicated region
        $region41: #{forward.2} parent=11 // pred_check
          %p430 = pneg %p219
        $region42: #{forward.2} parent=11 // pred_check_branch
          %432 = sbr.rel (%p430) target = $region44
        $region43: #{forward.2} parent=11 // pred_region
          %434 = vsyncadd [#allocation13], 0
          %s435 = sshll.u32 %s8, 4
          %s436 = int_to_ptr.hbm [resolvable:$true] %s435
          %s437 = sshll.u32 [#allocation14], 4
          %s438 = int_to_ptr.vmem [resolvable:$true] %s437
          %443 = dma.hbm_to_vmem [thread:$0]  %s436, 8192, %s438, [#allocation13], 256, 256, 16
        $region44: #{forward.2} parent=11 // pred_fallthru
          _
        // Predicated region
        $region45: #{forward.2} parent=11 // pred_check
          %p444 = pneg %p240
        $region46: #{forward.2} parent=11 // pred_check_branch
          %446 = sbr.rel (%p444) target = $region48
        $region47: #{forward.2} parent=11 // pred_region
          %448 = vsyncadd [#allocation16], 0
          %s450 = sshll.u32 %s9, 4
          %s451 = int_to_ptr.hbm [resolvable:$true] %s450
          %s452 = sshll.u32 [#allocation15], 4
          %s453 = int_to_ptr.vmem [resolvable:$true] %s452
          %455 = dma.hbm_to_vmem [thread:$0]  %s451, 32, %s453, [#allocation16]
        $region48: #{forward.2} parent=11 // pred_fallthru
          _
        // Predicated region
        $region49: #{forward.2} parent=11 // pred_check
          %p456 = pneg %p261
        $region50: #{forward.2} parent=11 // pred_check_branch
          %458 = sbr.rel (%p456) target = $region52
        $region51: #{forward.2} parent=11 // pred_region
          %460 = vsyncadd [#allocation16], 0
          %s461 = sshll.u32 %s10, 4
          %s462 = int_to_ptr.hbm [resolvable:$true] %s461
          %s463 = sshll.u32 [#allocation17], 4
          %s464 = int_to_ptr.vmem [resolvable:$true] %s463
          %469 = dma.hbm_to_vmem [thread:$0]  %s462, 4096, %s464, [#allocation16], 128, 128, 8
        $region52: #{forward.2} parent=11 // pred_fallthru
          _
      $region12: #{forward.2} parent=5 // pred_fallthru
        _
      %p470 = scmp.lt.s32.totalorder %s25, 16
      // Predicated region
      $region53: #{forward.2} parent=5 // pred_check
        %p471 = pneg %p470
      $region54: #{forward.2} parent=5 // pred_check_branch
        %473 = sbr.rel (%p471) target = $region56
      $region55: #{forward.2} parent=5 // pred_region
        // Predicated region
        $region57: #{forward.2} parent=55 // pred_check
          %p474 = pneg %p66
        $region58: #{forward.2} parent=55 // pred_check_branch
          %476 = sbr.rel (%p474) target = $region60
        $region59: #{forward.2} parent=55 // pred_region
          %p477 = scmp.lt.s32.totalorder %s25, 15
          %s478 = scalar_select %p477, %s25, 15
          %s479 = smul.addr %s478, 8
          %s480 = scalar_lea.vmem %s1, %s479
        $region60: #{forward.2} parent=55 // pred_fallthru
          _
      $region56: #{forward.2} parent=5 // pred_fallthru
        _
      %p481 = scmp.le.s32.totalorder 1, %s25
      %p482 = scmp.lt.s32.totalorder %s25, 17
      %p483 = pnand %p481, %p482
      %p484 = pneg %p483
      // Predicated region
      $region61: #{forward.2} parent=5 // pred_check
        _
      $region62: #{forward.2} parent=5 // pred_check_branch
        %486 = sbr.rel (%p483) target = $region64
      $region63: #{forward.2} parent=5 // pred_region
        %s487 = ssub.s32 %s25, 1
        // Predicated region
        $region65: #{forward.2} parent=63 // pred_check
          %p488 = pneg %p93
        $region66: #{forward.2} parent=63 // pred_check_branch
          %490 = sbr.rel (%p488) target = $region68
        $region67: #{forward.2} parent=63 // pred_region
          %492 = dma.done [#allocation5], 4096
        $region68: #{forward.2} parent=63 // pred_fallthru
          _
        // Predicated region
        $region69: #{forward.2} parent=63 // pred_check
          %p493 = pneg %p114
        $region70: #{forward.2} parent=63 // pred_check_branch
          %495 = sbr.rel (%p493) target = $region72
        $region71: #{forward.2} parent=63 // pred_region
          %497 = dma.done [#allocation7], 32
        $region72: #{forward.2} parent=63 // pred_fallthru
          _
        // Predicated region
        $region73: #{forward.2} parent=63 // pred_check
          %p498 = pneg %p135
        $region74: #{forward.2} parent=63 // pred_check_branch
          %500 = sbr.rel (%p498) target = $region76
        $region75: #{forward.2} parent=63 // pred_region
          %502 = dma.done [#allocation7], 24576
        $region76: #{forward.2} parent=63 // pred_fallthru
          _
        // Predicated region
        $region77: #{forward.2} parent=63 // pred_check
          %p503 = pneg %p156
        $region78: #{forward.2} parent=63 // pred_check_branch
          %505 = sbr.rel (%p503) target = $region80
        $region79: #{forward.2} parent=63 // pred_region
          %507 = dma.done [#allocation10], 24576
        $region80: #{forward.2} parent=63 // pred_fallthru
          _
        // Predicated region
        $region81: #{forward.2} parent=63 // pred_check
          %p508 = pneg %p177
        $region82: #{forward.2} parent=63 // pred_check_branch
          %510 = sbr.rel (%p508) target = $region84
        $region83: #{forward.2} parent=63 // pred_region
          %512 = dma.done [#allocation10], 96
        $region84: #{forward.2} parent=63 // pred_fallthru
          _
        // Predicated region
        $region85: #{forward.2} parent=63 // pred_check
          %p513 = pneg %p198
        $region86: #{forward.2} parent=63 // pred_check_branch
          %515 = sbr.rel (%p513) target = $region88
        $region87: #{forward.2} parent=63 // pred_region
          %517 = dma.done [#allocation13], 96
        $region88: #{forward.2} parent=63 // pred_fallthru
          _
        // Predicated region
        $region89: #{forward.2} parent=63 // pred_check
          %p518 = pneg %p219
        $region90: #{forward.2} parent=63 // pred_check_branch
          %520 = sbr.rel (%p518) target = $region92
        $region91: #{forward.2} parent=63 // pred_region
          %522 = dma.done [#allocation13], 8192
        $region92: #{forward.2} parent=63 // pred_fallthru
          _
        // Predicated region
        $region93: #{forward.2} parent=63 // pred_check
          %p523 = pneg %p240
        $region94: #{forward.2} parent=63 // pred_check_branch
          %525 = sbr.rel (%p523) target = $region96
        $region95: #{forward.2} parent=63 // pred_region
          %527 = dma.done [#allocation16], 32
        $region96: #{forward.2} parent=63 // pred_fallthru
          _
        // Predicated region
        $region97: #{forward.2} parent=63 // pred_check
          %p528 = pneg %p261
        $region98: #{forward.2} parent=63 // pred_check_branch
          %530 = sbr.rel (%p528) target = $region100
        $region99: #{forward.2} parent=63 // pred_region
          %532 = dma.done [#allocation16], 4096
        $region100: #{forward.2} parent=63 // pred_fallthru
          _
        %p533 = pneg %p46
        %p534 = pneg %p43
        %p535 = scmp.lt.s32.totalorder %s30, 15
        %s536 = scalar_select %p535, %s30, 15
        %s537 = smul.addr %s536, 8
        %s538 = scalar_lea.vmem %s1, %s537
        %p539 = pneg %p72
        %p540 = pneg %p69
        %p541 = pneg %p93
        %p542 = pneg %p90
        %p543 = pneg %p114
        %p544 = pneg %p111
        %p545 = pneg %p135
        %p546 = pneg %p132
        %p547 = pneg %p156
        %p548 = pneg %p153
        %p549 = pneg %p177
        %p550 = pneg %p174
        %p551 = pneg %p198
        %p552 = pneg %p195
        %p553 = pneg %p219
        %p554 = pneg %p216
        %p555 = pneg %p240
        %p556 = pneg %p237
        %p557 = pneg %p261
        %p558 = pneg %p258
        %p559 = pneg %p287
        %p560 = pneg %p284
        %p561 = scmp.lt.s32.totalorder %s30, 15
        %s562 = scalar_select %p561, %s30, 15
        %s563 = smul.addr %s562, 2
        %s564 = smul.addr %s563, 8
        %s565 = scalar_lea.vmem %s11, %s564
        %p566 = pneg %p313
        %p567 = pneg %p310
        %p568 = scmp.lt.s32.totalorder %s30, 15
        %s569 = scalar_select %p568, %s30, 15
        %s570 = smul.addr %s569, 8
        %s571 = scalar_lea.vmem %s12, %s570
        %p572 = pneg %p334
        %p573 = pneg %p331
        %p574 = scmp.lt.s32.totalorder %s30, 15
        %s575 = scalar_select %p574, %s30, 15
        %s576 = smul.addr %s575, 8
        %s577 = scalar_lea.vmem %s1, %s576
        %p578 = scmp.lt.s32.totalorder %s30, 15
        %s579 = scalar_select %p578, %s30, 15
        %s580 = smul.addr %s579, 2
        %s581 = smul.addr %s580, 8
        %s582 = scalar_lea.vmem %s11, %s581
        %p583 = scmp.lt.s32.totalorder %s30, 15
        %s584 = scalar_select %p583, %s30, 15
        %s585 = smul.addr %s584, 8
        %s586 = scalar_lea.vmem %s12, %s585
        %p587 = scmp.eq.s32.totalorder %s30, 0
        // Predicated region
        $region101: #{forward.2} parent=63 // pred_check
          %p588 = pneg %p587
        $region102: #{forward.2} parent=63 // pred_check_branch
          %590 = sbr.rel (%p588) target = $region104
        $region103: #{forward.2} parent=63 // pred_region
          %591 = vst [vmem:[#allocation2] sm:$0xff] 0.0
          %592 = vst [vmem:[#allocation2 + $0x8] sm:$0xff] 0.0
          %593 = vst [vmem:[#allocation3] sm:$0xff] 0.0
          %594 = vst [vmem:[#allocation3 + $0x8] sm:$0xff] 0.0
        $region104: #{forward.2} parent=63 // pred_fallthru
          _
        %v595 = vld [vmem:[%s577] sm:$0xff]
        %v596 = vld [vmem:[#allocation4] sm:$0xff]
        %v597 = vld [vmem:[#allocation4 + $0x8] sm:$0xff]
        %v598 = vld [vmem:[#allocation4 + $0x10] sm:$0xff]
        %v599 = vld [vmem:[#allocation4 + $0x18] sm:$0xff]
        %v600 = vld [vmem:[#allocation4 + $0x20] sm:$0xff]
        %v601 = vld [vmem:[#allocation4 + $0x28] sm:$0xff]
        %v602 = vld [vmem:[#allocation4 + $0x30] sm:$0xff]
        %v603 = vld [vmem:[#allocation4 + $0x38] sm:$0xff]
        %v604 = vld [vmem:[#allocation4 + $0x40] sm:$0xff]
        %v605 = vld [vmem:[#allocation4 + $0x48] sm:$0xff]
        %v606 = vld [vmem:[#allocation4 + $0x50] sm:$0xff]
        %v607 = vld [vmem:[#allocation4 + $0x58] sm:$0xff]
        %v608 = vld [vmem:[#allocation4 + $0x60] sm:$0xff]
        %v609 = vld [vmem:[#allocation4 + $0x68] sm:$0xff]
        %v610 = vld [vmem:[#allocation4 + $0x70] sm:$0xff]
        %v611 = vld [vmem:[#allocation4 + $0x78] sm:$0xff]
        %v612 = vld [vmem:[#allocation4 + $0x80] sm:$0xff]
        %v613 = vld [vmem:[#allocation4 + $0x88] sm:$0xff]
        %v614 = vld [vmem:[#allocation4 + $0x90] sm:$0xff]
        %v615 = vld [vmem:[#allocation4 + $0x98] sm:$0xff]
        %v616 = vld [vmem:[#allocation4 + $0xa0] sm:$0xff]
        %v617 = vld [vmem:[#allocation4 + $0xa8] sm:$0xff]
        %v618 = vld [vmem:[#allocation4 + $0xb0] sm:$0xff]
        %v619 = vld [vmem:[#allocation4 + $0xb8] sm:$0xff]
        %v620 = vld [vmem:[#allocation4 + $0xc0] sm:$0xff]
        %v621 = vld [vmem:[#allocation4 + $0xc8] sm:$0xff]
        %v622 = vld [vmem:[#allocation4 + $0xd0] sm:$0xff]
        %v623 = vld [vmem:[#allocation4 + $0xd8] sm:$0xff]
        %v624 = vld [vmem:[#allocation4 + $0xe0] sm:$0xff]
        %v625 = vld [vmem:[#allocation4 + $0xe8] sm:$0xff]
        %v626 = vld [vmem:[#allocation4 + $0xf0] sm:$0xff]
        %v627 = vld [vmem:[#allocation4 + $0xf8] sm:$0xff]
        %v628 = vld [vmem:[#allocation6] sm:$0x3]
        %v630 = vperm.slane %v628, 0
        %v631 = vperm.slane %v628, 1
        %634 = vmatpush.msra.mxu0 %v626
        %635 = vmatpush.msra.mxu0 %v624
        %636 = vmatpush.msra.mxu0 %v622
        %637 = vmatpush.msra.mxu0 %v620
        %638 = vmatpush.msra.mxu0 %v618
        %639 = vmatpush.msra.mxu0 %v616
        %640 = vmatpush.msra.mxu0 %v614
        %641 = vmatpush.msra.mxu0 %v612
        %642 = vmatpush.msra.mxu0 %v610
        %643 = vmatpush.msra.mxu0 %v608
        %644 = vmatpush.msra.mxu0 %v606
        %645 = vmatpush.msra.mxu0 %v604
        %646 = vmatpush.msra.mxu0 %v602
        %647 = vmatpush.msra.mxu0 %v600
        %648 = vmatpush.msra.mxu0 %v598
        %649 = vmatpush.msra.mxu0 %v596
        %650 = vmatmul.f32.gmra.mxu0 %v595
        %v651 = vpop.f32.mrf.mxu0
        %v652 = vadd.f32 %v630, %v651
        %653 = vdwg.mxu0
        %654 = vmatpush.msra.mxu0 %v627
        %655 = vmatpush.msra.mxu0 %v625
        %656 = vmatpush.msra.mxu0 %v623
        %657 = vmatpush.msra.mxu0 %v621
        %658 = vmatpush.msra.mxu0 %v619
        %659 = vmatpush.msra.mxu0 %v617
        %660 = vmatpush.msra.mxu0 %v615
        %661 = vmatpush.msra.mxu0 %v613
        %662 = vmatpush.msra.mxu0 %v611
        %663 = vmatpush.msra.mxu0 %v609
        %664 = vmatpush.msra.mxu0 %v607
        %665 = vmatpush.msra.mxu0 %v605
        %666 = vmatpush.msra.mxu0 %v603
        %667 = vmatpush.msra.mxu0 %v601
        %668 = vmatpush.msra.mxu0 %v599
        %669 = vmatpush.msra.mxu0 %v597
        %670 = vmatmul.f32.gmra.mxu0 %v595
        %v671 = vpop.f32.mrf.mxu0
        %v672 = vadd.f32 %v631, %v671
        %673 = vdwg.mxu0
        %v674 = vmax.f32 %v652, 0.0
        %v675 = vmax.f32 %v672, 0.0
        %v676 = vld [vmem:[#allocation2] sm:$0xff]
        %v677 = vld [vmem:[#allocation2 + $0x8] sm:$0xff]
        %v678 = vld [vmem:[#allocation8] sm:$0xff]
        %v679 = vld [vmem:[#allocation8 + $0x8] sm:$0xff]
        %v680 = vld [vmem:[#allocation8 + $0x10] sm:$0xff]
        %v681 = vld [vmem:[#allocation8 + $0x18] sm:$0xff]
        %v682 = vld [vmem:[#allocation8 + $0x20] sm:$0xff]
        %v683 = vld [vmem:[#allocation8 + $0x28] sm:$0xff]
        %v684 = vld [vmem:[#allocation8 + $0x30] sm:$0xff]
        %v685 = vld [vmem:[#allocation8 + $0x38] sm:$0xff]
        %v686 = vld [vmem:[#allocation8 + $0x40] sm:$0xff]
        %v687 = vld [vmem:[#allocation8 + $0x48] sm:$0xff]
        %v688 = vld [vmem:[#allocation8 + $0x50] sm:$0xff]
        %v689 = vld [vmem:[#allocation8 + $0x58] sm:$0xff]
        %v690 = vld [vmem:[#allocation8 + $0x60] sm:$0xff]
        %v691 = vld [vmem:[#allocation8 + $0x68] sm:$0xff]
        %v692 = vld [vmem:[#allocation8 + $0x70] sm:$0xff]
        %v693 = vld [vmem:[#allocation8 + $0x78] sm:$0xff]
        %v694 = vld [vmem:[#allocation8 + $0x80] sm:$0xff]
        %v695 = vld [vmem:[#allocation8 + $0x88] sm:$0xff]
        %v696 = vld [vmem:[#allocation8 + $0x90] sm:$0xff]
        %v697 = vld [vmem:[#allocation8 + $0x98] sm:$0xff]
        %v698 = vld [vmem:[#allocation8 + $0xa0] sm:$0xff]
        %v699 = vld [vmem:[#allocation8 + $0xa8] sm:$0xff]
        %v700 = vld [vmem:[#allocation8 + $0xb0] sm:$0xff]
        %v701 = vld [vmem:[#allocation8 + $0xb8] sm:$0xff]
        %v702 = vld [vmem:[#allocation8 + $0xc0] sm:$0xff]
        %v703 = vld [vmem:[#allocation8 + $0xc8] sm:$0xff]
        %v704 = vld [vmem:[#allocation8 + $0xd0] sm:$0xff]
        %v705 = vld [vmem:[#allocation8 + $0xd8] sm:$0xff]
        %v706 = vld [vmem:[#allocation8 + $0xe0] sm:$0xff]
        %v707 = vld [vmem:[#allocation8 + $0xe8] sm:$0xff]
        %v708 = vld [vmem:[#allocation8 + $0xf0] sm:$0xff]
        %v709 = vld [vmem:[#allocation8 + $0xf8] sm:$0xff]
        %v710 = vld [vmem:[#allocation8 + $0x100] sm:$0xff]
        %v711 = vld [vmem:[#allocation8 + $0x108] sm:$0xff]
        %v712 = vld [vmem:[#allocation8 + $0x110] sm:$0xff]
        %v713 = vld [vmem:[#allocation8 + $0x118] sm:$0xff]
        %v714 = vld [vmem:[#allocation8 + $0x120] sm:$0xff]
        %v715 = vld [vmem:[#allocation8 + $0x128] sm:$0xff]
        %v716 = vld [vmem:[#allocation8 + $0x130] sm:$0xff]
        %v717 = vld [vmem:[#allocation8 + $0x138] sm:$0xff]
        %v718 = vld [vmem:[#allocation8 + $0x140] sm:$0xff]
        %v719 = vld [vmem:[#allocation8 + $0x148] sm:$0xff]
        %v720 = vld [vmem:[#allocation8 + $0x150] sm:$0xff]
        %v721 = vld [vmem:[#allocation8 + $0x158] sm:$0xff]
        %v722 = vld [vmem:[#allocation8 + $0x160] sm:$0xff]
        %v723 = vld [vmem:[#allocation8 + $0x168] sm:$0xff]
        %v724 = vld [vmem:[#allocation8 + $0x170] sm:$0xff]
        %v725 = vld [vmem:[#allocation8 + $0x178] sm:$0xff]
        %v726 = vld [vmem:[#allocation8 + $0x180] sm:$0xff]
        %v727 = vld [vmem:[#allocation8 + $0x188] sm:$0xff]
        %v728 = vld [vmem:[#allocation8 + $0x190] sm:$0xff]
        %v729 = vld [vmem:[#allocation8 + $0x198] sm:$0xff]
        %v730 = vld [vmem:[#allocation8 + $0x1a0] sm:$0xff]
        %v731 = vld [vmem:[#allocation8 + $0x1a8] sm:$0xff]
        %v732 = vld [vmem:[#allocation8 + $0x1b0] sm:$0xff]
        %v733 = vld [vmem:[#allocation8 + $0x1b8] sm:$0xff]
        %v734 = vld [vmem:[#allocation8 + $0x1c0] sm:$0xff]
        %v735 = vld [vmem:[#allocation8 + $0x1c8] sm:$0xff]
        %v736 = vld [vmem:[#allocation8 + $0x1d0] sm:$0xff]
        %v737 = vld [vmem:[#allocation8 + $0x1d8] sm:$0xff]
        %v738 = vld [vmem:[#allocation8 + $0x1e0] sm:$0xff]
        %v739 = vld [vmem:[#allocation8 + $0x1e8] sm:$0xff]
        %v740 = vld [vmem:[#allocation8 + $0x1f0] sm:$0xff]
        %v741 = vld [vmem:[#allocation8 + $0x1f8] sm:$0xff]
        %v742 = vld [vmem:[#allocation8 + $0x200] sm:$0xff]
        %v743 = vld [vmem:[#allocation8 + $0x208] sm:$0xff]
        %v744 = vld [vmem:[#allocation8 + $0x210] sm:$0xff]
        %v745 = vld [vmem:[#allocation8 + $0x218] sm:$0xff]
        %v746 = vld [vmem:[#allocation8 + $0x220] sm:$0xff]
        %v747 = vld [vmem:[#allocation8 + $0x228] sm:$0xff]
        %v748 = vld [vmem:[#allocation8 + $0x230] sm:$0xff]
        %v749 = vld [vmem:[#allocation8 + $0x238] sm:$0xff]
        %v750 = vld [vmem:[#allocation8 + $0x240] sm:$0xff]
        %v751 = vld [vmem:[#allocation8 + $0x248] sm:$0xff]
        %v752 = vld [vmem:[#allocation8 + $0x250] sm:$0xff]
        %v753 = vld [vmem:[#allocation8 + $0x258] sm:$0xff]
        %v754 = vld [vmem:[#allocation8 + $0x260] sm:$0xff]
        %v755 = vld [vmem:[#allocation8 + $0x268] sm:$0xff]
        %v756 = vld [vmem:[#allocation8 + $0x270] sm:$0xff]
        %v757 = vld [vmem:[#allocation8 + $0x278] sm:$0xff]
        %v758 = vld [vmem:[#allocation8 + $0x280] sm:$0xff]
        %v759 = vld [vmem:[#allocation8 + $0x288] sm:$0xff]
        %v760 = vld [vmem:[#allocation8 + $0x290] sm:$0xff]
        %v761 = vld [vmem:[#allocation8 + $0x298] sm:$0xff]
        %v762 = vld [vmem:[#allocation8 + $0x2a0] sm:$0xff]
        %v763 = vld [vmem:[#allocation8 + $0x2a8] sm:$0xff]
        %v764 = vld [vmem:[#allocation8 + $0x2b0] sm:$0xff]
        %v765 = vld [vmem:[#allocation8 + $0x2b8] sm:$0xff]
        %v766 = vld [vmem:[#allocation8 + $0x2c0] sm:$0xff]
        %v767 = vld [vmem:[#allocation8 + $0x2c8] sm:$0xff]
        %v768 = vld [vmem:[#allocation8 + $0x2d0] sm:$0xff]
        %v769 = vld [vmem:[#allocation8 + $0x2d8] sm:$0xff]
        %v770 = vld [vmem:[#allocation8 + $0x2e0] sm:$0xff]
        %v771 = vld [vmem:[#allocation8 + $0x2e8] sm:$0xff]
        %v772 = vld [vmem:[#allocation8 + $0x2f0] sm:$0xff]
        %v773 = vld [vmem:[#allocation8 + $0x2f8] sm:$0xff]
        %v774 = vld [vmem:[#allocation8 + $0x300] sm:$0xff]
        %v775 = vld [vmem:[#allocation8 + $0x308] sm:$0xff]
        %v776 = vld [vmem:[#allocation8 + $0x310] sm:$0xff]
        %v777 = vld [vmem:[#allocation8 + $0x318] sm:$0xff]
        %v778 = vld [vmem:[#allocation8 + $0x320] sm:$0xff]
        %v779 = vld [vmem:[#allocation8 + $0x328] sm:$0xff]
        %v780 = vld [vmem:[#allocation8 + $0x330] sm:$0xff]
        %v781 = vld [vmem:[#allocation8 + $0x338] sm:$0xff]
        %v782 = vld [vmem:[#allocation8 + $0x340] sm:$0xff]
        %v783 = vld [vmem:[#allocation8 + $0x348] sm:$0xff]
        %v784 = vld [vmem:[#allocation8 + $0x350] sm:$0xff]
        %v785 = vld [vmem:[#allocation8 + $0x358] sm:$0xff]
        %v786 = vld [vmem:[#allocation8 + $0x360] sm:$0xff]
        %v787 = vld [vmem:[#allocation8 + $0x368] sm:$0xff]
        %v788 = vld [vmem:[#allocation8 + $0x370] sm:$0xff]
        %v789 = vld [vmem:[#allocation8 + $0x378] sm:$0xff]
        %v790 = vld [vmem:[#allocation8 + $0x380] sm:$0xff]
        %v791 = vld [vmem:[#allocation8 + $0x388] sm:$0xff]
        %v792 = vld [vmem:[#allocation8 + $0x390] sm:$0xff]
        %v793 = vld [vmem:[#allocation8 + $0x398] sm:$0xff]
        %v794 = vld [vmem:[#allocation8 + $0x3a0] sm:$0xff]
        %v795 = vld [vmem:[#allocation8 + $0x3a8] sm:$0xff]
        %v796 = vld [vmem:[#allocation8 + $0x3b0] sm:$0xff]
        %v797 = vld [vmem:[#allocation8 + $0x3b8] sm:$0xff]
        %v798 = vld [vmem:[#allocation8 + $0x3c0] sm:$0xff]
        %v799 = vld [vmem:[#allocation8 + $0x3c8] sm:$0xff]
        %v800 = vld [vmem:[#allocation8 + $0x3d0] sm:$0xff]
        %v801 = vld [vmem:[#allocation8 + $0x3d8] sm:$0xff]
        %v802 = vld [vmem:[#allocation8 + $0x3e0] sm:$0xff]
        %v803 = vld [vmem:[#allocation8 + $0x3e8] sm:$0xff]
        %v804 = vld [vmem:[#allocation8 + $0x3f0] sm:$0xff]
        %v805 = vld [vmem:[#allocation8 + $0x3f8] sm:$0xff]
        %v806 = vld [vmem:[#allocation8 + $0x400] sm:$0xff]
        %v807 = vld [vmem:[#allocation8 + $0x408] sm:$0xff]
        %v808 = vld [vmem:[#allocation8 + $0x410] sm:$0xff]
        %v809 = vld [vmem:[#allocation8 + $0x418] sm:$0xff]
        %v810 = vld [vmem:[#allocation8 + $0x420] sm:$0xff]
        %v811 = vld [vmem:[#allocation8 + $0x428] sm:$0xff]
        %v812 = vld [vmem:[#allocation8 + $0x430] sm:$0xff]
        %v813 = vld [vmem:[#allocation8 + $0x438] sm:$0xff]
        %v814 = vld [vmem:[#allocation8 + $0x440] sm:$0xff]
        %v815 = vld [vmem:[#allocation8 + $0x448] sm:$0xff]
        %v816 = vld [vmem:[#allocation8 + $0x450] sm:$0xff]
        %v817 = vld [vmem:[#allocation8 + $0x458] sm:$0xff]
        %v818 = vld [vmem:[#allocation8 + $0x460] sm:$0xff]
        %v819 = vld [vmem:[#allocation8 + $0x468] sm:$0xff]
        %v820 = vld [vmem:[#allocation8 + $0x470] sm:$0xff]
        %v821 = vld [vmem:[#allocation8 + $0x478] sm:$0xff]
        %v822 = vld [vmem:[#allocation8 + $0x480] sm:$0xff]
        %v823 = vld [vmem:[#allocation8 + $0x488] sm:$0xff]
        %v824 = vld [vmem:[#allocation8 + $0x490] sm:$0xff]
        %v825 = vld [vmem:[#allocation8 + $0x498] sm:$0xff]
        %v826 = vld [vmem:[#allocation8 + $0x4a0] sm:$0xff]
        %v827 = vld [vmem:[#allocation8 + $0x4a8] sm:$0xff]
        %v828 = vld [vmem:[#allocation8 + $0x4b0] sm:$0xff]
        %v829 = vld [vmem:[#allocation8 + $0x4b8] sm:$0xff]
        %v830 = vld [vmem:[#allocation8 + $0x4c0] sm:$0xff]
        %v831 = vld [vmem:[#allocation8 + $0x4c8] sm:$0xff]
        %v832 = vld [vmem:[#allocation8 + $0x4d0] sm:$0xff]
        %v833 = vld [vmem:[#allocation8 + $0x4d8] sm:$0xff]
        %v834 = vld [vmem:[#allocation8 + $0x4e0] sm:$0xff]
        %v835 = vld [vmem:[#allocation8 + $0x4e8] sm:$0xff]
        %v836 = vld [vmem:[#allocation8 + $0x4f0] sm:$0xff]
        %v837 = vld [vmem:[#allocation8 + $0x4f8] sm:$0xff]
        %v838 = vld [vmem:[#allocation8 + $0x500] sm:$0xff]
        %v839 = vld [vmem:[#allocation8 + $0x508] sm:$0xff]
        %v840 = vld [vmem:[#allocation8 + $0x510] sm:$0xff]
        %v841 = vld [vmem:[#allocation8 + $0x518] sm:$0xff]
        %v842 = vld [vmem:[#allocation8 + $0x520] sm:$0xff]
        %v843 = vld [vmem:[#allocation8 + $0x528] sm:$0xff]
        %v844 = vld [vmem:[#allocation8 + $0x530] sm:$0xff]
        %v845 = vld [vmem:[#allocation8 + $0x538] sm:$0xff]
        %v846 = vld [vmem:[#allocation8 + $0x540] sm:$0xff]
        %v847 = vld [vmem:[#allocation8 + $0x548] sm:$0xff]
        %v848 = vld [vmem:[#allocation8 + $0x550] sm:$0xff]
        %v849 = vld [vmem:[#allocation8 + $0x558] sm:$0xff]
        %v850 = vld [vmem:[#allocation8 + $0x560] sm:$0xff]
        %v851 = vld [vmem:[#allocation8 + $0x568] sm:$0xff]
        %v852 = vld [vmem:[#allocation8 + $0x570] sm:$0xff]
        %v853 = vld [vmem:[#allocation8 + $0x578] sm:$0xff]
        %v854 = vld [vmem:[#allocation8 + $0x580] sm:$0xff]
        %v855 = vld [vmem:[#allocation8 + $0x588] sm:$0xff]
        %v856 = vld [vmem:[#allocation8 + $0x590] sm:$0xff]
        %v857 = vld [vmem:[#allocation8 + $0x598] sm:$0xff]
        %v858 = vld [vmem:[#allocation8 + $0x5a0] sm:$0xff]
        %v859 = vld [vmem:[#allocation8 + $0x5a8] sm:$0xff]
        %v860 = vld [vmem:[#allocation8 + $0x5b0] sm:$0xff]
        %v861 = vld [vmem:[#allocation8 + $0x5b8] sm:$0xff]
        %v862 = vld [vmem:[#allocation8 + $0x5c0] sm:$0xff]
        %v863 = vld [vmem:[#allocation8 + $0x5c8] sm:$0xff]
        %v864 = vld [vmem:[#allocation8 + $0x5d0] sm:$0xff]
        %v865 = vld [vmem:[#allocation8 + $0x5d8] sm:$0xff]
        %v866 = vld [vmem:[#allocation8 + $0x5e0] sm:$0xff]
        %v867 = vld [vmem:[#allocation8 + $0x5e8] sm:$0xff]
        %v868 = vld [vmem:[#allocation8 + $0x5f0] sm:$0xff]
        %v869 = vld [vmem:[#allocation8 + $0x5f8] sm:$0xff]
        %v870 = vld [vmem:[#allocation11] sm:$0x3f]
        %v872 = vperm.slane %v870, 0
        %v873 = vperm.slane %v870, 1
        %v874 = vperm.slane %v870, 2
        %v875 = vperm.slane %v870, 3
        %v876 = vperm.slane %v870, 4
        %v877 = vperm.slane %v870, 5
        %884 = vmatpush.msra.mxu0 %v768
        %885 = vmatpush.msra.mxu0 %v762
        %886 = vmatpush.msra.mxu0 %v756
        %887 = vmatpush.msra.mxu0 %v750
        %888 = vmatpush.msra.mxu0 %v744
        %889 = vmatpush.msra.mxu0 %v738
        %890 = vmatpush.msra.mxu0 %v732
        %891 = vmatpush.msra.mxu0 %v726
        %892 = vmatpush.msra.mxu0 %v720
        %893 = vmatpush.msra.mxu0 %v714
        %894 = vmatpush.msra.mxu0 %v708
        %895 = vmatpush.msra.mxu0 %v702
        %896 = vmatpush.msra.mxu0 %v696
        %897 = vmatpush.msra.mxu0 %v690
        %898 = vmatpush.msra.mxu0 %v684
        %899 = vmatpush.msra.mxu0 %v678
        %900 = vmatmul.f32.gmra.mxu0 %v674
        %v901 = vpop.f32.mrf.mxu0
        %v902 = vadd.f32 %v872, %v901
        %903 = vdwg.mxu0
        %904 = vmatpush.msra.mxu0 %v864
        %905 = vmatpush.msra.mxu0 %v858
        %906 = vmatpush.msra.mxu0 %v852
        %907 = vmatpush.msra.mxu0 %v846
        %908 = vmatpush.msra.mxu0 %v840
        %909 = vmatpush.msra.mxu0 %v834
        %910 = vmatpush.msra.mxu0 %v828
        %911 = vmatpush.msra.mxu0 %v822
        %912 = vmatpush.msra.mxu0 %v816
        %913 = vmatpush.msra.mxu0 %v810
        %914 = vmatpush.msra.mxu0 %v804
        %915 = vmatpush.msra.mxu0 %v798
        %916 = vmatpush.msra.mxu0 %v792
        %917 = vmatpush.msra.mxu0 %v786
        %918 = vmatpush.msra.mxu0 %v780
        %919 = vmatpush.msra.mxu0 %v774
        %920 = vmatmul.f32.gmra.mxu0 %v675
        %v921 = vpop.f32.mrf.mxu0
        %v922 = vadd.f32 %v902, %v921
        %923 = vdwg.mxu0
        %924 = vmatpush.msra.mxu0 %v769
        %925 = vmatpush.msra.mxu0 %v763
        %926 = vmatpush.msra.mxu0 %v757
        %927 = vmatpush.msra.mxu0 %v751
        %928 = vmatpush.msra.mxu0 %v745
        %929 = vmatpush.msra.mxu0 %v739
        %930 = vmatpush.msra.mxu0 %v733
        %931 = vmatpush.msra.mxu0 %v727
        %932 = vmatpush.msra.mxu0 %v721
        %933 = vmatpush.msra.mxu0 %v715
        %934 = vmatpush.msra.mxu0 %v709
        %935 = vmatpush.msra.mxu0 %v703
        %936 = vmatpush.msra.mxu0 %v697
        %937 = vmatpush.msra.mxu0 %v691
        %938 = vmatpush.msra.mxu0 %v685
        %939 = vmatpush.msra.mxu0 %v679
        %940 = vmatmul.f32.gmra.mxu0 %v674
        %v941 = vpop.f32.mrf.mxu0
        %v942 = vadd.f32 %v873, %v941
        %943 = vdwg.mxu0
        %944 = vmatpush.msra.mxu0 %v865
        %945 = vmatpush.msra.mxu0 %v859
        %946 = vmatpush.msra.mxu0 %v853
        %947 = vmatpush.msra.mxu0 %v847
        %948 = vmatpush.msra.mxu0 %v841
        %949 = vmatpush.msra.mxu0 %v835
        %950 = vmatpush.msra.mxu0 %v829
        %951 = vmatpush.msra.mxu0 %v823
        %952 = vmatpush.msra.mxu0 %v817
        %953 = vmatpush.msra.mxu0 %v811
        %954 = vmatpush.msra.mxu0 %v805
        %955 = vmatpush.msra.mxu0 %v799
        %956 = vmatpush.msra.mxu0 %v793
        %957 = vmatpush.msra.mxu0 %v787
        %958 = vmatpush.msra.mxu0 %v781
        %959 = vmatpush.msra.mxu0 %v775
        %960 = vmatmul.f32.gmra.mxu0 %v675
        %v961 = vpop.f32.mrf.mxu0
        %v962 = vadd.f32 %v942, %v961
        %963 = vdwg.mxu0
        %964 = vmatpush.msra.mxu0 %v770
        %965 = vmatpush.msra.mxu0 %v764
        %966 = vmatpush.msra.mxu0 %v758
        %967 = vmatpush.msra.mxu0 %v752
        %968 = vmatpush.msra.mxu0 %v746
        %969 = vmatpush.msra.mxu0 %v740
        %970 = vmatpush.msra.mxu0 %v734
        %971 = vmatpush.msra.mxu0 %v728
        %972 = vmatpush.msra.mxu0 %v722
        %973 = vmatpush.msra.mxu0 %v716
        %974 = vmatpush.msra.mxu0 %v710
        %975 = vmatpush.msra.mxu0 %v704
        %976 = vmatpush.msra.mxu0 %v698
        %977 = vmatpush.msra.mxu0 %v692
        %978 = vmatpush.msra.mxu0 %v686
        %979 = vmatpush.msra.mxu0 %v680
        %980 = vmatmul.f32.gmra.mxu0 %v674
        %v981 = vpop.f32.mrf.mxu0
        %v982 = vadd.f32 %v874, %v981
        %983 = vdwg.mxu0
        %984 = vmatpush.msra.mxu0 %v866
        %985 = vmatpush.msra.mxu0 %v860
        %986 = vmatpush.msra.mxu0 %v854
        %987 = vmatpush.msra.mxu0 %v848
        %988 = vmatpush.msra.mxu0 %v842
        %989 = vmatpush.msra.mxu0 %v836
        %990 = vmatpush.msra.mxu0 %v830
        %991 = vmatpush.msra.mxu0 %v824
        %992 = vmatpush.msra.mxu0 %v818
        %993 = vmatpush.msra.mxu0 %v812
        %994 = vmatpush.msra.mxu0 %v806
        %995 = vmatpush.msra.mxu0 %v800
        %996 = vmatpush.msra.mxu0 %v794
        %997 = vmatpush.msra.mxu0 %v788
        %998 = vmatpush.msra.mxu0 %v782
        %999 = vmatpush.msra.mxu0 %v776
        %1000 = vmatmul.f32.gmra.mxu0 %v675
        %v1001 = vpop.f32.mrf.mxu0
        %v1002 = vadd.f32 %v982, %v1001
        %1003 = vdwg.mxu0
        %1004 = vmatpush.msra.mxu0 %v771
        %1005 = vmatpush.msra.mxu0 %v765
        %1006 = vmatpush.msra.mxu0 %v759
        %1007 = vmatpush.msra.mxu0 %v753
        %1008 = vmatpush.msra.mxu0 %v747
        %1009 = vmatpush.msra.mxu0 %v741
        %1010 = vmatpush.msra.mxu0 %v735
        %1011 = vmatpush.msra.mxu0 %v729
        %1012 = vmatpush.msra.mxu0 %v723
        %1013 = vmatpush.msra.mxu0 %v717
        %1014 = vmatpush.msra.mxu0 %v711
        %1015 = vmatpush.msra.mxu0 %v705
        %1016 = vmatpush.msra.mxu0 %v699
        %1017 = vmatpush.msra.mxu0 %v693
        %1018 = vmatpush.msra.mxu0 %v687
        %1019 = vmatpush.msra.mxu0 %v681
        %1020 = vmatmul.f32.gmra.mxu0 %v674
        %v1021 = vpop.f32.mrf.mxu0
        %v1022 = vadd.f32 %v875, %v1021
        %1023 = vdwg.mxu0
        %1024 = vmatpush.msra.mxu0 %v867
        %1025 = vmatpush.msra.mxu0 %v861
        %1026 = vmatpush.msra.mxu0 %v855
        %1027 = vmatpush.msra.mxu0 %v849
        %1028 = vmatpush.msra.mxu0 %v843
        %1029 = vmatpush.msra.mxu0 %v837
        %1030 = vmatpush.msra.mxu0 %v831
        %1031 = vmatpush.msra.mxu0 %v825
        %1032 = vmatpush.msra.mxu0 %v819
        %1033 = vmatpush.msra.mxu0 %v813
        %1034 = vmatpush.msra.mxu0 %v807
        %1035 = vmatpush.msra.mxu0 %v801
        %1036 = vmatpush.msra.mxu0 %v795
        %1037 = vmatpush.msra.mxu0 %v789
        %1038 = vmatpush.msra.mxu0 %v783
        %1039 = vmatpush.msra.mxu0 %v777
        %1040 = vmatmul.f32.gmra.mxu0 %v675
        %v1041 = vpop.f32.mrf.mxu0
        %v1042 = vadd.f32 %v1022, %v1041
        %1043 = vdwg.mxu0
        %1044 = vmatpush.msra.mxu0 %v772
        %1045 = vmatpush.msra.mxu0 %v766
        %1046 = vmatpush.msra.mxu0 %v760
        %1047 = vmatpush.msra.mxu0 %v754
        %1048 = vmatpush.msra.mxu0 %v748
        %1049 = vmatpush.msra.mxu0 %v742
        %1050 = vmatpush.msra.mxu0 %v736
        %1051 = vmatpush.msra.mxu0 %v730
        %1052 = vmatpush.msra.mxu0 %v724
        %1053 = vmatpush.msra.mxu0 %v718
        %1054 = vmatpush.msra.mxu0 %v712
        %1055 = vmatpush.msra.mxu0 %v706
        %1056 = vmatpush.msra.mxu0 %v700
        %1057 = vmatpush.msra.mxu0 %v694
        %1058 = vmatpush.msra.mxu0 %v688
        %1059 = vmatpush.msra.mxu0 %v682
        %1060 = vmatmul.f32.gmra.mxu0 %v674
        %v1061 = vpop.f32.mrf.mxu0
        %v1062 = vadd.f32 %v876, %v1061
        %1063 = vdwg.mxu0
        %1064 = vmatpush.msra.mxu0 %v868
        %1065 = vmatpush.msra.mxu0 %v862
        %1066 = vmatpush.msra.mxu0 %v856
        %1067 = vmatpush.msra.mxu0 %v850
        %1068 = vmatpush.msra.mxu0 %v844
        %1069 = vmatpush.msra.mxu0 %v838
        %1070 = vmatpush.msra.mxu0 %v832
        %1071 = vmatpush.msra.mxu0 %v826
        %1072 = vmatpush.msra.mxu0 %v820
        %1073 = vmatpush.msra.mxu0 %v814
        %1074 = vmatpush.msra.mxu0 %v808
        %1075 = vmatpush.msra.mxu0 %v802
        %1076 = vmatpush.msra.mxu0 %v796
        %1077 = vmatpush.msra.mxu0 %v790
        %1078 = vmatpush.msra.mxu0 %v784
        %1079 = vmatpush.msra.mxu0 %v778
        %1080 = vmatmul.f32.gmra.mxu0 %v675
        %v1081 = vpop.f32.mrf.mxu0
        %v1082 = vadd.f32 %v1062, %v1081
        %1083 = vdwg.mxu0
        %1084 = vmatpush.msra.mxu0 %v773
        %1085 = vmatpush.msra.mxu0 %v767
        %1086 = vmatpush.msra.mxu0 %v761
        %1087 = vmatpush.msra.mxu0 %v755
        %1088 = vmatpush.msra.mxu0 %v749
        %1089 = vmatpush.msra.mxu0 %v743
        %1090 = vmatpush.msra.mxu0 %v737
        %1091 = vmatpush.msra.mxu0 %v731
        %1092 = vmatpush.msra.mxu0 %v725
        %1093 = vmatpush.msra.mxu0 %v719
        %1094 = vmatpush.msra.mxu0 %v713
        %1095 = vmatpush.msra.mxu0 %v707
        %1096 = vmatpush.msra.mxu0 %v701
        %1097 = vmatpush.msra.mxu0 %v695
        %1098 = vmatpush.msra.mxu0 %v689
        %1099 = vmatpush.msra.mxu0 %v683
        %1100 = vmatmul.f32.gmra.mxu0 %v674
        %v1101 = vpop.f32.mrf.mxu0
        %v1102 = vadd.f32 %v877, %v1101
        %1103 = vdwg.mxu0
        %1104 = vmatpush.msra.mxu0 %v869
        %1105 = vmatpush.msra.mxu0 %v863
        %1106 = vmatpush.msra.mxu0 %v857
        %1107 = vmatpush.msra.mxu0 %v851
        %1108 = vmatpush.msra.mxu0 %v845
        %1109 = vmatpush.msra.mxu0 %v839
        %1110 = vmatpush.msra.mxu0 %v833
        %1111 = vmatpush.msra.mxu0 %v827
        %1112 = vmatpush.msra.mxu0 %v821
        %1113 = vmatpush.msra.mxu0 %v815
        %1114 = vmatpush.msra.mxu0 %v809
        %1115 = vmatpush.msra.mxu0 %v803
        %1116 = vmatpush.msra.mxu0 %v797
        %1117 = vmatpush.msra.mxu0 %v791
        %1118 = vmatpush.msra.mxu0 %v785
        %1119 = vmatpush.msra.mxu0 %v779
        %1120 = vmatmul.f32.gmra.mxu0 %v675
        %v1121 = vpop.f32.mrf.mxu0
        %v1122 = vadd.f32 %v1102, %v1121
        %1123 = vdwg.mxu0
        %v1124 = vld [vmem:[#allocation9] sm:$0xff]
        %v1125 = vld [vmem:[#allocation9 + $0x8] sm:$0xff]
        %v1126 = vld [vmem:[#allocation9 + $0x10] sm:$0xff]
        %v1127 = vld [vmem:[#allocation9 + $0x18] sm:$0xff]
        %v1128 = vld [vmem:[#allocation9 + $0x20] sm:$0xff]
        %v1129 = vld [vmem:[#allocation9 + $0x28] sm:$0xff]
        %v1130 = vld [vmem:[#allocation9 + $0x30] sm:$0xff]
        %v1131 = vld [vmem:[#allocation9 + $0x38] sm:$0xff]
        %v1132 = vld [vmem:[#allocation9 + $0x40] sm:$0xff]
        %v1133 = vld [vmem:[#allocation9 + $0x48] sm:$0xff]
        %v1134 = vld [vmem:[#allocation9 + $0x50] sm:$0xff]
        %v1135 = vld [vmem:[#allocation9 + $0x58] sm:$0xff]
        %v1136 = vld [vmem:[#allocation9 + $0x60] sm:$0xff]
        %v1137 = vld [vmem:[#allocation9 + $0x68] sm:$0xff]
        %v1138 = vld [vmem:[#allocation9 + $0x70] sm:$0xff]
        %v1139 = vld [vmem:[#allocation9 + $0x78] sm:$0xff]
        %v1140 = vld [vmem:[#allocation9 + $0x80] sm:$0xff]
        %v1141 = vld [vmem:[#allocation9 + $0x88] sm:$0xff]
        %v1142 = vld [vmem:[#allocation9 + $0x90] sm:$0xff]
        %v1143 = vld [vmem:[#allocation9 + $0x98] sm:$0xff]
        %v1144 = vld [vmem:[#allocation9 + $0xa0] sm:$0xff]
        %v1145 = vld [vmem:[#allocation9 + $0xa8] sm:$0xff]
        %v1146 = vld [vmem:[#allocation9 + $0xb0] sm:$0xff]
        %v1147 = vld [vmem:[#allocation9 + $0xb8] sm:$0xff]
        %v1148 = vld [vmem:[#allocation9 + $0xc0] sm:$0xff]
        %v1149 = vld [vmem:[#allocation9 + $0xc8] sm:$0xff]
        %v1150 = vld [vmem:[#allocation9 + $0xd0] sm:$0xff]
        %v1151 = vld [vmem:[#allocation9 + $0xd8] sm:$0xff]
        %v1152 = vld [vmem:[#allocation9 + $0xe0] sm:$0xff]
        %v1153 = vld [vmem:[#allocation9 + $0xe8] sm:$0xff]
        %v1154 = vld [vmem:[#allocation9 + $0xf0] sm:$0xff]
        %v1155 = vld [vmem:[#allocation9 + $0xf8] sm:$0xff]
        %v1156 = vld [vmem:[#allocation9 + $0x100] sm:$0xff]
        %v1157 = vld [vmem:[#allocation9 + $0x108] sm:$0xff]
        %v1158 = vld [vmem:[#allocation9 + $0x110] sm:$0xff]
        %v1159 = vld [vmem:[#allocation9 + $0x118] sm:$0xff]
        %v1160 = vld [vmem:[#allocation9 + $0x120] sm:$0xff]
        %v1161 = vld [vmem:[#allocation9 + $0x128] sm:$0xff]
        %v1162 = vld [vmem:[#allocation9 + $0x130] sm:$0xff]
        %v1163 = vld [vmem:[#allocation9 + $0x138] sm:$0xff]
        %v1164 = vld [vmem:[#allocation9 + $0x140] sm:$0xff]
        %v1165 = vld [vmem:[#allocation9 + $0x148] sm:$0xff]
        %v1166 = vld [vmem:[#allocation9 + $0x150] sm:$0xff]
        %v1167 = vld [vmem:[#allocation9 + $0x158] sm:$0xff]
        %v1168 = vld [vmem:[#allocation9 + $0x160] sm:$0xff]
        %v1169 = vld [vmem:[#allocation9 + $0x168] sm:$0xff]
        %v1170 = vld [vmem:[#allocation9 + $0x170] sm:$0xff]
        %v1171 = vld [vmem:[#allocation9 + $0x178] sm:$0xff]
        %v1172 = vld [vmem:[#allocation9 + $0x180] sm:$0xff]
        %v1173 = vld [vmem:[#allocation9 + $0x188] sm:$0xff]
        %v1174 = vld [vmem:[#allocation9 + $0x190] sm:$0xff]
        %v1175 = vld [vmem:[#allocation9 + $0x198] sm:$0xff]
        %v1176 = vld [vmem:[#allocation9 + $0x1a0] sm:$0xff]
        %v1177 = vld [vmem:[#allocation9 + $0x1a8] sm:$0xff]
        %v1178 = vld [vmem:[#allocation9 + $0x1b0] sm:$0xff]
        %v1179 = vld [vmem:[#allocation9 + $0x1b8] sm:$0xff]
        %v1180 = vld [vmem:[#allocation9 + $0x1c0] sm:$0xff]
        %v1181 = vld [vmem:[#allocation9 + $0x1c8] sm:$0xff]
        %v1182 = vld [vmem:[#allocation9 + $0x1d0] sm:$0xff]
        %v1183 = vld [vmem:[#allocation9 + $0x1d8] sm:$0xff]
        %v1184 = vld [vmem:[#allocation9 + $0x1e0] sm:$0xff]
        %v1185 = vld [vmem:[#allocation9 + $0x1e8] sm:$0xff]
        %v1186 = vld [vmem:[#allocation9 + $0x1f0] sm:$0xff]
        %v1187 = vld [vmem:[#allocation9 + $0x1f8] sm:$0xff]
        %v1188 = vld [vmem:[#allocation9 + $0x200] sm:$0xff]
        %v1189 = vld [vmem:[#allocation9 + $0x208] sm:$0xff]
        %v1190 = vld [vmem:[#allocation9 + $0x210] sm:$0xff]
        %v1191 = vld [vmem:[#allocation9 + $0x218] sm:$0xff]
        %v1192 = vld [vmem:[#allocation9 + $0x220] sm:$0xff]
        %v1193 = vld [vmem:[#allocation9 + $0x228] sm:$0xff]
        %v1194 = vld [vmem:[#allocation9 + $0x230] sm:$0xff]
        %v1195 = vld [vmem:[#allocation9 + $0x238] sm:$0xff]
        %v1196 = vld [vmem:[#allocation9 + $0x240] sm:$0xff]
        %v1197 = vld [vmem:[#allocation9 + $0x248] sm:$0xff]
        %v1198 = vld [vmem:[#allocation9 + $0x250] sm:$0xff]
        %v1199 = vld [vmem:[#allocation9 + $0x258] sm:$0xff]
        %v1200 = vld [vmem:[#allocation9 + $0x260] sm:$0xff]
        %v1201 = vld [vmem:[#allocation9 + $0x268] sm:$0xff]
        %v1202 = vld [vmem:[#allocation9 + $0x270] sm:$0xff]
        %v1203 = vld [vmem:[#allocation9 + $0x278] sm:$0xff]
        %v1204 = vld [vmem:[#allocation9 + $0x280] sm:$0xff]
        %v1205 = vld [vmem:[#allocation9 + $0x288] sm:$0xff]
        %v1206 = vld [vmem:[#allocation9 + $0x290] sm:$0xff]
        %v1207 = vld [vmem:[#allocation9 + $0x298] sm:$0xff]
        %v1208 = vld [vmem:[#allocation9 + $0x2a0] sm:$0xff]
        %v1209 = vld [vmem:[#allocation9 + $0x2a8] sm:$0xff]
        %v1210 = vld [vmem:[#allocation9 + $0x2b0] sm:$0xff]
        %v1211 = vld [vmem:[#allocation9 + $0x2b8] sm:$0xff]
        %v1212 = vld [vmem:[#allocation9 + $0x2c0] sm:$0xff]
        %v1213 = vld [vmem:[#allocation9 + $0x2c8] sm:$0xff]
        %v1214 = vld [vmem:[#allocation9 + $0x2d0] sm:$0xff]
        %v1215 = vld [vmem:[#allocation9 + $0x2d8] sm:$0xff]
        %v1216 = vld [vmem:[#allocation9 + $0x2e0] sm:$0xff]
        %v1217 = vld [vmem:[#allocation9 + $0x2e8] sm:$0xff]
        %v1218 = vld [vmem:[#allocation9 + $0x2f0] sm:$0xff]
        %v1219 = vld [vmem:[#allocation9 + $0x2f8] sm:$0xff]
        %v1220 = vld [vmem:[#allocation9 + $0x300] sm:$0xff]
        %v1221 = vld [vmem:[#allocation9 + $0x308] sm:$0xff]
        %v1222 = vld [vmem:[#allocation9 + $0x310] sm:$0xff]
        %v1223 = vld [vmem:[#allocation9 + $0x318] sm:$0xff]
        %v1224 = vld [vmem:[#allocation9 + $0x320] sm:$0xff]
        %v1225 = vld [vmem:[#allocation9 + $0x328] sm:$0xff]
        %v1226 = vld [vmem:[#allocation9 + $0x330] sm:$0xff]
        %v1227 = vld [vmem:[#allocation9 + $0x338] sm:$0xff]
        %v1228 = vld [vmem:[#allocation9 + $0x340] sm:$0xff]
        %v1229 = vld [vmem:[#allocation9 + $0x348] sm:$0xff]
        %v1230 = vld [vmem:[#allocation9 + $0x350] sm:$0xff]
        %v1231 = vld [vmem:[#allocation9 + $0x358] sm:$0xff]
        %v1232 = vld [vmem:[#allocation9 + $0x360] sm:$0xff]
        %v1233 = vld [vmem:[#allocation9 + $0x368] sm:$0xff]
        %v1234 = vld [vmem:[#allocation9 + $0x370] sm:$0xff]
        %v1235 = vld [vmem:[#allocation9 + $0x378] sm:$0xff]
        %v1236 = vld [vmem:[#allocation9 + $0x380] sm:$0xff]
        %v1237 = vld [vmem:[#allocation9 + $0x388] sm:$0xff]
        %v1238 = vld [vmem:[#allocation9 + $0x390] sm:$0xff]
        %v1239 = vld [vmem:[#allocation9 + $0x398] sm:$0xff]
        %v1240 = vld [vmem:[#allocation9 + $0x3a0] sm:$0xff]
        %v1241 = vld [vmem:[#allocation9 + $0x3a8] sm:$0xff]
        %v1242 = vld [vmem:[#allocation9 + $0x3b0] sm:$0xff]
        %v1243 = vld [vmem:[#allocation9 + $0x3b8] sm:$0xff]
        %v1244 = vld [vmem:[#allocation9 + $0x3c0] sm:$0xff]
        %v1245 = vld [vmem:[#allocation9 + $0x3c8] sm:$0xff]
        %v1246 = vld [vmem:[#allocation9 + $0x3d0] sm:$0xff]
        %v1247 = vld [vmem:[#allocation9 + $0x3d8] sm:$0xff]
        %v1248 = vld [vmem:[#allocation9 + $0x3e0] sm:$0xff]
        %v1249 = vld [vmem:[#allocation9 + $0x3e8] sm:$0xff]
        %v1250 = vld [vmem:[#allocation9 + $0x3f0] sm:$0xff]
        %v1251 = vld [vmem:[#allocation9 + $0x3f8] sm:$0xff]
        %v1252 = vld [vmem:[#allocation9 + $0x400] sm:$0xff]
        %v1253 = vld [vmem:[#allocation9 + $0x408] sm:$0xff]
        %v1254 = vld [vmem:[#allocation9 + $0x410] sm:$0xff]
        %v1255 = vld [vmem:[#allocation9 + $0x418] sm:$0xff]
        %v1256 = vld [vmem:[#allocation9 + $0x420] sm:$0xff]
        %v1257 = vld [vmem:[#allocation9 + $0x428] sm:$0xff]
        %v1258 = vld [vmem:[#allocation9 + $0x430] sm:$0xff]
        %v1259 = vld [vmem:[#allocation9 + $0x438] sm:$0xff]
        %v1260 = vld [vmem:[#allocation9 + $0x440] sm:$0xff]
        %v1261 = vld [vmem:[#allocation9 + $0x448] sm:$0xff]
        %v1262 = vld [vmem:[#allocation9 + $0x450] sm:$0xff]
        %v1263 = vld [vmem:[#allocation9 + $0x458] sm:$0xff]
        %v1264 = vld [vmem:[#allocation9 + $0x460] sm:$0xff]
        %v1265 = vld [vmem:[#allocation9 + $0x468] sm:$0xff]
        %v1266 = vld [vmem:[#allocation9 + $0x470] sm:$0xff]
        %v1267 = vld [vmem:[#allocation9 + $0x478] sm:$0xff]
        %v1268 = vld [vmem:[#allocation9 + $0x480] sm:$0xff]
        %v1269 = vld [vmem:[#allocation9 + $0x488] sm:$0xff]
        %v1270 = vld [vmem:[#allocation9 + $0x490] sm:$0xff]
        %v1271 = vld [vmem:[#allocation9 + $0x498] sm:$0xff]
        %v1272 = vld [vmem:[#allocation9 + $0x4a0] sm:$0xff]
        %v1273 = vld [vmem:[#allocation9 + $0x4a8] sm:$0xff]
        %v1274 = vld [vmem:[#allocation9 + $0x4b0] sm:$0xff]
        %v1275 = vld [vmem:[#allocation9 + $0x4b8] sm:$0xff]
        %v1276 = vld [vmem:[#allocation9 + $0x4c0] sm:$0xff]
        %v1277 = vld [vmem:[#allocation9 + $0x4c8] sm:$0xff]
        %v1278 = vld [vmem:[#allocation9 + $0x4d0] sm:$0xff]
        %v1279 = vld [vmem:[#allocation9 + $0x4d8] sm:$0xff]
        %v1280 = vld [vmem:[#allocation9 + $0x4e0] sm:$0xff]
        %v1281 = vld [vmem:[#allocation9 + $0x4e8] sm:$0xff]
        %v1282 = vld [vmem:[#allocation9 + $0x4f0] sm:$0xff]
        %v1283 = vld [vmem:[#allocation9 + $0x4f8] sm:$0xff]
        %v1284 = vld [vmem:[#allocation9 + $0x500] sm:$0xff]
        %v1285 = vld [vmem:[#allocation9 + $0x508] sm:$0xff]
        %v1286 = vld [vmem:[#allocation9 + $0x510] sm:$0xff]
        %v1287 = vld [vmem:[#allocation9 + $0x518] sm:$0xff]
        %v1288 = vld [vmem:[#allocation9 + $0x520] sm:$0xff]
        %v1289 = vld [vmem:[#allocation9 + $0x528] sm:$0xff]
        %v1290 = vld [vmem:[#allocation9 + $0x530] sm:$0xff]
        %v1291 = vld [vmem:[#allocation9 + $0x538] sm:$0xff]
        %v1292 = vld [vmem:[#allocation9 + $0x540] sm:$0xff]
        %v1293 = vld [vmem:[#allocation9 + $0x548] sm:$0xff]
        %v1294 = vld [vmem:[#allocation9 + $0x550] sm:$0xff]
        %v1295 = vld [vmem:[#allocation9 + $0x558] sm:$0xff]
        %v1296 = vld [vmem:[#allocation9 + $0x560] sm:$0xff]
        %v1297 = vld [vmem:[#allocation9 + $0x568] sm:$0xff]
        %v1298 = vld [vmem:[#allocation9 + $0x570] sm:$0xff]
        %v1299 = vld [vmem:[#allocation9 + $0x578] sm:$0xff]
        %v1300 = vld [vmem:[#allocation9 + $0x580] sm:$0xff]
        %v1301 = vld [vmem:[#allocation9 + $0x588] sm:$0xff]
        %v1302 = vld [vmem:[#allocation9 + $0x590] sm:$0xff]
        %v1303 = vld [vmem:[#allocation9 + $0x598] sm:$0xff]
        %v1304 = vld [vmem:[#allocation9 + $0x5a0] sm:$0xff]
        %v1305 = vld [vmem:[#allocation9 + $0x5a8] sm:$0xff]
        %v1306 = vld [vmem:[#allocation9 + $0x5b0] sm:$0xff]
        %v1307 = vld [vmem:[#allocation9 + $0x5b8] sm:$0xff]
        %v1308 = vld [vmem:[#allocation9 + $0x5c0] sm:$0xff]
        %v1309 = vld [vmem:[#allocation9 + $0x5c8] sm:$0xff]
        %v1310 = vld [vmem:[#allocation9 + $0x5d0] sm:$0xff]
        %v1311 = vld [vmem:[#allocation9 + $0x5d8] sm:$0xff]
        %v1312 = vld [vmem:[#allocation9 + $0x5e0] sm:$0xff]
        %v1313 = vld [vmem:[#allocation9 + $0x5e8] sm:$0xff]
        %v1314 = vld [vmem:[#allocation9 + $0x5f0] sm:$0xff]
        %v1315 = vld [vmem:[#allocation9 + $0x5f8] sm:$0xff]
        %v1316 = vld [vmem:[#allocation12] sm:$0x3f]
        %v1318 = vperm.slane %v1316, 0
        %v1319 = vperm.slane %v1316, 1
        %v1320 = vperm.slane %v1316, 2
        %v1321 = vperm.slane %v1316, 3
        %v1322 = vperm.slane %v1316, 4
        %v1323 = vperm.slane %v1316, 5
        %1330 = vmatpush.msra.mxu0 %v1214
        %1331 = vmatpush.msra.mxu0 %v1208
        %1332 = vmatpush.msra.mxu0 %v1202
        %1333 = vmatpush.msra.mxu0 %v1196
        %1334 = vmatpush.msra.mxu0 %v1190
        %1335 = vmatpush.msra.mxu0 %v1184
        %1336 = vmatpush.msra.mxu0 %v1178
        %1337 = vmatpush.msra.mxu0 %v1172
        %1338 = vmatpush.msra.mxu0 %v1166
        %1339 = vmatpush.msra.mxu0 %v1160
        %1340 = vmatpush.msra.mxu0 %v1154
        %1341 = vmatpush.msra.mxu0 %v1148
        %1342 = vmatpush.msra.mxu0 %v1142
        %1343 = vmatpush.msra.mxu0 %v1136
        %1344 = vmatpush.msra.mxu0 %v1130
        %1345 = vmatpush.msra.mxu0 %v1124
        %1346 = vmatmul.f32.gmra.mxu0 %v676
        %v1347 = vpop.f32.mrf.mxu0
        %v1348 = vadd.f32 %v1318, %v1347
        %1349 = vdwg.mxu0
        %1350 = vmatpush.msra.mxu0 %v1310
        %1351 = vmatpush.msra.mxu0 %v1304
        %1352 = vmatpush.msra.mxu0 %v1298
        %1353 = vmatpush.msra.mxu0 %v1292
        %1354 = vmatpush.msra.mxu0 %v1286
        %1355 = vmatpush.msra.mxu0 %v1280
        %1356 = vmatpush.msra.mxu0 %v1274
        %1357 = vmatpush.msra.mxu0 %v1268
        %1358 = vmatpush.msra.mxu0 %v1262
        %1359 = vmatpush.msra.mxu0 %v1256
        %1360 = vmatpush.msra.mxu0 %v1250
        %1361 = vmatpush.msra.mxu0 %v1244
        %1362 = vmatpush.msra.mxu0 %v1238
        %1363 = vmatpush.msra.mxu0 %v1232
        %1364 = vmatpush.msra.mxu0 %v1226
        %1365 = vmatpush.msra.mxu0 %v1220
        %1366 = vmatmul.f32.gmra.mxu0 %v677
        %v1367 = vpop.f32.mrf.mxu0
        %v1368 = vadd.f32 %v1348, %v1367
        %1369 = vdwg.mxu0
        %1370 = vmatpush.msra.mxu0 %v1215
        %1371 = vmatpush.msra.mxu0 %v1209
        %1372 = vmatpush.msra.mxu0 %v1203
        %1373 = vmatpush.msra.mxu0 %v1197
        %1374 = vmatpush.msra.mxu0 %v1191
        %1375 = vmatpush.msra.mxu0 %v1185
        %1376 = vmatpush.msra.mxu0 %v1179
        %1377 = vmatpush.msra.mxu0 %v1173
        %1378 = vmatpush.msra.mxu0 %v1167
        %1379 = vmatpush.msra.mxu0 %v1161
        %1380 = vmatpush.msra.mxu0 %v1155
        %1381 = vmatpush.msra.mxu0 %v1149
        %1382 = vmatpush.msra.mxu0 %v1143
        %1383 = vmatpush.msra.mxu0 %v1137
        %1384 = vmatpush.msra.mxu0 %v1131
        %1385 = vmatpush.msra.mxu0 %v1125
        %1386 = vmatmul.f32.gmra.mxu0 %v676
        %v1387 = vpop.f32.mrf.mxu0
        %v1388 = vadd.f32 %v1319, %v1387
        %1389 = vdwg.mxu0
        %1390 = vmatpush.msra.mxu0 %v1311
        %1391 = vmatpush.msra.mxu0 %v1305
        %1392 = vmatpush.msra.mxu0 %v1299
        %1393 = vmatpush.msra.mxu0 %v1293
        %1394 = vmatpush.msra.mxu0 %v1287
        %1395 = vmatpush.msra.mxu0 %v1281
        %1396 = vmatpush.msra.mxu0 %v1275
        %1397 = vmatpush.msra.mxu0 %v1269
        %1398 = vmatpush.msra.mxu0 %v1263
        %1399 = vmatpush.msra.mxu0 %v1257
        %1400 = vmatpush.msra.mxu0 %v1251
        %1401 = vmatpush.msra.mxu0 %v1245
        %1402 = vmatpush.msra.mxu0 %v1239
        %1403 = vmatpush.msra.mxu0 %v1233
        %1404 = vmatpush.msra.mxu0 %v1227
        %1405 = vmatpush.msra.mxu0 %v1221
        %1406 = vmatmul.f32.gmra.mxu0 %v677
        %v1407 = vpop.f32.mrf.mxu0
        %v1408 = vadd.f32 %v1388, %v1407
        %1409 = vdwg.mxu0
        %1410 = vmatpush.msra.mxu0 %v1216
        %1411 = vmatpush.msra.mxu0 %v1210
        %1412 = vmatpush.msra.mxu0 %v1204
        %1413 = vmatpush.msra.mxu0 %v1198
        %1414 = vmatpush.msra.mxu0 %v1192
        %1415 = vmatpush.msra.mxu0 %v1186
        %1416 = vmatpush.msra.mxu0 %v1180
        %1417 = vmatpush.msra.mxu0 %v1174
        %1418 = vmatpush.msra.mxu0 %v1168
        %1419 = vmatpush.msra.mxu0 %v1162
        %1420 = vmatpush.msra.mxu0 %v1156
        %1421 = vmatpush.msra.mxu0 %v1150
        %1422 = vmatpush.msra.mxu0 %v1144
        %1423 = vmatpush.msra.mxu0 %v1138
        %1424 = vmatpush.msra.mxu0 %v1132
        %1425 = vmatpush.msra.mxu0 %v1126
        %1426 = vmatmul.f32.gmra.mxu0 %v676
        %v1427 = vpop.f32.mrf.mxu0
        %v1428 = vadd.f32 %v1320, %v1427
        %1429 = vdwg.mxu0
        %1430 = vmatpush.msra.mxu0 %v1312
        %1431 = vmatpush.msra.mxu0 %v1306
        %1432 = vmatpush.msra.mxu0 %v1300
        %1433 = vmatpush.msra.mxu0 %v1294
        %1434 = vmatpush.msra.mxu0 %v1288
        %1435 = vmatpush.msra.mxu0 %v1282
        %1436 = vmatpush.msra.mxu0 %v1276
        %1437 = vmatpush.msra.mxu0 %v1270
        %1438 = vmatpush.msra.mxu0 %v1264
        %1439 = vmatpush.msra.mxu0 %v1258
        %1440 = vmatpush.msra.mxu0 %v1252
        %1441 = vmatpush.msra.mxu0 %v1246
        %1442 = vmatpush.msra.mxu0 %v1240
        %1443 = vmatpush.msra.mxu0 %v1234
        %1444 = vmatpush.msra.mxu0 %v1228
        %1445 = vmatpush.msra.mxu0 %v1222
        %1446 = vmatmul.f32.gmra.mxu0 %v677
        %v1447 = vpop.f32.mrf.mxu0
        %v1448 = vadd.f32 %v1428, %v1447
        %1449 = vdwg.mxu0
        %1450 = vmatpush.msra.mxu0 %v1217
        %1451 = vmatpush.msra.mxu0 %v1211
        %1452 = vmatpush.msra.mxu0 %v1205
        %1453 = vmatpush.msra.mxu0 %v1199
        %1454 = vmatpush.msra.mxu0 %v1193
        %1455 = vmatpush.msra.mxu0 %v1187
        %1456 = vmatpush.msra.mxu0 %v1181
        %1457 = vmatpush.msra.mxu0 %v1175
        %1458 = vmatpush.msra.mxu0 %v1169
        %1459 = vmatpush.msra.mxu0 %v1163
        %1460 = vmatpush.msra.mxu0 %v1157
        %1461 = vmatpush.msra.mxu0 %v1151
        %1462 = vmatpush.msra.mxu0 %v1145
        %1463 = vmatpush.msra.mxu0 %v1139
        %1464 = vmatpush.msra.mxu0 %v1133
        %1465 = vmatpush.msra.mxu0 %v1127
        %1466 = vmatmul.f32.gmra.mxu0 %v676
        %v1467 = vpop.f32.mrf.mxu0
        %v1468 = vadd.f32 %v1321, %v1467
        %1469 = vdwg.mxu0
        %1470 = vmatpush.msra.mxu0 %v1313
        %1471 = vmatpush.msra.mxu0 %v1307
        %1472 = vmatpush.msra.mxu0 %v1301
        %1473 = vmatpush.msra.mxu0 %v1295
        %1474 = vmatpush.msra.mxu0 %v1289
        %1475 = vmatpush.msra.mxu0 %v1283
        %1476 = vmatpush.msra.mxu0 %v1277
        %1477 = vmatpush.msra.mxu0 %v1271
        %1478 = vmatpush.msra.mxu0 %v1265
        %1479 = vmatpush.msra.mxu0 %v1259
        %1480 = vmatpush.msra.mxu0 %v1253
        %1481 = vmatpush.msra.mxu0 %v1247
        %1482 = vmatpush.msra.mxu0 %v1241
        %1483 = vmatpush.msra.mxu0 %v1235
        %1484 = vmatpush.msra.mxu0 %v1229
        %1485 = vmatpush.msra.mxu0 %v1223
        %1486 = vmatmul.f32.gmra.mxu0 %v677
        %v1487 = vpop.f32.mrf.mxu0
        %v1488 = vadd.f32 %v1468, %v1487
        %1489 = vdwg.mxu0
        %1490 = vmatpush.msra.mxu0 %v1218
        %1491 = vmatpush.msra.mxu0 %v1212
        %1492 = vmatpush.msra.mxu0 %v1206
        %1493 = vmatpush.msra.mxu0 %v1200
        %1494 = vmatpush.msra.mxu0 %v1194
        %1495 = vmatpush.msra.mxu0 %v1188
        %1496 = vmatpush.msra.mxu0 %v1182
        %1497 = vmatpush.msra.mxu0 %v1176
        %1498 = vmatpush.msra.mxu0 %v1170
        %1499 = vmatpush.msra.mxu0 %v1164
        %1500 = vmatpush.msra.mxu0 %v1158
        %1501 = vmatpush.msra.mxu0 %v1152
        %1502 = vmatpush.msra.mxu0 %v1146
        %1503 = vmatpush.msra.mxu0 %v1140
        %1504 = vmatpush.msra.mxu0 %v1134
        %1505 = vmatpush.msra.mxu0 %v1128
        %1506 = vmatmul.f32.gmra.mxu0 %v676
        %v1507 = vpop.f32.mrf.mxu0
        %v1508 = vadd.f32 %v1322, %v1507
        %1509 = vdwg.mxu0
        %1510 = vmatpush.msra.mxu0 %v1314
        %1511 = vmatpush.msra.mxu0 %v1308
        %1512 = vmatpush.msra.mxu0 %v1302
        %1513 = vmatpush.msra.mxu0 %v1296
        %1514 = vmatpush.msra.mxu0 %v1290
        %1515 = vmatpush.msra.mxu0 %v1284
        %1516 = vmatpush.msra.mxu0 %v1278
        %1517 = vmatpush.msra.mxu0 %v1272
        %1518 = vmatpush.msra.mxu0 %v1266
        %1519 = vmatpush.msra.mxu0 %v1260
        %1520 = vmatpush.msra.mxu0 %v1254
        %1521 = vmatpush.msra.mxu0 %v1248
        %1522 = vmatpush.msra.mxu0 %v1242
        %1523 = vmatpush.msra.mxu0 %v1236
        %1524 = vmatpush.msra.mxu0 %v1230
        %1525 = vmatpush.msra.mxu0 %v1224
        %1526 = vmatmul.f32.gmra.mxu0 %v677
        %v1527 = vpop.f32.mrf.mxu0
        %v1528 = vadd.f32 %v1508, %v1527
        %1529 = vdwg.mxu0
        %1530 = vmatpush.msra.mxu0 %v1219
        %1531 = vmatpush.msra.mxu0 %v1213
        %1532 = vmatpush.msra.mxu0 %v1207
        %1533 = vmatpush.msra.mxu0 %v1201
        %1534 = vmatpush.msra.mxu0 %v1195
        %1535 = vmatpush.msra.mxu0 %v1189
        %1536 = vmatpush.msra.mxu0 %v1183
        %1537 = vmatpush.msra.mxu0 %v1177
        %1538 = vmatpush.msra.mxu0 %v1171
        %1539 = vmatpush.msra.mxu0 %v1165
        %1540 = vmatpush.msra.mxu0 %v1159
        %1541 = vmatpush.msra.mxu0 %v1153
        %1542 = vmatpush.msra.mxu0 %v1147
        %1543 = vmatpush.msra.mxu0 %v1141
        %1544 = vmatpush.msra.mxu0 %v1135
        %1545 = vmatpush.msra.mxu0 %v1129
        %1546 = vmatmul.f32.gmra.mxu0 %v676
        %v1547 = vpop.f32.mrf.mxu0
        %v1548 = vadd.f32 %v1323, %v1547
        %1549 = vdwg.mxu0
        %1550 = vmatpush.msra.mxu0 %v1315
        %1551 = vmatpush.msra.mxu0 %v1309
        %1552 = vmatpush.msra.mxu0 %v1303
        %1553 = vmatpush.msra.mxu0 %v1297
        %1554 = vmatpush.msra.mxu0 %v1291
        %1555 = vmatpush.msra.mxu0 %v1285
        %1556 = vmatpush.msra.mxu0 %v1279
        %1557 = vmatpush.msra.mxu0 %v1273
        %1558 = vmatpush.msra.mxu0 %v1267
        %1559 = vmatpush.msra.mxu0 %v1261
        %1560 = vmatpush.msra.mxu0 %v1255
        %1561 = vmatpush.msra.mxu0 %v1249
        %1562 = vmatpush.msra.mxu0 %v1243
        %1563 = vmatpush.msra.mxu0 %v1237
        %1564 = vmatpush.msra.mxu0 %v1231
        %1565 = vmatpush.msra.mxu0 %v1225
        %1566 = vmatmul.f32.gmra.mxu0 %v677
        %v1567 = vpop.f32.mrf.mxu0
        %v1568 = vadd.f32 %v1548, %v1567
        %1569 = vdwg.mxu0
        %v1570 = vadd.f32 %v922, %v1368
        %v1571 = vadd.f32 %v962, %v1408
        %v1572 = vxor.u32 %v1570, 2147483648
        %v1573 = vxor.u32 %v1571, 2147483648
        %v1574 = vmul.f32 %v1572, 1.442695
        %v1575 = vpow.pop %v1574
        %v1576 = vmul.f32 %v1573, 1.442695
        %v1577 = vpow.pop %v1576
        %v1578 = vadd.f32 %v1575, 1.0
        %v1579 = vadd.f32 %v1577, 1.0
        %v1580 = vrcp.pop %v1578
        %v1581 = vmul.f32 %v1578, %v1580
        %v1582 = vsub.f32 1.0, %v1581
        %v1583 = vmul.f32 %v1580, %v1582
        %v1584 = vadd.f32 %v1580, %v1583
        %vm1585 = vweird.f32 %v1578
        %vm1586 = vweird.f32 %v1580
        %vm1587 = vmor %vm1585, %vm1586
        %v1588 = vsel %vm1587, %v1580, %v1584
        %v1589 = vand.u32 2147483647, %v1578
        %vm1590 = vcmp.eq.f32.partialorder %v1589, 8.507059e+37
        %v1591 = vand.u32 %v1578, 2147483648
        %v1592 = vor.u32 1.1754944e-38, %v1591
        %v1593 = vsel %vm1590, %v1592, %v1588
        %v1594 = vmul.f32 1.0, %v1593
        %v1595 = vrcp.pop %v1579
        %v1596 = vmul.f32 %v1579, %v1595
        %v1597 = vsub.f32 1.0, %v1596
        %v1598 = vmul.f32 %v1595, %v1597
        %v1599 = vadd.f32 %v1595, %v1598
        %vm1600 = vweird.f32 %v1579
        %vm1601 = vweird.f32 %v1595
        %vm1602 = vmor %vm1600, %vm1601
        %v1603 = vsel %vm1602, %v1595, %v1599
        %v1604 = vand.u32 2147483647, %v1579
        %vm1605 = vcmp.eq.f32.partialorder %v1604, 8.507059e+37
        %v1606 = vand.u32 %v1579, 2147483648
        %v1607 = vor.u32 1.1754944e-38, %v1606
        %v1608 = vsel %vm1605, %v1607, %v1603
        %v1609 = vmul.f32 1.0, %v1608
        %v1610 = vadd.f32 %v1002, %v1448
        %v1611 = vadd.f32 %v1042, %v1488
        %v1612 = vxor.u32 %v1610, 2147483648
        %v1613 = vxor.u32 %v1611, 2147483648
        %v1614 = vmul.f32 %v1612, 1.442695
        %v1615 = vpow.pop %v1614
        %v1616 = vmul.f32 %v1613, 1.442695
        %v1617 = vpow.pop %v1616
        %v1618 = vadd.f32 %v1615, 1.0
        %v1619 = vadd.f32 %v1617, 1.0
        %v1620 = vrcp.pop %v1618
        %v1621 = vmul.f32 %v1618, %v1620
        %v1622 = vsub.f32 1.0, %v1621
        %v1623 = vmul.f32 %v1620, %v1622
        %v1624 = vadd.f32 %v1620, %v1623
        %vm1625 = vweird.f32 %v1618
        %vm1626 = vweird.f32 %v1620
        %vm1627 = vmor %vm1625, %vm1626
        %v1628 = vsel %vm1627, %v1620, %v1624
        %v1629 = vand.u32 2147483647, %v1618
        %vm1630 = vcmp.eq.f32.partialorder %v1629, 8.507059e+37
        %v1631 = vand.u32 %v1618, 2147483648
        %v1632 = vor.u32 1.1754944e-38, %v1631
        %v1633 = vsel %vm1630, %v1632, %v1628
        %v1634 = vmul.f32 1.0, %v1633
        %v1635 = vrcp.pop %v1619
        %v1636 = vmul.f32 %v1619, %v1635
        %v1637 = vsub.f32 1.0, %v1636
        %v1638 = vmul.f32 %v1635, %v1637
        %v1639 = vadd.f32 %v1635, %v1638
        %vm1640 = vweird.f32 %v1619
        %vm1641 = vweird.f32 %v1635
        %vm1642 = vmor %vm1640, %vm1641
        %v1643 = vsel %vm1642, %v1635, %v1639
        %v1644 = vand.u32 2147483647, %v1619
        %vm1645 = vcmp.eq.f32.partialorder %v1644, 8.507059e+37
        %v1646 = vand.u32 %v1619, 2147483648
        %v1647 = vor.u32 1.1754944e-38, %v1646
        %v1648 = vsel %vm1645, %v1647, %v1643
        %v1649 = vmul.f32 1.0, %v1648
        %v1650 = vmul.f32 %v1594, %v1528
        %v1651 = vmul.f32 %v1609, %v1568
        %v1652 = vadd.f32 %v1082, %v1650
        %v1653 = vadd.f32 %v1122, %v1651
        %v1654 = vtanh.pop %v1652
        %v1655 = vtanh.pop %v1653
        %v1656 = vsub.f32 1.0, %v1634
        %v1657 = vsub.f32 1.0, %v1649
        %v1658 = vmul.f32 %v1656, %v1654
        %v1659 = vmul.f32 %v1657, %v1655
        %v1660 = vmul.f32 %v1634, %v676
        %v1661 = vmul.f32 %v1649, %v677
        %v1662 = vadd.f32 %v1658, %v1660
        %v1663 = vadd.f32 %v1659, %v1661
        %1664 = vst [vmem:[#allocation2] sm:$0xff] %v1662
        %1665 = vst [vmem:[#allocation2 + $0x8] sm:$0xff] %v1663
        %v1666 = vld [vmem:[%s0] sm:$0xff]
        %s1667 = sadd.s32 %s30, 1
        %v1668 = vstv %s1667
        %vm1669 = vcmp.eq.s32.totalorder %v1666, %v1668
        %v1670 = vld [vmem:[#allocation3] sm:$0xff]
        %v1671 = vld [vmem:[#allocation3 + $0x8] sm:$0xff]
        %v1672 = vsel %vm1669, 1, 0
        %1673 = vset.pattern.permute.xlu0 0
        %1674 = vperm.xlu0 %1673, %v1672
        %v1675 = vpop.permute.xlu0 %1674
        %vm1676 = vcmp.eq.s32.totalorder %v1675, 1
        %v1677 = vsel %vm1676, %v1662, %v1670
        %v1678 = vsel %vm1676, %v1663, %v1671
        %1679 = vst [vmem:[#allocation3] sm:$0xff] %v1677
        %1680 = vst [vmem:[#allocation3 + $0x8] sm:$0xff] %v1678
        %1681 = vst [vmem:[%s582] sm:$0xff] %v1662
        %1682 = vst [vmem:[%s582 + $0x8] sm:$0xff] %v1663
        %v1683 = vld [vmem:[#allocation17] sm:$0xff]
        %v1684 = vld [vmem:[#allocation17 + $0x8] sm:$0xff]
        %v1685 = vld [vmem:[#allocation17 + $0x10] sm:$0xff]
        %v1686 = vld [vmem:[#allocation17 + $0x18] sm:$0xff]
        %v1687 = vld [vmem:[#allocation17 + $0x20] sm:$0xff]
        %v1688 = vld [vmem:[#allocation17 + $0x28] sm:$0xff]
        %v1689 = vld [vmem:[#allocation17 + $0x30] sm:$0xff]
        %v1690 = vld [vmem:[#allocation17 + $0x38] sm:$0xff]
        %v1691 = vld [vmem:[#allocation17 + $0x40] sm:$0xff]
        %v1692 = vld [vmem:[#allocation17 + $0x48] sm:$0xff]
        %v1693 = vld [vmem:[#allocation17 + $0x50] sm:$0xff]
        %v1694 = vld [vmem:[#allocation17 + $0x58] sm:$0xff]
        %v1695 = vld [vmem:[#allocation17 + $0x60] sm:$0xff]
        %v1696 = vld [vmem:[#allocation17 + $0x68] sm:$0xff]
        %v1697 = vld [vmem:[#allocation17 + $0x70] sm:$0xff]
        %v1698 = vld [vmem:[#allocation17 + $0x78] sm:$0xff]
        %v1699 = vld [vmem:[#allocation17 + $0x80] sm:$0xff]
        %v1700 = vld [vmem:[#allocation17 + $0x88] sm:$0xff]
        %v1701 = vld [vmem:[#allocation17 + $0x90] sm:$0xff]
        %v1702 = vld [vmem:[#allocation17 + $0x98] sm:$0xff]
        %v1703 = vld [vmem:[#allocation17 + $0xa0] sm:$0xff]
        %v1704 = vld [vmem:[#allocation17 + $0xa8] sm:$0xff]
        %v1705 = vld [vmem:[#allocation17 + $0xb0] sm:$0xff]
        %v1706 = vld [vmem:[#allocation17 + $0xb8] sm:$0xff]
        %v1707 = vld [vmem:[#allocation17 + $0xc0] sm:$0xff]
        %v1708 = vld [vmem:[#allocation17 + $0xc8] sm:$0xff]
        %v1709 = vld [vmem:[#allocation17 + $0xd0] sm:$0xff]
        %v1710 = vld [vmem:[#allocation17 + $0xd8] sm:$0xff]
        %v1711 = vld [vmem:[#allocation17 + $0xe0] sm:$0xff]
        %v1712 = vld [vmem:[#allocation17 + $0xe8] sm:$0xff]
        %v1713 = vld [vmem:[#allocation17 + $0xf0] sm:$0xff]
        %v1714 = vld [vmem:[#allocation17 + $0xf8] sm:$0xff]
        %1715 = vmatpush.msra.mxu0 %v1698
        %1716 = vmatpush.msra.mxu0 %v1697
        %1717 = vmatpush.msra.mxu0 %v1696
        %1718 = vmatpush.msra.mxu0 %v1695
        %1719 = vmatpush.msra.mxu0 %v1694
        %1720 = vmatpush.msra.mxu0 %v1693
        %1721 = vmatpush.msra.mxu0 %v1692
        %1722 = vmatpush.msra.mxu0 %v1691
        %1723 = vmatpush.msra.mxu0 %v1690
        %1724 = vmatpush.msra.mxu0 %v1689
        %1725 = vmatpush.msra.mxu0 %v1688
        %1726 = vmatpush.msra.mxu0 %v1687
        %1727 = vmatpush.msra.mxu0 %v1686
        %1728 = vmatpush.msra.mxu0 %v1685
        %1729 = vmatpush.msra.mxu0 %v1684
        %1730 = vmatpush.msra.mxu0 %v1683
        %1731 = vmatmul.f32.gmra.mxu0 %v1662
        %v1732 = vpop.f32.mrf.mxu0
        %v1733 = vadd.f32 0.0, %v1732
        %1734 = vdwg.mxu0
        %1735 = vmatpush.msra.mxu0 %v1714
        %1736 = vmatpush.msra.mxu0 %v1713
        %1737 = vmatpush.msra.mxu0 %v1712
        %1738 = vmatpush.msra.mxu0 %v1711
        %1739 = vmatpush.msra.mxu0 %v1710
        %1740 = vmatpush.msra.mxu0 %v1709
        %1741 = vmatpush.msra.mxu0 %v1708
        %1742 = vmatpush.msra.mxu0 %v1707
        %1743 = vmatpush.msra.mxu0 %v1706
        %1744 = vmatpush.msra.mxu0 %v1705
        %1745 = vmatpush.msra.mxu0 %v1704
        %1746 = vmatpush.msra.mxu0 %v1703
        %1747 = vmatpush.msra.mxu0 %v1702
        %1748 = vmatpush.msra.mxu0 %v1701
        %1749 = vmatpush.msra.mxu0 %v1700
        %1750 = vmatpush.msra.mxu0 %v1699
        %1751 = vmatmul.f32.gmra.mxu0 %v1663
        %v1752 = vpop.f32.mrf.mxu0
        %v1753 = vadd.f32 %v1733, %v1752
        %1754 = vdwg.mxu0
        %1755 = vst [vmem:[%s586] sm:$0xff] %v1753
        %p1756 = scmp.eq.s32.totalorder %s30, 15
        // Predicated region
        $region105: #{forward.2} parent=63 // pred_check
          %p1757 = pneg %p1756
        $region106: #{forward.2} parent=63 // pred_check_branch
          %1759 = sbr.rel (%p1757) target = $region108
        $region107: #{forward.2} parent=63 // pred_region
          %v1760 = vld [vmem:[#allocation3] sm:$0xff]
          %v1761 = vld [vmem:[#allocation3 + $0x8] sm:$0xff]
          %v1762 = vld [vmem:[#allocation14] sm:$0xff]
          %v1763 = vld [vmem:[#allocation14 + $0x8] sm:$0xff]
          %v1764 = vld [vmem:[#allocation14 + $0x10] sm:$0xff]
          %v1765 = vld [vmem:[#allocation14 + $0x18] sm:$0xff]
          %v1766 = vld [vmem:[#allocation14 + $0x20] sm:$0xff]
          %v1767 = vld [vmem:[#allocation14 + $0x28] sm:$0xff]
          %v1768 = vld [vmem:[#allocation14 + $0x30] sm:$0xff]
          %v1769 = vld [vmem:[#allocation14 + $0x38] sm:$0xff]
          %v1770 = vld [vmem:[#allocation14 + $0x40] sm:$0xff]
          %v1771 = vld [vmem:[#allocation14 + $0x48] sm:$0xff]
          %v1772 = vld [vmem:[#allocation14 + $0x50] sm:$0xff]
          %v1773 = vld [vmem:[#allocation14 + $0x58] sm:$0xff]
          %v1774 = vld [vmem:[#allocation14 + $0x60] sm:$0xff]
          %v1775 = vld [vmem:[#allocation14 + $0x68] sm:$0xff]
          %v1776 = vld [vmem:[#allocation14 + $0x70] sm:$0xff]
          %v1777 = vld [vmem:[#allocation14 + $0x78] sm:$0xff]
          %v1778 = vld [vmem:[#allocation14 + $0x80] sm:$0xff]
          %v1779 = vld [vmem:[#allocation14 + $0x88] sm:$0xff]
          %v1780 = vld [vmem:[#allocation14 + $0x90] sm:$0xff]
          %v1781 = vld [vmem:[#allocation14 + $0x98] sm:$0xff]
          %v1782 = vld [vmem:[#allocation14 + $0xa0] sm:$0xff]
          %v1783 = vld [vmem:[#allocation14 + $0xa8] sm:$0xff]
          %v1784 = vld [vmem:[#allocation14 + $0xb0] sm:$0xff]
          %v1785 = vld [vmem:[#allocation14 + $0xb8] sm:$0xff]
          %v1786 = vld [vmem:[#allocation14 + $0xc0] sm:$0xff]
          %v1787 = vld [vmem:[#allocation14 + $0xc8] sm:$0xff]
          %v1788 = vld [vmem:[#allocation14 + $0xd0] sm:$0xff]
          %v1789 = vld [vmem:[#allocation14 + $0xd8] sm:$0xff]
          %v1790 = vld [vmem:[#allocation14 + $0xe0] sm:$0xff]
          %v1791 = vld [vmem:[#allocation14 + $0xe8] sm:$0xff]
          %v1792 = vld [vmem:[#allocation14 + $0xf0] sm:$0xff]
          %v1793 = vld [vmem:[#allocation14 + $0xf8] sm:$0xff]
          %v1794 = vld [vmem:[#allocation14 + $0x100] sm:$0xff]
          %v1795 = vld [vmem:[#allocation14 + $0x108] sm:$0xff]
          %v1796 = vld [vmem:[#allocation14 + $0x110] sm:$0xff]
          %v1797 = vld [vmem:[#allocation14 + $0x118] sm:$0xff]
          %v1798 = vld [vmem:[#allocation14 + $0x120] sm:$0xff]
          %v1799 = vld [vmem:[#allocation14 + $0x128] sm:$0xff]
          %v1800 = vld [vmem:[#allocation14 + $0x130] sm:$0xff]
          %v1801 = vld [vmem:[#allocation14 + $0x138] sm:$0xff]
          %v1802 = vld [vmem:[#allocation14 + $0x140] sm:$0xff]
          %v1803 = vld [vmem:[#allocation14 + $0x148] sm:$0xff]
          %v1804 = vld [vmem:[#allocation14 + $0x150] sm:$0xff]
          %v1805 = vld [vmem:[#allocation14 + $0x158] sm:$0xff]
          %v1806 = vld [vmem:[#allocation14 + $0x160] sm:$0xff]
          %v1807 = vld [vmem:[#allocation14 + $0x168] sm:$0xff]
          %v1808 = vld [vmem:[#allocation14 + $0x170] sm:$0xff]
          %v1809 = vld [vmem:[#allocation14 + $0x178] sm:$0xff]
          %v1810 = vld [vmem:[#allocation14 + $0x180] sm:$0xff]
          %v1811 = vld [vmem:[#allocation14 + $0x188] sm:$0xff]
          %v1812 = vld [vmem:[#allocation14 + $0x190] sm:$0xff]
          %v1813 = vld [vmem:[#allocation14 + $0x198] sm:$0xff]
          %v1814 = vld [vmem:[#allocation14 + $0x1a0] sm:$0xff]
          %v1815 = vld [vmem:[#allocation14 + $0x1a8] sm:$0xff]
          %v1816 = vld [vmem:[#allocation14 + $0x1b0] sm:$0xff]
          %v1817 = vld [vmem:[#allocation14 + $0x1b8] sm:$0xff]
          %v1818 = vld [vmem:[#allocation14 + $0x1c0] sm:$0xff]
          %v1819 = vld [vmem:[#allocation14 + $0x1c8] sm:$0xff]
          %v1820 = vld [vmem:[#allocation14 + $0x1d0] sm:$0xff]
          %v1821 = vld [vmem:[#allocation14 + $0x1d8] sm:$0xff]
          %v1822 = vld [vmem:[#allocation14 + $0x1e0] sm:$0xff]
          %v1823 = vld [vmem:[#allocation14 + $0x1e8] sm:$0xff]
          %v1824 = vld [vmem:[#allocation14 + $0x1f0] sm:$0xff]
          %v1825 = vld [vmem:[#allocation14 + $0x1f8] sm:$0xff]
          %v1826 = vld [vmem:[#allocation15] sm:$0x3]
          %v1828 = vperm.slane %v1826, 0
          %v1829 = vperm.slane %v1826, 1
          %1832 = vmatpush.msra.mxu0 %v1792
          %1833 = vmatpush.msra.mxu0 %v1790
          %1834 = vmatpush.msra.mxu0 %v1788
          %1835 = vmatpush.msra.mxu0 %v1786
          %1836 = vmatpush.msra.mxu0 %v1784
          %1837 = vmatpush.msra.mxu0 %v1782
          %1838 = vmatpush.msra.mxu0 %v1780
          %1839 = vmatpush.msra.mxu0 %v1778
          %1840 = vmatpush.msra.mxu0 %v1776
          %1841 = vmatpush.msra.mxu0 %v1774
          %1842 = vmatpush.msra.mxu0 %v1772
          %1843 = vmatpush.msra.mxu0 %v1770
          %1844 = vmatpush.msra.mxu0 %v1768
          %1845 = vmatpush.msra.mxu0 %v1766
          %1846 = vmatpush.msra.mxu0 %v1764
          %1847 = vmatpush.msra.mxu0 %v1762
          %1848 = vmatmul.f32.gmra.mxu0 %v1760
          %v1849 = vpop.f32.mrf.mxu0
          %v1850 = vadd.f32 %v1828, %v1849
          %1851 = vdwg.mxu0
          %1852 = vmatpush.msra.mxu0 %v1824
          %1853 = vmatpush.msra.mxu0 %v1822
          %1854 = vmatpush.msra.mxu0 %v1820
          %1855 = vmatpush.msra.mxu0 %v1818
          %1856 = vmatpush.msra.mxu0 %v1816
          %1857 = vmatpush.msra.mxu0 %v1814
          %1858 = vmatpush.msra.mxu0 %v1812
          %1859 = vmatpush.msra.mxu0 %v1810
          %1860 = vmatpush.msra.mxu0 %v1808
          %1861 = vmatpush.msra.mxu0 %v1806
          %1862 = vmatpush.msra.mxu0 %v1804
          %1863 = vmatpush.msra.mxu0 %v1802
          %1864 = vmatpush.msra.mxu0 %v1800
          %1865 = vmatpush.msra.mxu0 %v1798
          %1866 = vmatpush.msra.mxu0 %v1796
          %1867 = vmatpush.msra.mxu0 %v1794
          %1868 = vmatmul.f32.gmra.mxu0 %v1761
          %v1869 = vpop.f32.mrf.mxu0
          %v1870 = vadd.f32 %v1850, %v1869
          %1871 = vdwg.mxu0
          %1872 = vmatpush.msra.mxu0 %v1793
          %1873 = vmatpush.msra.mxu0 %v1791
          %1874 = vmatpush.msra.mxu0 %v1789
          %1875 = vmatpush.msra.mxu0 %v1787
          %1876 = vmatpush.msra.mxu0 %v1785
          %1877 = vmatpush.msra.mxu0 %v1783
          %1878 = vmatpush.msra.mxu0 %v1781
          %1879 = vmatpush.msra.mxu0 %v1779
          %1880 = vmatpush.msra.mxu0 %v1777
          %1881 = vmatpush.msra.mxu0 %v1775
          %1882 = vmatpush.msra.mxu0 %v1773
          %1883 = vmatpush.msra.mxu0 %v1771
          %1884 = vmatpush.msra.mxu0 %v1769
          %1885 = vmatpush.msra.mxu0 %v1767
          %1886 = vmatpush.msra.mxu0 %v1765
          %1887 = vmatpush.msra.mxu0 %v1763
          %1888 = vmatmul.f32.gmra.mxu0 %v1760
          %v1889 = vpop.f32.mrf.mxu0
          %v1890 = vadd.f32 %v1829, %v1889
          %1891 = vdwg.mxu0
          %1892 = vmatpush.msra.mxu0 %v1825
          %1893 = vmatpush.msra.mxu0 %v1823
          %1894 = vmatpush.msra.mxu0 %v1821
          %1895 = vmatpush.msra.mxu0 %v1819
          %1896 = vmatpush.msra.mxu0 %v1817
          %1897 = vmatpush.msra.mxu0 %v1815
          %1898 = vmatpush.msra.mxu0 %v1813
          %1899 = vmatpush.msra.mxu0 %v1811
          %1900 = vmatpush.msra.mxu0 %v1809
          %1901 = vmatpush.msra.mxu0 %v1807
          %1902 = vmatpush.msra.mxu0 %v1805
          %1903 = vmatpush.msra.mxu0 %v1803
          %1904 = vmatpush.msra.mxu0 %v1801
          %1905 = vmatpush.msra.mxu0 %v1799
          %1906 = vmatpush.msra.mxu0 %v1797
          %1907 = vmatpush.msra.mxu0 %v1795
          %1908 = vmatmul.f32.gmra.mxu0 %v1761
          %v1909 = vpop.f32.mrf.mxu0
          %v1910 = vadd.f32 %v1890, %v1909
          %1911 = vdwg.mxu0
          %v1912 = vtanh.pop %v1870
          %v1913 = vtanh.pop %v1910
          %1914 = vst [vmem:[%s13] sm:$0xff] %v1912
          %1915 = vst [vmem:[%s13 + $0x8] sm:$0xff] %v1913
        $region108: #{forward.2} parent=63 // pred_fallthru
          _
        %p1916 = scmp.lt.s32.totalorder %s30, 15
        %s1917 = scalar_select %p1916, %s30, 15
        %s1918 = smul.addr %s1917, 2
        %s1919 = smul.addr %s1918, 8
        %s1920 = scalar_lea.vmem %s11, %s1919
        %p1921 = scmp.lt.s32.totalorder %s30, 15
        %s1922 = scalar_select %p1921, %s30, 15
        %s1923 = smul.addr %s1922, 8
        %s1924 = scalar_lea.vmem %s12, %s1923
        // Predicated region
        $region109: #{forward.2} parent=63 // pred_check
          %p1925 = pneg %p284
        $region110: #{forward.2} parent=63 // pred_check_branch
          %1927 = sbr.rel (%p1925) target = $region112
        $region111: #{forward.2} parent=63 // pred_region
          _
        $region112: #{forward.2} parent=63 // pred_fallthru
          _
        // Predicated region
        $region113: #{forward.2} parent=63 // pred_check
          %p1928 = pneg %p310
        $region114: #{forward.2} parent=63 // pred_check_branch
          %1930 = sbr.rel (%p1928) target = $region116
        $region115: #{forward.2} parent=63 // pred_region
          _
        $region116: #{forward.2} parent=63 // pred_fallthru
          _
        // Predicated region
        $region117: #{forward.2} parent=63 // pred_check
          %p1931 = pneg %p331
        $region118: #{forward.2} parent=63 // pred_check_branch
          %1933 = sbr.rel (%p1931) target = $region120
        $region119: #{forward.2} parent=63 // pred_region
          _
        $region120: #{forward.2} parent=63 // pred_fallthru
          _
        // Predicated region
        $region121: #{forward.2} parent=63 // pred_check
          %p1934 = pneg %p331
        $region122: #{forward.2} parent=63 // pred_check_branch
          %1936 = sbr.rel (%p1934) target = $region124
        $region123: #{forward.2} parent=63 // pred_region
          _
        $region124: #{forward.2} parent=63 // pred_fallthru
          _
      $region64: #{forward.2} parent=5 // pred_fallthru
        _
      %p1937 = scmp.le.s32.totalorder 2, %s25
      // Predicated region
      $region125: #{forward.2} parent=5 // pred_check
        %p1938 = pneg %p1937
      $region126: #{forward.2} parent=5 // pred_check_branch
        %1940 = sbr.rel (%p1938) target = $region128
      $region127: #{forward.2} parent=5 // pred_region
        %s1941 = ssub.s32 %s25, 2
        // Predicated region
        $region129: #{forward.2} parent=127 // pred_check
          %p1942 = pneg %p290
        $region130: #{forward.2} parent=127 // pred_check_branch
          %1944 = sbr.rel (%p1942) target = $region132
        $region131: #{forward.2} parent=127 // pred_region
          %p1945 = scmp.lt.s32.totalorder %s31, 15
          %s1946 = scalar_select %p1945, %s31, 15
          %s1947 = smul.addr %s1946, 2
          %s1948 = smul.addr %s1947, 8
          %s1949 = scalar_lea.vmem %s11, %s1948
        $region132: #{forward.2} parent=127 // pred_fallthru
          _
        // Predicated region
        $region133: #{forward.2} parent=127 // pred_check
          %p1950 = pneg %p316
        $region134: #{forward.2} parent=127 // pred_check_branch
          %1952 = sbr.rel (%p1950) target = $region136
        $region135: #{forward.2} parent=127 // pred_region
          %p1953 = scmp.lt.s32.totalorder %s31, 15
          %s1954 = scalar_select %p1953, %s31, 15
          %s1955 = smul.addr %s1954, 8
          %s1956 = scalar_lea.vmem %s12, %s1955
        $region136: #{forward.2} parent=127 // pred_fallthru
          _
      $region128: #{forward.2} parent=5 // pred_fallthru
        _
    $region6: #{forward.2} parent=1 // loop_footer
      %s29 = sadd.s32 1, %s25
    $region7: #{forward.2} parent=1 // loop_footer_branch
      %24 = sbr.rel target = $region3
    $region8: #{forward.2} parent=1 // loop_exit
      _
    %1957 = vsyncpa [#allocation5], 1
    %s1958 = scalar_lea.sflag [#allocation5], 1
    %1959 = vsyncpa %s1958, 1
    %1960 = vsyncpa [#allocation7], 1
    %1961 = vsyncpa [#allocation10], 1
    %1962 = vsyncpa [#allocation13], 1
    %1963 = vsyncpa [#allocation16], 1

// kernel: forward.3
$region0: #{forward.3}
  #allocation0 [shape = 'u32[]', space=smem, size = 0x4, offset = 0x4, fixed_abs, tag = 'smem constant byte address 0x4 - core index']
  #allocation1 [shape = 'u32[72,128]{1,0:T(1,128)}', space=vmem, size = 0x9000, scoped, tag = 'internal scratch']
  #allocation2 [shape = 'f32[8,256]{1,0:T(8,128)}', space=vmem, size = 0x2000, scoped, tag = 'scratch operand']
  #allocation3 [shape = 'f32[8,1024]{1,0:T(8,128)}', space=vmem, size = 0x8000, scoped, tag = 'scratch operand']
  %s0 = inlined_call_operand.vmem [shape: f32[8,1024], index: 0, kind: input, shape index: {}]
  %s1 = inlined_call_operand.vmem [shape: f32[8,256], index: 1, kind: input, shape index: {}]
  %s2 = inlined_call_operand.vmem [shape: f32[16,8,256], index: 2, kind: input, shape index: {}]
  %s3 = inlined_call_operand.vmem [shape: f32[16,8,128], index: 3, kind: input, shape index: {}]
  %s4 = inlined_call_operand.vmem [shape: f32[16,8], index: 4, kind: input, shape index: {}]
  %s5 = inlined_call_operand.hbm [shape: f32[1024,384], index: 5, kind: input, shape index: {}]
  %s6 = inlined_call_operand.hbm [shape: f32[256,128], index: 6, kind: input, shape index: {}]
  %s7 = inlined_call_operand.hbm [shape: f32[1,128], index: 7, kind: input, shape index: {}]
  %s8 = inlined_call_operand.hbm [shape: f32[384,768], index: 8, kind: input, shape index: {}]
  %s9 = inlined_call_operand.hbm [shape: f32[256,768], index: 9, kind: input, shape index: {}]
  %s10 = inlined_call_operand.hbm [shape: f32[256,768], index: 10, kind: input, shape index: {}]
  %s11 = inlined_call_operand.hbm [shape: f32[1,768], index: 11, kind: input, shape index: {}]
  %s12 = inlined_call_operand.hbm [shape: f32[1,768], index: 12, kind: input, shape index: {}]
  %s13 = inlined_call_operand.hbm [shape: f32[256,1024], index: 13, kind: input, shape index: {}]
  %s14 = inlined_call_operand.hbm [shape: f32[256,1024], index: 14, kind: input, shape index: {}]
  %s15 = inlined_call_operand.hbm [shape: f32[1,1024], index: 15, kind: input, shape index: {}]
  %s16 = inlined_call_operand.vmem [shape: f32[7,8,1024], index: 16, kind: output, shape index: {}]
  %s17 = sld [smem:[#allocation0]]
  $region145: #{forward.3} parent=0
    _
  %s19 = ssub.s32 1, %s17
  %s20 = scalar_select 0, %s19, %s17
  $region1: #{forward.3} parent=0
    #allocation4 [shape = 'u8[1572864]{0}', space=vmem, size = 0x180000, scoped, tag = 'input window, operand 5, single buffered']
    #allocation5 [shape = 's32[2]{0}', space=sflag, size = 0x8, scoped, tag = 'scoped memory for forward.3']
    #allocation6 [shape = 'u8[131072]{0}', space=vmem, size = 0x20000, scoped, tag = 'input window, operand 6, single buffered']
    #allocation7 [shape = 's32[1]{0}', space=sflag, size = 0x4, scoped, tag = 'scoped memory for forward.3']
    #allocation8 [shape = 'u8[512]{0}', space=vmem, size = 0x400, scoped, tag = 'input window, operand 7, single buffered']
    #allocation9 [shape = 'u8[1179648]{0}', space=vmem, size = 0x120000, scoped, tag = 'input window, operand 8, single buffered']
    #allocation10 [shape = 's32[1]{0}', space=sflag, size = 0x4, scoped, tag = 'scoped memory for forward.3']
    #allocation11 [shape = 'u8[786432]{0}', space=vmem, size = 0xc0000, scoped, tag = 'input window, operand 9, single buffered']
    #allocation12 [shape = 'u8[786432]{0}', space=vmem, size = 0xc0000, scoped, tag = 'input window, operand 10, single buffered']
    #allocation13 [shape = 's32[1]{0}', space=sflag, size = 0x4, scoped, tag = 'scoped memory for forward.3']
    #allocation14 [shape = 'u8[3072]{0}', space=vmem, size = 0xc00, scoped, tag = 'input window, operand 11, single buffered']
    #allocation15 [shape = 'u8[3072]{0}', space=vmem, size = 0xc00, scoped, tag = 'input window, operand 12, single buffered']
    #allocation16 [shape = 's32[1]{0}', space=sflag, size = 0x4, scoped, tag = 'scoped memory for forward.3']
    #allocation17 [shape = 'u8[1048576]{0}', space=vmem, size = 0x100000, scoped, tag = 'input window, operand 13, single buffered']
    #allocation18 [shape = 'u8[1048576]{0}', space=vmem, size = 0x100000, scoped, tag = 'input window, operand 14, single buffered']
    #allocation19 [shape = 's32[1]{0}', space=sflag, size = 0x4, scoped, tag = 'scoped memory for forward.3']
    #allocation20 [shape = 'u8[4096]{0}', space=vmem, size = 0x1000, scoped, tag = 'input window, operand 15, single buffered']
    %21 = vsyncpa [#allocation5], 0
    %22 = vsyncpa [#allocation7], 0
    %23 = vsyncpa [#allocation10], 0
    %24 = vsyncpa [#allocation13], 0
    %25 = vsyncpa [#allocation16], 0
    %26 = vsyncpa [#allocation19], 0
    loop: start=0, step=1, limit=9
    $region2: #{forward.3} parent=1 // loop_pre_header
      _
    $region3: #{forward.3} parent=1 // loop_header
      %s28 = sphi 0, %s32
      %p29 = scmp.ge.s32.totalorder %s28, 9
      %s36 = sphi 0, %s36
      %s38 = sphi 0, %s36
      %s39 = sphi 0, %s38
      %s53 = sphi 0, %s39
      %s57 = sphi 0, %s57
      %s59 = sphi 0, %s57
      %s60 = sphi 0, %s59
      %s74 = sphi 0, %s60
      %s78 = sphi 0, %s78
      %s80 = sphi 0, %s78
      %s81 = sphi 0, %s80
      %s95 = sphi 0, %s81
      %s99 = sphi 0, %s99
      %s101 = sphi 0, %s99
      %s102 = sphi 0, %s101
      %s116 = sphi 0, %s102
      %s120 = sphi 0, %s120
      %s122 = sphi 0, %s120
      %s123 = sphi 0, %s122
      %s137 = sphi 0, %s123
      %s141 = sphi 0, %s141
      %s143 = sphi 0, %s141
      %s144 = sphi 0, %s143
      %s158 = sphi 0, %s144
      %s162 = sphi 0, %s162
      %s164 = sphi 0, %s162
      %s165 = sphi 0, %s164
      %s179 = sphi 0, %s165
      %s183 = sphi 0, %s183
      %s185 = sphi 0, %s183
      %s186 = sphi 0, %s185
      %s200 = sphi 0, %s186
      %s204 = sphi 0, %s204
      %s206 = sphi 0, %s204
      %s207 = sphi 0, %s206
      %s221 = sphi 0, %s207
      %s225 = sphi 0, %s225
      %s227 = sphi 0, %s225
      %s228 = sphi 0, %s227
      %s242 = sphi 0, %s228
      %s246 = sphi 0, %s246
      %s248 = sphi 0, %s246
      %s249 = sphi 0, %s248
      %s263 = sphi 0, %s249
      %s267 = sphi 0, %s267
      %s269 = sphi 0, %s267
      %s270 = sphi 0, %s269
      %s284 = sphi 0, %s270
      %s288 = sphi 0, %s288
      %s290 = sphi 0, %s288
      %s291 = sphi 0, %s290
      %s305 = sphi 0, %s291
      %s309 = sphi 0, %s309
      %s311 = sphi 0, %s309
      %s312 = sphi 0, %s311
      %s326 = sphi 0, %s312
      %s330 = sphi 0, %s330
      %s332 = sphi 0, %s330
      %s333 = sphi 0, %s332
      %s347 = sphi 0, %s333
      %s351 = sphi 0, %s351
      %s353 = sphi 0, %s351
      %s354 = sphi 0, %s353
      %s368 = sphi 0, %s354
      %s374 = sphi 0, %s376
      %s377 = sphi 0, %s374
      %s378 = sphi 0, %s377
      %s394 = sphi 0, %s378
    $region4: #{forward.3} parent=1 // loop_header_branch
      %31 = sbr.rel (%p29) target = $region8
    $region5: #{forward.3} parent=1 // loop_body
      %s33 = ssub.s32 %s28, 1
      %s34 = ssub.s32 %s28, 2
      %s35 = sadd.s32 %s28, 1
      %s37 = sadd.s32 %s36, 1
      %p40 = scmp.eq.s32.totalorder %s28, 6
      %p41 = scmp.ne.s32.totalorder %s36, %s38
      %p42 = scmp.eq.s32.totalorder %s28, 0
      %p43 = por %p41, %p42
      %p44 = scmp.ne.s32.totalorder %s36, %s38
      %p45 = scmp.eq.s32.totalorder %s33, 6
      %p46 = por %p44, %p45
      %p47 = scmp.ne.s32.totalorder %s38, %s39
      %p48 = scmp.eq.s32.totalorder %s33, 0
      %p49 = por %p47, %p48
      %p50 = scmp.ne.s32.totalorder %s38, %s39
      %p51 = scmp.eq.s32.totalorder %s34, 6
      %p52 = por %p50, %p51
      %p54 = scmp.ne.s32.totalorder %s39, %s53
      %p55 = scmp.eq.s32.totalorder %s34, 0
      %p56 = por %p54, %p55
      %s58 = sadd.s32 %s57, 1
      %p61 = scmp.eq.s32.totalorder %s28, 6
      %p62 = scmp.ne.s32.totalorder %s57, %s59
      %p63 = scmp.eq.s32.totalorder %s28, 0
      %p64 = por %p62, %p63
      %p65 = scmp.ne.s32.totalorder %s57, %s59
      %p66 = scmp.eq.s32.totalorder %s33, 6
      %p67 = por %p65, %p66
      %p68 = scmp.ne.s32.totalorder %s59, %s60
      %p69 = scmp.eq.s32.totalorder %s33, 0
      %p70 = por %p68, %p69
      %p71 = scmp.ne.s32.totalorder %s59, %s60
      %p72 = scmp.eq.s32.totalorder %s34, 6
      %p73 = por %p71, %p72
      %p75 = scmp.ne.s32.totalorder %s60, %s74
      %p76 = scmp.eq.s32.totalorder %s34, 0
      %p77 = por %p75, %p76
      %s79 = sadd.s32 %s78, 1
      %p82 = scmp.eq.s32.totalorder %s28, 6
      %p83 = scmp.ne.s32.totalorder %s78, %s80
      %p84 = scmp.eq.s32.totalorder %s28, 0
      %p85 = por %p83, %p84
      %p86 = scmp.ne.s32.totalorder %s78, %s80
      %p87 = scmp.eq.s32.totalorder %s33, 6
      %p88 = por %p86, %p87
      %p89 = scmp.ne.s32.totalorder %s80, %s81
      %p90 = scmp.eq.s32.totalorder %s33, 0
      %p91 = por %p89, %p90
      %p92 = scmp.ne.s32.totalorder %s80, %s81
      %p93 = scmp.eq.s32.totalorder %s34, 6
      %p94 = por %p92, %p93
      %p96 = scmp.ne.s32.totalorder %s81, %s95
      %p97 = scmp.eq.s32.totalorder %s34, 0
      %p98 = por %p96, %p97
      %s100 = sadd.s32 %s99, 1
      %p103 = scmp.eq.s32.totalorder %s28, 6
      %p104 = scmp.ne.s32.totalorder %s99, %s101
      %p105 = scmp.eq.s32.totalorder %s28, 0
      %p106 = por %p104, %p105
      %p107 = scmp.ne.s32.totalorder %s99, %s101
      %p108 = scmp.eq.s32.totalorder %s33, 6
      %p109 = por %p107, %p108
      %p110 = scmp.ne.s32.totalorder %s101, %s102
      %p111 = scmp.eq.s32.totalorder %s33, 0
      %p112 = por %p110, %p111
      %p113 = scmp.ne.s32.totalorder %s101, %s102
      %p114 = scmp.eq.s32.totalorder %s34, 6
      %p115 = por %p113, %p114
      %p117 = scmp.ne.s32.totalorder %s102, %s116
      %p118 = scmp.eq.s32.totalorder %s34, 0
      %p119 = por %p117, %p118
      %s121 = sadd.s32 %s120, 1
      %p124 = scmp.eq.s32.totalorder %s28, 6
      %p125 = scmp.ne.s32.totalorder %s120, %s122
      %p126 = scmp.eq.s32.totalorder %s28, 0
      %p127 = por %p125, %p126
      %p128 = scmp.ne.s32.totalorder %s120, %s122
      %p129 = scmp.eq.s32.totalorder %s33, 6
      %p130 = por %p128, %p129
      %p131 = scmp.ne.s32.totalorder %s122, %s123
      %p132 = scmp.eq.s32.totalorder %s33, 0
      %p133 = por %p131, %p132
      %p134 = scmp.ne.s32.totalorder %s122, %s123
      %p135 = scmp.eq.s32.totalorder %s34, 6
      %p136 = por %p134, %p135
      %p138 = scmp.ne.s32.totalorder %s123, %s137
      %p139 = scmp.eq.s32.totalorder %s34, 0
      %p140 = por %p138, %p139
      %s142 = sadd.s32 %s141, 1
      %p145 = scmp.eq.s32.totalorder %s28, 6
      %p146 = scmp.ne.s32.totalorder %s141, %s143
      %p147 = scmp.eq.s32.totalorder %s28, 0
      %p148 = por %p146, %p147
      %p149 = scmp.ne.s32.totalorder %s141, %s143
      %p150 = scmp.eq.s32.totalorder %s33, 6
      %p151 = por %p149, %p150
      %p152 = scmp.ne.s32.totalorder %s143, %s144
      %p153 = scmp.eq.s32.totalorder %s33, 0
      %p154 = por %p152, %p153
      %p155 = scmp.ne.s32.totalorder %s143, %s144
      %p156 = scmp.eq.s32.totalorder %s34, 6
      %p157 = por %p155, %p156
      %p159 = scmp.ne.s32.totalorder %s144, %s158
      %p160 = scmp.eq.s32.totalorder %s34, 0
      %p161 = por %p159, %p160
      %s163 = sadd.s32 %s162, 1
      %p166 = scmp.eq.s32.totalorder %s28, 6
      %p167 = scmp.ne.s32.totalorder %s162, %s164
      %p168 = scmp.eq.s32.totalorder %s28, 0
      %p169 = por %p167, %p168
      %p170 = scmp.ne.s32.totalorder %s162, %s164
      %p171 = scmp.eq.s32.totalorder %s33, 6
      %p172 = por %p170, %p171
      %p173 = scmp.ne.s32.totalorder %s164, %s165
      %p174 = scmp.eq.s32.totalorder %s33, 0
      %p175 = por %p173, %p174
      %p176 = scmp.ne.s32.totalorder %s164, %s165
      %p177 = scmp.eq.s32.totalorder %s34, 6
      %p178 = por %p176, %p177
      %p180 = scmp.ne.s32.totalorder %s165, %s179
      %p181 = scmp.eq.s32.totalorder %s34, 0
      %p182 = por %p180, %p181
      %s184 = sadd.s32 %s183, 1
      %p187 = scmp.eq.s32.totalorder %s28, 6
      %p188 = scmp.ne.s32.totalorder %s183, %s185
      %p189 = scmp.eq.s32.totalorder %s28, 0
      %p190 = por %p188, %p189
      %p191 = scmp.ne.s32.totalorder %s183, %s185
      %p192 = scmp.eq.s32.totalorder %s33, 6
      %p193 = por %p191, %p192
      %p194 = scmp.ne.s32.totalorder %s185, %s186
      %p195 = scmp.eq.s32.totalorder %s33, 0
      %p196 = por %p194, %p195
      %p197 = scmp.ne.s32.totalorder %s185, %s186
      %p198 = scmp.eq.s32.totalorder %s34, 6
      %p199 = por %p197, %p198
      %p201 = scmp.ne.s32.totalorder %s186, %s200
      %p202 = scmp.eq.s32.totalorder %s34, 0
      %p203 = por %p201, %p202
      %s205 = sadd.s32 %s204, 1
      %p208 = scmp.eq.s32.totalorder %s28, 6
      %p209 = scmp.ne.s32.totalorder %s204, %s206
      %p210 = scmp.eq.s32.totalorder %s28, 0
      %p211 = por %p209, %p210
      %p212 = scmp.ne.s32.totalorder %s204, %s206
      %p213 = scmp.eq.s32.totalorder %s33, 6
      %p214 = por %p212, %p213
      %p215 = scmp.ne.s32.totalorder %s206, %s207
      %p216 = scmp.eq.s32.totalorder %s33, 0
      %p217 = por %p215, %p216
      %p218 = scmp.ne.s32.totalorder %s206, %s207
      %p219 = scmp.eq.s32.totalorder %s34, 6
      %p220 = por %p218, %p219
      %p222 = scmp.ne.s32.totalorder %s207, %s221
      %p223 = scmp.eq.s32.totalorder %s34, 0
      %p224 = por %p222, %p223
      %s226 = sadd.s32 %s225, 1
      %p229 = scmp.eq.s32.totalorder %s28, 6
      %p230 = scmp.ne.s32.totalorder %s225, %s227
      %p231 = scmp.eq.s32.totalorder %s28, 0
      %p232 = por %p230, %p231
      %p233 = scmp.ne.s32.totalorder %s225, %s227
      %p234 = scmp.eq.s32.totalorder %s33, 6
      %p235 = por %p233, %p234
      %p236 = scmp.ne.s32.totalorder %s227, %s228
      %p237 = scmp.eq.s32.totalorder %s33, 0
      %p238 = por %p236, %p237
      %p239 = scmp.ne.s32.totalorder %s227, %s228
      %p240 = scmp.eq.s32.totalorder %s34, 6
      %p241 = por %p239, %p240
      %p243 = scmp.ne.s32.totalorder %s228, %s242
      %p244 = scmp.eq.s32.totalorder %s34, 0
      %p245 = por %p243, %p244
      %s247 = sadd.s32 %s246, 1
      %p250 = scmp.eq.s32.totalorder %s28, 6
      %p251 = scmp.ne.s32.totalorder %s246, %s248
      %p252 = scmp.eq.s32.totalorder %s28, 0
      %p253 = por %p251, %p252
      %p254 = scmp.ne.s32.totalorder %s246, %s248
      %p255 = scmp.eq.s32.totalorder %s33, 6
      %p256 = por %p254, %p255
      %p257 = scmp.ne.s32.totalorder %s248, %s249
      %p258 = scmp.eq.s32.totalorder %s33, 0
      %p259 = por %p257, %p258
      %p260 = scmp.ne.s32.totalorder %s248, %s249
      %p261 = scmp.eq.s32.totalorder %s34, 6
      %p262 = por %p260, %p261
      %p264 = scmp.ne.s32.totalorder %s249, %s263
      %p265 = scmp.eq.s32.totalorder %s34, 0
      %p266 = por %p264, %p265
      %s268 = sadd.s32 %s267, 1
      %p271 = scmp.eq.s32.totalorder %s28, 6
      %p272 = scmp.ne.s32.totalorder %s267, %s269
      %p273 = scmp.eq.s32.totalorder %s28, 0
      %p274 = por %p272, %p273
      %p275 = scmp.ne.s32.totalorder %s267, %s269
      %p276 = scmp.eq.s32.totalorder %s33, 6
      %p277 = por %p275, %p276
      %p278 = scmp.ne.s32.totalorder %s269, %s270
      %p279 = scmp.eq.s32.totalorder %s33, 0
      %p280 = por %p278, %p279
      %p281 = scmp.ne.s32.totalorder %s269, %s270
      %p282 = scmp.eq.s32.totalorder %s34, 6
      %p283 = por %p281, %p282
      %p285 = scmp.ne.s32.totalorder %s270, %s284
      %p286 = scmp.eq.s32.totalorder %s34, 0
      %p287 = por %p285, %p286
      %s289 = sadd.s32 %s288, 1
      %p292 = scmp.eq.s32.totalorder %s28, 6
      %p293 = scmp.ne.s32.totalorder %s288, %s290
      %p294 = scmp.eq.s32.totalorder %s28, 0
      %p295 = por %p293, %p294
      %p296 = scmp.ne.s32.totalorder %s288, %s290
      %p297 = scmp.eq.s32.totalorder %s33, 6
      %p298 = por %p296, %p297
      %p299 = scmp.ne.s32.totalorder %s290, %s291
      %p300 = scmp.eq.s32.totalorder %s33, 0
      %p301 = por %p299, %p300
      %p302 = scmp.ne.s32.totalorder %s290, %s291
      %p303 = scmp.eq.s32.totalorder %s34, 6
      %p304 = por %p302, %p303
      %p306 = scmp.ne.s32.totalorder %s291, %s305
      %p307 = scmp.eq.s32.totalorder %s34, 0
      %p308 = por %p306, %p307
      %s310 = sadd.s32 %s309, 1
      %p313 = scmp.eq.s32.totalorder %s28, 6
      %p314 = scmp.ne.s32.totalorder %s309, %s311
      %p315 = scmp.eq.s32.totalorder %s28, 0
      %p316 = por %p314, %p315
      %p317 = scmp.ne.s32.totalorder %s309, %s311
      %p318 = scmp.eq.s32.totalorder %s33, 6
      %p319 = por %p317, %p318
      %p320 = scmp.ne.s32.totalorder %s311, %s312
      %p321 = scmp.eq.s32.totalorder %s33, 0
      %p322 = por %p320, %p321
      %p323 = scmp.ne.s32.totalorder %s311, %s312
      %p324 = scmp.eq.s32.totalorder %s34, 6
      %p325 = por %p323, %p324
      %p327 = scmp.ne.s32.totalorder %s312, %s326
      %p328 = scmp.eq.s32.totalorder %s34, 0
      %p329 = por %p327, %p328
      %s331 = sadd.s32 %s330, 1
      %p334 = scmp.eq.s32.totalorder %s28, 6
      %p335 = scmp.ne.s32.totalorder %s330, %s332
      %p336 = scmp.eq.s32.totalorder %s28, 0
      %p337 = por %p335, %p336
      %p338 = scmp.ne.s32.totalorder %s330, %s332
      %p339 = scmp.eq.s32.totalorder %s33, 6
      %p340 = por %p338, %p339
      %p341 = scmp.ne.s32.totalorder %s332, %s333
      %p342 = scmp.eq.s32.totalorder %s33, 0
      %p343 = por %p341, %p342
      %p344 = scmp.ne.s32.totalorder %s332, %s333
      %p345 = scmp.eq.s32.totalorder %s34, 6
      %p346 = por %p344, %p345
      %p348 = scmp.ne.s32.totalorder %s333, %s347
      %p349 = scmp.eq.s32.totalorder %s34, 0
      %p350 = por %p348, %p349
      %s352 = sadd.s32 %s351, 1
      %p355 = scmp.eq.s32.totalorder %s28, 6
      %p356 = scmp.ne.s32.totalorder %s351, %s353
      %p357 = scmp.eq.s32.totalorder %s28, 0
      %p358 = por %p356, %p357
      %p359 = scmp.ne.s32.totalorder %s351, %s353
      %p360 = scmp.eq.s32.totalorder %s33, 6
      %p361 = por %p359, %p360
      %p362 = scmp.ne.s32.totalorder %s353, %s354
      %p363 = scmp.eq.s32.totalorder %s33, 0
      %p364 = por %p362, %p363
      %p365 = scmp.ne.s32.totalorder %s353, %s354
      %p366 = scmp.eq.s32.totalorder %s34, 6
      %p367 = por %p365, %p366
      %p369 = scmp.ne.s32.totalorder %s354, %s368
      %p370 = scmp.eq.s32.totalorder %s34, 0
      %p371 = por %p369, %p370
      %s372 = ssub.s32 %s28, %s35
      %p373 = scmp.eq.s32.totalorder %s372, 0
      %s375 = sadd.s32 %s374, 1
      %s376 = scalar_select %p373, %s374, %s375
      %p379 = pneg %p373
      %p380 = scmp.eq.s32.totalorder %s28, 6
      %p381 = por %p379, %p380
      %p382 = scmp.ne.s32.totalorder %s374, %s377
      %p383 = scmp.eq.s32.totalorder %s28, 0
      %p384 = por %p382, %p383
      %p385 = scmp.ne.s32.totalorder %s374, %s377
      %p386 = scmp.eq.s32.totalorder %s33, 6
      %p387 = por %p385, %p386
      %p388 = scmp.ne.s32.totalorder %s377, %s378
      %p389 = scmp.eq.s32.totalorder %s33, 0
      %p390 = por %p388, %p389
      %p391 = scmp.ne.s32.totalorder %s377, %s378
      %p392 = scmp.eq.s32.totalorder %s34, 6
      %p393 = por %p391, %p392
      %p395 = scmp.ne.s32.totalorder %s378, %s394
      %p396 = scmp.eq.s32.totalorder %s34, 0
      %p397 = por %p395, %p396
      %p398 = scmp.le.s32.totalorder 1, %s28
      %p399 = scmp.lt.s32.totalorder %s28, 8
      %p400 = pnand %p398, %p399
      %p401 = pneg %p400
      // Predicated region
      $region9: #{forward.3} parent=5 // pred_check
        _
      $region10: #{forward.3} parent=5 // pred_check_branch
        %403 = sbr.rel (%p400) target = $region12
      $region11: #{forward.3} parent=5 // pred_region
        %s404 = ssub.s32 %s28, 1
        // Predicated region
        $region13: #{forward.3} parent=11 // pred_check
          %p405 = pneg %p49
        $region14: #{forward.3} parent=11 // pred_check_branch
          %407 = sbr.rel (%p405) target = $region16
        $region15: #{forward.3} parent=11 // pred_region
          _
        $region16: #{forward.3} parent=11 // pred_fallthru
          _
        // Predicated region
        $region17: #{forward.3} parent=11 // pred_check
          %p408 = pneg %p70
        $region18: #{forward.3} parent=11 // pred_check_branch
          %410 = sbr.rel (%p408) target = $region20
        $region19: #{forward.3} parent=11 // pred_region
          _
        $region20: #{forward.3} parent=11 // pred_fallthru
          _
        // Predicated region
        $region21: #{forward.3} parent=11 // pred_check
          %p411 = pneg %p91
        $region22: #{forward.3} parent=11 // pred_check_branch
          %413 = sbr.rel (%p411) target = $region24
        $region23: #{forward.3} parent=11 // pred_region
          _
        $region24: #{forward.3} parent=11 // pred_fallthru
          _
        // Predicated region
        $region25: #{forward.3} parent=11 // pred_check
          %p414 = pneg %p112
        $region26: #{forward.3} parent=11 // pred_check_branch
          %416 = sbr.rel (%p414) target = $region28
        $region27: #{forward.3} parent=11 // pred_region
          _
        $region28: #{forward.3} parent=11 // pred_fallthru
          _
        // Predicated region
        $region29: #{forward.3} parent=11 // pred_check
          %p417 = pneg %p133
        $region30: #{forward.3} parent=11 // pred_check_branch
          %419 = sbr.rel (%p417) target = $region32
        $region31: #{forward.3} parent=11 // pred_region
          _
        $region32: #{forward.3} parent=11 // pred_fallthru
          _
        // Predicated region
        $region33: #{forward.3} parent=11 // pred_check
          %p420 = pneg %p154
        $region34: #{forward.3} parent=11 // pred_check_branch
          %422 = sbr.rel (%p420) target = $region36
        $region35: #{forward.3} parent=11 // pred_region
          %424 = vsyncadd [#allocation5], 0
          %s425 = sshll.u32 %s5, 4
          %s426 = int_to_ptr.hbm [resolvable:$true] %s425
          %s427 = sshll.u32 [#allocation4], 4
          %s428 = int_to_ptr.vmem [resolvable:$true] %s427
          %433 = dma.hbm_to_vmem [thread:$0]  %s426, 49152, %s428, [#allocation5], 384, 384, 24
        $region36: #{forward.3} parent=11 // pred_fallthru
          _
        // Predicated region
        $region37: #{forward.3} parent=11 // pred_check
          %p434 = pneg %p175
        $region38: #{forward.3} parent=11 // pred_check_branch
          %436 = sbr.rel (%p434) target = $region40
        $region39: #{forward.3} parent=11 // pred_region
          %438 = vsyncadd [#allocation7], 0
          %s439 = sshll.u32 %s6, 4
          %s440 = int_to_ptr.hbm [resolvable:$true] %s439
          %s441 = sshll.u32 [#allocation6], 4
          %s442 = int_to_ptr.vmem [resolvable:$true] %s441
          %447 = dma.hbm_to_vmem [thread:$0]  %s440, 4096, %s442, [#allocation7], 128, 128, 8
        $region40: #{forward.3} parent=11 // pred_fallthru
          _
        // Predicated region
        $region41: #{forward.3} parent=11 // pred_check
          %p448 = pneg %p196
        $region42: #{forward.3} parent=11 // pred_check_branch
          %450 = sbr.rel (%p448) target = $region44
        $region43: #{forward.3} parent=11 // pred_region
          %452 = vsyncadd [#allocation7], 0
          %s454 = sshll.u32 %s7, 4
          %s455 = int_to_ptr.hbm [resolvable:$true] %s454
          %s456 = sshll.u32 [#allocation8], 4
          %s457 = int_to_ptr.vmem [resolvable:$true] %s456
          %459 = dma.hbm_to_vmem [thread:$0]  %s455, 16, %s457, [#allocation7]
        $region44: #{forward.3} parent=11 // pred_fallthru
          _
        // Predicated region
        $region45: #{forward.3} parent=11 // pred_check
          %p460 = pneg %p217
        $region46: #{forward.3} parent=11 // pred_check_branch
          %462 = sbr.rel (%p460) target = $region48
        $region47: #{forward.3} parent=11 // pred_region
          %464 = vsyncadd [#allocation10], 0
          %s465 = sshll.u32 %s8, 4
          %s466 = int_to_ptr.hbm [resolvable:$true] %s465
          %s467 = sshll.u32 [#allocation9], 4
          %s468 = int_to_ptr.vmem [resolvable:$true] %s467
          %473 = dma.hbm_to_vmem [thread:$0]  %s466, 36864, %s468, [#allocation10], 768, 768, 48
        $region48: #{forward.3} parent=11 // pred_fallthru
          _
        // Predicated region
        $region49: #{forward.3} parent=11 // pred_check
          %p474 = pneg %p238
        $region50: #{forward.3} parent=11 // pred_check_branch
          %476 = sbr.rel (%p474) target = $region52
        $region51: #{forward.3} parent=11 // pred_region
          %478 = vsyncadd [#allocation10], 0
          %s479 = sshll.u32 %s9, 4
          %s480 = int_to_ptr.hbm [resolvable:$true] %s479
          %s481 = sshll.u32 [#allocation11], 4
          %s482 = int_to_ptr.vmem [resolvable:$true] %s481
          %487 = dma.hbm_to_vmem [thread:$0]  %s480, 24576, %s482, [#allocation10], 768, 768, 48
        $region52: #{forward.3} parent=11 // pred_fallthru
          _
        // Predicated region
        $region53: #{forward.3} parent=11 // pred_check
          %p488 = pneg %p259
        $region54: #{forward.3} parent=11 // pred_check_branch
          %490 = sbr.rel (%p488) target = $region56
        $region55: #{forward.3} parent=11 // pred_region
          %492 = vsyncadd [#allocation13], 0
          %s493 = sshll.u32 %s10, 4
          %s494 = int_to_ptr.hbm [resolvable:$true] %s493
          %s495 = sshll.u32 [#allocation12], 4
          %s496 = int_to_ptr.vmem [resolvable:$true] %s495
          %501 = dma.hbm_to_vmem [thread:$0]  %s494, 24576, %s496, [#allocation13], 768, 768, 48
        $region56: #{forward.3} parent=11 // pred_fallthru
          _
        // Predicated region
        $region57: #{forward.3} parent=11 // pred_check
          %p502 = pneg %p280
        $region58: #{forward.3} parent=11 // pred_check_branch
          %504 = sbr.rel (%p502) target = $region60
        $region59: #{forward.3} parent=11 // pred_region
          %506 = vsyncadd [#allocation13], 0
          %s508 = sshll.u32 %s11, 4
          %s509 = int_to_ptr.hbm [resolvable:$true] %s508
          %s510 = sshll.u32 [#allocation14], 4
          %s511 = int_to_ptr.vmem [resolvable:$true] %s510
          %513 = dma.hbm_to_vmem [thread:$0]  %s509, 96, %s511, [#allocation13]
        $region60: #{forward.3} parent=11 // pred_fallthru
          _
        // Predicated region
        $region61: #{forward.3} parent=11 // pred_check
          %p514 = pneg %p301
        $region62: #{forward.3} parent=11 // pred_check_branch
          %516 = sbr.rel (%p514) target = $region64
        $region63: #{forward.3} parent=11 // pred_region
          %518 = vsyncadd [#allocation16], 0
          %s520 = sshll.u32 %s12, 4
          %s521 = int_to_ptr.hbm [resolvable:$true] %s520
          %s522 = sshll.u32 [#allocation15], 4
          %s523 = int_to_ptr.vmem [resolvable:$true] %s522
          %525 = dma.hbm_to_vmem [thread:$0]  %s521, 96, %s523, [#allocation16]
        $region64: #{forward.3} parent=11 // pred_fallthru
          _
        // Predicated region
        $region65: #{forward.3} parent=11 // pred_check
          %p526 = pneg %p322
        $region66: #{forward.3} parent=11 // pred_check_branch
          %528 = sbr.rel (%p526) target = $region68
        $region67: #{forward.3} parent=11 // pred_region
          %530 = vsyncadd [#allocation16], 0
          %s531 = sshll.u32 %s13, 4
          %s532 = int_to_ptr.hbm [resolvable:$true] %s531
          %s533 = sshll.u32 [#allocation17], 4
          %s534 = int_to_ptr.vmem [resolvable:$true] %s533
          %539 = dma.hbm_to_vmem [thread:$0]  %s532, 32768, %s534, [#allocation16], 1024, 1024, 64
        $region68: #{forward.3} parent=11 // pred_fallthru
          _
        // Predicated region
        $region69: #{forward.3} parent=11 // pred_check
          %p540 = pneg %p343
        $region70: #{forward.3} parent=11 // pred_check_branch
          %542 = sbr.rel (%p540) target = $region72
        $region71: #{forward.3} parent=11 // pred_region
          %544 = vsyncadd [#allocation19], 0
          %s545 = sshll.u32 %s14, 4
          %s546 = int_to_ptr.hbm [resolvable:$true] %s545
          %s547 = sshll.u32 [#allocation18], 4
          %s548 = int_to_ptr.vmem [resolvable:$true] %s547
          %553 = dma.hbm_to_vmem [thread:$0]  %s546, 32768, %s548, [#allocation19], 1024, 1024, 64
        $region72: #{forward.3} parent=11 // pred_fallthru
          _
        // Predicated region
        $region73: #{forward.3} parent=11 // pred_check
          %p554 = pneg %p364
        $region74: #{forward.3} parent=11 // pred_check_branch
          %556 = sbr.rel (%p554) target = $region76
        $region75: #{forward.3} parent=11 // pred_region
          %558 = vsyncadd [#allocation19], 0
          %s560 = sshll.u32 %s15, 4
          %s561 = int_to_ptr.hbm [resolvable:$true] %s560
          %s562 = sshll.u32 [#allocation20], 4
          %s563 = int_to_ptr.vmem [resolvable:$true] %s562
          %565 = dma.hbm_to_vmem [thread:$0]  %s561, 128, %s563, [#allocation19]
        $region76: #{forward.3} parent=11 // pred_fallthru
          _
      $region12: #{forward.3} parent=5 // pred_fallthru
        _
      %p566 = scmp.lt.s32.totalorder %s28, 7
      // Predicated region
      $region77: #{forward.3} parent=5 // pred_check
        %p567 = pneg %p566
      $region78: #{forward.3} parent=5 // pred_check_branch
        %569 = sbr.rel (%p567) target = $region80
      $region79: #{forward.3} parent=5 // pred_region
        _
      $region80: #{forward.3} parent=5 // pred_fallthru
        _
      %p570 = scmp.le.s32.totalorder 1, %s28
      %p571 = scmp.lt.s32.totalorder %s28, 8
      %p572 = pnand %p570, %p571
      %p573 = pneg %p572
      // Predicated region
      $region81: #{forward.3} parent=5 // pred_check
        _
      $region82: #{forward.3} parent=5 // pred_check_branch
        %575 = sbr.rel (%p572) target = $region84
      $region83: #{forward.3} parent=5 // pred_region
        %s576 = ssub.s32 %s28, 1
        // Predicated region
        $region85: #{forward.3} parent=83 // pred_check
          %p577 = pneg %p154
        $region86: #{forward.3} parent=83 // pred_check_branch
          %579 = sbr.rel (%p577) target = $region88
        $region87: #{forward.3} parent=83 // pred_region
          %581 = dma.done [#allocation5], 49152
        $region88: #{forward.3} parent=83 // pred_fallthru
          _
        // Predicated region
        $region89: #{forward.3} parent=83 // pred_check
          %p582 = pneg %p175
        $region90: #{forward.3} parent=83 // pred_check_branch
          %584 = sbr.rel (%p582) target = $region92
        $region91: #{forward.3} parent=83 // pred_region
          %586 = dma.done [#allocation7], 4096
        $region92: #{forward.3} parent=83 // pred_fallthru
          _
        // Predicated region
        $region93: #{forward.3} parent=83 // pred_check
          %p587 = pneg %p196
        $region94: #{forward.3} parent=83 // pred_check_branch
          %589 = sbr.rel (%p587) target = $region96
        $region95: #{forward.3} parent=83 // pred_region
          %591 = dma.done [#allocation7], 16
        $region96: #{forward.3} parent=83 // pred_fallthru
          _
        // Predicated region
        $region97: #{forward.3} parent=83 // pred_check
          %p592 = pneg %p217
        $region98: #{forward.3} parent=83 // pred_check_branch
          %594 = sbr.rel (%p592) target = $region100
        $region99: #{forward.3} parent=83 // pred_region
          %596 = dma.done [#allocation10], 36864
        $region100: #{forward.3} parent=83 // pred_fallthru
          _
        // Predicated region
        $region101: #{forward.3} parent=83 // pred_check
          %p597 = pneg %p238
        $region102: #{forward.3} parent=83 // pred_check_branch
          %599 = sbr.rel (%p597) target = $region104
        $region103: #{forward.3} parent=83 // pred_region
          %601 = dma.done [#allocation10], 24576
        $region104: #{forward.3} parent=83 // pred_fallthru
          _
        // Predicated region
        $region105: #{forward.3} parent=83 // pred_check
          %p602 = pneg %p259
        $region106: #{forward.3} parent=83 // pred_check_branch
          %604 = sbr.rel (%p602) target = $region108
        $region107: #{forward.3} parent=83 // pred_region
          %606 = dma.done [#allocation13], 24576
        $region108: #{forward.3} parent=83 // pred_fallthru
          _
        // Predicated region
        $region109: #{forward.3} parent=83 // pred_check
          %p607 = pneg %p280
        $region110: #{forward.3} parent=83 // pred_check_branch
          %609 = sbr.rel (%p607) target = $region112
        $region111: #{forward.3} parent=83 // pred_region
          %611 = dma.done [#allocation13], 96
        $region112: #{forward.3} parent=83 // pred_fallthru
          _
        // Predicated region
        $region113: #{forward.3} parent=83 // pred_check
          %p612 = pneg %p301
        $region114: #{forward.3} parent=83 // pred_check_branch
          %614 = sbr.rel (%p612) target = $region116
        $region115: #{forward.3} parent=83 // pred_region
          %616 = dma.done [#allocation16], 96
        $region116: #{forward.3} parent=83 // pred_fallthru
          _
        // Predicated region
        $region117: #{forward.3} parent=83 // pred_check
          %p617 = pneg %p322
        $region118: #{forward.3} parent=83 // pred_check_branch
          %619 = sbr.rel (%p617) target = $region120
        $region119: #{forward.3} parent=83 // pred_region
          %621 = dma.done [#allocation16], 32768
        $region120: #{forward.3} parent=83 // pred_fallthru
          _
        // Predicated region
        $region121: #{forward.3} parent=83 // pred_check
          %p622 = pneg %p343
        $region122: #{forward.3} parent=83 // pred_check_branch
          %624 = sbr.rel (%p622) target = $region124
        $region123: #{forward.3} parent=83 // pred_region
          %626 = dma.done [#allocation19], 32768
        $region124: #{forward.3} parent=83 // pred_fallthru
          _
        // Predicated region
        $region125: #{forward.3} parent=83 // pred_check
          %p627 = pneg %p364
        $region126: #{forward.3} parent=83 // pred_check_branch
          %629 = sbr.rel (%p627) target = $region128
        $region127: #{forward.3} parent=83 // pred_region
          %631 = dma.done [#allocation19], 128
        $region128: #{forward.3} parent=83 // pred_fallthru
          _
        %p632 = pneg %p49
        %p633 = pneg %p46
        %p634 = pneg %p70
        %p635 = pneg %p67
        %p636 = pneg %p91
        %p637 = pneg %p88
        %p638 = pneg %p112
        %p639 = pneg %p109
        %p640 = pneg %p133
        %p641 = pneg %p130
        %p642 = pneg %p154
        %p643 = pneg %p151
        %p644 = pneg %p175
        %p645 = pneg %p172
        %p646 = pneg %p196
        %p647 = pneg %p193
        %p648 = pneg %p217
        %p649 = pneg %p214
        %p650 = pneg %p238
        %p651 = pneg %p235
        %p652 = pneg %p259
        %p653 = pneg %p256
        %p654 = pneg %p280
        %p655 = pneg %p277
        %p656 = pneg %p301
        %p657 = pneg %p298
        %p658 = pneg %p322
        %p659 = pneg %p319
        %p660 = pneg %p343
        %p661 = pneg %p340
        %p662 = pneg %p364
        %p663 = pneg %p361
        %p664 = pneg %p390
        %p665 = pneg %p387
        %p666 = scmp.lt.s32.totalorder %s33, 6
        %s667 = scalar_select %p666, %s33, 6
        %s668 = smul.addr %s667, 8
        %s669 = smul.addr %s668, 8
        %s670 = scalar_lea.vmem %s16, %s669
        %p671 = scmp.lt.s32.totalorder %s33, 6
        %s672 = scalar_select %p671, %s33, 6
        %s673 = smul.addr %s672, 8
        %s674 = smul.addr %s673, 8
        %s675 = scalar_lea.vmem %s16, %s674
        %p676 = scmp.eq.s32.totalorder %s33, 0
        // Predicated region
        $region129: #{forward.3} parent=83 // pred_check
          %p677 = pneg %p676
        $region130: #{forward.3} parent=83 // pred_check_branch
          %679 = sbr.rel (%p677) target = $region132
        $region131: #{forward.3} parent=83 // pred_region
          %v680 = vld [vmem:[%s1] sm:$0xff]
          %v681 = vld [vmem:[%s1 + $0x8] sm:$0xff]
          %682 = vst [vmem:[#allocation2] sm:$0xff] %v680
          %683 = vst [vmem:[#allocation2 + $0x8] sm:$0xff] %v681
          %v684 = vld [vmem:[%s0] sm:$0xff]
          %v685 = vld [vmem:[%s0 + $0x8] sm:$0xff]
          %v686 = vld [vmem:[%s0 + $0x10] sm:$0xff]
          %v687 = vld [vmem:[%s0 + $0x18] sm:$0xff]
          %v688 = vld [vmem:[%s0 + $0x20] sm:$0xff]
          %v689 = vld [vmem:[%s0 + $0x28] sm:$0xff]
          %v690 = vld [vmem:[%s0 + $0x30] sm:$0xff]
          %v691 = vld [vmem:[%s0 + $0x38] sm:$0xff]
          %692 = vst [vmem:[#allocation3] sm:$0xff] %v684
          %693 = vst [vmem:[#allocation3 + $0x8] sm:$0xff] %v685
          %694 = vst [vmem:[#allocation3 + $0x10] sm:$0xff] %v686
          %695 = vst [vmem:[#allocation3 + $0x18] sm:$0xff] %v687
          %696 = vst [vmem:[#allocation3 + $0x20] sm:$0xff] %v688
          %697 = vst [vmem:[#allocation3 + $0x28] sm:$0xff] %v689
          %698 = vst [vmem:[#allocation3 + $0x30] sm:$0xff] %v690
          %699 = vst [vmem:[#allocation3 + $0x38] sm:$0xff] %v691
        $region132: #{forward.3} parent=83 // pred_fallthru
          _
        %v700 = vld [vmem:[#allocation2] sm:$0xff]
        %v701 = vld [vmem:[#allocation2 + $0x8] sm:$0xff]
        %v702 = vld [vmem:[#allocation6] sm:$0xff]
        %v703 = vld [vmem:[#allocation6 + $0x8] sm:$0xff]
        %v704 = vld [vmem:[#allocation6 + $0x10] sm:$0xff]
        %v705 = vld [vmem:[#allocation6 + $0x18] sm:$0xff]
        %v706 = vld [vmem:[#allocation6 + $0x20] sm:$0xff]
        %v707 = vld [vmem:[#allocation6 + $0x28] sm:$0xff]
        %v708 = vld [vmem:[#allocation6 + $0x30] sm:$0xff]
        %v709 = vld [vmem:[#allocation6 + $0x38] sm:$0xff]
        %v710 = vld [vmem:[#allocation6 + $0x40] sm:$0xff]
        %v711 = vld [vmem:[#allocation6 + $0x48] sm:$0xff]
        %v712 = vld [vmem:[#allocation6 + $0x50] sm:$0xff]
        %v713 = vld [vmem:[#allocation6 + $0x58] sm:$0xff]
        %v714 = vld [vmem:[#allocation6 + $0x60] sm:$0xff]
        %v715 = vld [vmem:[#allocation6 + $0x68] sm:$0xff]
        %v716 = vld [vmem:[#allocation6 + $0x70] sm:$0xff]
        %v717 = vld [vmem:[#allocation6 + $0x78] sm:$0xff]
        %v718 = vld [vmem:[#allocation6 + $0x80] sm:$0xff]
        %v719 = vld [vmem:[#allocation6 + $0x88] sm:$0xff]
        %v720 = vld [vmem:[#allocation6 + $0x90] sm:$0xff]
        %v721 = vld [vmem:[#allocation6 + $0x98] sm:$0xff]
        %v722 = vld [vmem:[#allocation6 + $0xa0] sm:$0xff]
        %v723 = vld [vmem:[#allocation6 + $0xa8] sm:$0xff]
        %v724 = vld [vmem:[#allocation6 + $0xb0] sm:$0xff]
        %v725 = vld [vmem:[#allocation6 + $0xb8] sm:$0xff]
        %v726 = vld [vmem:[#allocation6 + $0xc0] sm:$0xff]
        %v727 = vld [vmem:[#allocation6 + $0xc8] sm:$0xff]
        %v728 = vld [vmem:[#allocation6 + $0xd0] sm:$0xff]
        %v729 = vld [vmem:[#allocation6 + $0xd8] sm:$0xff]
        %v730 = vld [vmem:[#allocation6 + $0xe0] sm:$0xff]
        %v731 = vld [vmem:[#allocation6 + $0xe8] sm:$0xff]
        %v732 = vld [vmem:[#allocation6 + $0xf0] sm:$0xff]
        %v733 = vld [vmem:[#allocation6 + $0xf8] sm:$0xff]
        %734 = vmatpush.msra.mxu0 %v717
        %735 = vmatpush.msra.mxu0 %v716
        %736 = vmatpush.msra.mxu0 %v715
        %737 = vmatpush.msra.mxu0 %v714
        %738 = vmatpush.msra.mxu0 %v713
        %739 = vmatpush.msra.mxu0 %v712
        %740 = vmatpush.msra.mxu0 %v711
        %741 = vmatpush.msra.mxu0 %v710
        %742 = vmatpush.msra.mxu0 %v709
        %743 = vmatpush.msra.mxu0 %v708
        %744 = vmatpush.msra.mxu0 %v707
        %745 = vmatpush.msra.mxu0 %v706
        %746 = vmatpush.msra.mxu0 %v705
        %747 = vmatpush.msra.mxu0 %v704
        %748 = vmatpush.msra.mxu0 %v703
        %749 = vmatpush.msra.mxu0 %v702
        %750 = vmatmul.f32.gmra.mxu0 %v700
        %v751 = vpop.f32.mrf.mxu0
        %v752 = vadd.f32 0.0, %v751
        %753 = vdwg.mxu0
        %754 = vmatpush.msra.mxu0 %v733
        %755 = vmatpush.msra.mxu0 %v732
        %756 = vmatpush.msra.mxu0 %v731
        %757 = vmatpush.msra.mxu0 %v730
        %758 = vmatpush.msra.mxu0 %v729
        %759 = vmatpush.msra.mxu0 %v728
        %760 = vmatpush.msra.mxu0 %v727
        %761 = vmatpush.msra.mxu0 %v726
        %762 = vmatpush.msra.mxu0 %v725
        %763 = vmatpush.msra.mxu0 %v724
        %764 = vmatpush.msra.mxu0 %v723
        %765 = vmatpush.msra.mxu0 %v722
        %766 = vmatpush.msra.mxu0 %v721
        %767 = vmatpush.msra.mxu0 %v720
        %768 = vmatpush.msra.mxu0 %v719
        %769 = vmatpush.msra.mxu0 %v718
        %770 = vmatmul.f32.gmra.mxu0 %v701
        %v771 = vpop.f32.mrf.mxu0
        %v772 = vadd.f32 %v752, %v771
        %773 = vdwg.mxu0
        %v774 = vld [vmem:[%s3] sm:$0xff]
        %v775 = vld [vmem:[%s3 + $0x8] sm:$0xff]
        %v776 = vld [vmem:[%s3 + $0x10] sm:$0xff]
        %v777 = vld [vmem:[%s3 + $0x18] sm:$0xff]
        %v778 = vld [vmem:[%s3 + $0x20] sm:$0xff]
        %v779 = vld [vmem:[%s3 + $0x28] sm:$0xff]
        %v780 = vld [vmem:[%s3 + $0x30] sm:$0xff]
        %v781 = vld [vmem:[%s3 + $0x38] sm:$0xff]
        %v782 = vld [vmem:[%s3 + $0x40] sm:$0xff]
        %v783 = vld [vmem:[%s3 + $0x48] sm:$0xff]
        %v784 = vld [vmem:[%s3 + $0x50] sm:$0xff]
        %v785 = vld [vmem:[%s3 + $0x58] sm:$0xff]
        %v786 = vld [vmem:[%s3 + $0x60] sm:$0xff]
        %v787 = vld [vmem:[%s3 + $0x68] sm:$0xff]
        %v788 = vld [vmem:[%s3 + $0x70] sm:$0xff]
        %v789 = vld [vmem:[%s3 + $0x78] sm:$0xff]
        %v790 = vadd.f32 %v774, %v772
        %v791 = vadd.f32 %v775, %v772
        %v792 = vadd.f32 %v776, %v772
        %v793 = vadd.f32 %v777, %v772
        %v794 = vadd.f32 %v778, %v772
        %v795 = vadd.f32 %v779, %v772
        %v796 = vadd.f32 %v780, %v772
        %v797 = vadd.f32 %v781, %v772
        %v798 = vadd.f32 %v782, %v772
        %v799 = vadd.f32 %v783, %v772
        %v800 = vadd.f32 %v784, %v772
        %v801 = vadd.f32 %v785, %v772
        %v802 = vadd.f32 %v786, %v772
        %v803 = vadd.f32 %v787, %v772
        %v804 = vadd.f32 %v788, %v772
        %v805 = vadd.f32 %v789, %v772
        %v806 = vtanh.pop %v790
        %v807 = vtanh.pop %v791
        %v808 = vtanh.pop %v792
        %v809 = vtanh.pop %v793
        %v810 = vtanh.pop %v794
        %v811 = vtanh.pop %v795
        %v812 = vtanh.pop %v796
        %v813 = vtanh.pop %v797
        %v814 = vtanh.pop %v798
        %v815 = vtanh.pop %v799
        %v816 = vtanh.pop %v800
        %v817 = vtanh.pop %v801
        %v818 = vtanh.pop %v802
        %v819 = vtanh.pop %v803
        %v820 = vtanh.pop %v804
        %v821 = vtanh.pop %v805
        %v822 = vld [vmem:[#allocation8] sm:$0x1]
        %v824 = vperm.slane %v822, 0
        %v826 = vmul.f32 %v806, %v824
        %v827 = vmul.f32 %v807, %v824
        %v828 = vmul.f32 %v808, %v824
        %v829 = vmul.f32 %v809, %v824
        %v830 = vmul.f32 %v810, %v824
        %v831 = vmul.f32 %v811, %v824
        %v832 = vmul.f32 %v812, %v824
        %v833 = vmul.f32 %v813, %v824
        %v834 = vmul.f32 %v814, %v824
        %v835 = vmul.f32 %v815, %v824
        %v836 = vmul.f32 %v816, %v824
        %v837 = vmul.f32 %v817, %v824
        %v838 = vmul.f32 %v818, %v824
        %v839 = vmul.f32 %v819, %v824
        %v840 = vmul.f32 %v820, %v824
        %v841 = vmul.f32 %v821, %v824
        %842 = vadd.xlane.f32.xlu0 %v826
        %v843 = vpop.xlane.xlu0 %842
        %844 = vadd.xlane.f32.xlu0 %v827
        %v845 = vpop.xlane.xlu0 %844
        %846 = vadd.xlane.f32.xlu0 %v828
        %v847 = vpop.xlane.xlu0 %846
        %848 = vadd.xlane.f32.xlu0 %v829
        %v849 = vpop.xlane.xlu0 %848
        %850 = vadd.xlane.f32.xlu0 %v830
        %v851 = vpop.xlane.xlu0 %850
        %852 = vadd.xlane.f32.xlu0 %v831
        %v853 = vpop.xlane.xlu0 %852
        %854 = vadd.xlane.f32.xlu0 %v832
        %v855 = vpop.xlane.xlu0 %854
        %856 = vadd.xlane.f32.xlu0 %v833
        %v857 = vpop.xlane.xlu0 %856
        %858 = vadd.xlane.f32.xlu0 %v834
        %v859 = vpop.xlane.xlu0 %858
        %860 = vadd.xlane.f32.xlu0 %v835
        %v861 = vpop.xlane.xlu0 %860
        %862 = vadd.xlane.f32.xlu0 %v836
        %v863 = vpop.xlane.xlu0 %862
        %864 = vadd.xlane.f32.xlu0 %v837
        %v865 = vpop.xlane.xlu0 %864
        %866 = vadd.xlane.f32.xlu0 %v838
        %v867 = vpop.xlane.xlu0 %866
        %868 = vadd.xlane.f32.xlu0 %v839
        %v869 = vpop.xlane.xlu0 %868
        %870 = vadd.xlane.f32.xlu0 %v840
        %v871 = vpop.xlane.xlu0 %870
        %872 = vadd.xlane.f32.xlu0 %v841
        %v873 = vpop.xlane.xlu0 %872
        %v874 = vld [vmem:[%s4] sm:$0xff]
        %v875 = vld [vmem:[%s4 + $0x8] sm:$0xff]
        %vm876 = vcmp.gt.f32.partialorder %v874, 0.0
        %vm877 = vcmp.gt.f32.partialorder %v875, 0.0
        %v894 = vlaneseq
        %v895 = vand.u32 %v894, 127
        %v896 = vperm.slane %v843, %v895
        %v897 = vperm.slane %v845, %v895
        %v898 = vperm.slane %v847, %v895
        %v899 = vperm.slane %v849, %v895
        %v900 = vperm.slane %v851, %v895
        %v901 = vperm.slane %v853, %v895
        %v902 = vperm.slane %v855, %v895
        %v903 = vperm.slane %v857, %v895
        %v904 = vperm.slane %v859, %v895
        %v905 = vperm.slane %v861, %v895
        %v906 = vperm.slane %v863, %v895
        %v907 = vperm.slane %v865, %v895
        %v908 = vperm.slane %v867, %v895
        %v909 = vperm.slane %v869, %v895
        %v910 = vperm.slane %v871, %v895
        %v911 = vperm.slane %v873, %v895
        %vm912 = vcmask 1041409
        %v913 = vsel %vm912, %v897, %v896
        %vm914 = vcmask 1042434
        %v915 = vsel %vm914, %v898, %v913
        %vm916 = vcmask 1043459
        %v917 = vsel %vm916, %v899, %v915
        %vm918 = vcmask 1044484
        %v919 = vsel %vm918, %v900, %v917
        %vm920 = vcmask 1045509
        %v921 = vsel %vm920, %v901, %v919
        %vm922 = vcmask 1046534
        %v923 = vsel %vm922, %v902, %v921
        %vm924 = vcmask 1047559
        %v925 = vsel %vm924, %v903, %v923
        %v926 = vsel %vm912, %v905, %v904
        %v927 = vsel %vm914, %v906, %v926
        %v928 = vsel %vm916, %v907, %v927
        %v929 = vsel %vm918, %v908, %v928
        %v930 = vsel %vm920, %v909, %v929
        %v931 = vsel %vm922, %v910, %v930
        %v932 = vsel %vm924, %v911, %v931
        %v935 = vsel %vm876, %v925, -1e+30
        %v936 = vsel %vm877, %v932, -1e+30
        %vm937 = vcmask 64512
        %v938 = vsel %vm937, %v935, -inf
        %v939 = vsel %vm937, %v936, -inf
        %v940 = vmax.f32 %v938, %v939
        %v941 = vrot.slane %v940, 4
        %v942 = vmax.f32 %v940, %v941
        %v943 = vrot.slane %v942, 2
        %v944 = vmax.f32 %v942, %v943
        %v945 = vrot.slane %v944, 1
        %v946 = vmax.f32 %v944, %v945
        %v947 = vsub.f32 %v935, %v946
        %v948 = vsub.f32 %v936, %v946
        %v949 = vmul.f32 %v947, 1.442695
        %v950 = vpow.pop %v949
        %v951 = vmul.f32 %v948, 1.442695
        %v952 = vpow.pop %v951
        %v953 = vmul.f32 %v950, %v874
        %v954 = vmul.f32 %v952, %v875
        %v955 = vsel %vm937, %v953, 0.0
        %v956 = vsel %vm937, %v954, 0.0
        %v957 = vadd.f32 %v955, %v956
        %v958 = vrot.slane %v957, 4
        %v959 = vadd.f32 %v957, %v958
        %v960 = vrot.slane %v959, 2
        %v961 = vadd.f32 %v959, %v960
        %v962 = vrot.slane %v961, 1
        %v963 = vadd.f32 %v961, %v962
        %v964 = vrcp.pop %v963
        %v965 = vmul.f32 %v963, %v964
        %v966 = vsub.f32 1.0, %v965
        %v967 = vmul.f32 %v964, %v966
        %v968 = vadd.f32 %v964, %v967
        %vm969 = vweird.f32 %v963
        %vm970 = vweird.f32 %v964
        %vm971 = vmor %vm969, %vm970
        %v972 = vsel %vm971, %v964, %v968
        %v973 = vand.u32 2147483647, %v963
        %vm974 = vcmp.eq.f32.partialorder %v973, 8.507059e+37
        %v975 = vand.u32 %v963, 2147483648
        %v976 = vor.u32 1.1754944e-38, %v975
        %v977 = vsel %vm974, %v976, %v972
        %v978 = vmul.f32 %v953, %v977
        %v979 = vmul.f32 %v954, %v977
        %v980 = vperm.slane %v978, 0
        %v981 = vlaneseq
        %v982 = vshrl.u32 %v981, 7
        %984 = vset.pattern.permute.xlu0 %v982
        %985 = vperm.xlu0 %984, %v980
        %v986 = vpop.permute.xlu0 %985
        %v987 = vperm.slane %v978, 1
        %v988 = vlaneseq
        %v989 = vshrl.u32 %v988, 7
        %991 = vset.pattern.permute.xlu0 %v989
        %992 = vperm.xlu0 %991, %v987
        %v993 = vpop.permute.xlu0 %992
        %v994 = vperm.slane %v978, 2
        %v995 = vlaneseq
        %v996 = vshrl.u32 %v995, 7
        %998 = vset.pattern.permute.xlu0 %v996
        %999 = vperm.xlu0 %998, %v994
        %v1000 = vpop.permute.xlu0 %999
        %v1001 = vperm.slane %v978, 3
        %v1002 = vlaneseq
        %v1003 = vshrl.u32 %v1002, 7
        %1005 = vset.pattern.permute.xlu0 %v1003
        %1006 = vperm.xlu0 %1005, %v1001
        %v1007 = vpop.permute.xlu0 %1006
        %v1008 = vperm.slane %v978, 4
        %v1009 = vlaneseq
        %v1010 = vshrl.u32 %v1009, 7
        %1012 = vset.pattern.permute.xlu0 %v1010
        %1013 = vperm.xlu0 %1012, %v1008
        %v1014 = vpop.permute.xlu0 %1013
        %v1015 = vperm.slane %v978, 5
        %v1016 = vlaneseq
        %v1017 = vshrl.u32 %v1016, 7
        %1019 = vset.pattern.permute.xlu0 %v1017
        %1020 = vperm.xlu0 %1019, %v1015
        %v1021 = vpop.permute.xlu0 %1020
        %v1022 = vperm.slane %v978, 6
        %v1023 = vlaneseq
        %v1024 = vshrl.u32 %v1023, 7
        %1026 = vset.pattern.permute.xlu0 %v1024
        %1027 = vperm.xlu0 %1026, %v1022
        %v1028 = vpop.permute.xlu0 %1027
        %v1029 = vperm.slane %v978, 7
        %v1030 = vlaneseq
        %v1031 = vshrl.u32 %v1030, 7
        %1033 = vset.pattern.permute.xlu0 %v1031
        %1034 = vperm.xlu0 %1033, %v1029
        %v1035 = vpop.permute.xlu0 %1034
        %v1036 = vperm.slane %v979, 0
        %v1037 = vlaneseq
        %v1038 = vshrl.u32 %v1037, 7
        %1040 = vset.pattern.permute.xlu0 %v1038
        %1041 = vperm.xlu0 %1040, %v1036
        %v1042 = vpop.permute.xlu0 %1041
        %v1043 = vperm.slane %v979, 1
        %v1044 = vlaneseq
        %v1045 = vshrl.u32 %v1044, 7
        %1047 = vset.pattern.permute.xlu0 %v1045
        %1048 = vperm.xlu0 %1047, %v1043
        %v1049 = vpop.permute.xlu0 %1048
        %v1050 = vperm.slane %v979, 2
        %v1051 = vlaneseq
        %v1052 = vshrl.u32 %v1051, 7
        %1054 = vset.pattern.permute.xlu0 %v1052
        %1055 = vperm.xlu0 %1054, %v1050
        %v1056 = vpop.permute.xlu0 %1055
        %v1057 = vperm.slane %v979, 3
        %v1058 = vlaneseq
        %v1059 = vshrl.u32 %v1058, 7
        %1061 = vset.pattern.permute.xlu0 %v1059
        %1062 = vperm.xlu0 %1061, %v1057
        %v1063 = vpop.permute.xlu0 %1062
        %v1064 = vperm.slane %v979, 4
        %v1065 = vlaneseq
        %v1066 = vshrl.u32 %v1065, 7
        %1068 = vset.pattern.permute.xlu0 %v1066
        %1069 = vperm.xlu0 %1068, %v1064
        %v1070 = vpop.permute.xlu0 %1069
        %v1071 = vperm.slane %v979, 5
        %v1072 = vlaneseq
        %v1073 = vshrl.u32 %v1072, 7
        %1075 = vset.pattern.permute.xlu0 %v1073
        %1076 = vperm.xlu0 %1075, %v1071
        %v1077 = vpop.permute.xlu0 %1076
        %v1078 = vperm.slane %v979, 6
        %v1079 = vlaneseq
        %v1080 = vshrl.u32 %v1079, 7
        %1082 = vset.pattern.permute.xlu0 %v1080
        %1083 = vperm.xlu0 %1082, %v1078
        %v1084 = vpop.permute.xlu0 %1083
        %v1085 = vperm.slane %v979, 7
        %v1086 = vlaneseq
        %v1087 = vshrl.u32 %v1086, 7
        %1089 = vset.pattern.permute.xlu0 %v1087
        %1090 = vperm.xlu0 %1089, %v1085
        %v1091 = vpop.permute.xlu0 %1090
        %v1092 = vld [vmem:[%s2] sm:$0xff]
        %v1093 = vld [vmem:[%s2 + $0x8] sm:$0xff]
        %v1094 = vld [vmem:[%s2 + $0x10] sm:$0xff]
        %v1095 = vld [vmem:[%s2 + $0x18] sm:$0xff]
        %v1096 = vld [vmem:[%s2 + $0x20] sm:$0xff]
        %v1097 = vld [vmem:[%s2 + $0x28] sm:$0xff]
        %v1098 = vld [vmem:[%s2 + $0x30] sm:$0xff]
        %v1099 = vld [vmem:[%s2 + $0x38] sm:$0xff]
        %v1100 = vld [vmem:[%s2 + $0x40] sm:$0xff]
        %v1101 = vld [vmem:[%s2 + $0x48] sm:$0xff]
        %v1102 = vld [vmem:[%s2 + $0x50] sm:$0xff]
        %v1103 = vld [vmem:[%s2 + $0x58] sm:$0xff]
        %v1104 = vld [vmem:[%s2 + $0x60] sm:$0xff]
        %v1105 = vld [vmem:[%s2 + $0x68] sm:$0xff]
        %v1106 = vld [vmem:[%s2 + $0x70] sm:$0xff]
        %v1107 = vld [vmem:[%s2 + $0x78] sm:$0xff]
        %v1108 = vld [vmem:[%s2 + $0x80] sm:$0xff]
        %v1109 = vld [vmem:[%s2 + $0x88] sm:$0xff]
        %v1110 = vld [vmem:[%s2 + $0x90] sm:$0xff]
        %v1111 = vld [vmem:[%s2 + $0x98] sm:$0xff]
        %v1112 = vld [vmem:[%s2 + $0xa0] sm:$0xff]
        %v1113 = vld [vmem:[%s2 + $0xa8] sm:$0xff]
        %v1114 = vld [vmem:[%s2 + $0xb0] sm:$0xff]
        %v1115 = vld [vmem:[%s2 + $0xb8] sm:$0xff]
        %v1116 = vld [vmem:[%s2 + $0xc0] sm:$0xff]
        %v1117 = vld [vmem:[%s2 + $0xc8] sm:$0xff]
        %v1118 = vld [vmem:[%s2 + $0xd0] sm:$0xff]
        %v1119 = vld [vmem:[%s2 + $0xd8] sm:$0xff]
        %v1120 = vld [vmem:[%s2 + $0xe0] sm:$0xff]
        %v1121 = vld [vmem:[%s2 + $0xe8] sm:$0xff]
        %v1122 = vld [vmem:[%s2 + $0xf0] sm:$0xff]
        %v1123 = vld [vmem:[%s2 + $0xf8] sm:$0xff]
        %v1124 = vmul.f32 %v986, %v1092
        %v1125 = vmul.f32 %v986, %v1093
        %v1126 = vmul.f32 %v993, %v1094
        %v1127 = vmul.f32 %v993, %v1095
        %v1128 = vmul.f32 %v1000, %v1096
        %v1129 = vmul.f32 %v1000, %v1097
        %v1130 = vmul.f32 %v1007, %v1098
        %v1131 = vmul.f32 %v1007, %v1099
        %v1132 = vmul.f32 %v1014, %v1100
        %v1133 = vmul.f32 %v1014, %v1101
        %v1134 = vmul.f32 %v1021, %v1102
        %v1135 = vmul.f32 %v1021, %v1103
        %v1136 = vmul.f32 %v1028, %v1104
        %v1137 = vmul.f32 %v1028, %v1105
        %v1138 = vmul.f32 %v1035, %v1106
        %v1139 = vmul.f32 %v1035, %v1107
        %v1140 = vmul.f32 %v1042, %v1108
        %v1141 = vmul.f32 %v1042, %v1109
        %v1142 = vmul.f32 %v1049, %v1110
        %v1143 = vmul.f32 %v1049, %v1111
        %v1144 = vmul.f32 %v1056, %v1112
        %v1145 = vmul.f32 %v1056, %v1113
        %v1146 = vmul.f32 %v1063, %v1114
        %v1147 = vmul.f32 %v1063, %v1115
        %v1148 = vmul.f32 %v1070, %v1116
        %v1149 = vmul.f32 %v1070, %v1117
        %v1150 = vmul.f32 %v1077, %v1118
        %v1151 = vmul.f32 %v1077, %v1119
        %v1152 = vmul.f32 %v1084, %v1120
        %v1153 = vmul.f32 %v1084, %v1121
        %v1154 = vmul.f32 %v1091, %v1122
        %v1155 = vmul.f32 %v1091, %v1123
        %v1156 = vadd.f32 %v1124, %v1126
        %v1157 = vadd.f32 %v1156, %v1128
        %v1158 = vadd.f32 %v1157, %v1130
        %v1159 = vadd.f32 %v1158, %v1132
        %v1160 = vadd.f32 %v1159, %v1134
        %v1161 = vadd.f32 %v1160, %v1136
        %v1162 = vadd.f32 %v1161, %v1138
        %v1163 = vadd.f32 %v1162, %v1140
        %v1164 = vadd.f32 %v1163, %v1142
        %v1165 = vadd.f32 %v1164, %v1144
        %v1166 = vadd.f32 %v1165, %v1146
        %v1167 = vadd.f32 %v1166, %v1148
        %v1168 = vadd.f32 %v1167, %v1150
        %v1169 = vadd.f32 %v1168, %v1152
        %v1170 = vadd.f32 %v1169, %v1154
        %v1171 = vadd.f32 %v1125, %v1127
        %v1172 = vadd.f32 %v1171, %v1129
        %v1173 = vadd.f32 %v1172, %v1131
        %v1174 = vadd.f32 %v1173, %v1133
        %v1175 = vadd.f32 %v1174, %v1135
        %v1176 = vadd.f32 %v1175, %v1137
        %v1177 = vadd.f32 %v1176, %v1139
        %v1178 = vadd.f32 %v1177, %v1141
        %v1179 = vadd.f32 %v1178, %v1143
        %v1180 = vadd.f32 %v1179, %v1145
        %v1181 = vadd.f32 %v1180, %v1147
        %v1182 = vadd.f32 %v1181, %v1149
        %v1183 = vadd.f32 %v1182, %v1151
        %v1184 = vadd.f32 %v1183, %v1153
        %v1185 = vadd.f32 %v1184, %v1155
        %v1186 = vld [vmem:[#allocation3] sm:$0xff]
        %v1187 = vld [vmem:[#allocation3 + $0x8] sm:$0xff]
        %v1188 = vld [vmem:[#allocation3 + $0x10] sm:$0xff]
        %v1189 = vld [vmem:[#allocation3 + $0x18] sm:$0xff]
        %v1190 = vld [vmem:[#allocation3 + $0x20] sm:$0xff]
        %v1191 = vld [vmem:[#allocation3 + $0x28] sm:$0xff]
        %v1192 = vld [vmem:[#allocation3 + $0x30] sm:$0xff]
        %v1193 = vld [vmem:[#allocation3 + $0x38] sm:$0xff]
        %v1194 = vld [vmem:[#allocation4] sm:$0xff]
        %v1195 = vld [vmem:[#allocation4 + $0x8] sm:$0xff]
        %v1196 = vld [vmem:[#allocation4 + $0x10] sm:$0xff]
        %v1197 = vld [vmem:[#allocation4 + $0x18] sm:$0xff]
        %v1198 = vld [vmem:[#allocation4 + $0x20] sm:$0xff]
        %v1199 = vld [vmem:[#allocation4 + $0x28] sm:$0xff]
        %v1200 = vld [vmem:[#allocation4 + $0x30] sm:$0xff]
        %v1201 = vld [vmem:[#allocation4 + $0x38] sm:$0xff]
        %v1202 = vld [vmem:[#allocation4 + $0x40] sm:$0xff]
        %v1203 = vld [vmem:[#allocation4 + $0x48] sm:$0xff]
        %v1204 = vld [vmem:[#allocation4 + $0x50] sm:$0xff]
        %v1205 = vld [vmem:[#allocation4 + $0x58] sm:$0xff]
        %v1206 = vld [vmem:[#allocation4 + $0x60] sm:$0xff]
        %v1207 = vld [vmem:[#allocation4 + $0x68] sm:$0xff]
        %v1208 = vld [vmem:[#allocation4 + $0x70] sm:$0xff]
        %v1209 = vld [vmem:[#allocation4 + $0x78] sm:$0xff]
        %v1210 = vld [vmem:[#allocation4 + $0x80] sm:$0xff]
        %v1211 = vld [vmem:[#allocation4 + $0x88] sm:$0xff]
        %v1212 = vld [vmem:[#allocation4 + $0x90] sm:$0xff]
        %v1213 = vld [vmem:[#allocation4 + $0x98] sm:$0xff]
        %v1214 = vld [vmem:[#allocation4 + $0xa0] sm:$0xff]
        %v1215 = vld [vmem:[#allocation4 + $0xa8] sm:$0xff]
        %v1216 = vld [vmem:[#allocation4 + $0xb0] sm:$0xff]
        %v1217 = vld [vmem:[#allocation4 + $0xb8] sm:$0xff]
        %v1218 = vld [vmem:[#allocation4 + $0xc0] sm:$0xff]
        %v1219 = vld [vmem:[#allocation4 + $0xc8] sm:$0xff]
        %v1220 = vld [vmem:[#allocation4 + $0xd0] sm:$0xff]
        %v1221 = vld [vmem:[#allocation4 + $0xd8] sm:$0xff]
        %v1222 = vld [vmem:[#allocation4 + $0xe0] sm:$0xff]
        %v1223 = vld [vmem:[#allocation4 + $0xe8] sm:$0xff]
        %v1224 = vld [vmem:[#allocation4 + $0xf0] sm:$0xff]
        %v1225 = vld [vmem:[#allocation4 + $0xf8] sm:$0xff]
        %v1226 = vld [vmem:[#allocation4 + $0x100] sm:$0xff]
        %v1227 = vld [vmem:[#allocation4 + $0x108] sm:$0xff]
        %v1228 = vld [vmem:[#allocation4 + $0x110] sm:$0xff]
        %v1229 = vld [vmem:[#allocation4 + $0x118] sm:$0xff]
        %v1230 = vld [vmem:[#allocation4 + $0x120] sm:$0xff]
        %v1231 = vld [vmem:[#allocation4 + $0x128] sm:$0xff]
        %v1232 = vld [vmem:[#allocation4 + $0x130] sm:$0xff]
        %v1233 = vld [vmem:[#allocation4 + $0x138] sm:$0xff]
        %v1234 = vld [vmem:[#allocation4 + $0x140] sm:$0xff]
        %v1235 = vld [vmem:[#allocation4 + $0x148] sm:$0xff]
        %v1236 = vld [vmem:[#allocation4 + $0x150] sm:$0xff]
        %v1237 = vld [vmem:[#allocation4 + $0x158] sm:$0xff]
        %v1238 = vld [vmem:[#allocation4 + $0x160] sm:$0xff]
        %v1239 = vld [vmem:[#allocation4 + $0x168] sm:$0xff]
        %v1240 = vld [vmem:[#allocation4 + $0x170] sm:$0xff]
        %v1241 = vld [vmem:[#allocation4 + $0x178] sm:$0xff]
        %v1242 = vld [vmem:[#allocation4 + $0x180] sm:$0xff]
        %v1243 = vld [vmem:[#allocation4 + $0x188] sm:$0xff]
        %v1244 = vld [vmem:[#allocation4 + $0x190] sm:$0xff]
        %v1245 = vld [vmem:[#allocation4 + $0x198] sm:$0xff]
        %v1246 = vld [vmem:[#allocation4 + $0x1a0] sm:$0xff]
        %v1247 = vld [vmem:[#allocation4 + $0x1a8] sm:$0xff]
        %v1248 = vld [vmem:[#allocation4 + $0x1b0] sm:$0xff]
        %v1249 = vld [vmem:[#allocation4 + $0x1b8] sm:$0xff]
        %v1250 = vld [vmem:[#allocation4 + $0x1c0] sm:$0xff]
        %v1251 = vld [vmem:[#allocation4 + $0x1c8] sm:$0xff]
        %v1252 = vld [vmem:[#allocation4 + $0x1d0] sm:$0xff]
        %v1253 = vld [vmem:[#allocation4 + $0x1d8] sm:$0xff]
        %v1254 = vld [vmem:[#allocation4 + $0x1e0] sm:$0xff]
        %v1255 = vld [vmem:[#allocation4 + $0x1e8] sm:$0xff]
        %v1256 = vld [vmem:[#allocation4 + $0x1f0] sm:$0xff]
        %v1257 = vld [vmem:[#allocation4 + $0x1f8] sm:$0xff]
        %v1258 = vld [vmem:[#allocation4 + $0x200] sm:$0xff]
        %v1259 = vld [vmem:[#allocation4 + $0x208] sm:$0xff]
        %v1260 = vld [vmem:[#allocation4 + $0x210] sm:$0xff]
        %v1261 = vld [vmem:[#allocation4 + $0x218] sm:$0xff]
        %v1262 = vld [vmem:[#allocation4 + $0x220] sm:$0xff]
        %v1263 = vld [vmem:[#allocation4 + $0x228] sm:$0xff]
        %v1264 = vld [vmem:[#allocation4 + $0x230] sm:$0xff]
        %v1265 = vld [vmem:[#allocation4 + $0x238] sm:$0xff]
        %v1266 = vld [vmem:[#allocation4 + $0x240] sm:$0xff]
        %v1267 = vld [vmem:[#allocation4 + $0x248] sm:$0xff]
        %v1268 = vld [vmem:[#allocation4 + $0x250] sm:$0xff]
        %v1269 = vld [vmem:[#allocation4 + $0x258] sm:$0xff]
        %v1270 = vld [vmem:[#allocation4 + $0x260] sm:$0xff]
        %v1271 = vld [vmem:[#allocation4 + $0x268] sm:$0xff]
        %v1272 = vld [vmem:[#allocation4 + $0x270] sm:$0xff]
        %v1273 = vld [vmem:[#allocation4 + $0x278] sm:$0xff]
        %v1274 = vld [vmem:[#allocation4 + $0x280] sm:$0xff]
        %v1275 = vld [vmem:[#allocation4 + $0x288] sm:$0xff]
        %v1276 = vld [vmem:[#allocation4 + $0x290] sm:$0xff]
        %v1277 = vld [vmem:[#allocation4 + $0x298] sm:$0xff]
        %v1278 = vld [vmem:[#allocation4 + $0x2a0] sm:$0xff]
        %v1279 = vld [vmem:[#allocation4 + $0x2a8] sm:$0xff]
        %v1280 = vld [vmem:[#allocation4 + $0x2b0] sm:$0xff]
        %v1281 = vld [vmem:[#allocation4 + $0x2b8] sm:$0xff]
        %v1282 = vld [vmem:[#allocation4 + $0x2c0] sm:$0xff]
        %v1283 = vld [vmem:[#allocation4 + $0x2c8] sm:$0xff]
        %v1284 = vld [vmem:[#allocation4 + $0x2d0] sm:$0xff]
        %v1285 = vld [vmem:[#allocation4 + $0x2d8] sm:$0xff]
        %v1286 = vld [vmem:[#allocation4 + $0x2e0] sm:$0xff]
        %v1287 = vld [vmem:[#allocation4 + $0x2e8] sm:$0xff]
        %v1288 = vld [vmem:[#allocation4 + $0x2f0] sm:$0xff]
        %v1289 = vld [vmem:[#allocation4 + $0x2f8] sm:$0xff]
        %v1290 = vld [vmem:[#allocation4 + $0x300] sm:$0xff]
        %v1291 = vld [vmem:[#allocation4 + $0x308] sm:$0xff]
        %v1292 = vld [vmem:[#allocation4 + $0x310] sm:$0xff]
        %v1293 = vld [vmem:[#allocation4 + $0x318] sm:$0xff]
        %v1294 = vld [vmem:[#allocation4 + $0x320] sm:$0xff]
        %v1295 = vld [vmem:[#allocation4 + $0x328] sm:$0xff]
        %v1296 = vld [vmem:[#allocation4 + $0x330] sm:$0xff]
        %v1297 = vld [vmem:[#allocation4 + $0x338] sm:$0xff]
        %v1298 = vld [vmem:[#allocation4 + $0x340] sm:$0xff]
        %v1299 = vld [vmem:[#allocation4 + $0x348] sm:$0xff]
        %v1300 = vld [vmem:[#allocation4 + $0x350] sm:$0xff]
        %v1301 = vld [vmem:[#allocation4 + $0x358] sm:$0xff]
        %v1302 = vld [vmem:[#allocation4 + $0x360] sm:$0xff]
        %v1303 = vld [vmem:[#allocation4 + $0x368] sm:$0xff]
        %v1304 = vld [vmem:[#allocation4 + $0x370] sm:$0xff]
        %v1305 = vld [vmem:[#allocation4 + $0x378] sm:$0xff]
        %v1306 = vld [vmem:[#allocation4 + $0x380] sm:$0xff]
        %v1307 = vld [vmem:[#allocation4 + $0x388] sm:$0xff]
        %v1308 = vld [vmem:[#allocation4 + $0x390] sm:$0xff]
        %v1309 = vld [vmem:[#allocation4 + $0x398] sm:$0xff]
        %v1310 = vld [vmem:[#allocation4 + $0x3a0] sm:$0xff]
        %v1311 = vld [vmem:[#allocation4 + $0x3a8] sm:$0xff]
        %v1312 = vld [vmem:[#allocation4 + $0x3b0] sm:$0xff]
        %v1313 = vld [vmem:[#allocation4 + $0x3b8] sm:$0xff]
        %v1314 = vld [vmem:[#allocation4 + $0x3c0] sm:$0xff]
        %v1315 = vld [vmem:[#allocation4 + $0x3c8] sm:$0xff]
        %v1316 = vld [vmem:[#allocation4 + $0x3d0] sm:$0xff]
        %v1317 = vld [vmem:[#allocation4 + $0x3d8] sm:$0xff]
        %v1318 = vld [vmem:[#allocation4 + $0x3e0] sm:$0xff]
        %v1319 = vld [vmem:[#allocation4 + $0x3e8] sm:$0xff]
        %v1320 = vld [vmem:[#allocation4 + $0x3f0] sm:$0xff]
        %v1321 = vld [vmem:[#allocation4 + $0x3f8] sm:$0xff]
        %v1322 = vld [vmem:[#allocation4 + $0x400] sm:$0xff]
        %v1323 = vld [vmem:[#allocation4 + $0x408] sm:$0xff]
        %v1324 = vld [vmem:[#allocation4 + $0x410] sm:$0xff]
        %v1325 = vld [vmem:[#allocation4 + $0x418] sm:$0xff]
        %v1326 = vld [vmem:[#allocation4 + $0x420] sm:$0xff]
        %v1327 = vld [vmem:[#allocation4 + $0x428] sm:$0xff]
        %v1328 = vld [vmem:[#allocation4 + $0x430] sm:$0xff]
        %v1329 = vld [vmem:[#allocation4 + $0x438] sm:$0xff]
        %v1330 = vld [vmem:[#allocation4 + $0x440] sm:$0xff]
        %v1331 = vld [vmem:[#allocation4 + $0x448] sm:$0xff]
        %v1332 = vld [vmem:[#allocation4 + $0x450] sm:$0xff]
        %v1333 = vld [vmem:[#allocation4 + $0x458] sm:$0xff]
        %v1334 = vld [vmem:[#allocation4 + $0x460] sm:$0xff]
        %v1335 = vld [vmem:[#allocation4 + $0x468] sm:$0xff]
        %v1336 = vld [vmem:[#allocation4 + $0x470] sm:$0xff]
        %v1337 = vld [vmem:[#allocation4 + $0x478] sm:$0xff]
        %v1338 = vld [vmem:[#allocation4 + $0x480] sm:$0xff]
        %v1339 = vld [vmem:[#allocation4 + $0x488] sm:$0xff]
        %v1340 = vld [vmem:[#allocation4 + $0x490] sm:$0xff]
        %v1341 = vld [vmem:[#allocation4 + $0x498] sm:$0xff]
        %v1342 = vld [vmem:[#allocation4 + $0x4a0] sm:$0xff]
        %v1343 = vld [vmem:[#allocation4 + $0x4a8] sm:$0xff]
        %v1344 = vld [vmem:[#allocation4 + $0x4b0] sm:$0xff]
        %v1345 = vld [vmem:[#allocation4 + $0x4b8] sm:$0xff]
        %v1346 = vld [vmem:[#allocation4 + $0x4c0] sm:$0xff]
        %v1347 = vld [vmem:[#allocation4 + $0x4c8] sm:$0xff]
        %v1348 = vld [vmem:[#allocation4 + $0x4d0] sm:$0xff]
        %v1349 = vld [vmem:[#allocation4 + $0x4d8] sm:$0xff]
        %v1350 = vld [vmem:[#allocation4 + $0x4e0] sm:$0xff]
        %v1351 = vld [vmem:[#allocation4 + $0x4e8] sm:$0xff]
        %v1352 = vld [vmem:[#allocation4 + $0x4f0] sm:$0xff]
        %v1353 = vld [vmem:[#allocation4 + $0x4f8] sm:$0xff]
        %v1354 = vld [vmem:[#allocation4 + $0x500] sm:$0xff]
        %v1355 = vld [vmem:[#allocation4 + $0x508] sm:$0xff]
        %v1356 = vld [vmem:[#allocation4 + $0x510] sm:$0xff]
        %v1357 = vld [vmem:[#allocation4 + $0x518] sm:$0xff]
        %v1358 = vld [vmem:[#allocation4 + $0x520] sm:$0xff]
        %v1359 = vld [vmem:[#allocation4 + $0x528] sm:$0xff]
        %v1360 = vld [vmem:[#allocation4 + $0x530] sm:$0xff]
        %v1361 = vld [vmem:[#allocation4 + $0x538] sm:$0xff]
        %v1362 = vld [vmem:[#allocation4 + $0x540] sm:$0xff]
        %v1363 = vld [vmem:[#allocation4 + $0x548] sm:$0xff]
        %v1364 = vld [vmem:[#allocation4 + $0x550] sm:$0xff]
        %v1365 = vld [vmem:[#allocation4 + $0x558] sm:$0xff]
        %v1366 = vld [vmem:[#allocation4 + $0x560] sm:$0xff]
        %v1367 = vld [vmem:[#allocation4 + $0x568] sm:$0xff]
        %v1368 = vld [vmem:[#allocation4 + $0x570] sm:$0xff]
        %v1369 = vld [vmem:[#allocation4 + $0x578] sm:$0xff]
        %v1370 = vld [vmem:[#allocation4 + $0x580] sm:$0xff]
        %v1371 = vld [vmem:[#allocation4 + $0x588] sm:$0xff]
        %v1372 = vld [vmem:[#allocation4 + $0x590] sm:$0xff]
        %v1373 = vld [vmem:[#allocation4 + $0x598] sm:$0xff]
        %v1374 = vld [vmem:[#allocation4 + $0x5a0] sm:$0xff]
        %v1375 = vld [vmem:[#allocation4 + $0x5a8] sm:$0xff]
        %v1376 = vld [vmem:[#allocation4 + $0x5b0] sm:$0xff]
        %v1377 = vld [vmem:[#allocation4 + $0x5b8] sm:$0xff]
        %v1378 = vld [vmem:[#allocation4 + $0x5c0] sm:$0xff]
        %v1379 = vld [vmem:[#allocation4 + $0x5c8] sm:$0xff]
        %v1380 = vld [vmem:[#allocation4 + $0x5d0] sm:$0xff]
        %v1381 = vld [vmem:[#allocation4 + $0x5d8] sm:$0xff]
        %v1382 = vld [vmem:[#allocation4 + $0x5e0] sm:$0xff]
        %v1383 = vld [vmem:[#allocation4 + $0x5e8] sm:$0xff]
        %v1384 = vld [vmem:[#allocation4 + $0x5f0] sm:$0xff]
        %v1385 = vld [vmem:[#allocation4 + $0x5f8] sm:$0xff]
        %v1386 = vld [vmem:[#allocation4 + $0x600] sm:$0xff]
        %v1387 = vld [vmem:[#allocation4 + $0x608] sm:$0xff]
        %v1388 = vld [vmem:[#allocation4 + $0x610] sm:$0xff]
        %v1389 = vld [vmem:[#allocation4 + $0x618] sm:$0xff]
        %v1390 = vld [vmem:[#allocation4 + $0x620] sm:$0xff]
        %v1391 = vld [vmem:[#allocation4 + $0x628] sm:$0xff]
        %v1392 = vld [vmem:[#allocation4 + $0x630] sm:$0xff]
        %v1393 = vld [vmem:[#allocation4 + $0x638] sm:$0xff]
        %v1394 = vld [vmem:[#allocation4 + $0x640] sm:$0xff]
        %v1395 = vld [vmem:[#allocation4 + $0x648] sm:$0xff]
        %v1396 = vld [vmem:[#allocation4 + $0x650] sm:$0xff]
        %v1397 = vld [vmem:[#allocation4 + $0x658] sm:$0xff]
        %v1398 = vld [vmem:[#allocation4 + $0x660] sm:$0xff]
        %v1399 = vld [vmem:[#allocation4 + $0x668] sm:$0xff]
        %v1400 = vld [vmem:[#allocation4 + $0x670] sm:$0xff]
        %v1401 = vld [vmem:[#allocation4 + $0x678] sm:$0xff]
        %v1402 = vld [vmem:[#allocation4 + $0x680] sm:$0xff]
        %v1403 = vld [vmem:[#allocation4 + $0x688] sm:$0xff]
        %v1404 = vld [vmem:[#allocation4 + $0x690] sm:$0xff]
        %v1405 = vld [vmem:[#allocation4 + $0x698] sm:$0xff]
        %v1406 = vld [vmem:[#allocation4 + $0x6a0] sm:$0xff]
        %v1407 = vld [vmem:[#allocation4 + $0x6a8] sm:$0xff]
        %v1408 = vld [vmem:[#allocation4 + $0x6b0] sm:$0xff]
        %v1409 = vld [vmem:[#allocation4 + $0x6b8] sm:$0xff]
        %v1410 = vld [vmem:[#allocation4 + $0x6c0] sm:$0xff]
        %v1411 = vld [vmem:[#allocation4 + $0x6c8] sm:$0xff]
        %v1412 = vld [vmem:[#allocation4 + $0x6d0] sm:$0xff]
        %v1413 = vld [vmem:[#allocation4 + $0x6d8] sm:$0xff]
        %v1414 = vld [vmem:[#allocation4 + $0x6e0] sm:$0xff]
        %v1415 = vld [vmem:[#allocation4 + $0x6e8] sm:$0xff]
        %v1416 = vld [vmem:[#allocation4 + $0x6f0] sm:$0xff]
        %v1417 = vld [vmem:[#allocation4 + $0x6f8] sm:$0xff]
        %v1418 = vld [vmem:[#allocation4 + $0x700] sm:$0xff]
        %v1419 = vld [vmem:[#allocation4 + $0x708] sm:$0xff]
        %v1420 = vld [vmem:[#allocation4 + $0x710] sm:$0xff]
        %v1421 = vld [vmem:[#allocation4 + $0x718] sm:$0xff]
        %v1422 = vld [vmem:[#allocation4 + $0x720] sm:$0xff]
        %v1423 = vld [vmem:[#allocation4 + $0x728] sm:$0xff]
        %v1424 = vld [vmem:[#allocation4 + $0x730] sm:$0xff]
        %v1425 = vld [vmem:[#allocation4 + $0x738] sm:$0xff]
        %v1426 = vld [vmem:[#allocation4 + $0x740] sm:$0xff]
        %v1427 = vld [vmem:[#allocation4 + $0x748] sm:$0xff]
        %v1428 = vld [vmem:[#allocation4 + $0x750] sm:$0xff]
        %v1429 = vld [vmem:[#allocation4 + $0x758] sm:$0xff]
        %v1430 = vld [vmem:[#allocation4 + $0x760] sm:$0xff]
        %v1431 = vld [vmem:[#allocation4 + $0x768] sm:$0xff]
        %v1432 = vld [vmem:[#allocation4 + $0x770] sm:$0xff]
        %v1433 = vld [vmem:[#allocation4 + $0x778] sm:$0xff]
        %v1434 = vld [vmem:[#allocation4 + $0x780] sm:$0xff]
        %v1435 = vld [vmem:[#allocation4 + $0x788] sm:$0xff]
        %v1436 = vld [vmem:[#allocation4 + $0x790] sm:$0xff]
        %v1437 = vld [vmem:[#allocation4 + $0x798] sm:$0xff]
        %v1438 = vld [vmem:[#allocation4 + $0x7a0] sm:$0xff]
        %v1439 = vld [vmem:[#allocation4 + $0x7a8] sm:$0xff]
        %v1440 = vld [vmem:[#allocation4 + $0x7b0] sm:$0xff]
        %v1441 = vld [vmem:[#allocation4 + $0x7b8] sm:$0xff]
        %v1442 = vld [vmem:[#allocation4 + $0x7c0] sm:$0xff]
        %v1443 = vld [vmem:[#allocation4 + $0x7c8] sm:$0xff]
        %v1444 = vld [vmem:[#allocation4 + $0x7d0] sm:$0xff]
        %v1445 = vld [vmem:[#allocation4 + $0x7d8] sm:$0xff]
        %v1446 = vld [vmem:[#allocation4 + $0x7e0] sm:$0xff]
        %v1447 = vld [vmem:[#allocation4 + $0x7e8] sm:$0xff]
        %v1448 = vld [vmem:[#allocation4 + $0x7f0] sm:$0xff]
        %v1449 = vld [vmem:[#allocation4 + $0x7f8] sm:$0xff]
        %v1450 = vld [vmem:[#allocation4 + $0x800] sm:$0xff]
        %v1451 = vld [vmem:[#allocation4 + $0x808] sm:$0xff]
        %v1452 = vld [vmem:[#allocation4 + $0x810] sm:$0xff]
        %v1453 = vld [vmem:[#allocation4 + $0x818] sm:$0xff]
        %v1454 = vld [vmem:[#allocation4 + $0x820] sm:$0xff]
        %v1455 = vld [vmem:[#allocation4 + $0x828] sm:$0xff]
        %v1456 = vld [vmem:[#allocation4 + $0x830] sm:$0xff]
        %v1457 = vld [vmem:[#allocation4 + $0x838] sm:$0xff]
        %v1458 = vld [vmem:[#allocation4 + $0x840] sm:$0xff]
        %v1459 = vld [vmem:[#allocation4 + $0x848] sm:$0xff]
        %v1460 = vld [vmem:[#allocation4 + $0x850] sm:$0xff]
        %v1461 = vld [vmem:[#allocation4 + $0x858] sm:$0xff]
        %v1462 = vld [vmem:[#allocation4 + $0x860] sm:$0xff]
        %v1463 = vld [vmem:[#allocation4 + $0x868] sm:$0xff]
        %v1464 = vld [vmem:[#allocation4 + $0x870] sm:$0xff]
        %v1465 = vld [vmem:[#allocation4 + $0x878] sm:$0xff]
        %v1466 = vld [vmem:[#allocation4 + $0x880] sm:$0xff]
        %v1467 = vld [vmem:[#allocation4 + $0x888] sm:$0xff]
        %v1468 = vld [vmem:[#allocation4 + $0x890] sm:$0xff]
        %v1469 = vld [vmem:[#allocation4 + $0x898] sm:$0xff]
        %v1470 = vld [vmem:[#allocation4 + $0x8a0] sm:$0xff]
        %v1471 = vld [vmem:[#allocation4 + $0x8a8] sm:$0xff]
        %v1472 = vld [vmem:[#allocation4 + $0x8b0] sm:$0xff]
        %v1473 = vld [vmem:[#allocation4 + $0x8b8] sm:$0xff]
        %v1474 = vld [vmem:[#allocation4 + $0x8c0] sm:$0xff]
        %v1475 = vld [vmem:[#allocation4 + $0x8c8] sm:$0xff]
        %v1476 = vld [vmem:[#allocation4 + $0x8d0] sm:$0xff]
        %v1477 = vld [vmem:[#allocation4 + $0x8d8] sm:$0xff]
        %v1478 = vld [vmem:[#allocation4 + $0x8e0] sm:$0xff]
        %v1479 = vld [vmem:[#allocation4 + $0x8e8] sm:$0xff]
        %v1480 = vld [vmem:[#allocation4 + $0x8f0] sm:$0xff]
        %v1481 = vld [vmem:[#allocation4 + $0x8f8] sm:$0xff]
        %v1482 = vld [vmem:[#allocation4 + $0x900] sm:$0xff]
        %v1483 = vld [vmem:[#allocation4 + $0x908] sm:$0xff]
        %v1484 = vld [vmem:[#allocation4 + $0x910] sm:$0xff]
        %v1485 = vld [vmem:[#allocation4 + $0x918] sm:$0xff]
        %v1486 = vld [vmem:[#allocation4 + $0x920] sm:$0xff]
        %v1487 = vld [vmem:[#allocation4 + $0x928] sm:$0xff]
        %v1488 = vld [vmem:[#allocation4 + $0x930] sm:$0xff]
        %v1489 = vld [vmem:[#allocation4 + $0x938] sm:$0xff]
        %v1490 = vld [vmem:[#allocation4 + $0x940] sm:$0xff]
        %v1491 = vld [vmem:[#allocation4 + $0x948] sm:$0xff]
        %v1492 = vld [vmem:[#allocation4 + $0x950] sm:$0xff]
        %v1493 = vld [vmem:[#allocation4 + $0x958] sm:$0xff]
        %v1494 = vld [vmem:[#allocation4 + $0x960] sm:$0xff]
        %v1495 = vld [vmem:[#allocation4 + $0x968] sm:$0xff]
        %v1496 = vld [vmem:[#allocation4 + $0x970] sm:$0xff]
        %v1497 = vld [vmem:[#allocation4 + $0x978] sm:$0xff]
        %v1498 = vld [vmem:[#allocation4 + $0x980] sm:$0xff]
        %v1499 = vld [vmem:[#allocation4 + $0x988] sm:$0xff]
        %v1500 = vld [vmem:[#allocation4 + $0x990] sm:$0xff]
        %v1501 = vld [vmem:[#allocation4 + $0x998] sm:$0xff]
        %v1502 = vld [vmem:[#allocation4 + $0x9a0] sm:$0xff]
        %v1503 = vld [vmem:[#allocation4 + $0x9a8] sm:$0xff]
        %v1504 = vld [vmem:[#allocation4 + $0x9b0] sm:$0xff]
        %v1505 = vld [vmem:[#allocation4 + $0x9b8] sm:$0xff]
        %v1506 = vld [vmem:[#allocation4 + $0x9c0] sm:$0xff]
        %v1507 = vld [vmem:[#allocation4 + $0x9c8] sm:$0xff]
        %v1508 = vld [vmem:[#allocation4 + $0x9d0] sm:$0xff]
        %v1509 = vld [vmem:[#allocation4 + $0x9d8] sm:$0xff]
        %v1510 = vld [vmem:[#allocation4 + $0x9e0] sm:$0xff]
        %v1511 = vld [vmem:[#allocation4 + $0x9e8] sm:$0xff]
        %v1512 = vld [vmem:[#allocation4 + $0x9f0] sm:$0xff]
        %v1513 = vld [vmem:[#allocation4 + $0x9f8] sm:$0xff]
        %v1514 = vld [vmem:[#allocation4 + $0xa00] sm:$0xff]
        %v1515 = vld [vmem:[#allocation4 + $0xa08] sm:$0xff]
        %v1516 = vld [vmem:[#allocation4 + $0xa10] sm:$0xff]
        %v1517 = vld [vmem:[#allocation4 + $0xa18] sm:$0xff]
        %v1518 = vld [vmem:[#allocation4 + $0xa20] sm:$0xff]
        %v1519 = vld [vmem:[#allocation4 + $0xa28] sm:$0xff]
        %v1520 = vld [vmem:[#allocation4 + $0xa30] sm:$0xff]
        %v1521 = vld [vmem:[#allocation4 + $0xa38] sm:$0xff]
        %v1522 = vld [vmem:[#allocation4 + $0xa40] sm:$0xff]
        %v1523 = vld [vmem:[#allocation4 + $0xa48] sm:$0xff]
        %v1524 = vld [vmem:[#allocation4 + $0xa50] sm:$0xff]
        %v1525 = vld [vmem:[#allocation4 + $0xa58] sm:$0xff]
        %v1526 = vld [vmem:[#allocation4 + $0xa60] sm:$0xff]
        %v1527 = vld [vmem:[#allocation4 + $0xa68] sm:$0xff]
        %v1528 = vld [vmem:[#allocation4 + $0xa70] sm:$0xff]
        %v1529 = vld [vmem:[#allocation4 + $0xa78] sm:$0xff]
        %v1530 = vld [vmem:[#allocation4 + $0xa80] sm:$0xff]
        %v1531 = vld [vmem:[#allocation4 + $0xa88] sm:$0xff]
        %v1532 = vld [vmem:[#allocation4 + $0xa90] sm:$0xff]
        %v1533 = vld [vmem:[#allocation4 + $0xa98] sm:$0xff]
        %v1534 = vld [vmem:[#allocation4 + $0xaa0] sm:$0xff]
        %v1535 = vld [vmem:[#allocation4 + $0xaa8] sm:$0xff]
        %v1536 = vld [vmem:[#allocation4 + $0xab0] sm:$0xff]
        %v1537 = vld [vmem:[#allocation4 + $0xab8] sm:$0xff]
        %v1538 = vld [vmem:[#allocation4 + $0xac0] sm:$0xff]
        %v1539 = vld [vmem:[#allocation4 + $0xac8] sm:$0xff]
        %v1540 = vld [vmem:[#allocation4 + $0xad0] sm:$0xff]
        %v1541 = vld [vmem:[#allocation4 + $0xad8] sm:$0xff]
        %v1542 = vld [vmem:[#allocation4 + $0xae0] sm:$0xff]
        %v1543 = vld [vmem:[#allocation4 + $0xae8] sm:$0xff]
        %v1544 = vld [vmem:[#allocation4 + $0xaf0] sm:$0xff]
        %v1545 = vld [vmem:[#allocation4 + $0xaf8] sm:$0xff]
        %v1546 = vld [vmem:[#allocation4 + $0xb00] sm:$0xff]
        %v1547 = vld [vmem:[#allocation4 + $0xb08] sm:$0xff]
        %v1548 = vld [vmem:[#allocation4 + $0xb10] sm:$0xff]
        %v1549 = vld [vmem:[#allocation4 + $0xb18] sm:$0xff]
        %v1550 = vld [vmem:[#allocation4 + $0xb20] sm:$0xff]
        %v1551 = vld [vmem:[#allocation4 + $0xb28] sm:$0xff]
        %v1552 = vld [vmem:[#allocation4 + $0xb30] sm:$0xff]
        %v1553 = vld [vmem:[#allocation4 + $0xb38] sm:$0xff]
        %v1554 = vld [vmem:[#allocation4 + $0xb40] sm:$0xff]
        %v1555 = vld [vmem:[#allocation4 + $0xb48] sm:$0xff]
        %v1556 = vld [vmem:[#allocation4 + $0xb50] sm:$0xff]
        %v1557 = vld [vmem:[#allocation4 + $0xb58] sm:$0xff]
        %v1558 = vld [vmem:[#allocation4 + $0xb60] sm:$0xff]
        %v1559 = vld [vmem:[#allocation4 + $0xb68] sm:$0xff]
        %v1560 = vld [vmem:[#allocation4 + $0xb70] sm:$0xff]
        %v1561 = vld [vmem:[#allocation4 + $0xb78] sm:$0xff]
        %v1562 = vld [vmem:[#allocation4 + $0xb80] sm:$0xff]
        %v1563 = vld [vmem:[#allocation4 + $0xb88] sm:$0xff]
        %v1564 = vld [vmem:[#allocation4 + $0xb90] sm:$0xff]
        %v1565 = vld [vmem:[#allocation4 + $0xb98] sm:$0xff]
        %v1566 = vld [vmem:[#allocation4 + $0xba0] sm:$0xff]
        %v1567 = vld [vmem:[#allocation4 + $0xba8] sm:$0xff]
        %v1568 = vld [vmem:[#allocation4 + $0xbb0] sm:$0xff]
        %v1569 = vld [vmem:[#allocation4 + $0xbb8] sm:$0xff]
        %v1570 = vld [vmem:[#allocation4 + $0xbc0] sm:$0xff]
        %v1571 = vld [vmem:[#allocation4 + $0xbc8] sm:$0xff]
        %v1572 = vld [vmem:[#allocation4 + $0xbd0] sm:$0xff]
        %v1573 = vld [vmem:[#allocation4 + $0xbd8] sm:$0xff]
        %v1574 = vld [vmem:[#allocation4 + $0xbe0] sm:$0xff]
        %v1575 = vld [vmem:[#allocation4 + $0xbe8] sm:$0xff]
        %v1576 = vld [vmem:[#allocation4 + $0xbf0] sm:$0xff]
        %v1577 = vld [vmem:[#allocation4 + $0xbf8] sm:$0xff]
        %1578 = vmatpush.msra.mxu0 %v1239
        %1579 = vmatpush.msra.mxu0 %v1236
        %1580 = vmatpush.msra.mxu0 %v1233
        %1581 = vmatpush.msra.mxu0 %v1230
        %1582 = vmatpush.msra.mxu0 %v1227
        %1583 = vmatpush.msra.mxu0 %v1224
        %1584 = vmatpush.msra.mxu0 %v1221
        %1585 = vmatpush.msra.mxu0 %v1218
        %1586 = vmatpush.msra.mxu0 %v1215
        %1587 = vmatpush.msra.mxu0 %v1212
        %1588 = vmatpush.msra.mxu0 %v1209
        %1589 = vmatpush.msra.mxu0 %v1206
        %1590 = vmatpush.msra.mxu0 %v1203
        %1591 = vmatpush.msra.mxu0 %v1200
        %1592 = vmatpush.msra.mxu0 %v1197
        %1593 = vmatpush.msra.mxu0 %v1194
        %1594 = vmatmul.f32.gmra.mxu0 %v1186
        %v1595 = vpop.f32.mrf.mxu0
        %v1596 = vadd.f32 0.0, %v1595
        %1597 = vdwg.mxu0
        %1598 = vmatpush.msra.mxu0 %v1287
        %1599 = vmatpush.msra.mxu0 %v1284
        %1600 = vmatpush.msra.mxu0 %v1281
        %1601 = vmatpush.msra.mxu0 %v1278
        %1602 = vmatpush.msra.mxu0 %v1275
        %1603 = vmatpush.msra.mxu0 %v1272
        %1604 = vmatpush.msra.mxu0 %v1269
        %1605 = vmatpush.msra.mxu0 %v1266
        %1606 = vmatpush.msra.mxu0 %v1263
        %1607 = vmatpush.msra.mxu0 %v1260
        %1608 = vmatpush.msra.mxu0 %v1257
        %1609 = vmatpush.msra.mxu0 %v1254
        %1610 = vmatpush.msra.mxu0 %v1251
        %1611 = vmatpush.msra.mxu0 %v1248
        %1612 = vmatpush.msra.mxu0 %v1245
        %1613 = vmatpush.msra.mxu0 %v1242
        %1614 = vmatmul.f32.gmra.mxu0 %v1187
        %v1615 = vpop.f32.mrf.mxu0
        %v1616 = vadd.f32 %v1596, %v1615
        %1617 = vdwg.mxu0
        %1618 = vmatpush.msra.mxu0 %v1335
        %1619 = vmatpush.msra.mxu0 %v1332
        %1620 = vmatpush.msra.mxu0 %v1329
        %1621 = vmatpush.msra.mxu0 %v1326
        %1622 = vmatpush.msra.mxu0 %v1323
        %1623 = vmatpush.msra.mxu0 %v1320
        %1624 = vmatpush.msra.mxu0 %v1317
        %1625 = vmatpush.msra.mxu0 %v1314
        %1626 = vmatpush.msra.mxu0 %v1311
        %1627 = vmatpush.msra.mxu0 %v1308
        %1628 = vmatpush.msra.mxu0 %v1305
        %1629 = vmatpush.msra.mxu0 %v1302
        %1630 = vmatpush.msra.mxu0 %v1299
        %1631 = vmatpush.msra.mxu0 %v1296
        %1632 = vmatpush.msra.mxu0 %v1293
        %1633 = vmatpush.msra.mxu0 %v1290
        %1634 = vmatmul.f32.gmra.mxu0 %v1188
        %v1635 = vpop.f32.mrf.mxu0
        %v1636 = vadd.f32 %v1616, %v1635
        %1637 = vdwg.mxu0
        %1638 = vmatpush.msra.mxu0 %v1383
        %1639 = vmatpush.msra.mxu0 %v1380
        %1640 = vmatpush.msra.mxu0 %v1377
        %1641 = vmatpush.msra.mxu0 %v1374
        %1642 = vmatpush.msra.mxu0 %v1371
        %1643 = vmatpush.msra.mxu0 %v1368
        %1644 = vmatpush.msra.mxu0 %v1365
        %1645 = vmatpush.msra.mxu0 %v1362
        %1646 = vmatpush.msra.mxu0 %v1359
        %1647 = vmatpush.msra.mxu0 %v1356
        %1648 = vmatpush.msra.mxu0 %v1353
        %1649 = vmatpush.msra.mxu0 %v1350
        %1650 = vmatpush.msra.mxu0 %v1347
        %1651 = vmatpush.msra.mxu0 %v1344
        %1652 = vmatpush.msra.mxu0 %v1341
        %1653 = vmatpush.msra.mxu0 %v1338
        %1654 = vmatmul.f32.gmra.mxu0 %v1189
        %v1655 = vpop.f32.mrf.mxu0
        %v1656 = vadd.f32 %v1636, %v1655
        %1657 = vdwg.mxu0
        %1658 = vmatpush.msra.mxu0 %v1431
        %1659 = vmatpush.msra.mxu0 %v1428
        %1660 = vmatpush.msra.mxu0 %v1425
        %1661 = vmatpush.msra.mxu0 %v1422
        %1662 = vmatpush.msra.mxu0 %v1419
        %1663 = vmatpush.msra.mxu0 %v1416
        %1664 = vmatpush.msra.mxu0 %v1413
        %1665 = vmatpush.msra.mxu0 %v1410
        %1666 = vmatpush.msra.mxu0 %v1407
        %1667 = vmatpush.msra.mxu0 %v1404
        %1668 = vmatpush.msra.mxu0 %v1401
        %1669 = vmatpush.msra.mxu0 %v1398
        %1670 = vmatpush.msra.mxu0 %v1395
        %1671 = vmatpush.msra.mxu0 %v1392
        %1672 = vmatpush.msra.mxu0 %v1389
        %1673 = vmatpush.msra.mxu0 %v1386
        %1674 = vmatmul.f32.gmra.mxu0 %v1190
        %v1675 = vpop.f32.mrf.mxu0
        %v1676 = vadd.f32 %v1656, %v1675
        %1677 = vdwg.mxu0
        %1678 = vmatpush.msra.mxu0 %v1479
        %1679 = vmatpush.msra.mxu0 %v1476
        %1680 = vmatpush.msra.mxu0 %v1473
        %1681 = vmatpush.msra.mxu0 %v1470
        %1682 = vmatpush.msra.mxu0 %v1467
        %1683 = vmatpush.msra.mxu0 %v1464
        %1684 = vmatpush.msra.mxu0 %v1461
        %1685 = vmatpush.msra.mxu0 %v1458
        %1686 = vmatpush.msra.mxu0 %v1455
        %1687 = vmatpush.msra.mxu0 %v1452
        %1688 = vmatpush.msra.mxu0 %v1449
        %1689 = vmatpush.msra.mxu0 %v1446
        %1690 = vmatpush.msra.mxu0 %v1443
        %1691 = vmatpush.msra.mxu0 %v1440
        %1692 = vmatpush.msra.mxu0 %v1437
        %1693 = vmatpush.msra.mxu0 %v1434
        %1694 = vmatmul.f32.gmra.mxu0 %v1191
        %v1695 = vpop.f32.mrf.mxu0
        %v1696 = vadd.f32 %v1676, %v1695
        %1697 = vdwg.mxu0
        %1698 = vmatpush.msra.mxu0 %v1527
        %1699 = vmatpush.msra.mxu0 %v1524
        %1700 = vmatpush.msra.mxu0 %v1521
        %1701 = vmatpush.msra.mxu0 %v1518
        %1702 = vmatpush.msra.mxu0 %v1515
        %1703 = vmatpush.msra.mxu0 %v1512
        %1704 = vmatpush.msra.mxu0 %v1509
        %1705 = vmatpush.msra.mxu0 %v1506
        %1706 = vmatpush.msra.mxu0 %v1503
        %1707 = vmatpush.msra.mxu0 %v1500
        %1708 = vmatpush.msra.mxu0 %v1497
        %1709 = vmatpush.msra.mxu0 %v1494
        %1710 = vmatpush.msra.mxu0 %v1491
        %1711 = vmatpush.msra.mxu0 %v1488
        %1712 = vmatpush.msra.mxu0 %v1485
        %1713 = vmatpush.msra.mxu0 %v1482
        %1714 = vmatmul.f32.gmra.mxu0 %v1192
        %v1715 = vpop.f32.mrf.mxu0
        %v1716 = vadd.f32 %v1696, %v1715
        %1717 = vdwg.mxu0
        %1718 = vmatpush.msra.mxu0 %v1575
        %1719 = vmatpush.msra.mxu0 %v1572
        %1720 = vmatpush.msra.mxu0 %v1569
        %1721 = vmatpush.msra.mxu0 %v1566
        %1722 = vmatpush.msra.mxu0 %v1563
        %1723 = vmatpush.msra.mxu0 %v1560
        %1724 = vmatpush.msra.mxu0 %v1557
        %1725 = vmatpush.msra.mxu0 %v1554
        %1726 = vmatpush.msra.mxu0 %v1551
        %1727 = vmatpush.msra.mxu0 %v1548
        %1728 = vmatpush.msra.mxu0 %v1545
        %1729 = vmatpush.msra.mxu0 %v1542
        %1730 = vmatpush.msra.mxu0 %v1539
        %1731 = vmatpush.msra.mxu0 %v1536
        %1732 = vmatpush.msra.mxu0 %v1533
        %1733 = vmatpush.msra.mxu0 %v1530
        %1734 = vmatmul.f32.gmra.mxu0 %v1193
        %v1735 = vpop.f32.mrf.mxu0
        %v1736 = vadd.f32 %v1716, %v1735
        %1737 = vdwg.mxu0
        %1738 = vmatpush.msra.mxu0 %v1240
        %1739 = vmatpush.msra.mxu0 %v1237
        %1740 = vmatpush.msra.mxu0 %v1234
        %1741 = vmatpush.msra.mxu0 %v1231
        %1742 = vmatpush.msra.mxu0 %v1228
        %1743 = vmatpush.msra.mxu0 %v1225
        %1744 = vmatpush.msra.mxu0 %v1222
        %1745 = vmatpush.msra.mxu0 %v1219
        %1746 = vmatpush.msra.mxu0 %v1216
        %1747 = vmatpush.msra.mxu0 %v1213
        %1748 = vmatpush.msra.mxu0 %v1210
        %1749 = vmatpush.msra.mxu0 %v1207
        %1750 = vmatpush.msra.mxu0 %v1204
        %1751 = vmatpush.msra.mxu0 %v1201
        %1752 = vmatpush.msra.mxu0 %v1198
        %1753 = vmatpush.msra.mxu0 %v1195
        %1754 = vmatmul.f32.gmra.mxu0 %v1186
        %v1755 = vpop.f32.mrf.mxu0
        %v1756 = vadd.f32 0.0, %v1755
        %1757 = vdwg.mxu0
        %1758 = vmatpush.msra.mxu0 %v1288
        %1759 = vmatpush.msra.mxu0 %v1285
        %1760 = vmatpush.msra.mxu0 %v1282
        %1761 = vmatpush.msra.mxu0 %v1279
        %1762 = vmatpush.msra.mxu0 %v1276
        %1763 = vmatpush.msra.mxu0 %v1273
        %1764 = vmatpush.msra.mxu0 %v1270
        %1765 = vmatpush.msra.mxu0 %v1267
        %1766 = vmatpush.msra.mxu0 %v1264
        %1767 = vmatpush.msra.mxu0 %v1261
        %1768 = vmatpush.msra.mxu0 %v1258
        %1769 = vmatpush.msra.mxu0 %v1255
        %1770 = vmatpush.msra.mxu0 %v1252
        %1771 = vmatpush.msra.mxu0 %v1249
        %1772 = vmatpush.msra.mxu0 %v1246
        %1773 = vmatpush.msra.mxu0 %v1243
        %1774 = vmatmul.f32.gmra.mxu0 %v1187
        %v1775 = vpop.f32.mrf.mxu0
        %v1776 = vadd.f32 %v1756, %v1775
        %1777 = vdwg.mxu0
        %1778 = vmatpush.msra.mxu0 %v1336
        %1779 = vmatpush.msra.mxu0 %v1333
        %1780 = vmatpush.msra.mxu0 %v1330
        %1781 = vmatpush.msra.mxu0 %v1327
        %1782 = vmatpush.msra.mxu0 %v1324
        %1783 = vmatpush.msra.mxu0 %v1321
        %1784 = vmatpush.msra.mxu0 %v1318
        %1785 = vmatpush.msra.mxu0 %v1315
        %1786 = vmatpush.msra.mxu0 %v1312
        %1787 = vmatpush.msra.mxu0 %v1309
        %1788 = vmatpush.msra.mxu0 %v1306
        %1789 = vmatpush.msra.mxu0 %v1303
        %1790 = vmatpush.msra.mxu0 %v1300
        %1791 = vmatpush.msra.mxu0 %v1297
        %1792 = vmatpush.msra.mxu0 %v1294
        %1793 = vmatpush.msra.mxu0 %v1291
        %1794 = vmatmul.f32.gmra.mxu0 %v1188
        %v1795 = vpop.f32.mrf.mxu0
        %v1796 = vadd.f32 %v1776, %v1795
        %1797 = vdwg.mxu0
        %1798 = vmatpush.msra.mxu0 %v1384
        %1799 = vmatpush.msra.mxu0 %v1381
        %1800 = vmatpush.msra.mxu0 %v1378
        %1801 = vmatpush.msra.mxu0 %v1375
        %1802 = vmatpush.msra.mxu0 %v1372
        %1803 = vmatpush.msra.mxu0 %v1369
        %1804 = vmatpush.msra.mxu0 %v1366
        %1805 = vmatpush.msra.mxu0 %v1363
        %1806 = vmatpush.msra.mxu0 %v1360
        %1807 = vmatpush.msra.mxu0 %v1357
        %1808 = vmatpush.msra.mxu0 %v1354
        %1809 = vmatpush.msra.mxu0 %v1351
        %1810 = vmatpush.msra.mxu0 %v1348
        %1811 = vmatpush.msra.mxu0 %v1345
        %1812 = vmatpush.msra.mxu0 %v1342
        %1813 = vmatpush.msra.mxu0 %v1339
        %1814 = vmatmul.f32.gmra.mxu0 %v1189
        %v1815 = vpop.f32.mrf.mxu0
        %v1816 = vadd.f32 %v1796, %v1815
        %1817 = vdwg.mxu0
        %1818 = vmatpush.msra.mxu0 %v1432
        %1819 = vmatpush.msra.mxu0 %v1429
        %1820 = vmatpush.msra.mxu0 %v1426
        %1821 = vmatpush.msra.mxu0 %v1423
        %1822 = vmatpush.msra.mxu0 %v1420
        %1823 = vmatpush.msra.mxu0 %v1417
        %1824 = vmatpush.msra.mxu0 %v1414
        %1825 = vmatpush.msra.mxu0 %v1411
        %1826 = vmatpush.msra.mxu0 %v1408
        %1827 = vmatpush.msra.mxu0 %v1405
        %1828 = vmatpush.msra.mxu0 %v1402
        %1829 = vmatpush.msra.mxu0 %v1399
        %1830 = vmatpush.msra.mxu0 %v1396
        %1831 = vmatpush.msra.mxu0 %v1393
        %1832 = vmatpush.msra.mxu0 %v1390
        %1833 = vmatpush.msra.mxu0 %v1387
        %1834 = vmatmul.f32.gmra.mxu0 %v1190
        %v1835 = vpop.f32.mrf.mxu0
        %v1836 = vadd.f32 %v1816, %v1835
        %1837 = vdwg.mxu0
        %1838 = vmatpush.msra.mxu0 %v1480
        %1839 = vmatpush.msra.mxu0 %v1477
        %1840 = vmatpush.msra.mxu0 %v1474
        %1841 = vmatpush.msra.mxu0 %v1471
        %1842 = vmatpush.msra.mxu0 %v1468
        %1843 = vmatpush.msra.mxu0 %v1465
        %1844 = vmatpush.msra.mxu0 %v1462
        %1845 = vmatpush.msra.mxu0 %v1459
        %1846 = vmatpush.msra.mxu0 %v1456
        %1847 = vmatpush.msra.mxu0 %v1453
        %1848 = vmatpush.msra.mxu0 %v1450
        %1849 = vmatpush.msra.mxu0 %v1447
        %1850 = vmatpush.msra.mxu0 %v1444
        %1851 = vmatpush.msra.mxu0 %v1441
        %1852 = vmatpush.msra.mxu0 %v1438
        %1853 = vmatpush.msra.mxu0 %v1435
        %1854 = vmatmul.f32.gmra.mxu0 %v1191
        %v1855 = vpop.f32.mrf.mxu0
        %v1856 = vadd.f32 %v1836, %v1855
        %1857 = vdwg.mxu0
        %1858 = vmatpush.msra.mxu0 %v1528
        %1859 = vmatpush.msra.mxu0 %v1525
        %1860 = vmatpush.msra.mxu0 %v1522
        %1861 = vmatpush.msra.mxu0 %v1519
        %1862 = vmatpush.msra.mxu0 %v1516
        %1863 = vmatpush.msra.mxu0 %v1513
        %1864 = vmatpush.msra.mxu0 %v1510
        %1865 = vmatpush.msra.mxu0 %v1507
        %1866 = vmatpush.msra.mxu0 %v1504
        %1867 = vmatpush.msra.mxu0 %v1501
        %1868 = vmatpush.msra.mxu0 %v1498
        %1869 = vmatpush.msra.mxu0 %v1495
        %1870 = vmatpush.msra.mxu0 %v1492
        %1871 = vmatpush.msra.mxu0 %v1489
        %1872 = vmatpush.msra.mxu0 %v1486
        %1873 = vmatpush.msra.mxu0 %v1483
        %1874 = vmatmul.f32.gmra.mxu0 %v1192
        %v1875 = vpop.f32.mrf.mxu0
        %v1876 = vadd.f32 %v1856, %v1875
        %1877 = vdwg.mxu0
        %1878 = vmatpush.msra.mxu0 %v1576
        %1879 = vmatpush.msra.mxu0 %v1573
        %1880 = vmatpush.msra.mxu0 %v1570
        %1881 = vmatpush.msra.mxu0 %v1567
        %1882 = vmatpush.msra.mxu0 %v1564
        %1883 = vmatpush.msra.mxu0 %v1561
        %1884 = vmatpush.msra.mxu0 %v1558
        %1885 = vmatpush.msra.mxu0 %v1555
        %1886 = vmatpush.msra.mxu0 %v1552
        %1887 = vmatpush.msra.mxu0 %v1549
        %1888 = vmatpush.msra.mxu0 %v1546
        %1889 = vmatpush.msra.mxu0 %v1543
        %1890 = vmatpush.msra.mxu0 %v1540
        %1891 = vmatpush.msra.mxu0 %v1537
        %1892 = vmatpush.msra.mxu0 %v1534
        %1893 = vmatpush.msra.mxu0 %v1531
        %1894 = vmatmul.f32.gmra.mxu0 %v1193
        %v1895 = vpop.f32.mrf.mxu0
        %v1896 = vadd.f32 %v1876, %v1895
        %1897 = vdwg.mxu0
        %1898 = vmatpush.msra.mxu0 %v1241
        %1899 = vmatpush.msra.mxu0 %v1238
        %1900 = vmatpush.msra.mxu0 %v1235
        %1901 = vmatpush.msra.mxu0 %v1232
        %1902 = vmatpush.msra.mxu0 %v1229
        %1903 = vmatpush.msra.mxu0 %v1226
        %1904 = vmatpush.msra.mxu0 %v1223
        %1905 = vmatpush.msra.mxu0 %v1220
        %1906 = vmatpush.msra.mxu0 %v1217
        %1907 = vmatpush.msra.mxu0 %v1214
        %1908 = vmatpush.msra.mxu0 %v1211
        %1909 = vmatpush.msra.mxu0 %v1208
        %1910 = vmatpush.msra.mxu0 %v1205
        %1911 = vmatpush.msra.mxu0 %v1202
        %1912 = vmatpush.msra.mxu0 %v1199
        %1913 = vmatpush.msra.mxu0 %v1196
        %1914 = vmatmul.f32.gmra.mxu0 %v1186
        %v1915 = vpop.f32.mrf.mxu0
        %v1916 = vadd.f32 0.0, %v1915
        %1917 = vdwg.mxu0
        %1918 = vmatpush.msra.mxu0 %v1289
        %1919 = vmatpush.msra.mxu0 %v1286
        %1920 = vmatpush.msra.mxu0 %v1283
        %1921 = vmatpush.msra.mxu0 %v1280
        %1922 = vmatpush.msra.mxu0 %v1277
        %1923 = vmatpush.msra.mxu0 %v1274
        %1924 = vmatpush.msra.mxu0 %v1271
        %1925 = vmatpush.msra.mxu0 %v1268
        %1926 = vmatpush.msra.mxu0 %v1265
        %1927 = vmatpush.msra.mxu0 %v1262
        %1928 = vmatpush.msra.mxu0 %v1259
        %1929 = vmatpush.msra.mxu0 %v1256
        %1930 = vmatpush.msra.mxu0 %v1253
        %1931 = vmatpush.msra.mxu0 %v1250
        %1932 = vmatpush.msra.mxu0 %v1247
        %1933 = vmatpush.msra.mxu0 %v1244
        %1934 = vmatmul.f32.gmra.mxu0 %v1187
        %v1935 = vpop.f32.mrf.mxu0
        %v1936 = vadd.f32 %v1916, %v1935
        %1937 = vdwg.mxu0
        %1938 = vmatpush.msra.mxu0 %v1337
        %1939 = vmatpush.msra.mxu0 %v1334
        %1940 = vmatpush.msra.mxu0 %v1331
        %1941 = vmatpush.msra.mxu0 %v1328
        %1942 = vmatpush.msra.mxu0 %v1325
        %1943 = vmatpush.msra.mxu0 %v1322
        %1944 = vmatpush.msra.mxu0 %v1319
        %1945 = vmatpush.msra.mxu0 %v1316
        %1946 = vmatpush.msra.mxu0 %v1313
        %1947 = vmatpush.msra.mxu0 %v1310
        %1948 = vmatpush.msra.mxu0 %v1307
        %1949 = vmatpush.msra.mxu0 %v1304
        %1950 = vmatpush.msra.mxu0 %v1301
        %1951 = vmatpush.msra.mxu0 %v1298
        %1952 = vmatpush.msra.mxu0 %v1295
        %1953 = vmatpush.msra.mxu0 %v1292
        %1954 = vmatmul.f32.gmra.mxu0 %v1188
        %v1955 = vpop.f32.mrf.mxu0
        %v1956 = vadd.f32 %v1936, %v1955
        %1957 = vdwg.mxu0
        %1958 = vmatpush.msra.mxu0 %v1385
        %1959 = vmatpush.msra.mxu0 %v1382
        %1960 = vmatpush.msra.mxu0 %v1379
        %1961 = vmatpush.msra.mxu0 %v1376
        %1962 = vmatpush.msra.mxu0 %v1373
        %1963 = vmatpush.msra.mxu0 %v1370
        %1964 = vmatpush.msra.mxu0 %v1367
        %1965 = vmatpush.msra.mxu0 %v1364
        %1966 = vmatpush.msra.mxu0 %v1361
        %1967 = vmatpush.msra.mxu0 %v1358
        %1968 = vmatpush.msra.mxu0 %v1355
        %1969 = vmatpush.msra.mxu0 %v1352
        %1970 = vmatpush.msra.mxu0 %v1349
        %1971 = vmatpush.msra.mxu0 %v1346
        %1972 = vmatpush.msra.mxu0 %v1343
        %1973 = vmatpush.msra.mxu0 %v1340
        %1974 = vmatmul.f32.gmra.mxu0 %v1189
        %v1975 = vpop.f32.mrf.mxu0
        %v1976 = vadd.f32 %v1956, %v1975
        %1977 = vdwg.mxu0
        %1978 = vmatpush.msra.mxu0 %v1433
        %1979 = vmatpush.msra.mxu0 %v1430
        %1980 = vmatpush.msra.mxu0 %v1427
        %1981 = vmatpush.msra.mxu0 %v1424
        %1982 = vmatpush.msra.mxu0 %v1421
        %1983 = vmatpush.msra.mxu0 %v1418
        %1984 = vmatpush.msra.mxu0 %v1415
        %1985 = vmatpush.msra.mxu0 %v1412
        %1986 = vmatpush.msra.mxu0 %v1409
        %1987 = vmatpush.msra.mxu0 %v1406
        %1988 = vmatpush.msra.mxu0 %v1403
        %1989 = vmatpush.msra.mxu0 %v1400
        %1990 = vmatpush.msra.mxu0 %v1397
        %1991 = vmatpush.msra.mxu0 %v1394
        %1992 = vmatpush.msra.mxu0 %v1391
        %1993 = vmatpush.msra.mxu0 %v1388
        %1994 = vmatmul.f32.gmra.mxu0 %v1190
        %v1995 = vpop.f32.mrf.mxu0
        %v1996 = vadd.f32 %v1976, %v1995
        %1997 = vdwg.mxu0
        %1998 = vmatpush.msra.mxu0 %v1481
        %1999 = vmatpush.msra.mxu0 %v1478
        %2000 = vmatpush.msra.mxu0 %v1475
        %2001 = vmatpush.msra.mxu0 %v1472
        %2002 = vmatpush.msra.mxu0 %v1469
        %2003 = vmatpush.msra.mxu0 %v1466
        %2004 = vmatpush.msra.mxu0 %v1463
        %2005 = vmatpush.msra.mxu0 %v1460
        %2006 = vmatpush.msra.mxu0 %v1457
        %2007 = vmatpush.msra.mxu0 %v1454
        %2008 = vmatpush.msra.mxu0 %v1451
        %2009 = vmatpush.msra.mxu0 %v1448
        %2010 = vmatpush.msra.mxu0 %v1445
        %2011 = vmatpush.msra.mxu0 %v1442
        %2012 = vmatpush.msra.mxu0 %v1439
        %2013 = vmatpush.msra.mxu0 %v1436
        %2014 = vmatmul.f32.gmra.mxu0 %v1191
        %v2015 = vpop.f32.mrf.mxu0
        %v2016 = vadd.f32 %v1996, %v2015
        %2017 = vdwg.mxu0
        %2018 = vmatpush.msra.mxu0 %v1529
        %2019 = vmatpush.msra.mxu0 %v1526
        %2020 = vmatpush.msra.mxu0 %v1523
        %2021 = vmatpush.msra.mxu0 %v1520
        %2022 = vmatpush.msra.mxu0 %v1517
        %2023 = vmatpush.msra.mxu0 %v1514
        %2024 = vmatpush.msra.mxu0 %v1511
        %2025 = vmatpush.msra.mxu0 %v1508
        %2026 = vmatpush.msra.mxu0 %v1505
        %2027 = vmatpush.msra.mxu0 %v1502
        %2028 = vmatpush.msra.mxu0 %v1499
        %2029 = vmatpush.msra.mxu0 %v1496
        %2030 = vmatpush.msra.mxu0 %v1493
        %2031 = vmatpush.msra.mxu0 %v1490
        %2032 = vmatpush.msra.mxu0 %v1487
        %2033 = vmatpush.msra.mxu0 %v1484
        %2034 = vmatmul.f32.gmra.mxu0 %v1192
        %v2035 = vpop.f32.mrf.mxu0
        %v2036 = vadd.f32 %v2016, %v2035
        %2037 = vdwg.mxu0
        %2038 = vmatpush.msra.mxu0 %v1577
        %2039 = vmatpush.msra.mxu0 %v1574
        %2040 = vmatpush.msra.mxu0 %v1571
        %2041 = vmatpush.msra.mxu0 %v1568
        %2042 = vmatpush.msra.mxu0 %v1565
        %2043 = vmatpush.msra.mxu0 %v1562
        %2044 = vmatpush.msra.mxu0 %v1559
        %2045 = vmatpush.msra.mxu0 %v1556
        %2046 = vmatpush.msra.mxu0 %v1553
        %2047 = vmatpush.msra.mxu0 %v1550
        %2048 = vmatpush.msra.mxu0 %v1547
        %2049 = vmatpush.msra.mxu0 %v1544
        %2050 = vmatpush.msra.mxu0 %v1541
        %2051 = vmatpush.msra.mxu0 %v1538
        %2052 = vmatpush.msra.mxu0 %v1535
        %2053 = vmatpush.msra.mxu0 %v1532
        %2054 = vmatmul.f32.gmra.mxu0 %v1193
        %v2055 = vpop.f32.mrf.mxu0
        %v2056 = vadd.f32 %v2036, %v2055
        %2057 = vdwg.mxu0
        %v2058 = vld [vmem:[#allocation9] sm:$0xff]
        %v2059 = vld [vmem:[#allocation9 + $0x8] sm:$0xff]
        %v2060 = vld [vmem:[#allocation9 + $0x10] sm:$0xff]
        %v2061 = vld [vmem:[#allocation9 + $0x18] sm:$0xff]
        %v2062 = vld [vmem:[#allocation9 + $0x20] sm:$0xff]
        %v2063 = vld [vmem:[#allocation9 + $0x28] sm:$0xff]
        %v2064 = vld [vmem:[#allocation9 + $0x30] sm:$0xff]
        %v2065 = vld [vmem:[#allocation9 + $0x38] sm:$0xff]
        %v2066 = vld [vmem:[#allocation9 + $0x40] sm:$0xff]
        %v2067 = vld [vmem:[#allocation9 + $0x48] sm:$0xff]
        %v2068 = vld [vmem:[#allocation9 + $0x50] sm:$0xff]
        %v2069 = vld [vmem:[#allocation9 + $0x58] sm:$0xff]
        %v2070 = vld [vmem:[#allocation9 + $0x60] sm:$0xff]
        %v2071 = vld [vmem:[#allocation9 + $0x68] sm:$0xff]
        %v2072 = vld [vmem:[#allocation9 + $0x70] sm:$0xff]
        %v2073 = vld [vmem:[#allocation9 + $0x78] sm:$0xff]
        %v2074 = vld [vmem:[#allocation9 + $0x80] sm:$0xff]
        %v2075 = vld [vmem:[#allocation9 + $0x88] sm:$0xff]
        %v2076 = vld [vmem:[#allocation9 + $0x90] sm:$0xff]
        %v2077 = vld [vmem:[#allocation9 + $0x98] sm:$0xff]
        %v2078 = vld [vmem:[#allocation9 + $0xa0] sm:$0xff]
        %v2079 = vld [vmem:[#allocation9 + $0xa8] sm:$0xff]
        %v2080 = vld [vmem:[#allocation9 + $0xb0] sm:$0xff]
        %v2081 = vld [vmem:[#allocation9 + $0xb8] sm:$0xff]
        %v2082 = vld [vmem:[#allocation9 + $0xc0] sm:$0xff]
        %v2083 = vld [vmem:[#allocation9 + $0xc8] sm:$0xff]
        %v2084 = vld [vmem:[#allocation9 + $0xd0] sm:$0xff]
        %v2085 = vld [vmem:[#allocation9 + $0xd8] sm:$0xff]
        %v2086 = vld [vmem:[#allocation9 + $0xe0] sm:$0xff]
        %v2087 = vld [vmem:[#allocation9 + $0xe8] sm:$0xff]
        %v2088 = vld [vmem:[#allocation9 + $0xf0] sm:$0xff]
        %v2089 = vld [vmem:[#allocation9 + $0xf8] sm:$0xff]
        %v2090 = vld [vmem:[#allocation9 + $0x100] sm:$0xff]
        %v2091 = vld [vmem:[#allocation9 + $0x108] sm:$0xff]
        %v2092 = vld [vmem:[#allocation9 + $0x110] sm:$0xff]
        %v2093 = vld [vmem:[#allocation9 + $0x118] sm:$0xff]
        %v2094 = vld [vmem:[#allocation9 + $0x120] sm:$0xff]
        %v2095 = vld [vmem:[#allocation9 + $0x128] sm:$0xff]
        %v2096 = vld [vmem:[#allocation9 + $0x130] sm:$0xff]
        %v2097 = vld [vmem:[#allocation9 + $0x138] sm:$0xff]
        %v2098 = vld [vmem:[#allocation9 + $0x140] sm:$0xff]
        %v2099 = vld [vmem:[#allocation9 + $0x148] sm:$0xff]
        %v2100 = vld [vmem:[#allocation9 + $0x150] sm:$0xff]
        %v2101 = vld [vmem:[#allocation9 + $0x158] sm:$0xff]
        %v2102 = vld [vmem:[#allocation9 + $0x160] sm:$0xff]
        %v2103 = vld [vmem:[#allocation9 + $0x168] sm:$0xff]
        %v2104 = vld [vmem:[#allocation9 + $0x170] sm:$0xff]
        %v2105 = vld [vmem:[#allocation9 + $0x178] sm:$0xff]
        %v2106 = vld [vmem:[#allocation9 + $0x180] sm:$0xff]
        %v2107 = vld [vmem:[#allocation9 + $0x188] sm:$0xff]
        %v2108 = vld [vmem:[#allocation9 + $0x190] sm:$0xff]
        %v2109 = vld [vmem:[#allocation9 + $0x198] sm:$0xff]
        %v2110 = vld [vmem:[#allocation9 + $0x1a0] sm:$0xff]
        %v2111 = vld [vmem:[#allocation9 + $0x1a8] sm:$0xff]
        %v2112 = vld [vmem:[#allocation9 + $0x1b0] sm:$0xff]
        %v2113 = vld [vmem:[#allocation9 + $0x1b8] sm:$0xff]
        %v2114 = vld [vmem:[#allocation9 + $0x1c0] sm:$0xff]
        %v2115 = vld [vmem:[#allocation9 + $0x1c8] sm:$0xff]
        %v2116 = vld [vmem:[#allocation9 + $0x1d0] sm:$0xff]
        %v2117 = vld [vmem:[#allocation9 + $0x1d8] sm:$0xff]
        %v2118 = vld [vmem:[#allocation9 + $0x1e0] sm:$0xff]
        %v2119 = vld [vmem:[#allocation9 + $0x1e8] sm:$0xff]
        %v2120 = vld [vmem:[#allocation9 + $0x1f0] sm:$0xff]
        %v2121 = vld [vmem:[#allocation9 + $0x1f8] sm:$0xff]
        %v2122 = vld [vmem:[#allocation9 + $0x200] sm:$0xff]
        %v2123 = vld [vmem:[#allocation9 + $0x208] sm:$0xff]
        %v2124 = vld [vmem:[#allocation9 + $0x210] sm:$0xff]
        %v2125 = vld [vmem:[#allocation9 + $0x218] sm:$0xff]
        %v2126 = vld [vmem:[#allocation9 + $0x220] sm:$0xff]
        %v2127 = vld [vmem:[#allocation9 + $0x228] sm:$0xff]
        %v2128 = vld [vmem:[#allocation9 + $0x230] sm:$0xff]
        %v2129 = vld [vmem:[#allocation9 + $0x238] sm:$0xff]
        %v2130 = vld [vmem:[#allocation9 + $0x240] sm:$0xff]
        %v2131 = vld [vmem:[#allocation9 + $0x248] sm:$0xff]
        %v2132 = vld [vmem:[#allocation9 + $0x250] sm:$0xff]
        %v2133 = vld [vmem:[#allocation9 + $0x258] sm:$0xff]
        %v2134 = vld [vmem:[#allocation9 + $0x260] sm:$0xff]
        %v2135 = vld [vmem:[#allocation9 + $0x268] sm:$0xff]
        %v2136 = vld [vmem:[#allocation9 + $0x270] sm:$0xff]
        %v2137 = vld [vmem:[#allocation9 + $0x278] sm:$0xff]
        %v2138 = vld [vmem:[#allocation9 + $0x280] sm:$0xff]
        %v2139 = vld [vmem:[#allocation9 + $0x288] sm:$0xff]
        %v2140 = vld [vmem:[#allocation9 + $0x290] sm:$0xff]
        %v2141 = vld [vmem:[#allocation9 + $0x298] sm:$0xff]
        %v2142 = vld [vmem:[#allocation9 + $0x2a0] sm:$0xff]
        %v2143 = vld [vmem:[#allocation9 + $0x2a8] sm:$0xff]
        %v2144 = vld [vmem:[#allocation9 + $0x2b0] sm:$0xff]
        %v2145 = vld [vmem:[#allocation9 + $0x2b8] sm:$0xff]
        %v2146 = vld [vmem:[#allocation9 + $0x2c0] sm:$0xff]
        %v2147 = vld [vmem:[#allocation9 + $0x2c8] sm:$0xff]
        %v2148 = vld [vmem:[#allocation9 + $0x2d0] sm:$0xff]
        %v2149 = vld [vmem:[#allocation9 + $0x2d8] sm:$0xff]
        %v2150 = vld [vmem:[#allocation9 + $0x2e0] sm:$0xff]
        %v2151 = vld [vmem:[#allocation9 + $0x2e8] sm:$0xff]
        %v2152 = vld [vmem:[#allocation9 + $0x2f0] sm:$0xff]
        %v2153 = vld [vmem:[#allocation9 + $0x2f8] sm:$0xff]
        %v2154 = vld [vmem:[#allocation9 + $0x300] sm:$0xff]
        %v2155 = vld [vmem:[#allocation9 + $0x308] sm:$0xff]
        %v2156 = vld [vmem:[#allocation9 + $0x310] sm:$0xff]
        %v2157 = vld [vmem:[#allocation9 + $0x318] sm:$0xff]
        %v2158 = vld [vmem:[#allocation9 + $0x320] sm:$0xff]
        %v2159 = vld [vmem:[#allocation9 + $0x328] sm:$0xff]
        %v2160 = vld [vmem:[#allocation9 + $0x330] sm:$0xff]
        %v2161 = vld [vmem:[#allocation9 + $0x338] sm:$0xff]
        %v2162 = vld [vmem:[#allocation9 + $0x340] sm:$0xff]
        %v2163 = vld [vmem:[#allocation9 + $0x348] sm:$0xff]
        %v2164 = vld [vmem:[#allocation9 + $0x350] sm:$0xff]
        %v2165 = vld [vmem:[#allocation9 + $0x358] sm:$0xff]
        %v2166 = vld [vmem:[#allocation9 + $0x360] sm:$0xff]
        %v2167 = vld [vmem:[#allocation9 + $0x368] sm:$0xff]
        %v2168 = vld [vmem:[#allocation9 + $0x370] sm:$0xff]
        %v2169 = vld [vmem:[#allocation9 + $0x378] sm:$0xff]
        %v2170 = vld [vmem:[#allocation9 + $0x380] sm:$0xff]
        %v2171 = vld [vmem:[#allocation9 + $0x388] sm:$0xff]
        %v2172 = vld [vmem:[#allocation9 + $0x390] sm:$0xff]
        %v2173 = vld [vmem:[#allocation9 + $0x398] sm:$0xff]
        %v2174 = vld [vmem:[#allocation9 + $0x3a0] sm:$0xff]
        %v2175 = vld [vmem:[#allocation9 + $0x3a8] sm:$0xff]
        %v2176 = vld [vmem:[#allocation9 + $0x3b0] sm:$0xff]
        %v2177 = vld [vmem:[#allocation9 + $0x3b8] sm:$0xff]
        %v2178 = vld [vmem:[#allocation9 + $0x3c0] sm:$0xff]
        %v2179 = vld [vmem:[#allocation9 + $0x3c8] sm:$0xff]
        %v2180 = vld [vmem:[#allocation9 + $0x3d0] sm:$0xff]
        %v2181 = vld [vmem:[#allocation9 + $0x3d8] sm:$0xff]
        %v2182 = vld [vmem:[#allocation9 + $0x3e0] sm:$0xff]
        %v2183 = vld [vmem:[#allocation9 + $0x3e8] sm:$0xff]
        %v2184 = vld [vmem:[#allocation9 + $0x3f0] sm:$0xff]
        %v2185 = vld [vmem:[#allocation9 + $0x3f8] sm:$0xff]
        %v2186 = vld [vmem:[#allocation9 + $0x400] sm:$0xff]
        %v2187 = vld [vmem:[#allocation9 + $0x408] sm:$0xff]
        %v2188 = vld [vmem:[#allocation9 + $0x410] sm:$0xff]
        %v2189 = vld [vmem:[#allocation9 + $0x418] sm:$0xff]
        %v2190 = vld [vmem:[#allocation9 + $0x420] sm:$0xff]
        %v2191 = vld [vmem:[#allocation9 + $0x428] sm:$0xff]
        %v2192 = vld [vmem:[#allocation9 + $0x430] sm:$0xff]
        %v2193 = vld [vmem:[#allocation9 + $0x438] sm:$0xff]
        %v2194 = vld [vmem:[#allocation9 + $0x440] sm:$0xff]
        %v2195 = vld [vmem:[#allocation9 + $0x448] sm:$0xff]
        %v2196 = vld [vmem:[#allocation9 + $0x450] sm:$0xff]
        %v2197 = vld [vmem:[#allocation9 + $0x458] sm:$0xff]
        %v2198 = vld [vmem:[#allocation9 + $0x460] sm:$0xff]
        %v2199 = vld [vmem:[#allocation9 + $0x468] sm:$0xff]
        %v2200 = vld [vmem:[#allocation9 + $0x470] sm:$0xff]
        %v2201 = vld [vmem:[#allocation9 + $0x478] sm:$0xff]
        %v2202 = vld [vmem:[#allocation9 + $0x480] sm:$0xff]
        %v2203 = vld [vmem:[#allocation9 + $0x488] sm:$0xff]
        %v2204 = vld [vmem:[#allocation9 + $0x490] sm:$0xff]
        %v2205 = vld [vmem:[#allocation9 + $0x498] sm:$0xff]
        %v2206 = vld [vmem:[#allocation9 + $0x4a0] sm:$0xff]
        %v2207 = vld [vmem:[#allocation9 + $0x4a8] sm:$0xff]
        %v2208 = vld [vmem:[#allocation9 + $0x4b0] sm:$0xff]
        %v2209 = vld [vmem:[#allocation9 + $0x4b8] sm:$0xff]
        %v2210 = vld [vmem:[#allocation9 + $0x4c0] sm:$0xff]
        %v2211 = vld [vmem:[#allocation9 + $0x4c8] sm:$0xff]
        %v2212 = vld [vmem:[#allocation9 + $0x4d0] sm:$0xff]
        %v2213 = vld [vmem:[#allocation9 + $0x4d8] sm:$0xff]
        %v2214 = vld [vmem:[#allocation9 + $0x4e0] sm:$0xff]
        %v2215 = vld [vmem:[#allocation9 + $0x4e8] sm:$0xff]
        %v2216 = vld [vmem:[#allocation9 + $0x4f0] sm:$0xff]
        %v2217 = vld [vmem:[#allocation9 + $0x4f8] sm:$0xff]
        %v2218 = vld [vmem:[#allocation9 + $0x500] sm:$0xff]
        %v2219 = vld [vmem:[#allocation9 + $0x508] sm:$0xff]
        %v2220 = vld [vmem:[#allocation9 + $0x510] sm:$0xff]
        %v2221 = vld [vmem:[#allocation9 + $0x518] sm:$0xff]
        %v2222 = vld [vmem:[#allocation9 + $0x520] sm:$0xff]
        %v2223 = vld [vmem:[#allocation9 + $0x528] sm:$0xff]
        %v2224 = vld [vmem:[#allocation9 + $0x530] sm:$0xff]
        %v2225 = vld [vmem:[#allocation9 + $0x538] sm:$0xff]
        %v2226 = vld [vmem:[#allocation9 + $0x540] sm:$0xff]
        %v2227 = vld [vmem:[#allocation9 + $0x548] sm:$0xff]
        %v2228 = vld [vmem:[#allocation9 + $0x550] sm:$0xff]
        %v2229 = vld [vmem:[#allocation9 + $0x558] sm:$0xff]
        %v2230 = vld [vmem:[#allocation9 + $0x560] sm:$0xff]
        %v2231 = vld [vmem:[#allocation9 + $0x568] sm:$0xff]
        %v2232 = vld [vmem:[#allocation9 + $0x570] sm:$0xff]
        %v2233 = vld [vmem:[#allocation9 + $0x578] sm:$0xff]
        %v2234 = vld [vmem:[#allocation9 + $0x580] sm:$0xff]
        %v2235 = vld [vmem:[#allocation9 + $0x588] sm:$0xff]
        %v2236 = vld [vmem:[#allocation9 + $0x590] sm:$0xff]
        %v2237 = vld [vmem:[#allocation9 + $0x598] sm:$0xff]
        %v2238 = vld [vmem:[#allocation9 + $0x5a0] sm:$0xff]
        %v2239 = vld [vmem:[#allocation9 + $0x5a8] sm:$0xff]
        %v2240 = vld [vmem:[#allocation9 + $0x5b0] sm:$0xff]
        %v2241 = vld [vmem:[#allocation9 + $0x5b8] sm:$0xff]
        %v2242 = vld [vmem:[#allocation9 + $0x5c0] sm:$0xff]
        %v2243 = vld [vmem:[#allocation9 + $0x5c8] sm:$0xff]
        %v2244 = vld [vmem:[#allocation9 + $0x5d0] sm:$0xff]
        %v2245 = vld [vmem:[#allocation9 + $0x5d8] sm:$0xff]
        %v2246 = vld [vmem:[#allocation9 + $0x5e0] sm:$0xff]
        %v2247 = vld [vmem:[#allocation9 + $0x5e8] sm:$0xff]
        %v2248 = vld [vmem:[#allocation9 + $0x5f0] sm:$0xff]
        %v2249 = vld [vmem:[#allocation9 + $0x5f8] sm:$0xff]
        %v2250 = vld [vmem:[#allocation9 + $0x600] sm:$0xff]
        %v2251 = vld [vmem:[#allocation9 + $0x608] sm:$0xff]
        %v2252 = vld [vmem:[#allocation9 + $0x610] sm:$0xff]
        %v2253 = vld [vmem:[#allocation9 + $0x618] sm:$0xff]
        %v2254 = vld [vmem:[#allocation9 + $0x620] sm:$0xff]
        %v2255 = vld [vmem:[#allocation9 + $0x628] sm:$0xff]
        %v2256 = vld [vmem:[#allocation9 + $0x630] sm:$0xff]
        %v2257 = vld [vmem:[#allocation9 + $0x638] sm:$0xff]
        %v2258 = vld [vmem:[#allocation9 + $0x640] sm:$0xff]
        %v2259 = vld [vmem:[#allocation9 + $0x648] sm:$0xff]
        %v2260 = vld [vmem:[#allocation9 + $0x650] sm:$0xff]
        %v2261 = vld [vmem:[#allocation9 + $0x658] sm:$0xff]
        %v2262 = vld [vmem:[#allocation9 + $0x660] sm:$0xff]
        %v2263 = vld [vmem:[#allocation9 + $0x668] sm:$0xff]
        %v2264 = vld [vmem:[#allocation9 + $0x670] sm:$0xff]
        %v2265 = vld [vmem:[#allocation9 + $0x678] sm:$0xff]
        %v2266 = vld [vmem:[#allocation9 + $0x680] sm:$0xff]
        %v2267 = vld [vmem:[#allocation9 + $0x688] sm:$0xff]
        %v2268 = vld [vmem:[#allocation9 + $0x690] sm:$0xff]
        %v2269 = vld [vmem:[#allocation9 + $0x698] sm:$0xff]
        %v2270 = vld [vmem:[#allocation9 + $0x6a0] sm:$0xff]
        %v2271 = vld [vmem:[#allocation9 + $0x6a8] sm:$0xff]
        %v2272 = vld [vmem:[#allocation9 + $0x6b0] sm:$0xff]
        %v2273 = vld [vmem:[#allocation9 + $0x6b8] sm:$0xff]
        %v2274 = vld [vmem:[#allocation9 + $0x6c0] sm:$0xff]
        %v2275 = vld [vmem:[#allocation9 + $0x6c8] sm:$0xff]
        %v2276 = vld [vmem:[#allocation9 + $0x6d0] sm:$0xff]
        %v2277 = vld [vmem:[#allocation9 + $0x6d8] sm:$0xff]
        %v2278 = vld [vmem:[#allocation9 + $0x6e0] sm:$0xff]
        %v2279 = vld [vmem:[#allocation9 + $0x6e8] sm:$0xff]
        %v2280 = vld [vmem:[#allocation9 + $0x6f0] sm:$0xff]
        %v2281 = vld [vmem:[#allocation9 + $0x6f8] sm:$0xff]
        %v2282 = vld [vmem:[#allocation9 + $0x700] sm:$0xff]
        %v2283 = vld [vmem:[#allocation9 + $0x708] sm:$0xff]
        %v2284 = vld [vmem:[#allocation9 + $0x710] sm:$0xff]
        %v2285 = vld [vmem:[#allocation9 + $0x718] sm:$0xff]
        %v2286 = vld [vmem:[#allocation9 + $0x720] sm:$0xff]
        %v2287 = vld [vmem:[#allocation9 + $0x728] sm:$0xff]
        %v2288 = vld [vmem:[#allocation9 + $0x730] sm:$0xff]
        %v2289 = vld [vmem:[#allocation9 + $0x738] sm:$0xff]
        %v2290 = vld [vmem:[#allocation9 + $0x740] sm:$0xff]
        %v2291 = vld [vmem:[#allocation9 + $0x748] sm:$0xff]
        %v2292 = vld [vmem:[#allocation9 + $0x750] sm:$0xff]
        %v2293 = vld [vmem:[#allocation9 + $0x758] sm:$0xff]
        %v2294 = vld [vmem:[#allocation9 + $0x760] sm:$0xff]
        %v2295 = vld [vmem:[#allocation9 + $0x768] sm:$0xff]
        %v2296 = vld [vmem:[#allocation9 + $0x770] sm:$0xff]
        %v2297 = vld [vmem:[#allocation9 + $0x778] sm:$0xff]
        %v2298 = vld [vmem:[#allocation9 + $0x780] sm:$0xff]
        %v2299 = vld [vmem:[#allocation9 + $0x788] sm:$0xff]
        %v2300 = vld [vmem:[#allocation9 + $0x790] sm:$0xff]
        %v2301 = vld [vmem:[#allocation9 + $0x798] sm:$0xff]
        %v2302 = vld [vmem:[#allocation9 + $0x7a0] sm:$0xff]
        %v2303 = vld [vmem:[#allocation9 + $0x7a8] sm:$0xff]
        %v2304 = vld [vmem:[#allocation9 + $0x7b0] sm:$0xff]
        %v2305 = vld [vmem:[#allocation9 + $0x7b8] sm:$0xff]
        %v2306 = vld [vmem:[#allocation9 + $0x7c0] sm:$0xff]
        %v2307 = vld [vmem:[#allocation9 + $0x7c8] sm:$0xff]
        %v2308 = vld [vmem:[#allocation9 + $0x7d0] sm:$0xff]
        %v2309 = vld [vmem:[#allocation9 + $0x7d8] sm:$0xff]
        %v2310 = vld [vmem:[#allocation9 + $0x7e0] sm:$0xff]
        %v2311 = vld [vmem:[#allocation9 + $0x7e8] sm:$0xff]
        %v2312 = vld [vmem:[#allocation9 + $0x7f0] sm:$0xff]
        %v2313 = vld [vmem:[#allocation9 + $0x7f8] sm:$0xff]
        %v2314 = vld [vmem:[#allocation9 + $0x800] sm:$0xff]
        %v2315 = vld [vmem:[#allocation9 + $0x808] sm:$0xff]
        %v2316 = vld [vmem:[#allocation9 + $0x810] sm:$0xff]
        %v2317 = vld [vmem:[#allocation9 + $0x818] sm:$0xff]
        %v2318 = vld [vmem:[#allocation9 + $0x820] sm:$0xff]
        %v2319 = vld [vmem:[#allocation9 + $0x828] sm:$0xff]
        %v2320 = vld [vmem:[#allocation9 + $0x830] sm:$0xff]
        %v2321 = vld [vmem:[#allocation9 + $0x838] sm:$0xff]
        %v2322 = vld [vmem:[#allocation9 + $0x840] sm:$0xff]
        %v2323 = vld [vmem:[#allocation9 + $0x848] sm:$0xff]
        %v2324 = vld [vmem:[#allocation9 + $0x850] sm:$0xff]
        %v2325 = vld [vmem:[#allocation9 + $0x858] sm:$0xff]
        %v2326 = vld [vmem:[#allocation9 + $0x860] sm:$0xff]
        %v2327 = vld [vmem:[#allocation9 + $0x868] sm:$0xff]
        %v2328 = vld [vmem:[#allocation9 + $0x870] sm:$0xff]
        %v2329 = vld [vmem:[#allocation9 + $0x878] sm:$0xff]
        %v2330 = vld [vmem:[#allocation9 + $0x880] sm:$0xff]
        %v2331 = vld [vmem:[#allocation9 + $0x888] sm:$0xff]
        %v2332 = vld [vmem:[#allocation9 + $0x890] sm:$0xff]
        %v2333 = vld [vmem:[#allocation9 + $0x898] sm:$0xff]
        %v2334 = vld [vmem:[#allocation9 + $0x8a0] sm:$0xff]
        %v2335 = vld [vmem:[#allocation9 + $0x8a8] sm:$0xff]
        %v2336 = vld [vmem:[#allocation9 + $0x8b0] sm:$0xff]
        %v2337 = vld [vmem:[#allocation9 + $0x8b8] sm:$0xff]
        %v2338 = vld [vmem:[#allocation9 + $0x8c0] sm:$0xff]
        %v2339 = vld [vmem:[#allocation9 + $0x8c8] sm:$0xff]
        %v2340 = vld [vmem:[#allocation9 + $0x8d0] sm:$0xff]
        %v2341 = vld [vmem:[#allocation9 + $0x8d8] sm:$0xff]
        %v2342 = vld [vmem:[#allocation9 + $0x8e0] sm:$0xff]
        %v2343 = vld [vmem:[#allocation9 + $0x8e8] sm:$0xff]
        %v2344 = vld [vmem:[#allocation9 + $0x8f0] sm:$0xff]
        %v2345 = vld [vmem:[#allocation9 + $0x8f8] sm:$0xff]
        %v2346 = vld [vmem:[#allocation11] sm:$0xff]
        %v2347 = vld [vmem:[#allocation11 + $0x8] sm:$0xff]
        %v2348 = vld [vmem:[#allocation11 + $0x10] sm:$0xff]
        %v2349 = vld [vmem:[#allocation11 + $0x18] sm:$0xff]
        %v2350 = vld [vmem:[#allocation11 + $0x20] sm:$0xff]
        %v2351 = vld [vmem:[#allocation11 + $0x28] sm:$0xff]
        %v2352 = vld [vmem:[#allocation11 + $0x30] sm:$0xff]
        %v2353 = vld [vmem:[#allocation11 + $0x38] sm:$0xff]
        %v2354 = vld [vmem:[#allocation11 + $0x40] sm:$0xff]
        %v2355 = vld [vmem:[#allocation11 + $0x48] sm:$0xff]
        %v2356 = vld [vmem:[#allocation11 + $0x50] sm:$0xff]
        %v2357 = vld [vmem:[#allocation11 + $0x58] sm:$0xff]
        %v2358 = vld [vmem:[#allocation11 + $0x60] sm:$0xff]
        %v2359 = vld [vmem:[#allocation11 + $0x68] sm:$0xff]
        %v2360 = vld [vmem:[#allocation11 + $0x70] sm:$0xff]
        %v2361 = vld [vmem:[#allocation11 + $0x78] sm:$0xff]
        %v2362 = vld [vmem:[#allocation11 + $0x80] sm:$0xff]
        %v2363 = vld [vmem:[#allocation11 + $0x88] sm:$0xff]
        %v2364 = vld [vmem:[#allocation11 + $0x90] sm:$0xff]
        %v2365 = vld [vmem:[#allocation11 + $0x98] sm:$0xff]
        %v2366 = vld [vmem:[#allocation11 + $0xa0] sm:$0xff]
        %v2367 = vld [vmem:[#allocation11 + $0xa8] sm:$0xff]
        %v2368 = vld [vmem:[#allocation11 + $0xb0] sm:$0xff]
        %v2369 = vld [vmem:[#allocation11 + $0xb8] sm:$0xff]
        %v2370 = vld [vmem:[#allocation11 + $0xc0] sm:$0xff]
        %v2371 = vld [vmem:[#allocation11 + $0xc8] sm:$0xff]
        %v2372 = vld [vmem:[#allocation11 + $0xd0] sm:$0xff]
        %v2373 = vld [vmem:[#allocation11 + $0xd8] sm:$0xff]
        %v2374 = vld [vmem:[#allocation11 + $0xe0] sm:$0xff]
        %v2375 = vld [vmem:[#allocation11 + $0xe8] sm:$0xff]
        %v2376 = vld [vmem:[#allocation11 + $0xf0] sm:$0xff]
        %v2377 = vld [vmem:[#allocation11 + $0xf8] sm:$0xff]
        %v2378 = vld [vmem:[#allocation11 + $0x100] sm:$0xff]
        %v2379 = vld [vmem:[#allocation11 + $0x108] sm:$0xff]
        %v2380 = vld [vmem:[#allocation11 + $0x110] sm:$0xff]
        %v2381 = vld [vmem:[#allocation11 + $0x118] sm:$0xff]
        %v2382 = vld [vmem:[#allocation11 + $0x120] sm:$0xff]
        %v2383 = vld [vmem:[#allocation11 + $0x128] sm:$0xff]
        %v2384 = vld [vmem:[#allocation11 + $0x130] sm:$0xff]
        %v2385 = vld [vmem:[#allocation11 + $0x138] sm:$0xff]
        %v2386 = vld [vmem:[#allocation11 + $0x140] sm:$0xff]
        %v2387 = vld [vmem:[#allocation11 + $0x148] sm:$0xff]
        %v2388 = vld [vmem:[#allocation11 + $0x150] sm:$0xff]
        %v2389 = vld [vmem:[#allocation11 + $0x158] sm:$0xff]
        %v2390 = vld [vmem:[#allocation11 + $0x160] sm:$0xff]
        %v2391 = vld [vmem:[#allocation11 + $0x168] sm:$0xff]
        %v2392 = vld [vmem:[#allocation11 + $0x170] sm:$0xff]
        %v2393 = vld [vmem:[#allocation11 + $0x178] sm:$0xff]
        %v2394 = vld [vmem:[#allocation11 + $0x180] sm:$0xff]
        %v2395 = vld [vmem:[#allocation11 + $0x188] sm:$0xff]
        %v2396 = vld [vmem:[#allocation11 + $0x190] sm:$0xff]
        %v2397 = vld [vmem:[#allocation11 + $0x198] sm:$0xff]
        %v2398 = vld [vmem:[#allocation11 + $0x1a0] sm:$0xff]
        %v2399 = vld [vmem:[#allocation11 + $0x1a8] sm:$0xff]
        %v2400 = vld [vmem:[#allocation11 + $0x1b0] sm:$0xff]
        %v2401 = vld [vmem:[#allocation11 + $0x1b8] sm:$0xff]
        %v2402 = vld [vmem:[#allocation11 + $0x1c0] sm:$0xff]
        %v2403 = vld [vmem:[#allocation11 + $0x1c8] sm:$0xff]
        %v2404 = vld [vmem:[#allocation11 + $0x1d0] sm:$0xff]
        %v2405 = vld [vmem:[#allocation11 + $0x1d8] sm:$0xff]
        %v2406 = vld [vmem:[#allocation11 + $0x1e0] sm:$0xff]
        %v2407 = vld [vmem:[#allocation11 + $0x1e8] sm:$0xff]
        %v2408 = vld [vmem:[#allocation11 + $0x1f0] sm:$0xff]
        %v2409 = vld [vmem:[#allocation11 + $0x1f8] sm:$0xff]
        %v2410 = vld [vmem:[#allocation11 + $0x200] sm:$0xff]
        %v2411 = vld [vmem:[#allocation11 + $0x208] sm:$0xff]
        %v2412 = vld [vmem:[#allocation11 + $0x210] sm:$0xff]
        %v2413 = vld [vmem:[#allocation11 + $0x218] sm:$0xff]
        %v2414 = vld [vmem:[#allocation11 + $0x220] sm:$0xff]
        %v2415 = vld [vmem:[#allocation11 + $0x228] sm:$0xff]
        %v2416 = vld [vmem:[#allocation11 + $0x230] sm:$0xff]
        %v2417 = vld [vmem:[#allocation11 + $0x238] sm:$0xff]
        %v2418 = vld [vmem:[#allocation11 + $0x240] sm:$0xff]
        %v2419 = vld [vmem:[#allocation11 + $0x248] sm:$0xff]
        %v2420 = vld [vmem:[#allocation11 + $0x250] sm:$0xff]
        %v2421 = vld [vmem:[#allocation11 + $0x258] sm:$0xff]
        %v2422 = vld [vmem:[#allocation11 + $0x260] sm:$0xff]
        %v2423 = vld [vmem:[#allocation11 + $0x268] sm:$0xff]
        %v2424 = vld [vmem:[#allocation11 + $0x270] sm:$0xff]
        %v2425 = vld [vmem:[#allocation11 + $0x278] sm:$0xff]
        %v2426 = vld [vmem:[#allocation11 + $0x280] sm:$0xff]
        %v2427 = vld [vmem:[#allocation11 + $0x288] sm:$0xff]
        %v2428 = vld [vmem:[#allocation11 + $0x290] sm:$0xff]
        %v2429 = vld [vmem:[#allocation11 + $0x298] sm:$0xff]
        %v2430 = vld [vmem:[#allocation11 + $0x2a0] sm:$0xff]
        %v2431 = vld [vmem:[#allocation11 + $0x2a8] sm:$0xff]
        %v2432 = vld [vmem:[#allocation11 + $0x2b0] sm:$0xff]
        %v2433 = vld [vmem:[#allocation11 + $0x2b8] sm:$0xff]
        %v2434 = vld [vmem:[#allocation11 + $0x2c0] sm:$0xff]
        %v2435 = vld [vmem:[#allocation11 + $0x2c8] sm:$0xff]
        %v2436 = vld [vmem:[#allocation11 + $0x2d0] sm:$0xff]
        %v2437 = vld [vmem:[#allocation11 + $0x2d8] sm:$0xff]
        %v2438 = vld [vmem:[#allocation11 + $0x2e0] sm:$0xff]
        %v2439 = vld [vmem:[#allocation11 + $0x2e8] sm:$0xff]
        %v2440 = vld [vmem:[#allocation11 + $0x2f0] sm:$0xff]
        %v2441 = vld [vmem:[#allocation11 + $0x2f8] sm:$0xff]
        %v2442 = vld [vmem:[#allocation11 + $0x300] sm:$0xff]
        %v2443 = vld [vmem:[#allocation11 + $0x308] sm:$0xff]
        %v2444 = vld [vmem:[#allocation11 + $0x310] sm:$0xff]
        %v2445 = vld [vmem:[#allocation11 + $0x318] sm:$0xff]
        %v2446 = vld [vmem:[#allocation11 + $0x320] sm:$0xff]
        %v2447 = vld [vmem:[#allocation11 + $0x328] sm:$0xff]
        %v2448 = vld [vmem:[#allocation11 + $0x330] sm:$0xff]
        %v2449 = vld [vmem:[#allocation11 + $0x338] sm:$0xff]
        %v2450 = vld [vmem:[#allocation11 + $0x340] sm:$0xff]
        %v2451 = vld [vmem:[#allocation11 + $0x348] sm:$0xff]
        %v2452 = vld [vmem:[#allocation11 + $0x350] sm:$0xff]
        %v2453 = vld [vmem:[#allocation11 + $0x358] sm:$0xff]
        %v2454 = vld [vmem:[#allocation11 + $0x360] sm:$0xff]
        %v2455 = vld [vmem:[#allocation11 + $0x368] sm:$0xff]
        %v2456 = vld [vmem:[#allocation11 + $0x370] sm:$0xff]
        %v2457 = vld [vmem:[#allocation11 + $0x378] sm:$0xff]
        %v2458 = vld [vmem:[#allocation11 + $0x380] sm:$0xff]
        %v2459 = vld [vmem:[#allocation11 + $0x388] sm:$0xff]
        %v2460 = vld [vmem:[#allocation11 + $0x390] sm:$0xff]
        %v2461 = vld [vmem:[#allocation11 + $0x398] sm:$0xff]
        %v2462 = vld [vmem:[#allocation11 + $0x3a0] sm:$0xff]
        %v2463 = vld [vmem:[#allocation11 + $0x3a8] sm:$0xff]
        %v2464 = vld [vmem:[#allocation11 + $0x3b0] sm:$0xff]
        %v2465 = vld [vmem:[#allocation11 + $0x3b8] sm:$0xff]
        %v2466 = vld [vmem:[#allocation11 + $0x3c0] sm:$0xff]
        %v2467 = vld [vmem:[#allocation11 + $0x3c8] sm:$0xff]
        %v2468 = vld [vmem:[#allocation11 + $0x3d0] sm:$0xff]
        %v2469 = vld [vmem:[#allocation11 + $0x3d8] sm:$0xff]
        %v2470 = vld [vmem:[#allocation11 + $0x3e0] sm:$0xff]
        %v2471 = vld [vmem:[#allocation11 + $0x3e8] sm:$0xff]
        %v2472 = vld [vmem:[#allocation11 + $0x3f0] sm:$0xff]
        %v2473 = vld [vmem:[#allocation11 + $0x3f8] sm:$0xff]
        %v2474 = vld [vmem:[#allocation11 + $0x400] sm:$0xff]
        %v2475 = vld [vmem:[#allocation11 + $0x408] sm:$0xff]
        %v2476 = vld [vmem:[#allocation11 + $0x410] sm:$0xff]
        %v2477 = vld [vmem:[#allocation11 + $0x418] sm:$0xff]
        %v2478 = vld [vmem:[#allocation11 + $0x420] sm:$0xff]
        %v2479 = vld [vmem:[#allocation11 + $0x428] sm:$0xff]
        %v2480 = vld [vmem:[#allocation11 + $0x430] sm:$0xff]
        %v2481 = vld [vmem:[#allocation11 + $0x438] sm:$0xff]
        %v2482 = vld [vmem:[#allocation11 + $0x440] sm:$0xff]
        %v2483 = vld [vmem:[#allocation11 + $0x448] sm:$0xff]
        %v2484 = vld [vmem:[#allocation11 + $0x450] sm:$0xff]
        %v2485 = vld [vmem:[#allocation11 + $0x458] sm:$0xff]
        %v2486 = vld [vmem:[#allocation11 + $0x460] sm:$0xff]
        %v2487 = vld [vmem:[#allocation11 + $0x468] sm:$0xff]
        %v2488 = vld [vmem:[#allocation11 + $0x470] sm:$0xff]
        %v2489 = vld [vmem:[#allocation11 + $0x478] sm:$0xff]
        %v2490 = vld [vmem:[#allocation11 + $0x480] sm:$0xff]
        %v2491 = vld [vmem:[#allocation11 + $0x488] sm:$0xff]
        %v2492 = vld [vmem:[#allocation11 + $0x490] sm:$0xff]
        %v2493 = vld [vmem:[#allocation11 + $0x498] sm:$0xff]
        %v2494 = vld [vmem:[#allocation11 + $0x4a0] sm:$0xff]
        %v2495 = vld [vmem:[#allocation11 + $0x4a8] sm:$0xff]
        %v2496 = vld [vmem:[#allocation11 + $0x4b0] sm:$0xff]
        %v2497 = vld [vmem:[#allocation11 + $0x4b8] sm:$0xff]
        %v2498 = vld [vmem:[#allocation11 + $0x4c0] sm:$0xff]
        %v2499 = vld [vmem:[#allocation11 + $0x4c8] sm:$0xff]
        %v2500 = vld [vmem:[#allocation11 + $0x4d0] sm:$0xff]
        %v2501 = vld [vmem:[#allocation11 + $0x4d8] sm:$0xff]
        %v2502 = vld [vmem:[#allocation11 + $0x4e0] sm:$0xff]
        %v2503 = vld [vmem:[#allocation11 + $0x4e8] sm:$0xff]
        %v2504 = vld [vmem:[#allocation11 + $0x4f0] sm:$0xff]
        %v2505 = vld [vmem:[#allocation11 + $0x4f8] sm:$0xff]
        %v2506 = vld [vmem:[#allocation11 + $0x500] sm:$0xff]
        %v2507 = vld [vmem:[#allocation11 + $0x508] sm:$0xff]
        %v2508 = vld [vmem:[#allocation11 + $0x510] sm:$0xff]
        %v2509 = vld [vmem:[#allocation11 + $0x518] sm:$0xff]
        %v2510 = vld [vmem:[#allocation11 + $0x520] sm:$0xff]
        %v2511 = vld [vmem:[#allocation11 + $0x528] sm:$0xff]
        %v2512 = vld [vmem:[#allocation11 + $0x530] sm:$0xff]
        %v2513 = vld [vmem:[#allocation11 + $0x538] sm:$0xff]
        %v2514 = vld [vmem:[#allocation11 + $0x540] sm:$0xff]
        %v2515 = vld [vmem:[#allocation11 + $0x548] sm:$0xff]
        %v2516 = vld [vmem:[#allocation11 + $0x550] sm:$0xff]
        %v2517 = vld [vmem:[#allocation11 + $0x558] sm:$0xff]
        %v2518 = vld [vmem:[#allocation11 + $0x560] sm:$0xff]
        %v2519 = vld [vmem:[#allocation11 + $0x568] sm:$0xff]
        %v2520 = vld [vmem:[#allocation11 + $0x570] sm:$0xff]
        %v2521 = vld [vmem:[#allocation11 + $0x578] sm:$0xff]
        %v2522 = vld [vmem:[#allocation11 + $0x580] sm:$0xff]
        %v2523 = vld [vmem:[#allocation11 + $0x588] sm:$0xff]
        %v2524 = vld [vmem:[#allocation11 + $0x590] sm:$0xff]
        %v2525 = vld [vmem:[#allocation11 + $0x598] sm:$0xff]
        %v2526 = vld [vmem:[#allocation11 + $0x5a0] sm:$0xff]
        %v2527 = vld [vmem:[#allocation11 + $0x5a8] sm:$0xff]
        %v2528 = vld [vmem:[#allocation11 + $0x5b0] sm:$0xff]
        %v2529 = vld [vmem:[#allocation11 + $0x5b8] sm:$0xff]
        %v2530 = vld [vmem:[#allocation11 + $0x5c0] sm:$0xff]
        %v2531 = vld [vmem:[#allocation11 + $0x5c8] sm:$0xff]
        %v2532 = vld [vmem:[#allocation11 + $0x5d0] sm:$0xff]
        %v2533 = vld [vmem:[#allocation11 + $0x5d8] sm:$0xff]
        %v2534 = vld [vmem:[#allocation11 + $0x5e0] sm:$0xff]
        %v2535 = vld [vmem:[#allocation11 + $0x5e8] sm:$0xff]
        %v2536 = vld [vmem:[#allocation11 + $0x5f0] sm:$0xff]
        %v2537 = vld [vmem:[#allocation11 + $0x5f8] sm:$0xff]
        %2538 = vmatpush.msra.mxu0 %v2436
        %2539 = vmatpush.msra.mxu0 %v2430
        %2540 = vmatpush.msra.mxu0 %v2424
        %2541 = vmatpush.msra.mxu0 %v2418
        %2542 = vmatpush.msra.mxu0 %v2412
        %2543 = vmatpush.msra.mxu0 %v2406
        %2544 = vmatpush.msra.mxu0 %v2400
        %2545 = vmatpush.msra.mxu0 %v2394
        %2546 = vmatpush.msra.mxu0 %v2388
        %2547 = vmatpush.msra.mxu0 %v2382
        %2548 = vmatpush.msra.mxu0 %v2376
        %2549 = vmatpush.msra.mxu0 %v2370
        %2550 = vmatpush.msra.mxu0 %v2364
        %2551 = vmatpush.msra.mxu0 %v2358
        %2552 = vmatpush.msra.mxu0 %v2352
        %2553 = vmatpush.msra.mxu0 %v2346
        %2554 = vmatmul.f32.gmra.mxu0 %v1170
        %v2555 = vpop.f32.mrf.mxu0
        %v2556 = vadd.f32 0.0, %v2555
        %2557 = vdwg.mxu0
        %2558 = vmatpush.msra.mxu0 %v2532
        %2559 = vmatpush.msra.mxu0 %v2526
        %2560 = vmatpush.msra.mxu0 %v2520
        %2561 = vmatpush.msra.mxu0 %v2514
        %2562 = vmatpush.msra.mxu0 %v2508
        %2563 = vmatpush.msra.mxu0 %v2502
        %2564 = vmatpush.msra.mxu0 %v2496
        %2565 = vmatpush.msra.mxu0 %v2490
        %2566 = vmatpush.msra.mxu0 %v2484
        %2567 = vmatpush.msra.mxu0 %v2478
        %2568 = vmatpush.msra.mxu0 %v2472
        %2569 = vmatpush.msra.mxu0 %v2466
        %2570 = vmatpush.msra.mxu0 %v2460
        %2571 = vmatpush.msra.mxu0 %v2454
        %2572 = vmatpush.msra.mxu0 %v2448
        %2573 = vmatpush.msra.mxu0 %v2442
        %2574 = vmatmul.f32.gmra.mxu0 %v1185
        %v2575 = vpop.f32.mrf.mxu0
        %v2576 = vadd.f32 %v2556, %v2575
        %2577 = vdwg.mxu0
        %2578 = vmatpush.msra.mxu0 %v2437
        %2579 = vmatpush.msra.mxu0 %v2431
        %2580 = vmatpush.msra.mxu0 %v2425
        %2581 = vmatpush.msra.mxu0 %v2419
        %2582 = vmatpush.msra.mxu0 %v2413
        %2583 = vmatpush.msra.mxu0 %v2407
        %2584 = vmatpush.msra.mxu0 %v2401
        %2585 = vmatpush.msra.mxu0 %v2395
        %2586 = vmatpush.msra.mxu0 %v2389
        %2587 = vmatpush.msra.mxu0 %v2383
        %2588 = vmatpush.msra.mxu0 %v2377
        %2589 = vmatpush.msra.mxu0 %v2371
        %2590 = vmatpush.msra.mxu0 %v2365
        %2591 = vmatpush.msra.mxu0 %v2359
        %2592 = vmatpush.msra.mxu0 %v2353
        %2593 = vmatpush.msra.mxu0 %v2347
        %2594 = vmatmul.f32.gmra.mxu0 %v1170
        %v2595 = vpop.f32.mrf.mxu0
        %v2596 = vadd.f32 0.0, %v2595
        %2597 = vdwg.mxu0
        %2598 = vmatpush.msra.mxu0 %v2533
        %2599 = vmatpush.msra.mxu0 %v2527
        %2600 = vmatpush.msra.mxu0 %v2521
        %2601 = vmatpush.msra.mxu0 %v2515
        %2602 = vmatpush.msra.mxu0 %v2509
        %2603 = vmatpush.msra.mxu0 %v2503
        %2604 = vmatpush.msra.mxu0 %v2497
        %2605 = vmatpush.msra.mxu0 %v2491
        %2606 = vmatpush.msra.mxu0 %v2485
        %2607 = vmatpush.msra.mxu0 %v2479
        %2608 = vmatpush.msra.mxu0 %v2473
        %2609 = vmatpush.msra.mxu0 %v2467
        %2610 = vmatpush.msra.mxu0 %v2461
        %2611 = vmatpush.msra.mxu0 %v2455
        %2612 = vmatpush.msra.mxu0 %v2449
        %2613 = vmatpush.msra.mxu0 %v2443
        %2614 = vmatmul.f32.gmra.mxu0 %v1185
        %v2615 = vpop.f32.mrf.mxu0
        %v2616 = vadd.f32 %v2596, %v2615
        %2617 = vdwg.mxu0
        %2618 = vmatpush.msra.mxu0 %v2438
        %2619 = vmatpush.msra.mxu0 %v2432
        %2620 = vmatpush.msra.mxu0 %v2426
        %2621 = vmatpush.msra.mxu0 %v2420
        %2622 = vmatpush.msra.mxu0 %v2414
        %2623 = vmatpush.msra.mxu0 %v2408
        %2624 = vmatpush.msra.mxu0 %v2402
        %2625 = vmatpush.msra.mxu0 %v2396
        %2626 = vmatpush.msra.mxu0 %v2390
        %2627 = vmatpush.msra.mxu0 %v2384
        %2628 = vmatpush.msra.mxu0 %v2378
        %2629 = vmatpush.msra.mxu0 %v2372
        %2630 = vmatpush.msra.mxu0 %v2366
        %2631 = vmatpush.msra.mxu0 %v2360
        %2632 = vmatpush.msra.mxu0 %v2354
        %2633 = vmatpush.msra.mxu0 %v2348
        %2634 = vmatmul.f32.gmra.mxu0 %v1170
        %v2635 = vpop.f32.mrf.mxu0
        %v2636 = vadd.f32 0.0, %v2635
        %2637 = vdwg.mxu0
        %2638 = vmatpush.msra.mxu0 %v2534
        %2639 = vmatpush.msra.mxu0 %v2528
        %2640 = vmatpush.msra.mxu0 %v2522
        %2641 = vmatpush.msra.mxu0 %v2516
        %2642 = vmatpush.msra.mxu0 %v2510
        %2643 = vmatpush.msra.mxu0 %v2504
        %2644 = vmatpush.msra.mxu0 %v2498
        %2645 = vmatpush.msra.mxu0 %v2492
        %2646 = vmatpush.msra.mxu0 %v2486
        %2647 = vmatpush.msra.mxu0 %v2480
        %2648 = vmatpush.msra.mxu0 %v2474
        %2649 = vmatpush.msra.mxu0 %v2468
        %2650 = vmatpush.msra.mxu0 %v2462
        %2651 = vmatpush.msra.mxu0 %v2456
        %2652 = vmatpush.msra.mxu0 %v2450
        %2653 = vmatpush.msra.mxu0 %v2444
        %2654 = vmatmul.f32.gmra.mxu0 %v1185
        %v2655 = vpop.f32.mrf.mxu0
        %v2656 = vadd.f32 %v2636, %v2655
        %2657 = vdwg.mxu0
        %2658 = vmatpush.msra.mxu0 %v2439
        %2659 = vmatpush.msra.mxu0 %v2433
        %2660 = vmatpush.msra.mxu0 %v2427
        %2661 = vmatpush.msra.mxu0 %v2421
        %2662 = vmatpush.msra.mxu0 %v2415
        %2663 = vmatpush.msra.mxu0 %v2409
        %2664 = vmatpush.msra.mxu0 %v2403
        %2665 = vmatpush.msra.mxu0 %v2397
        %2666 = vmatpush.msra.mxu0 %v2391
        %2667 = vmatpush.msra.mxu0 %v2385
        %2668 = vmatpush.msra.mxu0 %v2379
        %2669 = vmatpush.msra.mxu0 %v2373
        %2670 = vmatpush.msra.mxu0 %v2367
        %2671 = vmatpush.msra.mxu0 %v2361
        %2672 = vmatpush.msra.mxu0 %v2355
        %2673 = vmatpush.msra.mxu0 %v2349
        %2674 = vmatmul.f32.gmra.mxu0 %v1170
        %v2675 = vpop.f32.mrf.mxu0
        %v2676 = vadd.f32 0.0, %v2675
        %2677 = vdwg.mxu0
        %2678 = vmatpush.msra.mxu0 %v2535
        %2679 = vmatpush.msra.mxu0 %v2529
        %2680 = vmatpush.msra.mxu0 %v2523
        %2681 = vmatpush.msra.mxu0 %v2517
        %2682 = vmatpush.msra.mxu0 %v2511
        %2683 = vmatpush.msra.mxu0 %v2505
        %2684 = vmatpush.msra.mxu0 %v2499
        %2685 = vmatpush.msra.mxu0 %v2493
        %2686 = vmatpush.msra.mxu0 %v2487
        %2687 = vmatpush.msra.mxu0 %v2481
        %2688 = vmatpush.msra.mxu0 %v2475
        %2689 = vmatpush.msra.mxu0 %v2469
        %2690 = vmatpush.msra.mxu0 %v2463
        %2691 = vmatpush.msra.mxu0 %v2457
        %2692 = vmatpush.msra.mxu0 %v2451
        %2693 = vmatpush.msra.mxu0 %v2445
        %2694 = vmatmul.f32.gmra.mxu0 %v1185
        %v2695 = vpop.f32.mrf.mxu0
        %v2696 = vadd.f32 %v2676, %v2695
        %2697 = vdwg.mxu0
        %2698 = vmatpush.msra.mxu0 %v2440
        %2699 = vmatpush.msra.mxu0 %v2434
        %2700 = vmatpush.msra.mxu0 %v2428
        %2701 = vmatpush.msra.mxu0 %v2422
        %2702 = vmatpush.msra.mxu0 %v2416
        %2703 = vmatpush.msra.mxu0 %v2410
        %2704 = vmatpush.msra.mxu0 %v2404
        %2705 = vmatpush.msra.mxu0 %v2398
        %2706 = vmatpush.msra.mxu0 %v2392
        %2707 = vmatpush.msra.mxu0 %v2386
        %2708 = vmatpush.msra.mxu0 %v2380
        %2709 = vmatpush.msra.mxu0 %v2374
        %2710 = vmatpush.msra.mxu0 %v2368
        %2711 = vmatpush.msra.mxu0 %v2362
        %2712 = vmatpush.msra.mxu0 %v2356
        %2713 = vmatpush.msra.mxu0 %v2350
        %2714 = vmatmul.f32.gmra.mxu0 %v1170
        %v2715 = vpop.f32.mrf.mxu0
        %v2716 = vadd.f32 0.0, %v2715
        %2717 = vdwg.mxu0
        %2718 = vmatpush.msra.mxu0 %v2536
        %2719 = vmatpush.msra.mxu0 %v2530
        %2720 = vmatpush.msra.mxu0 %v2524
        %2721 = vmatpush.msra.mxu0 %v2518
        %2722 = vmatpush.msra.mxu0 %v2512
        %2723 = vmatpush.msra.mxu0 %v2506
        %2724 = vmatpush.msra.mxu0 %v2500
        %2725 = vmatpush.msra.mxu0 %v2494
        %2726 = vmatpush.msra.mxu0 %v2488
        %2727 = vmatpush.msra.mxu0 %v2482
        %2728 = vmatpush.msra.mxu0 %v2476
        %2729 = vmatpush.msra.mxu0 %v2470
        %2730 = vmatpush.msra.mxu0 %v2464
        %2731 = vmatpush.msra.mxu0 %v2458
        %2732 = vmatpush.msra.mxu0 %v2452
        %2733 = vmatpush.msra.mxu0 %v2446
        %2734 = vmatmul.f32.gmra.mxu0 %v1185
        %v2735 = vpop.f32.mrf.mxu0
        %v2736 = vadd.f32 %v2716, %v2735
        %2737 = vdwg.mxu0
        %2738 = vmatpush.msra.mxu0 %v2441
        %2739 = vmatpush.msra.mxu0 %v2435
        %2740 = vmatpush.msra.mxu0 %v2429
        %2741 = vmatpush.msra.mxu0 %v2423
        %2742 = vmatpush.msra.mxu0 %v2417
        %2743 = vmatpush.msra.mxu0 %v2411
        %2744 = vmatpush.msra.mxu0 %v2405
        %2745 = vmatpush.msra.mxu0 %v2399
        %2746 = vmatpush.msra.mxu0 %v2393
        %2747 = vmatpush.msra.mxu0 %v2387
        %2748 = vmatpush.msra.mxu0 %v2381
        %2749 = vmatpush.msra.mxu0 %v2375
        %2750 = vmatpush.msra.mxu0 %v2369
        %2751 = vmatpush.msra.mxu0 %v2363
        %2752 = vmatpush.msra.mxu0 %v2357
        %2753 = vmatpush.msra.mxu0 %v2351
        %2754 = vmatmul.f32.gmra.mxu0 %v1170
        %v2755 = vpop.f32.mrf.mxu0
        %v2756 = vadd.f32 0.0, %v2755
        %2757 = vdwg.mxu0
        %2758 = vmatpush.msra.mxu0 %v2537
        %2759 = vmatpush.msra.mxu0 %v2531
        %2760 = vmatpush.msra.mxu0 %v2525
        %2761 = vmatpush.msra.mxu0 %v2519
        %2762 = vmatpush.msra.mxu0 %v2513
        %2763 = vmatpush.msra.mxu0 %v2507
        %2764 = vmatpush.msra.mxu0 %v2501
        %2765 = vmatpush.msra.mxu0 %v2495
        %2766 = vmatpush.msra.mxu0 %v2489
        %2767 = vmatpush.msra.mxu0 %v2483
        %2768 = vmatpush.msra.mxu0 %v2477
        %2769 = vmatpush.msra.mxu0 %v2471
        %2770 = vmatpush.msra.mxu0 %v2465
        %2771 = vmatpush.msra.mxu0 %v2459
        %2772 = vmatpush.msra.mxu0 %v2453
        %2773 = vmatpush.msra.mxu0 %v2447
        %2774 = vmatmul.f32.gmra.mxu0 %v1185
        %v2775 = vpop.f32.mrf.mxu0
        %v2776 = vadd.f32 %v2756, %v2775
        %2777 = vdwg.mxu0
        %2778 = vmatpush.msra.mxu0 %v2148
        %2779 = vmatpush.msra.mxu0 %v2142
        %2780 = vmatpush.msra.mxu0 %v2136
        %2781 = vmatpush.msra.mxu0 %v2130
        %2782 = vmatpush.msra.mxu0 %v2124
        %2783 = vmatpush.msra.mxu0 %v2118
        %2784 = vmatpush.msra.mxu0 %v2112
        %2785 = vmatpush.msra.mxu0 %v2106
        %2786 = vmatpush.msra.mxu0 %v2100
        %2787 = vmatpush.msra.mxu0 %v2094
        %2788 = vmatpush.msra.mxu0 %v2088
        %2789 = vmatpush.msra.mxu0 %v2082
        %2790 = vmatpush.msra.mxu0 %v2076
        %2791 = vmatpush.msra.mxu0 %v2070
        %2792 = vmatpush.msra.mxu0 %v2064
        %2793 = vmatpush.msra.mxu0 %v2058
        %2794 = vmatmul.f32.gmra.mxu0 %v1736
        %v2795 = vpop.f32.mrf.mxu0
        %v2796 = vadd.f32 %v2576, %v2795
        %2797 = vdwg.mxu0
        %2798 = vmatpush.msra.mxu0 %v2244
        %2799 = vmatpush.msra.mxu0 %v2238
        %2800 = vmatpush.msra.mxu0 %v2232
        %2801 = vmatpush.msra.mxu0 %v2226
        %2802 = vmatpush.msra.mxu0 %v2220
        %2803 = vmatpush.msra.mxu0 %v2214
        %2804 = vmatpush.msra.mxu0 %v2208
        %2805 = vmatpush.msra.mxu0 %v2202
        %2806 = vmatpush.msra.mxu0 %v2196
        %2807 = vmatpush.msra.mxu0 %v2190
        %2808 = vmatpush.msra.mxu0 %v2184
        %2809 = vmatpush.msra.mxu0 %v2178
        %2810 = vmatpush.msra.mxu0 %v2172
        %2811 = vmatpush.msra.mxu0 %v2166
        %2812 = vmatpush.msra.mxu0 %v2160
        %2813 = vmatpush.msra.mxu0 %v2154
        %2814 = vmatmul.f32.gmra.mxu0 %v1896
        %v2815 = vpop.f32.mrf.mxu0
        %v2816 = vadd.f32 %v2796, %v2815
        %2817 = vdwg.mxu0
        %2818 = vmatpush.msra.mxu0 %v2340
        %2819 = vmatpush.msra.mxu0 %v2334
        %2820 = vmatpush.msra.mxu0 %v2328
        %2821 = vmatpush.msra.mxu0 %v2322
        %2822 = vmatpush.msra.mxu0 %v2316
        %2823 = vmatpush.msra.mxu0 %v2310
        %2824 = vmatpush.msra.mxu0 %v2304
        %2825 = vmatpush.msra.mxu0 %v2298
        %2826 = vmatpush.msra.mxu0 %v2292
        %2827 = vmatpush.msra.mxu0 %v2286
        %2828 = vmatpush.msra.mxu0 %v2280
        %2829 = vmatpush.msra.mxu0 %v2274
        %2830 = vmatpush.msra.mxu0 %v2268
        %2831 = vmatpush.msra.mxu0 %v2262
        %2832 = vmatpush.msra.mxu0 %v2256
        %2833 = vmatpush.msra.mxu0 %v2250
        %2834 = vmatmul.f32.gmra.mxu0 %v2056
        %v2835 = vpop.f32.mrf.mxu0
        %v2836 = vadd.f32 %v2816, %v2835
        %2837 = vdwg.mxu0
        %2838 = vmatpush.msra.mxu0 %v2149
        %2839 = vmatpush.msra.mxu0 %v2143
        %2840 = vmatpush.msra.mxu0 %v2137
        %2841 = vmatpush.msra.mxu0 %v2131
        %2842 = vmatpush.msra.mxu0 %v2125
        %2843 = vmatpush.msra.mxu0 %v2119
        %2844 = vmatpush.msra.mxu0 %v2113
        %2845 = vmatpush.msra.mxu0 %v2107
        %2846 = vmatpush.msra.mxu0 %v2101
        %2847 = vmatpush.msra.mxu0 %v2095
        %2848 = vmatpush.msra.mxu0 %v2089
        %2849 = vmatpush.msra.mxu0 %v2083
        %2850 = vmatpush.msra.mxu0 %v2077
        %2851 = vmatpush.msra.mxu0 %v2071
        %2852 = vmatpush.msra.mxu0 %v2065
        %2853 = vmatpush.msra.mxu0 %v2059
        %2854 = vmatmul.f32.gmra.mxu0 %v1736
        %v2855 = vpop.f32.mrf.mxu0
        %v2856 = vadd.f32 %v2616, %v2855
        %2857 = vdwg.mxu0
        %2858 = vmatpush.msra.mxu0 %v2245
        %2859 = vmatpush.msra.mxu0 %v2239
        %2860 = vmatpush.msra.mxu0 %v2233
        %2861 = vmatpush.msra.mxu0 %v2227
        %2862 = vmatpush.msra.mxu0 %v2221
        %2863 = vmatpush.msra.mxu0 %v2215
        %2864 = vmatpush.msra.mxu0 %v2209
        %2865 = vmatpush.msra.mxu0 %v2203
        %2866 = vmatpush.msra.mxu0 %v2197
        %2867 = vmatpush.msra.mxu0 %v2191
        %2868 = vmatpush.msra.mxu0 %v2185
        %2869 = vmatpush.msra.mxu0 %v2179
        %2870 = vmatpush.msra.mxu0 %v2173
        %2871 = vmatpush.msra.mxu0 %v2167
        %2872 = vmatpush.msra.mxu0 %v2161
        %2873 = vmatpush.msra.mxu0 %v2155
        %2874 = vmatmul.f32.gmra.mxu0 %v1896
        %v2875 = vpop.f32.mrf.mxu0
        %v2876 = vadd.f32 %v2856, %v2875
        %2877 = vdwg.mxu0
        %2878 = vmatpush.msra.mxu0 %v2341
        %2879 = vmatpush.msra.mxu0 %v2335
        %2880 = vmatpush.msra.mxu0 %v2329
        %2881 = vmatpush.msra.mxu0 %v2323
        %2882 = vmatpush.msra.mxu0 %v2317
        %2883 = vmatpush.msra.mxu0 %v2311
        %2884 = vmatpush.msra.mxu0 %v2305
        %2885 = vmatpush.msra.mxu0 %v2299
        %2886 = vmatpush.msra.mxu0 %v2293
        %2887 = vmatpush.msra.mxu0 %v2287
        %2888 = vmatpush.msra.mxu0 %v2281
        %2889 = vmatpush.msra.mxu0 %v2275
        %2890 = vmatpush.msra.mxu0 %v2269
        %2891 = vmatpush.msra.mxu0 %v2263
        %2892 = vmatpush.msra.mxu0 %v2257
        %2893 = vmatpush.msra.mxu0 %v2251
        %2894 = vmatmul.f32.gmra.mxu0 %v2056
        %v2895 = vpop.f32.mrf.mxu0
        %v2896 = vadd.f32 %v2876, %v2895
        %2897 = vdwg.mxu0
        %2898 = vmatpush.msra.mxu0 %v2150
        %2899 = vmatpush.msra.mxu0 %v2144
        %2900 = vmatpush.msra.mxu0 %v2138
        %2901 = vmatpush.msra.mxu0 %v2132
        %2902 = vmatpush.msra.mxu0 %v2126
        %2903 = vmatpush.msra.mxu0 %v2120
        %2904 = vmatpush.msra.mxu0 %v2114
        %2905 = vmatpush.msra.mxu0 %v2108
        %2906 = vmatpush.msra.mxu0 %v2102
        %2907 = vmatpush.msra.mxu0 %v2096
        %2908 = vmatpush.msra.mxu0 %v2090
        %2909 = vmatpush.msra.mxu0 %v2084
        %2910 = vmatpush.msra.mxu0 %v2078
        %2911 = vmatpush.msra.mxu0 %v2072
        %2912 = vmatpush.msra.mxu0 %v2066
        %2913 = vmatpush.msra.mxu0 %v2060
        %2914 = vmatmul.f32.gmra.mxu0 %v1736
        %v2915 = vpop.f32.mrf.mxu0
        %v2916 = vadd.f32 %v2656, %v2915
        %2917 = vdwg.mxu0
        %2918 = vmatpush.msra.mxu0 %v2246
        %2919 = vmatpush.msra.mxu0 %v2240
        %2920 = vmatpush.msra.mxu0 %v2234
        %2921 = vmatpush.msra.mxu0 %v2228
        %2922 = vmatpush.msra.mxu0 %v2222
        %2923 = vmatpush.msra.mxu0 %v2216
        %2924 = vmatpush.msra.mxu0 %v2210
        %2925 = vmatpush.msra.mxu0 %v2204
        %2926 = vmatpush.msra.mxu0 %v2198
        %2927 = vmatpush.msra.mxu0 %v2192
        %2928 = vmatpush.msra.mxu0 %v2186
        %2929 = vmatpush.msra.mxu0 %v2180
        %2930 = vmatpush.msra.mxu0 %v2174
        %2931 = vmatpush.msra.mxu0 %v2168
        %2932 = vmatpush.msra.mxu0 %v2162
        %2933 = vmatpush.msra.mxu0 %v2156
        %2934 = vmatmul.f32.gmra.mxu0 %v1896
        %v2935 = vpop.f32.mrf.mxu0
        %v2936 = vadd.f32 %v2916, %v2935
        %2937 = vdwg.mxu0
        %2938 = vmatpush.msra.mxu0 %v2342
        %2939 = vmatpush.msra.mxu0 %v2336
        %2940 = vmatpush.msra.mxu0 %v2330
        %2941 = vmatpush.msra.mxu0 %v2324
        %2942 = vmatpush.msra.mxu0 %v2318
        %2943 = vmatpush.msra.mxu0 %v2312
        %2944 = vmatpush.msra.mxu0 %v2306
        %2945 = vmatpush.msra.mxu0 %v2300
        %2946 = vmatpush.msra.mxu0 %v2294
        %2947 = vmatpush.msra.mxu0 %v2288
        %2948 = vmatpush.msra.mxu0 %v2282
        %2949 = vmatpush.msra.mxu0 %v2276
        %2950 = vmatpush.msra.mxu0 %v2270
        %2951 = vmatpush.msra.mxu0 %v2264
        %2952 = vmatpush.msra.mxu0 %v2258
        %2953 = vmatpush.msra.mxu0 %v2252
        %2954 = vmatmul.f32.gmra.mxu0 %v2056
        %v2955 = vpop.f32.mrf.mxu0
        %v2956 = vadd.f32 %v2936, %v2955
        %2957 = vdwg.mxu0
        %2958 = vmatpush.msra.mxu0 %v2151
        %2959 = vmatpush.msra.mxu0 %v2145
        %2960 = vmatpush.msra.mxu0 %v2139
        %2961 = vmatpush.msra.mxu0 %v2133
        %2962 = vmatpush.msra.mxu0 %v2127
        %2963 = vmatpush.msra.mxu0 %v2121
        %2964 = vmatpush.msra.mxu0 %v2115
        %2965 = vmatpush.msra.mxu0 %v2109
        %2966 = vmatpush.msra.mxu0 %v2103
        %2967 = vmatpush.msra.mxu0 %v2097
        %2968 = vmatpush.msra.mxu0 %v2091
        %2969 = vmatpush.msra.mxu0 %v2085
        %2970 = vmatpush.msra.mxu0 %v2079
        %2971 = vmatpush.msra.mxu0 %v2073
        %2972 = vmatpush.msra.mxu0 %v2067
        %2973 = vmatpush.msra.mxu0 %v2061
        %2974 = vmatmul.f32.gmra.mxu0 %v1736
        %v2975 = vpop.f32.mrf.mxu0
        %v2976 = vadd.f32 %v2696, %v2975
        %2977 = vdwg.mxu0
        %2978 = vmatpush.msra.mxu0 %v2247
        %2979 = vmatpush.msra.mxu0 %v2241
        %2980 = vmatpush.msra.mxu0 %v2235
        %2981 = vmatpush.msra.mxu0 %v2229
        %2982 = vmatpush.msra.mxu0 %v2223
        %2983 = vmatpush.msra.mxu0 %v2217
        %2984 = vmatpush.msra.mxu0 %v2211
        %2985 = vmatpush.msra.mxu0 %v2205
        %2986 = vmatpush.msra.mxu0 %v2199
        %2987 = vmatpush.msra.mxu0 %v2193
        %2988 = vmatpush.msra.mxu0 %v2187
        %2989 = vmatpush.msra.mxu0 %v2181
        %2990 = vmatpush.msra.mxu0 %v2175
        %2991 = vmatpush.msra.mxu0 %v2169
        %2992 = vmatpush.msra.mxu0 %v2163
        %2993 = vmatpush.msra.mxu0 %v2157
        %2994 = vmatmul.f32.gmra.mxu0 %v1896
        %v2995 = vpop.f32.mrf.mxu0
        %v2996 = vadd.f32 %v2976, %v2995
        %2997 = vdwg.mxu0
        %2998 = vmatpush.msra.mxu0 %v2343
        %2999 = vmatpush.msra.mxu0 %v2337
        %3000 = vmatpush.msra.mxu0 %v2331
        %3001 = vmatpush.msra.mxu0 %v2325
        %3002 = vmatpush.msra.mxu0 %v2319
        %3003 = vmatpush.msra.mxu0 %v2313
        %3004 = vmatpush.msra.mxu0 %v2307
        %3005 = vmatpush.msra.mxu0 %v2301
        %3006 = vmatpush.msra.mxu0 %v2295
        %3007 = vmatpush.msra.mxu0 %v2289
        %3008 = vmatpush.msra.mxu0 %v2283
        %3009 = vmatpush.msra.mxu0 %v2277
        %3010 = vmatpush.msra.mxu0 %v2271
        %3011 = vmatpush.msra.mxu0 %v2265
        %3012 = vmatpush.msra.mxu0 %v2259
        %3013 = vmatpush.msra.mxu0 %v2253
        %3014 = vmatmul.f32.gmra.mxu0 %v2056
        %v3015 = vpop.f32.mrf.mxu0
        %v3016 = vadd.f32 %v2996, %v3015
        %3017 = vdwg.mxu0
        %3018 = vmatpush.msra.mxu0 %v2152
        %3019 = vmatpush.msra.mxu0 %v2146
        %3020 = vmatpush.msra.mxu0 %v2140
        %3021 = vmatpush.msra.mxu0 %v2134
        %3022 = vmatpush.msra.mxu0 %v2128
        %3023 = vmatpush.msra.mxu0 %v2122
        %3024 = vmatpush.msra.mxu0 %v2116
        %3025 = vmatpush.msra.mxu0 %v2110
        %3026 = vmatpush.msra.mxu0 %v2104
        %3027 = vmatpush.msra.mxu0 %v2098
        %3028 = vmatpush.msra.mxu0 %v2092
        %3029 = vmatpush.msra.mxu0 %v2086
        %3030 = vmatpush.msra.mxu0 %v2080
        %3031 = vmatpush.msra.mxu0 %v2074
        %3032 = vmatpush.msra.mxu0 %v2068
        %3033 = vmatpush.msra.mxu0 %v2062
        %3034 = vmatmul.f32.gmra.mxu0 %v1736
        %v3035 = vpop.f32.mrf.mxu0
        %v3036 = vadd.f32 %v2736, %v3035
        %3037 = vdwg.mxu0
        %3038 = vmatpush.msra.mxu0 %v2248
        %3039 = vmatpush.msra.mxu0 %v2242
        %3040 = vmatpush.msra.mxu0 %v2236
        %3041 = vmatpush.msra.mxu0 %v2230
        %3042 = vmatpush.msra.mxu0 %v2224
        %3043 = vmatpush.msra.mxu0 %v2218
        %3044 = vmatpush.msra.mxu0 %v2212
        %3045 = vmatpush.msra.mxu0 %v2206
        %3046 = vmatpush.msra.mxu0 %v2200
        %3047 = vmatpush.msra.mxu0 %v2194
        %3048 = vmatpush.msra.mxu0 %v2188
        %3049 = vmatpush.msra.mxu0 %v2182
        %3050 = vmatpush.msra.mxu0 %v2176
        %3051 = vmatpush.msra.mxu0 %v2170
        %3052 = vmatpush.msra.mxu0 %v2164
        %3053 = vmatpush.msra.mxu0 %v2158
        %3054 = vmatmul.f32.gmra.mxu0 %v1896
        %v3055 = vpop.f32.mrf.mxu0
        %v3056 = vadd.f32 %v3036, %v3055
        %3057 = vdwg.mxu0
        %3058 = vmatpush.msra.mxu0 %v2344
        %3059 = vmatpush.msra.mxu0 %v2338
        %3060 = vmatpush.msra.mxu0 %v2332
        %3061 = vmatpush.msra.mxu0 %v2326
        %3062 = vmatpush.msra.mxu0 %v2320
        %3063 = vmatpush.msra.mxu0 %v2314
        %3064 = vmatpush.msra.mxu0 %v2308
        %3065 = vmatpush.msra.mxu0 %v2302
        %3066 = vmatpush.msra.mxu0 %v2296
        %3067 = vmatpush.msra.mxu0 %v2290
        %3068 = vmatpush.msra.mxu0 %v2284
        %3069 = vmatpush.msra.mxu0 %v2278
        %3070 = vmatpush.msra.mxu0 %v2272
        %3071 = vmatpush.msra.mxu0 %v2266
        %3072 = vmatpush.msra.mxu0 %v2260
        %3073 = vmatpush.msra.mxu0 %v2254
        %3074 = vmatmul.f32.gmra.mxu0 %v2056
        %v3075 = vpop.f32.mrf.mxu0
        %v3076 = vadd.f32 %v3056, %v3075
        %3077 = vdwg.mxu0
        %3078 = vmatpush.msra.mxu0 %v2153
        %3079 = vmatpush.msra.mxu0 %v2147
        %3080 = vmatpush.msra.mxu0 %v2141
        %3081 = vmatpush.msra.mxu0 %v2135
        %3082 = vmatpush.msra.mxu0 %v2129
        %3083 = vmatpush.msra.mxu0 %v2123
        %3084 = vmatpush.msra.mxu0 %v2117
        %3085 = vmatpush.msra.mxu0 %v2111
        %3086 = vmatpush.msra.mxu0 %v2105
        %3087 = vmatpush.msra.mxu0 %v2099
        %3088 = vmatpush.msra.mxu0 %v2093
        %3089 = vmatpush.msra.mxu0 %v2087
        %3090 = vmatpush.msra.mxu0 %v2081
        %3091 = vmatpush.msra.mxu0 %v2075
        %3092 = vmatpush.msra.mxu0 %v2069
        %3093 = vmatpush.msra.mxu0 %v2063
        %3094 = vmatmul.f32.gmra.mxu0 %v1736
        %v3095 = vpop.f32.mrf.mxu0
        %v3096 = vadd.f32 %v2776, %v3095
        %3097 = vdwg.mxu0
        %3098 = vmatpush.msra.mxu0 %v2249
        %3099 = vmatpush.msra.mxu0 %v2243
        %3100 = vmatpush.msra.mxu0 %v2237
        %3101 = vmatpush.msra.mxu0 %v2231
        %3102 = vmatpush.msra.mxu0 %v2225
        %3103 = vmatpush.msra.mxu0 %v2219
        %3104 = vmatpush.msra.mxu0 %v2213
        %3105 = vmatpush.msra.mxu0 %v2207
        %3106 = vmatpush.msra.mxu0 %v2201
        %3107 = vmatpush.msra.mxu0 %v2195
        %3108 = vmatpush.msra.mxu0 %v2189
        %3109 = vmatpush.msra.mxu0 %v2183
        %3110 = vmatpush.msra.mxu0 %v2177
        %3111 = vmatpush.msra.mxu0 %v2171
        %3112 = vmatpush.msra.mxu0 %v2165
        %3113 = vmatpush.msra.mxu0 %v2159
        %3114 = vmatmul.f32.gmra.mxu0 %v1896
        %v3115 = vpop.f32.mrf.mxu0
        %v3116 = vadd.f32 %v3096, %v3115
        %3117 = vdwg.mxu0
        %3118 = vmatpush.msra.mxu0 %v2345
        %3119 = vmatpush.msra.mxu0 %v2339
        %3120 = vmatpush.msra.mxu0 %v2333
        %3121 = vmatpush.msra.mxu0 %v2327
        %3122 = vmatpush.msra.mxu0 %v2321
        %3123 = vmatpush.msra.mxu0 %v2315
        %3124 = vmatpush.msra.mxu0 %v2309
        %3125 = vmatpush.msra.mxu0 %v2303
        %3126 = vmatpush.msra.mxu0 %v2297
        %3127 = vmatpush.msra.mxu0 %v2291
        %3128 = vmatpush.msra.mxu0 %v2285
        %3129 = vmatpush.msra.mxu0 %v2279
        %3130 = vmatpush.msra.mxu0 %v2273
        %3131 = vmatpush.msra.mxu0 %v2267
        %3132 = vmatpush.msra.mxu0 %v2261
        %3133 = vmatpush.msra.mxu0 %v2255
        %3134 = vmatmul.f32.gmra.mxu0 %v2056
        %v3135 = vpop.f32.mrf.mxu0
        %v3136 = vadd.f32 %v3116, %v3135
        %3137 = vdwg.mxu0
        %v3138 = vld [vmem:[#allocation14] sm:$0x3f]
        %v3140 = vperm.slane %v3138, 0
        %v3141 = vperm.slane %v3138, 1
        %v3142 = vperm.slane %v3138, 2
        %v3143 = vperm.slane %v3138, 3
        %v3144 = vperm.slane %v3138, 4
        %v3145 = vperm.slane %v3138, 5
        %v3152 = vadd.f32 %v2836, %v3140
        %v3153 = vadd.f32 %v2896, %v3141
        %v3154 = vadd.f32 %v2956, %v3142
        %v3155 = vadd.f32 %v3016, %v3143
        %v3156 = vadd.f32 %v3076, %v3144
        %v3157 = vadd.f32 %v3136, %v3145
        %v3158 = vld [vmem:[#allocation12] sm:$0xff]
        %v3159 = vld [vmem:[#allocation12 + $0x8] sm:$0xff]
        %v3160 = vld [vmem:[#allocation12 + $0x10] sm:$0xff]
        %v3161 = vld [vmem:[#allocation12 + $0x18] sm:$0xff]
        %v3162 = vld [vmem:[#allocation12 + $0x20] sm:$0xff]
        %v3163 = vld [vmem:[#allocation12 + $0x28] sm:$0xff]
        %v3164 = vld [vmem:[#allocation12 + $0x30] sm:$0xff]
        %v3165 = vld [vmem:[#allocation12 + $0x38] sm:$0xff]
        %v3166 = vld [vmem:[#allocation12 + $0x40] sm:$0xff]
        %v3167 = vld [vmem:[#allocation12 + $0x48] sm:$0xff]
        %v3168 = vld [vmem:[#allocation12 + $0x50] sm:$0xff]
        %v3169 = vld [vmem:[#allocation12 + $0x58] sm:$0xff]
        %v3170 = vld [vmem:[#allocation12 + $0x60] sm:$0xff]
        %v3171 = vld [vmem:[#allocation12 + $0x68] sm:$0xff]
        %v3172 = vld [vmem:[#allocation12 + $0x70] sm:$0xff]
        %v3173 = vld [vmem:[#allocation12 + $0x78] sm:$0xff]
        %v3174 = vld [vmem:[#allocation12 + $0x80] sm:$0xff]
        %v3175 = vld [vmem:[#allocation12 + $0x88] sm:$0xff]
        %v3176 = vld [vmem:[#allocation12 + $0x90] sm:$0xff]
        %v3177 = vld [vmem:[#allocation12 + $0x98] sm:$0xff]
        %v3178 = vld [vmem:[#allocation12 + $0xa0] sm:$0xff]
        %v3179 = vld [vmem:[#allocation12 + $0xa8] sm:$0xff]
        %v3180 = vld [vmem:[#allocation12 + $0xb0] sm:$0xff]
        %v3181 = vld [vmem:[#allocation12 + $0xb8] sm:$0xff]
        %v3182 = vld [vmem:[#allocation12 + $0xc0] sm:$0xff]
        %v3183 = vld [vmem:[#allocation12 + $0xc8] sm:$0xff]
        %v3184 = vld [vmem:[#allocation12 + $0xd0] sm:$0xff]
        %v3185 = vld [vmem:[#allocation12 + $0xd8] sm:$0xff]
        %v3186 = vld [vmem:[#allocation12 + $0xe0] sm:$0xff]
        %v3187 = vld [vmem:[#allocation12 + $0xe8] sm:$0xff]
        %v3188 = vld [vmem:[#allocation12 + $0xf0] sm:$0xff]
        %v3189 = vld [vmem:[#allocation12 + $0xf8] sm:$0xff]
        %v3190 = vld [vmem:[#allocation12 + $0x100] sm:$0xff]
        %v3191 = vld [vmem:[#allocation12 + $0x108] sm:$0xff]
        %v3192 = vld [vmem:[#allocation12 + $0x110] sm:$0xff]
        %v3193 = vld [vmem:[#allocation12 + $0x118] sm:$0xff]
        %v3194 = vld [vmem:[#allocation12 + $0x120] sm:$0xff]
        %v3195 = vld [vmem:[#allocation12 + $0x128] sm:$0xff]
        %v3196 = vld [vmem:[#allocation12 + $0x130] sm:$0xff]
        %v3197 = vld [vmem:[#allocation12 + $0x138] sm:$0xff]
        %v3198 = vld [vmem:[#allocation12 + $0x140] sm:$0xff]
        %v3199 = vld [vmem:[#allocation12 + $0x148] sm:$0xff]
        %v3200 = vld [vmem:[#allocation12 + $0x150] sm:$0xff]
        %v3201 = vld [vmem:[#allocation12 + $0x158] sm:$0xff]
        %v3202 = vld [vmem:[#allocation12 + $0x160] sm:$0xff]
        %v3203 = vld [vmem:[#allocation12 + $0x168] sm:$0xff]
        %v3204 = vld [vmem:[#allocation12 + $0x170] sm:$0xff]
        %v3205 = vld [vmem:[#allocation12 + $0x178] sm:$0xff]
        %v3206 = vld [vmem:[#allocation12 + $0x180] sm:$0xff]
        %v3207 = vld [vmem:[#allocation12 + $0x188] sm:$0xff]
        %v3208 = vld [vmem:[#allocation12 + $0x190] sm:$0xff]
        %v3209 = vld [vmem:[#allocation12 + $0x198] sm:$0xff]
        %v3210 = vld [vmem:[#allocation12 + $0x1a0] sm:$0xff]
        %v3211 = vld [vmem:[#allocation12 + $0x1a8] sm:$0xff]
        %v3212 = vld [vmem:[#allocation12 + $0x1b0] sm:$0xff]
        %v3213 = vld [vmem:[#allocation12 + $0x1b8] sm:$0xff]
        %v3214 = vld [vmem:[#allocation12 + $0x1c0] sm:$0xff]
        %v3215 = vld [vmem:[#allocation12 + $0x1c8] sm:$0xff]
        %v3216 = vld [vmem:[#allocation12 + $0x1d0] sm:$0xff]
        %v3217 = vld [vmem:[#allocation12 + $0x1d8] sm:$0xff]
        %v3218 = vld [vmem:[#allocation12 + $0x1e0] sm:$0xff]
        %v3219 = vld [vmem:[#allocation12 + $0x1e8] sm:$0xff]
        %v3220 = vld [vmem:[#allocation12 + $0x1f0] sm:$0xff]
        %v3221 = vld [vmem:[#allocation12 + $0x1f8] sm:$0xff]
        %v3222 = vld [vmem:[#allocation12 + $0x200] sm:$0xff]
        %v3223 = vld [vmem:[#allocation12 + $0x208] sm:$0xff]
        %v3224 = vld [vmem:[#allocation12 + $0x210] sm:$0xff]
        %v3225 = vld [vmem:[#allocation12 + $0x218] sm:$0xff]
        %v3226 = vld [vmem:[#allocation12 + $0x220] sm:$0xff]
        %v3227 = vld [vmem:[#allocation12 + $0x228] sm:$0xff]
        %v3228 = vld [vmem:[#allocation12 + $0x230] sm:$0xff]
        %v3229 = vld [vmem:[#allocation12 + $0x238] sm:$0xff]
        %v3230 = vld [vmem:[#allocation12 + $0x240] sm:$0xff]
        %v3231 = vld [vmem:[#allocation12 + $0x248] sm:$0xff]
        %v3232 = vld [vmem:[#allocation12 + $0x250] sm:$0xff]
        %v3233 = vld [vmem:[#allocation12 + $0x258] sm:$0xff]
        %v3234 = vld [vmem:[#allocation12 + $0x260] sm:$0xff]
        %v3235 = vld [vmem:[#allocation12 + $0x268] sm:$0xff]
        %v3236 = vld [vmem:[#allocation12 + $0x270] sm:$0xff]
        %v3237 = vld [vmem:[#allocation12 + $0x278] sm:$0xff]
        %v3238 = vld [vmem:[#allocation12 + $0x280] sm:$0xff]
        %v3239 = vld [vmem:[#allocation12 + $0x288] sm:$0xff]
        %v3240 = vld [vmem:[#allocation12 + $0x290] sm:$0xff]
        %v3241 = vld [vmem:[#allocation12 + $0x298] sm:$0xff]
        %v3242 = vld [vmem:[#allocation12 + $0x2a0] sm:$0xff]
        %v3243 = vld [vmem:[#allocation12 + $0x2a8] sm:$0xff]
        %v3244 = vld [vmem:[#allocation12 + $0x2b0] sm:$0xff]
        %v3245 = vld [vmem:[#allocation12 + $0x2b8] sm:$0xff]
        %v3246 = vld [vmem:[#allocation12 + $0x2c0] sm:$0xff]
        %v3247 = vld [vmem:[#allocation12 + $0x2c8] sm:$0xff]
        %v3248 = vld [vmem:[#allocation12 + $0x2d0] sm:$0xff]
        %v3249 = vld [vmem:[#allocation12 + $0x2d8] sm:$0xff]
        %v3250 = vld [vmem:[#allocation12 + $0x2e0] sm:$0xff]
        %v3251 = vld [vmem:[#allocation12 + $0x2e8] sm:$0xff]
        %v3252 = vld [vmem:[#allocation12 + $0x2f0] sm:$0xff]
        %v3253 = vld [vmem:[#allocation12 + $0x2f8] sm:$0xff]
        %v3254 = vld [vmem:[#allocation12 + $0x300] sm:$0xff]
        %v3255 = vld [vmem:[#allocation12 + $0x308] sm:$0xff]
        %v3256 = vld [vmem:[#allocation12 + $0x310] sm:$0xff]
        %v3257 = vld [vmem:[#allocation12 + $0x318] sm:$0xff]
        %v3258 = vld [vmem:[#allocation12 + $0x320] sm:$0xff]
        %v3259 = vld [vmem:[#allocation12 + $0x328] sm:$0xff]
        %v3260 = vld [vmem:[#allocation12 + $0x330] sm:$0xff]
        %v3261 = vld [vmem:[#allocation12 + $0x338] sm:$0xff]
        %v3262 = vld [vmem:[#allocation12 + $0x340] sm:$0xff]
        %v3263 = vld [vmem:[#allocation12 + $0x348] sm:$0xff]
        %v3264 = vld [vmem:[#allocation12 + $0x350] sm:$0xff]
        %v3265 = vld [vmem:[#allocation12 + $0x358] sm:$0xff]
        %v3266 = vld [vmem:[#allocation12 + $0x360] sm:$0xff]
        %v3267 = vld [vmem:[#allocation12 + $0x368] sm:$0xff]
        %v3268 = vld [vmem:[#allocation12 + $0x370] sm:$0xff]
        %v3269 = vld [vmem:[#allocation12 + $0x378] sm:$0xff]
        %v3270 = vld [vmem:[#allocation12 + $0x380] sm:$0xff]
        %v3271 = vld [vmem:[#allocation12 + $0x388] sm:$0xff]
        %v3272 = vld [vmem:[#allocation12 + $0x390] sm:$0xff]
        %v3273 = vld [vmem:[#allocation12 + $0x398] sm:$0xff]
        %v3274 = vld [vmem:[#allocation12 + $0x3a0] sm:$0xff]
        %v3275 = vld [vmem:[#allocation12 + $0x3a8] sm:$0xff]
        %v3276 = vld [vmem:[#allocation12 + $0x3b0] sm:$0xff]
        %v3277 = vld [vmem:[#allocation12 + $0x3b8] sm:$0xff]
        %v3278 = vld [vmem:[#allocation12 + $0x3c0] sm:$0xff]
        %v3279 = vld [vmem:[#allocation12 + $0x3c8] sm:$0xff]
        %v3280 = vld [vmem:[#allocation12 + $0x3d0] sm:$0xff]
        %v3281 = vld [vmem:[#allocation12 + $0x3d8] sm:$0xff]
        %v3282 = vld [vmem:[#allocation12 + $0x3e0] sm:$0xff]
        %v3283 = vld [vmem:[#allocation12 + $0x3e8] sm:$0xff]
        %v3284 = vld [vmem:[#allocation12 + $0x3f0] sm:$0xff]
        %v3285 = vld [vmem:[#allocation12 + $0x3f8] sm:$0xff]
        %v3286 = vld [vmem:[#allocation12 + $0x400] sm:$0xff]
        %v3287 = vld [vmem:[#allocation12 + $0x408] sm:$0xff]
        %v3288 = vld [vmem:[#allocation12 + $0x410] sm:$0xff]
        %v3289 = vld [vmem:[#allocation12 + $0x418] sm:$0xff]
        %v3290 = vld [vmem:[#allocation12 + $0x420] sm:$0xff]
        %v3291 = vld [vmem:[#allocation12 + $0x428] sm:$0xff]
        %v3292 = vld [vmem:[#allocation12 + $0x430] sm:$0xff]
        %v3293 = vld [vmem:[#allocation12 + $0x438] sm:$0xff]
        %v3294 = vld [vmem:[#allocation12 + $0x440] sm:$0xff]
        %v3295 = vld [vmem:[#allocation12 + $0x448] sm:$0xff]
        %v3296 = vld [vmem:[#allocation12 + $0x450] sm:$0xff]
        %v3297 = vld [vmem:[#allocation12 + $0x458] sm:$0xff]
        %v3298 = vld [vmem:[#allocation12 + $0x460] sm:$0xff]
        %v3299 = vld [vmem:[#allocation12 + $0x468] sm:$0xff]
        %v3300 = vld [vmem:[#allocation12 + $0x470] sm:$0xff]
        %v3301 = vld [vmem:[#allocation12 + $0x478] sm:$0xff]
        %v3302 = vld [vmem:[#allocation12 + $0x480] sm:$0xff]
        %v3303 = vld [vmem:[#allocation12 + $0x488] sm:$0xff]
        %v3304 = vld [vmem:[#allocation12 + $0x490] sm:$0xff]
        %v3305 = vld [vmem:[#allocation12 + $0x498] sm:$0xff]
        %v3306 = vld [vmem:[#allocation12 + $0x4a0] sm:$0xff]
        %v3307 = vld [vmem:[#allocation12 + $0x4a8] sm:$0xff]
        %v3308 = vld [vmem:[#allocation12 + $0x4b0] sm:$0xff]
        %v3309 = vld [vmem:[#allocation12 + $0x4b8] sm:$0xff]
        %v3310 = vld [vmem:[#allocation12 + $0x4c0] sm:$0xff]
        %v3311 = vld [vmem:[#allocation12 + $0x4c8] sm:$0xff]
        %v3312 = vld [vmem:[#allocation12 + $0x4d0] sm:$0xff]
        %v3313 = vld [vmem:[#allocation12 + $0x4d8] sm:$0xff]
        %v3314 = vld [vmem:[#allocation12 + $0x4e0] sm:$0xff]
        %v3315 = vld [vmem:[#allocation12 + $0x4e8] sm:$0xff]
        %v3316 = vld [vmem:[#allocation12 + $0x4f0] sm:$0xff]
        %v3317 = vld [vmem:[#allocation12 + $0x4f8] sm:$0xff]
        %v3318 = vld [vmem:[#allocation12 + $0x500] sm:$0xff]
        %v3319 = vld [vmem:[#allocation12 + $0x508] sm:$0xff]
        %v3320 = vld [vmem:[#allocation12 + $0x510] sm:$0xff]
        %v3321 = vld [vmem:[#allocation12 + $0x518] sm:$0xff]
        %v3322 = vld [vmem:[#allocation12 + $0x520] sm:$0xff]
        %v3323 = vld [vmem:[#allocation12 + $0x528] sm:$0xff]
        %v3324 = vld [vmem:[#allocation12 + $0x530] sm:$0xff]
        %v3325 = vld [vmem:[#allocation12 + $0x538] sm:$0xff]
        %v3326 = vld [vmem:[#allocation12 + $0x540] sm:$0xff]
        %v3327 = vld [vmem:[#allocation12 + $0x548] sm:$0xff]
        %v3328 = vld [vmem:[#allocation12 + $0x550] sm:$0xff]
        %v3329 = vld [vmem:[#allocation12 + $0x558] sm:$0xff]
        %v3330 = vld [vmem:[#allocation12 + $0x560] sm:$0xff]
        %v3331 = vld [vmem:[#allocation12 + $0x568] sm:$0xff]
        %v3332 = vld [vmem:[#allocation12 + $0x570] sm:$0xff]
        %v3333 = vld [vmem:[#allocation12 + $0x578] sm:$0xff]
        %v3334 = vld [vmem:[#allocation12 + $0x580] sm:$0xff]
        %v3335 = vld [vmem:[#allocation12 + $0x588] sm:$0xff]
        %v3336 = vld [vmem:[#allocation12 + $0x590] sm:$0xff]
        %v3337 = vld [vmem:[#allocation12 + $0x598] sm:$0xff]
        %v3338 = vld [vmem:[#allocation12 + $0x5a0] sm:$0xff]
        %v3339 = vld [vmem:[#allocation12 + $0x5a8] sm:$0xff]
        %v3340 = vld [vmem:[#allocation12 + $0x5b0] sm:$0xff]
        %v3341 = vld [vmem:[#allocation12 + $0x5b8] sm:$0xff]
        %v3342 = vld [vmem:[#allocation12 + $0x5c0] sm:$0xff]
        %v3343 = vld [vmem:[#allocation12 + $0x5c8] sm:$0xff]
        %v3344 = vld [vmem:[#allocation12 + $0x5d0] sm:$0xff]
        %v3345 = vld [vmem:[#allocation12 + $0x5d8] sm:$0xff]
        %v3346 = vld [vmem:[#allocation12 + $0x5e0] sm:$0xff]
        %v3347 = vld [vmem:[#allocation12 + $0x5e8] sm:$0xff]
        %v3348 = vld [vmem:[#allocation12 + $0x5f0] sm:$0xff]
        %v3349 = vld [vmem:[#allocation12 + $0x5f8] sm:$0xff]
        %v3350 = vld [vmem:[#allocation15] sm:$0x3f]
        %v3352 = vperm.slane %v3350, 0
        %v3353 = vperm.slane %v3350, 1
        %v3354 = vperm.slane %v3350, 2
        %v3355 = vperm.slane %v3350, 3
        %v3356 = vperm.slane %v3350, 4
        %v3357 = vperm.slane %v3350, 5
        %3364 = vmatpush.msra.mxu0 %v3248
        %3365 = vmatpush.msra.mxu0 %v3242
        %3366 = vmatpush.msra.mxu0 %v3236
        %3367 = vmatpush.msra.mxu0 %v3230
        %3368 = vmatpush.msra.mxu0 %v3224
        %3369 = vmatpush.msra.mxu0 %v3218
        %3370 = vmatpush.msra.mxu0 %v3212
        %3371 = vmatpush.msra.mxu0 %v3206
        %3372 = vmatpush.msra.mxu0 %v3200
        %3373 = vmatpush.msra.mxu0 %v3194
        %3374 = vmatpush.msra.mxu0 %v3188
        %3375 = vmatpush.msra.mxu0 %v3182
        %3376 = vmatpush.msra.mxu0 %v3176
        %3377 = vmatpush.msra.mxu0 %v3170
        %3378 = vmatpush.msra.mxu0 %v3164
        %3379 = vmatpush.msra.mxu0 %v3158
        %3380 = vmatmul.f32.gmra.mxu0 %v700
        %v3381 = vpop.f32.mrf.mxu0
        %v3382 = vadd.f32 %v3352, %v3381
        %3383 = vdwg.mxu0
        %3384 = vmatpush.msra.mxu0 %v3344
        %3385 = vmatpush.msra.mxu0 %v3338
        %3386 = vmatpush.msra.mxu0 %v3332
        %3387 = vmatpush.msra.mxu0 %v3326
        %3388 = vmatpush.msra.mxu0 %v3320
        %3389 = vmatpush.msra.mxu0 %v3314
        %3390 = vmatpush.msra.mxu0 %v3308
        %3391 = vmatpush.msra.mxu0 %v3302
        %3392 = vmatpush.msra.mxu0 %v3296
        %3393 = vmatpush.msra.mxu0 %v3290
        %3394 = vmatpush.msra.mxu0 %v3284
        %3395 = vmatpush.msra.mxu0 %v3278
        %3396 = vmatpush.msra.mxu0 %v3272
        %3397 = vmatpush.msra.mxu0 %v3266
        %3398 = vmatpush.msra.mxu0 %v3260
        %3399 = vmatpush.msra.mxu0 %v3254
        %3400 = vmatmul.f32.gmra.mxu0 %v701
        %v3401 = vpop.f32.mrf.mxu0
        %v3402 = vadd.f32 %v3382, %v3401
        %3403 = vdwg.mxu0
        %3404 = vmatpush.msra.mxu0 %v3249
        %3405 = vmatpush.msra.mxu0 %v3243
        %3406 = vmatpush.msra.mxu0 %v3237
        %3407 = vmatpush.msra.mxu0 %v3231
        %3408 = vmatpush.msra.mxu0 %v3225
        %3409 = vmatpush.msra.mxu0 %v3219
        %3410 = vmatpush.msra.mxu0 %v3213
        %3411 = vmatpush.msra.mxu0 %v3207
        %3412 = vmatpush.msra.mxu0 %v3201
        %3413 = vmatpush.msra.mxu0 %v3195
        %3414 = vmatpush.msra.mxu0 %v3189
        %3415 = vmatpush.msra.mxu0 %v3183
        %3416 = vmatpush.msra.mxu0 %v3177
        %3417 = vmatpush.msra.mxu0 %v3171
        %3418 = vmatpush.msra.mxu0 %v3165
        %3419 = vmatpush.msra.mxu0 %v3159
        %3420 = vmatmul.f32.gmra.mxu0 %v700
        %v3421 = vpop.f32.mrf.mxu0
        %v3422 = vadd.f32 %v3353, %v3421
        %3423 = vdwg.mxu0
        %3424 = vmatpush.msra.mxu0 %v3345
        %3425 = vmatpush.msra.mxu0 %v3339
        %3426 = vmatpush.msra.mxu0 %v3333
        %3427 = vmatpush.msra.mxu0 %v3327
        %3428 = vmatpush.msra.mxu0 %v3321
        %3429 = vmatpush.msra.mxu0 %v3315
        %3430 = vmatpush.msra.mxu0 %v3309
        %3431 = vmatpush.msra.mxu0 %v3303
        %3432 = vmatpush.msra.mxu0 %v3297
        %3433 = vmatpush.msra.mxu0 %v3291
        %3434 = vmatpush.msra.mxu0 %v3285
        %3435 = vmatpush.msra.mxu0 %v3279
        %3436 = vmatpush.msra.mxu0 %v3273
        %3437 = vmatpush.msra.mxu0 %v3267
        %3438 = vmatpush.msra.mxu0 %v3261
        %3439 = vmatpush.msra.mxu0 %v3255
        %3440 = vmatmul.f32.gmra.mxu0 %v701
        %v3441 = vpop.f32.mrf.mxu0
        %v3442 = vadd.f32 %v3422, %v3441
        %3443 = vdwg.mxu0
        %3444 = vmatpush.msra.mxu0 %v3250
        %3445 = vmatpush.msra.mxu0 %v3244
        %3446 = vmatpush.msra.mxu0 %v3238
        %3447 = vmatpush.msra.mxu0 %v3232
        %3448 = vmatpush.msra.mxu0 %v3226
        %3449 = vmatpush.msra.mxu0 %v3220
        %3450 = vmatpush.msra.mxu0 %v3214
        %3451 = vmatpush.msra.mxu0 %v3208
        %3452 = vmatpush.msra.mxu0 %v3202
        %3453 = vmatpush.msra.mxu0 %v3196
        %3454 = vmatpush.msra.mxu0 %v3190
        %3455 = vmatpush.msra.mxu0 %v3184
        %3456 = vmatpush.msra.mxu0 %v3178
        %3457 = vmatpush.msra.mxu0 %v3172
        %3458 = vmatpush.msra.mxu0 %v3166
        %3459 = vmatpush.msra.mxu0 %v3160
        %3460 = vmatmul.f32.gmra.mxu0 %v700
        %v3461 = vpop.f32.mrf.mxu0
        %v3462 = vadd.f32 %v3354, %v3461
        %3463 = vdwg.mxu0
        %3464 = vmatpush.msra.mxu0 %v3346
        %3465 = vmatpush.msra.mxu0 %v3340
        %3466 = vmatpush.msra.mxu0 %v3334
        %3467 = vmatpush.msra.mxu0 %v3328
        %3468 = vmatpush.msra.mxu0 %v3322
        %3469 = vmatpush.msra.mxu0 %v3316
        %3470 = vmatpush.msra.mxu0 %v3310
        %3471 = vmatpush.msra.mxu0 %v3304
        %3472 = vmatpush.msra.mxu0 %v3298
        %3473 = vmatpush.msra.mxu0 %v3292
        %3474 = vmatpush.msra.mxu0 %v3286
        %3475 = vmatpush.msra.mxu0 %v3280
        %3476 = vmatpush.msra.mxu0 %v3274
        %3477 = vmatpush.msra.mxu0 %v3268
        %3478 = vmatpush.msra.mxu0 %v3262
        %3479 = vmatpush.msra.mxu0 %v3256
        %3480 = vmatmul.f32.gmra.mxu0 %v701
        %v3481 = vpop.f32.mrf.mxu0
        %v3482 = vadd.f32 %v3462, %v3481
        %3483 = vdwg.mxu0
        %3484 = vmatpush.msra.mxu0 %v3251
        %3485 = vmatpush.msra.mxu0 %v3245
        %3486 = vmatpush.msra.mxu0 %v3239
        %3487 = vmatpush.msra.mxu0 %v3233
        %3488 = vmatpush.msra.mxu0 %v3227
        %3489 = vmatpush.msra.mxu0 %v3221
        %3490 = vmatpush.msra.mxu0 %v3215
        %3491 = vmatpush.msra.mxu0 %v3209
        %3492 = vmatpush.msra.mxu0 %v3203
        %3493 = vmatpush.msra.mxu0 %v3197
        %3494 = vmatpush.msra.mxu0 %v3191
        %3495 = vmatpush.msra.mxu0 %v3185
        %3496 = vmatpush.msra.mxu0 %v3179
        %3497 = vmatpush.msra.mxu0 %v3173
        %3498 = vmatpush.msra.mxu0 %v3167
        %3499 = vmatpush.msra.mxu0 %v3161
        %3500 = vmatmul.f32.gmra.mxu0 %v700
        %v3501 = vpop.f32.mrf.mxu0
        %v3502 = vadd.f32 %v3355, %v3501
        %3503 = vdwg.mxu0
        %3504 = vmatpush.msra.mxu0 %v3347
        %3505 = vmatpush.msra.mxu0 %v3341
        %3506 = vmatpush.msra.mxu0 %v3335
        %3507 = vmatpush.msra.mxu0 %v3329
        %3508 = vmatpush.msra.mxu0 %v3323
        %3509 = vmatpush.msra.mxu0 %v3317
        %3510 = vmatpush.msra.mxu0 %v3311
        %3511 = vmatpush.msra.mxu0 %v3305
        %3512 = vmatpush.msra.mxu0 %v3299
        %3513 = vmatpush.msra.mxu0 %v3293
        %3514 = vmatpush.msra.mxu0 %v3287
        %3515 = vmatpush.msra.mxu0 %v3281
        %3516 = vmatpush.msra.mxu0 %v3275
        %3517 = vmatpush.msra.mxu0 %v3269
        %3518 = vmatpush.msra.mxu0 %v3263
        %3519 = vmatpush.msra.mxu0 %v3257
        %3520 = vmatmul.f32.gmra.mxu0 %v701
        %v3521 = vpop.f32.mrf.mxu0
        %v3522 = vadd.f32 %v3502, %v3521
        %3523 = vdwg.mxu0
        %3524 = vmatpush.msra.mxu0 %v3252
        %3525 = vmatpush.msra.mxu0 %v3246
        %3526 = vmatpush.msra.mxu0 %v3240
        %3527 = vmatpush.msra.mxu0 %v3234
        %3528 = vmatpush.msra.mxu0 %v3228
        %3529 = vmatpush.msra.mxu0 %v3222
        %3530 = vmatpush.msra.mxu0 %v3216
        %3531 = vmatpush.msra.mxu0 %v3210
        %3532 = vmatpush.msra.mxu0 %v3204
        %3533 = vmatpush.msra.mxu0 %v3198
        %3534 = vmatpush.msra.mxu0 %v3192
        %3535 = vmatpush.msra.mxu0 %v3186
        %3536 = vmatpush.msra.mxu0 %v3180
        %3537 = vmatpush.msra.mxu0 %v3174
        %3538 = vmatpush.msra.mxu0 %v3168
        %3539 = vmatpush.msra.mxu0 %v3162
        %3540 = vmatmul.f32.gmra.mxu0 %v700
        %v3541 = vpop.f32.mrf.mxu0
        %v3542 = vadd.f32 %v3356, %v3541
        %3543 = vdwg.mxu0
        %3544 = vmatpush.msra.mxu0 %v3348
        %3545 = vmatpush.msra.mxu0 %v3342
        %3546 = vmatpush.msra.mxu0 %v3336
        %3547 = vmatpush.msra.mxu0 %v3330
        %3548 = vmatpush.msra.mxu0 %v3324
        %3549 = vmatpush.msra.mxu0 %v3318
        %3550 = vmatpush.msra.mxu0 %v3312
        %3551 = vmatpush.msra.mxu0 %v3306
        %3552 = vmatpush.msra.mxu0 %v3300
        %3553 = vmatpush.msra.mxu0 %v3294
        %3554 = vmatpush.msra.mxu0 %v3288
        %3555 = vmatpush.msra.mxu0 %v3282
        %3556 = vmatpush.msra.mxu0 %v3276
        %3557 = vmatpush.msra.mxu0 %v3270
        %3558 = vmatpush.msra.mxu0 %v3264
        %3559 = vmatpush.msra.mxu0 %v3258
        %3560 = vmatmul.f32.gmra.mxu0 %v701
        %v3561 = vpop.f32.mrf.mxu0
        %v3562 = vadd.f32 %v3542, %v3561
        %3563 = vdwg.mxu0
        %3564 = vmatpush.msra.mxu0 %v3253
        %3565 = vmatpush.msra.mxu0 %v3247
        %3566 = vmatpush.msra.mxu0 %v3241
        %3567 = vmatpush.msra.mxu0 %v3235
        %3568 = vmatpush.msra.mxu0 %v3229
        %3569 = vmatpush.msra.mxu0 %v3223
        %3570 = vmatpush.msra.mxu0 %v3217
        %3571 = vmatpush.msra.mxu0 %v3211
        %3572 = vmatpush.msra.mxu0 %v3205
        %3573 = vmatpush.msra.mxu0 %v3199
        %3574 = vmatpush.msra.mxu0 %v3193
        %3575 = vmatpush.msra.mxu0 %v3187
        %3576 = vmatpush.msra.mxu0 %v3181
        %3577 = vmatpush.msra.mxu0 %v3175
        %3578 = vmatpush.msra.mxu0 %v3169
        %3579 = vmatpush.msra.mxu0 %v3163
        %3580 = vmatmul.f32.gmra.mxu0 %v700
        %v3581 = vpop.f32.mrf.mxu0
        %v3582 = vadd.f32 %v3357, %v3581
        %3583 = vdwg.mxu0
        %3584 = vmatpush.msra.mxu0 %v3349
        %3585 = vmatpush.msra.mxu0 %v3343
        %3586 = vmatpush.msra.mxu0 %v3337
        %3587 = vmatpush.msra.mxu0 %v3331
        %3588 = vmatpush.msra.mxu0 %v3325
        %3589 = vmatpush.msra.mxu0 %v3319
        %3590 = vmatpush.msra.mxu0 %v3313
        %3591 = vmatpush.msra.mxu0 %v3307
        %3592 = vmatpush.msra.mxu0 %v3301
        %3593 = vmatpush.msra.mxu0 %v3295
        %3594 = vmatpush.msra.mxu0 %v3289
        %3595 = vmatpush.msra.mxu0 %v3283
        %3596 = vmatpush.msra.mxu0 %v3277
        %3597 = vmatpush.msra.mxu0 %v3271
        %3598 = vmatpush.msra.mxu0 %v3265
        %3599 = vmatpush.msra.mxu0 %v3259
        %3600 = vmatmul.f32.gmra.mxu0 %v701
        %v3601 = vpop.f32.mrf.mxu0
        %v3602 = vadd.f32 %v3582, %v3601
        %3603 = vdwg.mxu0
        %v3604 = vadd.f32 %v3152, %v3402
        %v3605 = vadd.f32 %v3153, %v3442
        %v3606 = vxor.u32 %v3604, 2147483648
        %v3607 = vxor.u32 %v3605, 2147483648
        %v3608 = vmul.f32 %v3606, 1.442695
        %v3609 = vpow.pop %v3608
        %v3610 = vmul.f32 %v3607, 1.442695
        %v3611 = vpow.pop %v3610
        %v3612 = vadd.f32 %v3609, 1.0
        %v3613 = vadd.f32 %v3611, 1.0
        %v3614 = vrcp.pop %v3612
        %v3615 = vmul.f32 %v3612, %v3614
        %v3616 = vsub.f32 1.0, %v3615
        %v3617 = vmul.f32 %v3614, %v3616
        %v3618 = vadd.f32 %v3614, %v3617
        %vm3619 = vweird.f32 %v3612
        %vm3620 = vweird.f32 %v3614
        %vm3621 = vmor %vm3619, %vm3620
        %v3622 = vsel %vm3621, %v3614, %v3618
        %v3623 = vand.u32 2147483647, %v3612
        %vm3624 = vcmp.eq.f32.partialorder %v3623, 8.507059e+37
        %v3625 = vand.u32 %v3612, 2147483648
        %v3626 = vor.u32 1.1754944e-38, %v3625
        %v3627 = vsel %vm3624, %v3626, %v3622
        %v3628 = vmul.f32 1.0, %v3627
        %v3629 = vrcp.pop %v3613
        %v3630 = vmul.f32 %v3613, %v3629
        %v3631 = vsub.f32 1.0, %v3630
        %v3632 = vmul.f32 %v3629, %v3631
        %v3633 = vadd.f32 %v3629, %v3632
        %vm3634 = vweird.f32 %v3613
        %vm3635 = vweird.f32 %v3629
        %vm3636 = vmor %vm3634, %vm3635
        %v3637 = vsel %vm3636, %v3629, %v3633
        %v3638 = vand.u32 2147483647, %v3613
        %vm3639 = vcmp.eq.f32.partialorder %v3638, 8.507059e+37
        %v3640 = vand.u32 %v3613, 2147483648
        %v3641 = vor.u32 1.1754944e-38, %v3640
        %v3642 = vsel %vm3639, %v3641, %v3637
        %v3643 = vmul.f32 1.0, %v3642
        %v3644 = vadd.f32 %v3154, %v3482
        %v3645 = vadd.f32 %v3155, %v3522
        %v3646 = vxor.u32 %v3644, 2147483648
        %v3647 = vxor.u32 %v3645, 2147483648
        %v3648 = vmul.f32 %v3646, 1.442695
        %v3649 = vpow.pop %v3648
        %v3650 = vmul.f32 %v3647, 1.442695
        %v3651 = vpow.pop %v3650
        %v3652 = vadd.f32 %v3649, 1.0
        %v3653 = vadd.f32 %v3651, 1.0
        %v3654 = vrcp.pop %v3652
        %v3655 = vmul.f32 %v3652, %v3654
        %v3656 = vsub.f32 1.0, %v3655
        %v3657 = vmul.f32 %v3654, %v3656
        %v3658 = vadd.f32 %v3654, %v3657
        %vm3659 = vweird.f32 %v3652
        %vm3660 = vweird.f32 %v3654
        %vm3661 = vmor %vm3659, %vm3660
        %v3662 = vsel %vm3661, %v3654, %v3658
        %v3663 = vand.u32 2147483647, %v3652
        %vm3664 = vcmp.eq.f32.partialorder %v3663, 8.507059e+37
        %v3665 = vand.u32 %v3652, 2147483648
        %v3666 = vor.u32 1.1754944e-38, %v3665
        %v3667 = vsel %vm3664, %v3666, %v3662
        %v3668 = vmul.f32 1.0, %v3667
        %v3669 = vrcp.pop %v3653
        %v3670 = vmul.f32 %v3653, %v3669
        %v3671 = vsub.f32 1.0, %v3670
        %v3672 = vmul.f32 %v3669, %v3671
        %v3673 = vadd.f32 %v3669, %v3672
        %vm3674 = vweird.f32 %v3653
        %vm3675 = vweird.f32 %v3669
        %vm3676 = vmor %vm3674, %vm3675
        %v3677 = vsel %vm3676, %v3669, %v3673
        %v3678 = vand.u32 2147483647, %v3653
        %vm3679 = vcmp.eq.f32.partialorder %v3678, 8.507059e+37
        %v3680 = vand.u32 %v3653, 2147483648
        %v3681 = vor.u32 1.1754944e-38, %v3680
        %v3682 = vsel %vm3679, %v3681, %v3677
        %v3683 = vmul.f32 1.0, %v3682
        %v3684 = vmul.f32 %v3628, %v3562
        %v3685 = vmul.f32 %v3643, %v3602
        %v3686 = vadd.f32 %v3156, %v3684
        %v3687 = vadd.f32 %v3157, %v3685
        %v3688 = vtanh.pop %v3686
        %v3689 = vtanh.pop %v3687
        %v3690 = vsub.f32 1.0, %v3668
        %v3691 = vsub.f32 1.0, %v3683
        %v3692 = vmul.f32 %v3690, %v3688
        %v3693 = vmul.f32 %v3691, %v3689
        %v3694 = vmul.f32 %v3668, %v700
        %v3695 = vmul.f32 %v3683, %v701
        %v3696 = vadd.f32 %v3692, %v3694
        %v3697 = vadd.f32 %v3693, %v3695
        %3698 = vst [vmem:[#allocation2] sm:$0xff] %v3696
        %3699 = vst [vmem:[#allocation2 + $0x8] sm:$0xff] %v3697
        %v3700 = vld [vmem:[#allocation17] sm:$0xff]
        %v3701 = vld [vmem:[#allocation17 + $0x8] sm:$0xff]
        %v3702 = vld [vmem:[#allocation17 + $0x10] sm:$0xff]
        %v3703 = vld [vmem:[#allocation17 + $0x18] sm:$0xff]
        %v3704 = vld [vmem:[#allocation17 + $0x20] sm:$0xff]
        %v3705 = vld [vmem:[#allocation17 + $0x28] sm:$0xff]
        %v3706 = vld [vmem:[#allocation17 + $0x30] sm:$0xff]
        %v3707 = vld [vmem:[#allocation17 + $0x38] sm:$0xff]
        %v3708 = vld [vmem:[#allocation17 + $0x40] sm:$0xff]
        %v3709 = vld [vmem:[#allocation17 + $0x48] sm:$0xff]
        %v3710 = vld [vmem:[#allocation17 + $0x50] sm:$0xff]
        %v3711 = vld [vmem:[#allocation17 + $0x58] sm:$0xff]
        %v3712 = vld [vmem:[#allocation17 + $0x60] sm:$0xff]
        %v3713 = vld [vmem:[#allocation17 + $0x68] sm:$0xff]
        %v3714 = vld [vmem:[#allocation17 + $0x70] sm:$0xff]
        %v3715 = vld [vmem:[#allocation17 + $0x78] sm:$0xff]
        %v3716 = vld [vmem:[#allocation17 + $0x80] sm:$0xff]
        %v3717 = vld [vmem:[#allocation17 + $0x88] sm:$0xff]
        %v3718 = vld [vmem:[#allocation17 + $0x90] sm:$0xff]
        %v3719 = vld [vmem:[#allocation17 + $0x98] sm:$0xff]
        %v3720 = vld [vmem:[#allocation17 + $0xa0] sm:$0xff]
        %v3721 = vld [vmem:[#allocation17 + $0xa8] sm:$0xff]
        %v3722 = vld [vmem:[#allocation17 + $0xb0] sm:$0xff]
        %v3723 = vld [vmem:[#allocation17 + $0xb8] sm:$0xff]
        %v3724 = vld [vmem:[#allocation17 + $0xc0] sm:$0xff]
        %v3725 = vld [vmem:[#allocation17 + $0xc8] sm:$0xff]
        %v3726 = vld [vmem:[#allocation17 + $0xd0] sm:$0xff]
        %v3727 = vld [vmem:[#allocation17 + $0xd8] sm:$0xff]
        %v3728 = vld [vmem:[#allocation17 + $0xe0] sm:$0xff]
        %v3729 = vld [vmem:[#allocation17 + $0xe8] sm:$0xff]
        %v3730 = vld [vmem:[#allocation17 + $0xf0] sm:$0xff]
        %v3731 = vld [vmem:[#allocation17 + $0xf8] sm:$0xff]
        %v3732 = vld [vmem:[#allocation17 + $0x100] sm:$0xff]
        %v3733 = vld [vmem:[#allocation17 + $0x108] sm:$0xff]
        %v3734 = vld [vmem:[#allocation17 + $0x110] sm:$0xff]
        %v3735 = vld [vmem:[#allocation17 + $0x118] sm:$0xff]
        %v3736 = vld [vmem:[#allocation17 + $0x120] sm:$0xff]
        %v3737 = vld [vmem:[#allocation17 + $0x128] sm:$0xff]
        %v3738 = vld [vmem:[#allocation17 + $0x130] sm:$0xff]
        %v3739 = vld [vmem:[#allocation17 + $0x138] sm:$0xff]
        %v3740 = vld [vmem:[#allocation17 + $0x140] sm:$0xff]
        %v3741 = vld [vmem:[#allocation17 + $0x148] sm:$0xff]
        %v3742 = vld [vmem:[#allocation17 + $0x150] sm:$0xff]
        %v3743 = vld [vmem:[#allocation17 + $0x158] sm:$0xff]
        %v3744 = vld [vmem:[#allocation17 + $0x160] sm:$0xff]
        %v3745 = vld [vmem:[#allocation17 + $0x168] sm:$0xff]
        %v3746 = vld [vmem:[#allocation17 + $0x170] sm:$0xff]
        %v3747 = vld [vmem:[#allocation17 + $0x178] sm:$0xff]
        %v3748 = vld [vmem:[#allocation17 + $0x180] sm:$0xff]
        %v3749 = vld [vmem:[#allocation17 + $0x188] sm:$0xff]
        %v3750 = vld [vmem:[#allocation17 + $0x190] sm:$0xff]
        %v3751 = vld [vmem:[#allocation17 + $0x198] sm:$0xff]
        %v3752 = vld [vmem:[#allocation17 + $0x1a0] sm:$0xff]
        %v3753 = vld [vmem:[#allocation17 + $0x1a8] sm:$0xff]
        %v3754 = vld [vmem:[#allocation17 + $0x1b0] sm:$0xff]
        %v3755 = vld [vmem:[#allocation17 + $0x1b8] sm:$0xff]
        %v3756 = vld [vmem:[#allocation17 + $0x1c0] sm:$0xff]
        %v3757 = vld [vmem:[#allocation17 + $0x1c8] sm:$0xff]
        %v3758 = vld [vmem:[#allocation17 + $0x1d0] sm:$0xff]
        %v3759 = vld [vmem:[#allocation17 + $0x1d8] sm:$0xff]
        %v3760 = vld [vmem:[#allocation17 + $0x1e0] sm:$0xff]
        %v3761 = vld [vmem:[#allocation17 + $0x1e8] sm:$0xff]
        %v3762 = vld [vmem:[#allocation17 + $0x1f0] sm:$0xff]
        %v3763 = vld [vmem:[#allocation17 + $0x1f8] sm:$0xff]
        %v3764 = vld [vmem:[#allocation17 + $0x200] sm:$0xff]
        %v3765 = vld [vmem:[#allocation17 + $0x208] sm:$0xff]
        %v3766 = vld [vmem:[#allocation17 + $0x210] sm:$0xff]
        %v3767 = vld [vmem:[#allocation17 + $0x218] sm:$0xff]
        %v3768 = vld [vmem:[#allocation17 + $0x220] sm:$0xff]
        %v3769 = vld [vmem:[#allocation17 + $0x228] sm:$0xff]
        %v3770 = vld [vmem:[#allocation17 + $0x230] sm:$0xff]
        %v3771 = vld [vmem:[#allocation17 + $0x238] sm:$0xff]
        %v3772 = vld [vmem:[#allocation17 + $0x240] sm:$0xff]
        %v3773 = vld [vmem:[#allocation17 + $0x248] sm:$0xff]
        %v3774 = vld [vmem:[#allocation17 + $0x250] sm:$0xff]
        %v3775 = vld [vmem:[#allocation17 + $0x258] sm:$0xff]
        %v3776 = vld [vmem:[#allocation17 + $0x260] sm:$0xff]
        %v3777 = vld [vmem:[#allocation17 + $0x268] sm:$0xff]
        %v3778 = vld [vmem:[#allocation17 + $0x270] sm:$0xff]
        %v3779 = vld [vmem:[#allocation17 + $0x278] sm:$0xff]
        %v3780 = vld [vmem:[#allocation17 + $0x280] sm:$0xff]
        %v3781 = vld [vmem:[#allocation17 + $0x288] sm:$0xff]
        %v3782 = vld [vmem:[#allocation17 + $0x290] sm:$0xff]
        %v3783 = vld [vmem:[#allocation17 + $0x298] sm:$0xff]
        %v3784 = vld [vmem:[#allocation17 + $0x2a0] sm:$0xff]
        %v3785 = vld [vmem:[#allocation17 + $0x2a8] sm:$0xff]
        %v3786 = vld [vmem:[#allocation17 + $0x2b0] sm:$0xff]
        %v3787 = vld [vmem:[#allocation17 + $0x2b8] sm:$0xff]
        %v3788 = vld [vmem:[#allocation17 + $0x2c0] sm:$0xff]
        %v3789 = vld [vmem:[#allocation17 + $0x2c8] sm:$0xff]
        %v3790 = vld [vmem:[#allocation17 + $0x2d0] sm:$0xff]
        %v3791 = vld [vmem:[#allocation17 + $0x2d8] sm:$0xff]
        %v3792 = vld [vmem:[#allocation17 + $0x2e0] sm:$0xff]
        %v3793 = vld [vmem:[#allocation17 + $0x2e8] sm:$0xff]
        %v3794 = vld [vmem:[#allocation17 + $0x2f0] sm:$0xff]
        %v3795 = vld [vmem:[#allocation17 + $0x2f8] sm:$0xff]
        %v3796 = vld [vmem:[#allocation17 + $0x300] sm:$0xff]
        %v3797 = vld [vmem:[#allocation17 + $0x308] sm:$0xff]
        %v3798 = vld [vmem:[#allocation17 + $0x310] sm:$0xff]
        %v3799 = vld [vmem:[#allocation17 + $0x318] sm:$0xff]
        %v3800 = vld [vmem:[#allocation17 + $0x320] sm:$0xff]
        %v3801 = vld [vmem:[#allocation17 + $0x328] sm:$0xff]
        %v3802 = vld [vmem:[#allocation17 + $0x330] sm:$0xff]
        %v3803 = vld [vmem:[#allocation17 + $0x338] sm:$0xff]
        %v3804 = vld [vmem:[#allocation17 + $0x340] sm:$0xff]
        %v3805 = vld [vmem:[#allocation17 + $0x348] sm:$0xff]
        %v3806 = vld [vmem:[#allocation17 + $0x350] sm:$0xff]
        %v3807 = vld [vmem:[#allocation17 + $0x358] sm:$0xff]
        %v3808 = vld [vmem:[#allocation17 + $0x360] sm:$0xff]
        %v3809 = vld [vmem:[#allocation17 + $0x368] sm:$0xff]
        %v3810 = vld [vmem:[#allocation17 + $0x370] sm:$0xff]
        %v3811 = vld [vmem:[#allocation17 + $0x378] sm:$0xff]
        %v3812 = vld [vmem:[#allocation17 + $0x380] sm:$0xff]
        %v3813 = vld [vmem:[#allocation17 + $0x388] sm:$0xff]
        %v3814 = vld [vmem:[#allocation17 + $0x390] sm:$0xff]
        %v3815 = vld [vmem:[#allocation17 + $0x398] sm:$0xff]
        %v3816 = vld [vmem:[#allocation17 + $0x3a0] sm:$0xff]
        %v3817 = vld [vmem:[#allocation17 + $0x3a8] sm:$0xff]
        %v3818 = vld [vmem:[#allocation17 + $0x3b0] sm:$0xff]
        %v3819 = vld [vmem:[#allocation17 + $0x3b8] sm:$0xff]
        %v3820 = vld [vmem:[#allocation17 + $0x3c0] sm:$0xff]
        %v3821 = vld [vmem:[#allocation17 + $0x3c8] sm:$0xff]
        %v3822 = vld [vmem:[#allocation17 + $0x3d0] sm:$0xff]
        %v3823 = vld [vmem:[#allocation17 + $0x3d8] sm:$0xff]
        %v3824 = vld [vmem:[#allocation17 + $0x3e0] sm:$0xff]
        %v3825 = vld [vmem:[#allocation17 + $0x3e8] sm:$0xff]
        %v3826 = vld [vmem:[#allocation17 + $0x3f0] sm:$0xff]
        %v3827 = vld [vmem:[#allocation17 + $0x3f8] sm:$0xff]
        %v3828 = vld [vmem:[#allocation17 + $0x400] sm:$0xff]
        %v3829 = vld [vmem:[#allocation17 + $0x408] sm:$0xff]
        %v3830 = vld [vmem:[#allocation17 + $0x410] sm:$0xff]
        %v3831 = vld [vmem:[#allocation17 + $0x418] sm:$0xff]
        %v3832 = vld [vmem:[#allocation17 + $0x420] sm:$0xff]
        %v3833 = vld [vmem:[#allocation17 + $0x428] sm:$0xff]
        %v3834 = vld [vmem:[#allocation17 + $0x430] sm:$0xff]
        %v3835 = vld [vmem:[#allocation17 + $0x438] sm:$0xff]
        %v3836 = vld [vmem:[#allocation17 + $0x440] sm:$0xff]
        %v3837 = vld [vmem:[#allocation17 + $0x448] sm:$0xff]
        %v3838 = vld [vmem:[#allocation17 + $0x450] sm:$0xff]
        %v3839 = vld [vmem:[#allocation17 + $0x458] sm:$0xff]
        %v3840 = vld [vmem:[#allocation17 + $0x460] sm:$0xff]
        %v3841 = vld [vmem:[#allocation17 + $0x468] sm:$0xff]
        %v3842 = vld [vmem:[#allocation17 + $0x470] sm:$0xff]
        %v3843 = vld [vmem:[#allocation17 + $0x478] sm:$0xff]
        %v3844 = vld [vmem:[#allocation17 + $0x480] sm:$0xff]
        %v3845 = vld [vmem:[#allocation17 + $0x488] sm:$0xff]
        %v3846 = vld [vmem:[#allocation17 + $0x490] sm:$0xff]
        %v3847 = vld [vmem:[#allocation17 + $0x498] sm:$0xff]
        %v3848 = vld [vmem:[#allocation17 + $0x4a0] sm:$0xff]
        %v3849 = vld [vmem:[#allocation17 + $0x4a8] sm:$0xff]
        %v3850 = vld [vmem:[#allocation17 + $0x4b0] sm:$0xff]
        %v3851 = vld [vmem:[#allocation17 + $0x4b8] sm:$0xff]
        %v3852 = vld [vmem:[#allocation17 + $0x4c0] sm:$0xff]
        %v3853 = vld [vmem:[#allocation17 + $0x4c8] sm:$0xff]
        %v3854 = vld [vmem:[#allocation17 + $0x4d0] sm:$0xff]
        %v3855 = vld [vmem:[#allocation17 + $0x4d8] sm:$0xff]
        %v3856 = vld [vmem:[#allocation17 + $0x4e0] sm:$0xff]
        %v3857 = vld [vmem:[#allocation17 + $0x4e8] sm:$0xff]
        %v3858 = vld [vmem:[#allocation17 + $0x4f0] sm:$0xff]
        %v3859 = vld [vmem:[#allocation17 + $0x4f8] sm:$0xff]
        %v3860 = vld [vmem:[#allocation17 + $0x500] sm:$0xff]
        %v3861 = vld [vmem:[#allocation17 + $0x508] sm:$0xff]
        %v3862 = vld [vmem:[#allocation17 + $0x510] sm:$0xff]
        %v3863 = vld [vmem:[#allocation17 + $0x518] sm:$0xff]
        %v3864 = vld [vmem:[#allocation17 + $0x520] sm:$0xff]
        %v3865 = vld [vmem:[#allocation17 + $0x528] sm:$0xff]
        %v3866 = vld [vmem:[#allocation17 + $0x530] sm:$0xff]
        %v3867 = vld [vmem:[#allocation17 + $0x538] sm:$0xff]
        %v3868 = vld [vmem:[#allocation17 + $0x540] sm:$0xff]
        %v3869 = vld [vmem:[#allocation17 + $0x548] sm:$0xff]
        %v3870 = vld [vmem:[#allocation17 + $0x550] sm:$0xff]
        %v3871 = vld [vmem:[#allocation17 + $0x558] sm:$0xff]
        %v3872 = vld [vmem:[#allocation17 + $0x560] sm:$0xff]
        %v3873 = vld [vmem:[#allocation17 + $0x568] sm:$0xff]
        %v3874 = vld [vmem:[#allocation17 + $0x570] sm:$0xff]
        %v3875 = vld [vmem:[#allocation17 + $0x578] sm:$0xff]
        %v3876 = vld [vmem:[#allocation17 + $0x580] sm:$0xff]
        %v3877 = vld [vmem:[#allocation17 + $0x588] sm:$0xff]
        %v3878 = vld [vmem:[#allocation17 + $0x590] sm:$0xff]
        %v3879 = vld [vmem:[#allocation17 + $0x598] sm:$0xff]
        %v3880 = vld [vmem:[#allocation17 + $0x5a0] sm:$0xff]
        %v3881 = vld [vmem:[#allocation17 + $0x5a8] sm:$0xff]
        %v3882 = vld [vmem:[#allocation17 + $0x5b0] sm:$0xff]
        %v3883 = vld [vmem:[#allocation17 + $0x5b8] sm:$0xff]
        %v3884 = vld [vmem:[#allocation17 + $0x5c0] sm:$0xff]
        %v3885 = vld [vmem:[#allocation17 + $0x5c8] sm:$0xff]
        %v3886 = vld [vmem:[#allocation17 + $0x5d0] sm:$0xff]
        %v3887 = vld [vmem:[#allocation17 + $0x5d8] sm:$0xff]
        %v3888 = vld [vmem:[#allocation17 + $0x5e0] sm:$0xff]
        %v3889 = vld [vmem:[#allocation17 + $0x5e8] sm:$0xff]
        %v3890 = vld [vmem:[#allocation17 + $0x5f0] sm:$0xff]
        %v3891 = vld [vmem:[#allocation17 + $0x5f8] sm:$0xff]
        %v3892 = vld [vmem:[#allocation17 + $0x600] sm:$0xff]
        %v3893 = vld [vmem:[#allocation17 + $0x608] sm:$0xff]
        %v3894 = vld [vmem:[#allocation17 + $0x610] sm:$0xff]
        %v3895 = vld [vmem:[#allocation17 + $0x618] sm:$0xff]
        %v3896 = vld [vmem:[#allocation17 + $0x620] sm:$0xff]
        %v3897 = vld [vmem:[#allocation17 + $0x628] sm:$0xff]
        %v3898 = vld [vmem:[#allocation17 + $0x630] sm:$0xff]
        %v3899 = vld [vmem:[#allocation17 + $0x638] sm:$0xff]
        %v3900 = vld [vmem:[#allocation17 + $0x640] sm:$0xff]
        %v3901 = vld [vmem:[#allocation17 + $0x648] sm:$0xff]
        %v3902 = vld [vmem:[#allocation17 + $0x650] sm:$0xff]
        %v3903 = vld [vmem:[#allocation17 + $0x658] sm:$0xff]
        %v3904 = vld [vmem:[#allocation17 + $0x660] sm:$0xff]
        %v3905 = vld [vmem:[#allocation17 + $0x668] sm:$0xff]
        %v3906 = vld [vmem:[#allocation17 + $0x670] sm:$0xff]
        %v3907 = vld [vmem:[#allocation17 + $0x678] sm:$0xff]
        %v3908 = vld [vmem:[#allocation17 + $0x680] sm:$0xff]
        %v3909 = vld [vmem:[#allocation17 + $0x688] sm:$0xff]
        %v3910 = vld [vmem:[#allocation17 + $0x690] sm:$0xff]
        %v3911 = vld [vmem:[#allocation17 + $0x698] sm:$0xff]
        %v3912 = vld [vmem:[#allocation17 + $0x6a0] sm:$0xff]
        %v3913 = vld [vmem:[#allocation17 + $0x6a8] sm:$0xff]
        %v3914 = vld [vmem:[#allocation17 + $0x6b0] sm:$0xff]
        %v3915 = vld [vmem:[#allocation17 + $0x6b8] sm:$0xff]
        %v3916 = vld [vmem:[#allocation17 + $0x6c0] sm:$0xff]
        %v3917 = vld [vmem:[#allocation17 + $0x6c8] sm:$0xff]
        %v3918 = vld [vmem:[#allocation17 + $0x6d0] sm:$0xff]
        %v3919 = vld [vmem:[#allocation17 + $0x6d8] sm:$0xff]
        %v3920 = vld [vmem:[#allocation17 + $0x6e0] sm:$0xff]
        %v3921 = vld [vmem:[#allocation17 + $0x6e8] sm:$0xff]
        %v3922 = vld [vmem:[#allocation17 + $0x6f0] sm:$0xff]
        %v3923 = vld [vmem:[#allocation17 + $0x6f8] sm:$0xff]
        %v3924 = vld [vmem:[#allocation17 + $0x700] sm:$0xff]
        %v3925 = vld [vmem:[#allocation17 + $0x708] sm:$0xff]
        %v3926 = vld [vmem:[#allocation17 + $0x710] sm:$0xff]
        %v3927 = vld [vmem:[#allocation17 + $0x718] sm:$0xff]
        %v3928 = vld [vmem:[#allocation17 + $0x720] sm:$0xff]
        %v3929 = vld [vmem:[#allocation17 + $0x728] sm:$0xff]
        %v3930 = vld [vmem:[#allocation17 + $0x730] sm:$0xff]
        %v3931 = vld [vmem:[#allocation17 + $0x738] sm:$0xff]
        %v3932 = vld [vmem:[#allocation17 + $0x740] sm:$0xff]
        %v3933 = vld [vmem:[#allocation17 + $0x748] sm:$0xff]
        %v3934 = vld [vmem:[#allocation17 + $0x750] sm:$0xff]
        %v3935 = vld [vmem:[#allocation17 + $0x758] sm:$0xff]
        %v3936 = vld [vmem:[#allocation17 + $0x760] sm:$0xff]
        %v3937 = vld [vmem:[#allocation17 + $0x768] sm:$0xff]
        %v3938 = vld [vmem:[#allocation17 + $0x770] sm:$0xff]
        %v3939 = vld [vmem:[#allocation17 + $0x778] sm:$0xff]
        %v3940 = vld [vmem:[#allocation17 + $0x780] sm:$0xff]
        %v3941 = vld [vmem:[#allocation17 + $0x788] sm:$0xff]
        %v3942 = vld [vmem:[#allocation17 + $0x790] sm:$0xff]
        %v3943 = vld [vmem:[#allocation17 + $0x798] sm:$0xff]
        %v3944 = vld [vmem:[#allocation17 + $0x7a0] sm:$0xff]
        %v3945 = vld [vmem:[#allocation17 + $0x7a8] sm:$0xff]
        %v3946 = vld [vmem:[#allocation17 + $0x7b0] sm:$0xff]
        %v3947 = vld [vmem:[#allocation17 + $0x7b8] sm:$0xff]
        %v3948 = vld [vmem:[#allocation17 + $0x7c0] sm:$0xff]
        %v3949 = vld [vmem:[#allocation17 + $0x7c8] sm:$0xff]
        %v3950 = vld [vmem:[#allocation17 + $0x7d0] sm:$0xff]
        %v3951 = vld [vmem:[#allocation17 + $0x7d8] sm:$0xff]
        %v3952 = vld [vmem:[#allocation17 + $0x7e0] sm:$0xff]
        %v3953 = vld [vmem:[#allocation17 + $0x7e8] sm:$0xff]
        %v3954 = vld [vmem:[#allocation17 + $0x7f0] sm:$0xff]
        %v3955 = vld [vmem:[#allocation17 + $0x7f8] sm:$0xff]
        %v3956 = vld [vmem:[#allocation18] sm:$0xff]
        %v3957 = vld [vmem:[#allocation18 + $0x8] sm:$0xff]
        %v3958 = vld [vmem:[#allocation18 + $0x10] sm:$0xff]
        %v3959 = vld [vmem:[#allocation18 + $0x18] sm:$0xff]
        %v3960 = vld [vmem:[#allocation18 + $0x20] sm:$0xff]
        %v3961 = vld [vmem:[#allocation18 + $0x28] sm:$0xff]
        %v3962 = vld [vmem:[#allocation18 + $0x30] sm:$0xff]
        %v3963 = vld [vmem:[#allocation18 + $0x38] sm:$0xff]
        %v3964 = vld [vmem:[#allocation18 + $0x40] sm:$0xff]
        %v3965 = vld [vmem:[#allocation18 + $0x48] sm:$0xff]
        %v3966 = vld [vmem:[#allocation18 + $0x50] sm:$0xff]
        %v3967 = vld [vmem:[#allocation18 + $0x58] sm:$0xff]
        %v3968 = vld [vmem:[#allocation18 + $0x60] sm:$0xff]
        %v3969 = vld [vmem:[#allocation18 + $0x68] sm:$0xff]
        %v3970 = vld [vmem:[#allocation18 + $0x70] sm:$0xff]
        %v3971 = vld [vmem:[#allocation18 + $0x78] sm:$0xff]
        %v3972 = vld [vmem:[#allocation18 + $0x80] sm:$0xff]
        %v3973 = vld [vmem:[#allocation18 + $0x88] sm:$0xff]
        %v3974 = vld [vmem:[#allocation18 + $0x90] sm:$0xff]
        %v3975 = vld [vmem:[#allocation18 + $0x98] sm:$0xff]
        %v3976 = vld [vmem:[#allocation18 + $0xa0] sm:$0xff]
        %v3977 = vld [vmem:[#allocation18 + $0xa8] sm:$0xff]
        %v3978 = vld [vmem:[#allocation18 + $0xb0] sm:$0xff]
        %v3979 = vld [vmem:[#allocation18 + $0xb8] sm:$0xff]
        %v3980 = vld [vmem:[#allocation18 + $0xc0] sm:$0xff]
        %v3981 = vld [vmem:[#allocation18 + $0xc8] sm:$0xff]
        %v3982 = vld [vmem:[#allocation18 + $0xd0] sm:$0xff]
        %v3983 = vld [vmem:[#allocation18 + $0xd8] sm:$0xff]
        %v3984 = vld [vmem:[#allocation18 + $0xe0] sm:$0xff]
        %v3985 = vld [vmem:[#allocation18 + $0xe8] sm:$0xff]
        %v3986 = vld [vmem:[#allocation18 + $0xf0] sm:$0xff]
        %v3987 = vld [vmem:[#allocation18 + $0xf8] sm:$0xff]
        %v3988 = vld [vmem:[#allocation18 + $0x100] sm:$0xff]
        %v3989 = vld [vmem:[#allocation18 + $0x108] sm:$0xff]
        %v3990 = vld [vmem:[#allocation18 + $0x110] sm:$0xff]
        %v3991 = vld [vmem:[#allocation18 + $0x118] sm:$0xff]
        %v3992 = vld [vmem:[#allocation18 + $0x120] sm:$0xff]
        %v3993 = vld [vmem:[#allocation18 + $0x128] sm:$0xff]
        %v3994 = vld [vmem:[#allocation18 + $0x130] sm:$0xff]
        %v3995 = vld [vmem:[#allocation18 + $0x138] sm:$0xff]
        %v3996 = vld [vmem:[#allocation18 + $0x140] sm:$0xff]
        %v3997 = vld [vmem:[#allocation18 + $0x148] sm:$0xff]
        %v3998 = vld [vmem:[#allocation18 + $0x150] sm:$0xff]
        %v3999 = vld [vmem:[#allocation18 + $0x158] sm:$0xff]
        %v4000 = vld [vmem:[#allocation18 + $0x160] sm:$0xff]
        %v4001 = vld [vmem:[#allocation18 + $0x168] sm:$0xff]
        %v4002 = vld [vmem:[#allocation18 + $0x170] sm:$0xff]
        %v4003 = vld [vmem:[#allocation18 + $0x178] sm:$0xff]
        %v4004 = vld [vmem:[#allocation18 + $0x180] sm:$0xff]
        %v4005 = vld [vmem:[#allocation18 + $0x188] sm:$0xff]
        %v4006 = vld [vmem:[#allocation18 + $0x190] sm:$0xff]
        %v4007 = vld [vmem:[#allocation18 + $0x198] sm:$0xff]
        %v4008 = vld [vmem:[#allocation18 + $0x1a0] sm:$0xff]
        %v4009 = vld [vmem:[#allocation18 + $0x1a8] sm:$0xff]
        %v4010 = vld [vmem:[#allocation18 + $0x1b0] sm:$0xff]
        %v4011 = vld [vmem:[#allocation18 + $0x1b8] sm:$0xff]
        %v4012 = vld [vmem:[#allocation18 + $0x1c0] sm:$0xff]
        %v4013 = vld [vmem:[#allocation18 + $0x1c8] sm:$0xff]
        %v4014 = vld [vmem:[#allocation18 + $0x1d0] sm:$0xff]
        %v4015 = vld [vmem:[#allocation18 + $0x1d8] sm:$0xff]
        %v4016 = vld [vmem:[#allocation18 + $0x1e0] sm:$0xff]
        %v4017 = vld [vmem:[#allocation18 + $0x1e8] sm:$0xff]
        %v4018 = vld [vmem:[#allocation18 + $0x1f0] sm:$0xff]
        %v4019 = vld [vmem:[#allocation18 + $0x1f8] sm:$0xff]
        %v4020 = vld [vmem:[#allocation18 + $0x200] sm:$0xff]
        %v4021 = vld [vmem:[#allocation18 + $0x208] sm:$0xff]
        %v4022 = vld [vmem:[#allocation18 + $0x210] sm:$0xff]
        %v4023 = vld [vmem:[#allocation18 + $0x218] sm:$0xff]
        %v4024 = vld [vmem:[#allocation18 + $0x220] sm:$0xff]
        %v4025 = vld [vmem:[#allocation18 + $0x228] sm:$0xff]
        %v4026 = vld [vmem:[#allocation18 + $0x230] sm:$0xff]
        %v4027 = vld [vmem:[#allocation18 + $0x238] sm:$0xff]
        %v4028 = vld [vmem:[#allocation18 + $0x240] sm:$0xff]
        %v4029 = vld [vmem:[#allocation18 + $0x248] sm:$0xff]
        %v4030 = vld [vmem:[#allocation18 + $0x250] sm:$0xff]
        %v4031 = vld [vmem:[#allocation18 + $0x258] sm:$0xff]
        %v4032 = vld [vmem:[#allocation18 + $0x260] sm:$0xff]
        %v4033 = vld [vmem:[#allocation18 + $0x268] sm:$0xff]
        %v4034 = vld [vmem:[#allocation18 + $0x270] sm:$0xff]
        %v4035 = vld [vmem:[#allocation18 + $0x278] sm:$0xff]
        %v4036 = vld [vmem:[#allocation18 + $0x280] sm:$0xff]
        %v4037 = vld [vmem:[#allocation18 + $0x288] sm:$0xff]
        %v4038 = vld [vmem:[#allocation18 + $0x290] sm:$0xff]
        %v4039 = vld [vmem:[#allocation18 + $0x298] sm:$0xff]
        %v4040 = vld [vmem:[#allocation18 + $0x2a0] sm:$0xff]
        %v4041 = vld [vmem:[#allocation18 + $0x2a8] sm:$0xff]
        %v4042 = vld [vmem:[#allocation18 + $0x2b0] sm:$0xff]
        %v4043 = vld [vmem:[#allocation18 + $0x2b8] sm:$0xff]
        %v4044 = vld [vmem:[#allocation18 + $0x2c0] sm:$0xff]
        %v4045 = vld [vmem:[#allocation18 + $0x2c8] sm:$0xff]
        %v4046 = vld [vmem:[#allocation18 + $0x2d0] sm:$0xff]
        %v4047 = vld [vmem:[#allocation18 + $0x2d8] sm:$0xff]
        %v4048 = vld [vmem:[#allocation18 + $0x2e0] sm:$0xff]
        %v4049 = vld [vmem:[#allocation18 + $0x2e8] sm:$0xff]
        %v4050 = vld [vmem:[#allocation18 + $0x2f0] sm:$0xff]
        %v4051 = vld [vmem:[#allocation18 + $0x2f8] sm:$0xff]
        %v4052 = vld [vmem:[#allocation18 + $0x300] sm:$0xff]
        %v4053 = vld [vmem:[#allocation18 + $0x308] sm:$0xff]
        %v4054 = vld [vmem:[#allocation18 + $0x310] sm:$0xff]
        %v4055 = vld [vmem:[#allocation18 + $0x318] sm:$0xff]
        %v4056 = vld [vmem:[#allocation18 + $0x320] sm:$0xff]
        %v4057 = vld [vmem:[#allocation18 + $0x328] sm:$0xff]
        %v4058 = vld [vmem:[#allocation18 + $0x330] sm:$0xff]
        %v4059 = vld [vmem:[#allocation18 + $0x338] sm:$0xff]
        %v4060 = vld [vmem:[#allocation18 + $0x340] sm:$0xff]
        %v4061 = vld [vmem:[#allocation18 + $0x348] sm:$0xff]
        %v4062 = vld [vmem:[#allocation18 + $0x350] sm:$0xff]
        %v4063 = vld [vmem:[#allocation18 + $0x358] sm:$0xff]
        %v4064 = vld [vmem:[#allocation18 + $0x360] sm:$0xff]
        %v4065 = vld [vmem:[#allocation18 + $0x368] sm:$0xff]
        %v4066 = vld [vmem:[#allocation18 + $0x370] sm:$0xff]
        %v4067 = vld [vmem:[#allocation18 + $0x378] sm:$0xff]
        %v4068 = vld [vmem:[#allocation18 + $0x380] sm:$0xff]
        %v4069 = vld [vmem:[#allocation18 + $0x388] sm:$0xff]
        %v4070 = vld [vmem:[#allocation18 + $0x390] sm:$0xff]
        %v4071 = vld [vmem:[#allocation18 + $0x398] sm:$0xff]
        %v4072 = vld [vmem:[#allocation18 + $0x3a0] sm:$0xff]
        %v4073 = vld [vmem:[#allocation18 + $0x3a8] sm:$0xff]
        %v4074 = vld [vmem:[#allocation18 + $0x3b0] sm:$0xff]
        %v4075 = vld [vmem:[#allocation18 + $0x3b8] sm:$0xff]
        %v4076 = vld [vmem:[#allocation18 + $0x3c0] sm:$0xff]
        %v4077 = vld [vmem:[#allocation18 + $0x3c8] sm:$0xff]
        %v4078 = vld [vmem:[#allocation18 + $0x3d0] sm:$0xff]
        %v4079 = vld [vmem:[#allocation18 + $0x3d8] sm:$0xff]
        %v4080 = vld [vmem:[#allocation18 + $0x3e0] sm:$0xff]
        %v4081 = vld [vmem:[#allocation18 + $0x3e8] sm:$0xff]
        %v4082 = vld [vmem:[#allocation18 + $0x3f0] sm:$0xff]
        %v4083 = vld [vmem:[#allocation18 + $0x3f8] sm:$0xff]
        %v4084 = vld [vmem:[#allocation18 + $0x400] sm:$0xff]
        %v4085 = vld [vmem:[#allocation18 + $0x408] sm:$0xff]
        %v4086 = vld [vmem:[#allocation18 + $0x410] sm:$0xff]
        %v4087 = vld [vmem:[#allocation18 + $0x418] sm:$0xff]
        %v4088 = vld [vmem:[#allocation18 + $0x420] sm:$0xff]
        %v4089 = vld [vmem:[#allocation18 + $0x428] sm:$0xff]
        %v4090 = vld [vmem:[#allocation18 + $0x430] sm:$0xff]
        %v4091 = vld [vmem:[#allocation18 + $0x438] sm:$0xff]
        %v4092 = vld [vmem:[#allocation18 + $0x440] sm:$0xff]
        %v4093 = vld [vmem:[#allocation18 + $0x448] sm:$0xff]
        %v4094 = vld [vmem:[#allocation18 + $0x450] sm:$0xff]
        %v4095 = vld [vmem:[#allocation18 + $0x458] sm:$0xff]
        %v4096 = vld [vmem:[#allocation18 + $0x460] sm:$0xff]
        %v4097 = vld [vmem:[#allocation18 + $0x468] sm:$0xff]
        %v4098 = vld [vmem:[#allocation18 + $0x470] sm:$0xff]
        %v4099 = vld [vmem:[#allocation18 + $0x478] sm:$0xff]
        %v4100 = vld [vmem:[#allocation18 + $0x480] sm:$0xff]
        %v4101 = vld [vmem:[#allocation18 + $0x488] sm:$0xff]
        %v4102 = vld [vmem:[#allocation18 + $0x490] sm:$0xff]
        %v4103 = vld [vmem:[#allocation18 + $0x498] sm:$0xff]
        %v4104 = vld [vmem:[#allocation18 + $0x4a0] sm:$0xff]
        %v4105 = vld [vmem:[#allocation18 + $0x4a8] sm:$0xff]
        %v4106 = vld [vmem:[#allocation18 + $0x4b0] sm:$0xff]
        %v4107 = vld [vmem:[#allocation18 + $0x4b8] sm:$0xff]
        %v4108 = vld [vmem:[#allocation18 + $0x4c0] sm:$0xff]
        %v4109 = vld [vmem:[#allocation18 + $0x4c8] sm:$0xff]
        %v4110 = vld [vmem:[#allocation18 + $0x4d0] sm:$0xff]
        %v4111 = vld [vmem:[#allocation18 + $0x4d8] sm:$0xff]
        %v4112 = vld [vmem:[#allocation18 + $0x4e0] sm:$0xff]
        %v4113 = vld [vmem:[#allocation18 + $0x4e8] sm:$0xff]
        %v4114 = vld [vmem:[#allocation18 + $0x4f0] sm:$0xff]
        %v4115 = vld [vmem:[#allocation18 + $0x4f8] sm:$0xff]
        %v4116 = vld [vmem:[#allocation18 + $0x500] sm:$0xff]
        %v4117 = vld [vmem:[#allocation18 + $0x508] sm:$0xff]
        %v4118 = vld [vmem:[#allocation18 + $0x510] sm:$0xff]
        %v4119 = vld [vmem:[#allocation18 + $0x518] sm:$0xff]
        %v4120 = vld [vmem:[#allocation18 + $0x520] sm:$0xff]
        %v4121 = vld [vmem:[#allocation18 + $0x528] sm:$0xff]
        %v4122 = vld [vmem:[#allocation18 + $0x530] sm:$0xff]
        %v4123 = vld [vmem:[#allocation18 + $0x538] sm:$0xff]
        %v4124 = vld [vmem:[#allocation18 + $0x540] sm:$0xff]
        %v4125 = vld [vmem:[#allocation18 + $0x548] sm:$0xff]
        %v4126 = vld [vmem:[#allocation18 + $0x550] sm:$0xff]
        %v4127 = vld [vmem:[#allocation18 + $0x558] sm:$0xff]
        %v4128 = vld [vmem:[#allocation18 + $0x560] sm:$0xff]
        %v4129 = vld [vmem:[#allocation18 + $0x568] sm:$0xff]
        %v4130 = vld [vmem:[#allocation18 + $0x570] sm:$0xff]
        %v4131 = vld [vmem:[#allocation18 + $0x578] sm:$0xff]
        %v4132 = vld [vmem:[#allocation18 + $0x580] sm:$0xff]
        %v4133 = vld [vmem:[#allocation18 + $0x588] sm:$0xff]
        %v4134 = vld [vmem:[#allocation18 + $0x590] sm:$0xff]
        %v4135 = vld [vmem:[#allocation18 + $0x598] sm:$0xff]
        %v4136 = vld [vmem:[#allocation18 + $0x5a0] sm:$0xff]
        %v4137 = vld [vmem:[#allocation18 + $0x5a8] sm:$0xff]
        %v4138 = vld [vmem:[#allocation18 + $0x5b0] sm:$0xff]
        %v4139 = vld [vmem:[#allocation18 + $0x5b8] sm:$0xff]
        %v4140 = vld [vmem:[#allocation18 + $0x5c0] sm:$0xff]
        %v4141 = vld [vmem:[#allocation18 + $0x5c8] sm:$0xff]
        %v4142 = vld [vmem:[#allocation18 + $0x5d0] sm:$0xff]
        %v4143 = vld [vmem:[#allocation18 + $0x5d8] sm:$0xff]
        %v4144 = vld [vmem:[#allocation18 + $0x5e0] sm:$0xff]
        %v4145 = vld [vmem:[#allocation18 + $0x5e8] sm:$0xff]
        %v4146 = vld [vmem:[#allocation18 + $0x5f0] sm:$0xff]
        %v4147 = vld [vmem:[#allocation18 + $0x5f8] sm:$0xff]
        %v4148 = vld [vmem:[#allocation18 + $0x600] sm:$0xff]
        %v4149 = vld [vmem:[#allocation18 + $0x608] sm:$0xff]
        %v4150 = vld [vmem:[#allocation18 + $0x610] sm:$0xff]
        %v4151 = vld [vmem:[#allocation18 + $0x618] sm:$0xff]
        %v4152 = vld [vmem:[#allocation18 + $0x620] sm:$0xff]
        %v4153 = vld [vmem:[#allocation18 + $0x628] sm:$0xff]
        %v4154 = vld [vmem:[#allocation18 + $0x630] sm:$0xff]
        %v4155 = vld [vmem:[#allocation18 + $0x638] sm:$0xff]
        %v4156 = vld [vmem:[#allocation18 + $0x640] sm:$0xff]
        %v4157 = vld [vmem:[#allocation18 + $0x648] sm:$0xff]
        %v4158 = vld [vmem:[#allocation18 + $0x650] sm:$0xff]
        %v4159 = vld [vmem:[#allocation18 + $0x658] sm:$0xff]
        %v4160 = vld [vmem:[#allocation18 + $0x660] sm:$0xff]
        %v4161 = vld [vmem:[#allocation18 + $0x668] sm:$0xff]
        %v4162 = vld [vmem:[#allocation18 + $0x670] sm:$0xff]
        %v4163 = vld [vmem:[#allocation18 + $0x678] sm:$0xff]
        %v4164 = vld [vmem:[#allocation18 + $0x680] sm:$0xff]
        %v4165 = vld [vmem:[#allocation18 + $0x688] sm:$0xff]
        %v4166 = vld [vmem:[#allocation18 + $0x690] sm:$0xff]
        %v4167 = vld [vmem:[#allocation18 + $0x698] sm:$0xff]
        %v4168 = vld [vmem:[#allocation18 + $0x6a0] sm:$0xff]
        %v4169 = vld [vmem:[#allocation18 + $0x6a8] sm:$0xff]
        %v4170 = vld [vmem:[#allocation18 + $0x6b0] sm:$0xff]
        %v4171 = vld [vmem:[#allocation18 + $0x6b8] sm:$0xff]
        %v4172 = vld [vmem:[#allocation18 + $0x6c0] sm:$0xff]
        %v4173 = vld [vmem:[#allocation18 + $0x6c8] sm:$0xff]
        %v4174 = vld [vmem:[#allocation18 + $0x6d0] sm:$0xff]
        %v4175 = vld [vmem:[#allocation18 + $0x6d8] sm:$0xff]
        %v4176 = vld [vmem:[#allocation18 + $0x6e0] sm:$0xff]
        %v4177 = vld [vmem:[#allocation18 + $0x6e8] sm:$0xff]
        %v4178 = vld [vmem:[#allocation18 + $0x6f0] sm:$0xff]
        %v4179 = vld [vmem:[#allocation18 + $0x6f8] sm:$0xff]
        %v4180 = vld [vmem:[#allocation18 + $0x700] sm:$0xff]
        %v4181 = vld [vmem:[#allocation18 + $0x708] sm:$0xff]
        %v4182 = vld [vmem:[#allocation18 + $0x710] sm:$0xff]
        %v4183 = vld [vmem:[#allocation18 + $0x718] sm:$0xff]
        %v4184 = vld [vmem:[#allocation18 + $0x720] sm:$0xff]
        %v4185 = vld [vmem:[#allocation18 + $0x728] sm:$0xff]
        %v4186 = vld [vmem:[#allocation18 + $0x730] sm:$0xff]
        %v4187 = vld [vmem:[#allocation18 + $0x738] sm:$0xff]
        %v4188 = vld [vmem:[#allocation18 + $0x740] sm:$0xff]
        %v4189 = vld [vmem:[#allocation18 + $0x748] sm:$0xff]
        %v4190 = vld [vmem:[#allocation18 + $0x750] sm:$0xff]
        %v4191 = vld [vmem:[#allocation18 + $0x758] sm:$0xff]
        %v4192 = vld [vmem:[#allocation18 + $0x760] sm:$0xff]
        %v4193 = vld [vmem:[#allocation18 + $0x768] sm:$0xff]
        %v4194 = vld [vmem:[#allocation18 + $0x770] sm:$0xff]
        %v4195 = vld [vmem:[#allocation18 + $0x778] sm:$0xff]
        %v4196 = vld [vmem:[#allocation18 + $0x780] sm:$0xff]
        %v4197 = vld [vmem:[#allocation18 + $0x788] sm:$0xff]
        %v4198 = vld [vmem:[#allocation18 + $0x790] sm:$0xff]
        %v4199 = vld [vmem:[#allocation18 + $0x798] sm:$0xff]
        %v4200 = vld [vmem:[#allocation18 + $0x7a0] sm:$0xff]
        %v4201 = vld [vmem:[#allocation18 + $0x7a8] sm:$0xff]
        %v4202 = vld [vmem:[#allocation18 + $0x7b0] sm:$0xff]
        %v4203 = vld [vmem:[#allocation18 + $0x7b8] sm:$0xff]
        %v4204 = vld [vmem:[#allocation18 + $0x7c0] sm:$0xff]
        %v4205 = vld [vmem:[#allocation18 + $0x7c8] sm:$0xff]
        %v4206 = vld [vmem:[#allocation18 + $0x7d0] sm:$0xff]
        %v4207 = vld [vmem:[#allocation18 + $0x7d8] sm:$0xff]
        %v4208 = vld [vmem:[#allocation18 + $0x7e0] sm:$0xff]
        %v4209 = vld [vmem:[#allocation18 + $0x7e8] sm:$0xff]
        %v4210 = vld [vmem:[#allocation18 + $0x7f0] sm:$0xff]
        %v4211 = vld [vmem:[#allocation18 + $0x7f8] sm:$0xff]
        %4212 = vmatpush.msra.mxu0 %v4076
        %4213 = vmatpush.msra.mxu0 %v4068
        %4214 = vmatpush.msra.mxu0 %v4060
        %4215 = vmatpush.msra.mxu0 %v4052
        %4216 = vmatpush.msra.mxu0 %v4044
        %4217 = vmatpush.msra.mxu0 %v4036
        %4218 = vmatpush.msra.mxu0 %v4028
        %4219 = vmatpush.msra.mxu0 %v4020
        %4220 = vmatpush.msra.mxu0 %v4012
        %4221 = vmatpush.msra.mxu0 %v4004
        %4222 = vmatpush.msra.mxu0 %v3996
        %4223 = vmatpush.msra.mxu0 %v3988
        %4224 = vmatpush.msra.mxu0 %v3980
        %4225 = vmatpush.msra.mxu0 %v3972
        %4226 = vmatpush.msra.mxu0 %v3964
        %4227 = vmatpush.msra.mxu0 %v3956
        %4228 = vmatmul.f32.gmra.mxu0 %v1170
        %v4229 = vpop.f32.mrf.mxu0
        %v4230 = vadd.f32 0.0, %v4229
        %4231 = vdwg.mxu0
        %4232 = vmatpush.msra.mxu0 %v4204
        %4233 = vmatpush.msra.mxu0 %v4196
        %4234 = vmatpush.msra.mxu0 %v4188
        %4235 = vmatpush.msra.mxu0 %v4180
        %4236 = vmatpush.msra.mxu0 %v4172
        %4237 = vmatpush.msra.mxu0 %v4164
        %4238 = vmatpush.msra.mxu0 %v4156
        %4239 = vmatpush.msra.mxu0 %v4148
        %4240 = vmatpush.msra.mxu0 %v4140
        %4241 = vmatpush.msra.mxu0 %v4132
        %4242 = vmatpush.msra.mxu0 %v4124
        %4243 = vmatpush.msra.mxu0 %v4116
        %4244 = vmatpush.msra.mxu0 %v4108
        %4245 = vmatpush.msra.mxu0 %v4100
        %4246 = vmatpush.msra.mxu0 %v4092
        %4247 = vmatpush.msra.mxu0 %v4084
        %4248 = vmatmul.f32.gmra.mxu0 %v1185
        %v4249 = vpop.f32.mrf.mxu0
        %v4250 = vadd.f32 %v4230, %v4249
        %4251 = vdwg.mxu0
        %4252 = vmatpush.msra.mxu0 %v4077
        %4253 = vmatpush.msra.mxu0 %v4069
        %4254 = vmatpush.msra.mxu0 %v4061
        %4255 = vmatpush.msra.mxu0 %v4053
        %4256 = vmatpush.msra.mxu0 %v4045
        %4257 = vmatpush.msra.mxu0 %v4037
        %4258 = vmatpush.msra.mxu0 %v4029
        %4259 = vmatpush.msra.mxu0 %v4021
        %4260 = vmatpush.msra.mxu0 %v4013
        %4261 = vmatpush.msra.mxu0 %v4005
        %4262 = vmatpush.msra.mxu0 %v3997
        %4263 = vmatpush.msra.mxu0 %v3989
        %4264 = vmatpush.msra.mxu0 %v3981
        %4265 = vmatpush.msra.mxu0 %v3973
        %4266 = vmatpush.msra.mxu0 %v3965
        %4267 = vmatpush.msra.mxu0 %v3957
        %4268 = vmatmul.f32.gmra.mxu0 %v1170
        %v4269 = vpop.f32.mrf.mxu0
        %v4270 = vadd.f32 0.0, %v4269
        %4271 = vdwg.mxu0
        %4272 = vmatpush.msra.mxu0 %v4205
        %4273 = vmatpush.msra.mxu0 %v4197
        %4274 = vmatpush.msra.mxu0 %v4189
        %4275 = vmatpush.msra.mxu0 %v4181
        %4276 = vmatpush.msra.mxu0 %v4173
        %4277 = vmatpush.msra.mxu0 %v4165
        %4278 = vmatpush.msra.mxu0 %v4157
        %4279 = vmatpush.msra.mxu0 %v4149
        %4280 = vmatpush.msra.mxu0 %v4141
        %4281 = vmatpush.msra.mxu0 %v4133
        %4282 = vmatpush.msra.mxu0 %v4125
        %4283 = vmatpush.msra.mxu0 %v4117
        %4284 = vmatpush.msra.mxu0 %v4109
        %4285 = vmatpush.msra.mxu0 %v4101
        %4286 = vmatpush.msra.mxu0 %v4093
        %4287 = vmatpush.msra.mxu0 %v4085
        %4288 = vmatmul.f32.gmra.mxu0 %v1185
        %v4289 = vpop.f32.mrf.mxu0
        %v4290 = vadd.f32 %v4270, %v4289
        %4291 = vdwg.mxu0
        %4292 = vmatpush.msra.mxu0 %v4078
        %4293 = vmatpush.msra.mxu0 %v4070
        %4294 = vmatpush.msra.mxu0 %v4062
        %4295 = vmatpush.msra.mxu0 %v4054
        %4296 = vmatpush.msra.mxu0 %v4046
        %4297 = vmatpush.msra.mxu0 %v4038
        %4298 = vmatpush.msra.mxu0 %v4030
        %4299 = vmatpush.msra.mxu0 %v4022
        %4300 = vmatpush.msra.mxu0 %v4014
        %4301 = vmatpush.msra.mxu0 %v4006
        %4302 = vmatpush.msra.mxu0 %v3998
        %4303 = vmatpush.msra.mxu0 %v3990
        %4304 = vmatpush.msra.mxu0 %v3982
        %4305 = vmatpush.msra.mxu0 %v3974
        %4306 = vmatpush.msra.mxu0 %v3966
        %4307 = vmatpush.msra.mxu0 %v3958
        %4308 = vmatmul.f32.gmra.mxu0 %v1170
        %v4309 = vpop.f32.mrf.mxu0
        %v4310 = vadd.f32 0.0, %v4309
        %4311 = vdwg.mxu0
        %4312 = vmatpush.msra.mxu0 %v4206
        %4313 = vmatpush.msra.mxu0 %v4198
        %4314 = vmatpush.msra.mxu0 %v4190
        %4315 = vmatpush.msra.mxu0 %v4182
        %4316 = vmatpush.msra.mxu0 %v4174
        %4317 = vmatpush.msra.mxu0 %v4166
        %4318 = vmatpush.msra.mxu0 %v4158
        %4319 = vmatpush.msra.mxu0 %v4150
        %4320 = vmatpush.msra.mxu0 %v4142
        %4321 = vmatpush.msra.mxu0 %v4134
        %4322 = vmatpush.msra.mxu0 %v4126
        %4323 = vmatpush.msra.mxu0 %v4118
        %4324 = vmatpush.msra.mxu0 %v4110
        %4325 = vmatpush.msra.mxu0 %v4102
        %4326 = vmatpush.msra.mxu0 %v4094
        %4327 = vmatpush.msra.mxu0 %v4086
        %4328 = vmatmul.f32.gmra.mxu0 %v1185
        %v4329 = vpop.f32.mrf.mxu0
        %v4330 = vadd.f32 %v4310, %v4329
        %4331 = vdwg.mxu0
        %4332 = vmatpush.msra.mxu0 %v4079
        %4333 = vmatpush.msra.mxu0 %v4071
        %4334 = vmatpush.msra.mxu0 %v4063
        %4335 = vmatpush.msra.mxu0 %v4055
        %4336 = vmatpush.msra.mxu0 %v4047
        %4337 = vmatpush.msra.mxu0 %v4039
        %4338 = vmatpush.msra.mxu0 %v4031
        %4339 = vmatpush.msra.mxu0 %v4023
        %4340 = vmatpush.msra.mxu0 %v4015
        %4341 = vmatpush.msra.mxu0 %v4007
        %4342 = vmatpush.msra.mxu0 %v3999
        %4343 = vmatpush.msra.mxu0 %v3991
        %4344 = vmatpush.msra.mxu0 %v3983
        %4345 = vmatpush.msra.mxu0 %v3975
        %4346 = vmatpush.msra.mxu0 %v3967
        %4347 = vmatpush.msra.mxu0 %v3959
        %4348 = vmatmul.f32.gmra.mxu0 %v1170
        %v4349 = vpop.f32.mrf.mxu0
        %v4350 = vadd.f32 0.0, %v4349
        %4351 = vdwg.mxu0
        %4352 = vmatpush.msra.mxu0 %v4207
        %4353 = vmatpush.msra.mxu0 %v4199
        %4354 = vmatpush.msra.mxu0 %v4191
        %4355 = vmatpush.msra.mxu0 %v4183
        %4356 = vmatpush.msra.mxu0 %v4175
        %4357 = vmatpush.msra.mxu0 %v4167
        %4358 = vmatpush.msra.mxu0 %v4159
        %4359 = vmatpush.msra.mxu0 %v4151
        %4360 = vmatpush.msra.mxu0 %v4143
        %4361 = vmatpush.msra.mxu0 %v4135
        %4362 = vmatpush.msra.mxu0 %v4127
        %4363 = vmatpush.msra.mxu0 %v4119
        %4364 = vmatpush.msra.mxu0 %v4111
        %4365 = vmatpush.msra.mxu0 %v4103
        %4366 = vmatpush.msra.mxu0 %v4095
        %4367 = vmatpush.msra.mxu0 %v4087
        %4368 = vmatmul.f32.gmra.mxu0 %v1185
        %v4369 = vpop.f32.mrf.mxu0
        %v4370 = vadd.f32 %v4350, %v4369
        %4371 = vdwg.mxu0
        %4372 = vmatpush.msra.mxu0 %v4080
        %4373 = vmatpush.msra.mxu0 %v4072
        %4374 = vmatpush.msra.mxu0 %v4064
        %4375 = vmatpush.msra.mxu0 %v4056
        %4376 = vmatpush.msra.mxu0 %v4048
        %4377 = vmatpush.msra.mxu0 %v4040
        %4378 = vmatpush.msra.mxu0 %v4032
        %4379 = vmatpush.msra.mxu0 %v4024
        %4380 = vmatpush.msra.mxu0 %v4016
        %4381 = vmatpush.msra.mxu0 %v4008
        %4382 = vmatpush.msra.mxu0 %v4000
        %4383 = vmatpush.msra.mxu0 %v3992
        %4384 = vmatpush.msra.mxu0 %v3984
        %4385 = vmatpush.msra.mxu0 %v3976
        %4386 = vmatpush.msra.mxu0 %v3968
        %4387 = vmatpush.msra.mxu0 %v3960
        %4388 = vmatmul.f32.gmra.mxu0 %v1170
        %v4389 = vpop.f32.mrf.mxu0
        %v4390 = vadd.f32 0.0, %v4389
        %4391 = vdwg.mxu0
        %4392 = vmatpush.msra.mxu0 %v4208
        %4393 = vmatpush.msra.mxu0 %v4200
        %4394 = vmatpush.msra.mxu0 %v4192
        %4395 = vmatpush.msra.mxu0 %v4184
        %4396 = vmatpush.msra.mxu0 %v4176
        %4397 = vmatpush.msra.mxu0 %v4168
        %4398 = vmatpush.msra.mxu0 %v4160
        %4399 = vmatpush.msra.mxu0 %v4152
        %4400 = vmatpush.msra.mxu0 %v4144
        %4401 = vmatpush.msra.mxu0 %v4136
        %4402 = vmatpush.msra.mxu0 %v4128
        %4403 = vmatpush.msra.mxu0 %v4120
        %4404 = vmatpush.msra.mxu0 %v4112
        %4405 = vmatpush.msra.mxu0 %v4104
        %4406 = vmatpush.msra.mxu0 %v4096
        %4407 = vmatpush.msra.mxu0 %v4088
        %4408 = vmatmul.f32.gmra.mxu0 %v1185
        %v4409 = vpop.f32.mrf.mxu0
        %v4410 = vadd.f32 %v4390, %v4409
        %4411 = vdwg.mxu0
        %4412 = vmatpush.msra.mxu0 %v4081
        %4413 = vmatpush.msra.mxu0 %v4073
        %4414 = vmatpush.msra.mxu0 %v4065
        %4415 = vmatpush.msra.mxu0 %v4057
        %4416 = vmatpush.msra.mxu0 %v4049
        %4417 = vmatpush.msra.mxu0 %v4041
        %4418 = vmatpush.msra.mxu0 %v4033
        %4419 = vmatpush.msra.mxu0 %v4025
        %4420 = vmatpush.msra.mxu0 %v4017
        %4421 = vmatpush.msra.mxu0 %v4009
        %4422 = vmatpush.msra.mxu0 %v4001
        %4423 = vmatpush.msra.mxu0 %v3993
        %4424 = vmatpush.msra.mxu0 %v3985
        %4425 = vmatpush.msra.mxu0 %v3977
        %4426 = vmatpush.msra.mxu0 %v3969
        %4427 = vmatpush.msra.mxu0 %v3961
        %4428 = vmatmul.f32.gmra.mxu0 %v1170
        %v4429 = vpop.f32.mrf.mxu0
        %v4430 = vadd.f32 0.0, %v4429
        %4431 = vdwg.mxu0
        %4432 = vmatpush.msra.mxu0 %v4209
        %4433 = vmatpush.msra.mxu0 %v4201
        %4434 = vmatpush.msra.mxu0 %v4193
        %4435 = vmatpush.msra.mxu0 %v4185
        %4436 = vmatpush.msra.mxu0 %v4177
        %4437 = vmatpush.msra.mxu0 %v4169
        %4438 = vmatpush.msra.mxu0 %v4161
        %4439 = vmatpush.msra.mxu0 %v4153
        %4440 = vmatpush.msra.mxu0 %v4145
        %4441 = vmatpush.msra.mxu0 %v4137
        %4442 = vmatpush.msra.mxu0 %v4129
        %4443 = vmatpush.msra.mxu0 %v4121
        %4444 = vmatpush.msra.mxu0 %v4113
        %4445 = vmatpush.msra.mxu0 %v4105
        %4446 = vmatpush.msra.mxu0 %v4097
        %4447 = vmatpush.msra.mxu0 %v4089
        %4448 = vmatmul.f32.gmra.mxu0 %v1185
        %v4449 = vpop.f32.mrf.mxu0
        %v4450 = vadd.f32 %v4430, %v4449
        %4451 = vdwg.mxu0
        %4452 = vmatpush.msra.mxu0 %v4082
        %4453 = vmatpush.msra.mxu0 %v4074
        %4454 = vmatpush.msra.mxu0 %v4066
        %4455 = vmatpush.msra.mxu0 %v4058
        %4456 = vmatpush.msra.mxu0 %v4050
        %4457 = vmatpush.msra.mxu0 %v4042
        %4458 = vmatpush.msra.mxu0 %v4034
        %4459 = vmatpush.msra.mxu0 %v4026
        %4460 = vmatpush.msra.mxu0 %v4018
        %4461 = vmatpush.msra.mxu0 %v4010
        %4462 = vmatpush.msra.mxu0 %v4002
        %4463 = vmatpush.msra.mxu0 %v3994
        %4464 = vmatpush.msra.mxu0 %v3986
        %4465 = vmatpush.msra.mxu0 %v3978
        %4466 = vmatpush.msra.mxu0 %v3970
        %4467 = vmatpush.msra.mxu0 %v3962
        %4468 = vmatmul.f32.gmra.mxu0 %v1170
        %v4469 = vpop.f32.mrf.mxu0
        %v4470 = vadd.f32 0.0, %v4469
        %4471 = vdwg.mxu0
        %4472 = vmatpush.msra.mxu0 %v4210
        %4473 = vmatpush.msra.mxu0 %v4202
        %4474 = vmatpush.msra.mxu0 %v4194
        %4475 = vmatpush.msra.mxu0 %v4186
        %4476 = vmatpush.msra.mxu0 %v4178
        %4477 = vmatpush.msra.mxu0 %v4170
        %4478 = vmatpush.msra.mxu0 %v4162
        %4479 = vmatpush.msra.mxu0 %v4154
        %4480 = vmatpush.msra.mxu0 %v4146
        %4481 = vmatpush.msra.mxu0 %v4138
        %4482 = vmatpush.msra.mxu0 %v4130
        %4483 = vmatpush.msra.mxu0 %v4122
        %4484 = vmatpush.msra.mxu0 %v4114
        %4485 = vmatpush.msra.mxu0 %v4106
        %4486 = vmatpush.msra.mxu0 %v4098
        %4487 = vmatpush.msra.mxu0 %v4090
        %4488 = vmatmul.f32.gmra.mxu0 %v1185
        %v4489 = vpop.f32.mrf.mxu0
        %v4490 = vadd.f32 %v4470, %v4489
        %4491 = vdwg.mxu0
        %4492 = vmatpush.msra.mxu0 %v4083
        %4493 = vmatpush.msra.mxu0 %v4075
        %4494 = vmatpush.msra.mxu0 %v4067
        %4495 = vmatpush.msra.mxu0 %v4059
        %4496 = vmatpush.msra.mxu0 %v4051
        %4497 = vmatpush.msra.mxu0 %v4043
        %4498 = vmatpush.msra.mxu0 %v4035
        %4499 = vmatpush.msra.mxu0 %v4027
        %4500 = vmatpush.msra.mxu0 %v4019
        %4501 = vmatpush.msra.mxu0 %v4011
        %4502 = vmatpush.msra.mxu0 %v4003
        %4503 = vmatpush.msra.mxu0 %v3995
        %4504 = vmatpush.msra.mxu0 %v3987
        %4505 = vmatpush.msra.mxu0 %v3979
        %4506 = vmatpush.msra.mxu0 %v3971
        %4507 = vmatpush.msra.mxu0 %v3963
        %4508 = vmatmul.f32.gmra.mxu0 %v1170
        %v4509 = vpop.f32.mrf.mxu0
        %v4510 = vadd.f32 0.0, %v4509
        %4511 = vdwg.mxu0
        %4512 = vmatpush.msra.mxu0 %v4211
        %4513 = vmatpush.msra.mxu0 %v4203
        %4514 = vmatpush.msra.mxu0 %v4195
        %4515 = vmatpush.msra.mxu0 %v4187
        %4516 = vmatpush.msra.mxu0 %v4179
        %4517 = vmatpush.msra.mxu0 %v4171
        %4518 = vmatpush.msra.mxu0 %v4163
        %4519 = vmatpush.msra.mxu0 %v4155
        %4520 = vmatpush.msra.mxu0 %v4147
        %4521 = vmatpush.msra.mxu0 %v4139
        %4522 = vmatpush.msra.mxu0 %v4131
        %4523 = vmatpush.msra.mxu0 %v4123
        %4524 = vmatpush.msra.mxu0 %v4115
        %4525 = vmatpush.msra.mxu0 %v4107
        %4526 = vmatpush.msra.mxu0 %v4099
        %4527 = vmatpush.msra.mxu0 %v4091
        %4528 = vmatmul.f32.gmra.mxu0 %v1185
        %v4529 = vpop.f32.mrf.mxu0
        %v4530 = vadd.f32 %v4510, %v4529
        %4531 = vdwg.mxu0
        %4532 = vmatpush.msra.mxu0 %v3820
        %4533 = vmatpush.msra.mxu0 %v3812
        %4534 = vmatpush.msra.mxu0 %v3804
        %4535 = vmatpush.msra.mxu0 %v3796
        %4536 = vmatpush.msra.mxu0 %v3788
        %4537 = vmatpush.msra.mxu0 %v3780
        %4538 = vmatpush.msra.mxu0 %v3772
        %4539 = vmatpush.msra.mxu0 %v3764
        %4540 = vmatpush.msra.mxu0 %v3756
        %4541 = vmatpush.msra.mxu0 %v3748
        %4542 = vmatpush.msra.mxu0 %v3740
        %4543 = vmatpush.msra.mxu0 %v3732
        %4544 = vmatpush.msra.mxu0 %v3724
        %4545 = vmatpush.msra.mxu0 %v3716
        %4546 = vmatpush.msra.mxu0 %v3708
        %4547 = vmatpush.msra.mxu0 %v3700
        %4548 = vmatmul.f32.gmra.mxu0 %v3696
        %v4549 = vpop.f32.mrf.mxu0
        %v4550 = vadd.f32 %v4250, %v4549
        %4551 = vdwg.mxu0
        %4552 = vmatpush.msra.mxu0 %v3948
        %4553 = vmatpush.msra.mxu0 %v3940
        %4554 = vmatpush.msra.mxu0 %v3932
        %4555 = vmatpush.msra.mxu0 %v3924
        %4556 = vmatpush.msra.mxu0 %v3916
        %4557 = vmatpush.msra.mxu0 %v3908
        %4558 = vmatpush.msra.mxu0 %v3900
        %4559 = vmatpush.msra.mxu0 %v3892
        %4560 = vmatpush.msra.mxu0 %v3884
        %4561 = vmatpush.msra.mxu0 %v3876
        %4562 = vmatpush.msra.mxu0 %v3868
        %4563 = vmatpush.msra.mxu0 %v3860
        %4564 = vmatpush.msra.mxu0 %v3852
        %4565 = vmatpush.msra.mxu0 %v3844
        %4566 = vmatpush.msra.mxu0 %v3836
        %4567 = vmatpush.msra.mxu0 %v3828
        %4568 = vmatmul.f32.gmra.mxu0 %v3697
        %v4569 = vpop.f32.mrf.mxu0
        %v4570 = vadd.f32 %v4550, %v4569
        %4571 = vdwg.mxu0
        %4572 = vmatpush.msra.mxu0 %v3821
        %4573 = vmatpush.msra.mxu0 %v3813
        %4574 = vmatpush.msra.mxu0 %v3805
        %4575 = vmatpush.msra.mxu0 %v3797
        %4576 = vmatpush.msra.mxu0 %v3789
        %4577 = vmatpush.msra.mxu0 %v3781
        %4578 = vmatpush.msra.mxu0 %v3773
        %4579 = vmatpush.msra.mxu0 %v3765
        %4580 = vmatpush.msra.mxu0 %v3757
        %4581 = vmatpush.msra.mxu0 %v3749
        %4582 = vmatpush.msra.mxu0 %v3741
        %4583 = vmatpush.msra.mxu0 %v3733
        %4584 = vmatpush.msra.mxu0 %v3725
        %4585 = vmatpush.msra.mxu0 %v3717
        %4586 = vmatpush.msra.mxu0 %v3709
        %4587 = vmatpush.msra.mxu0 %v3701
        %4588 = vmatmul.f32.gmra.mxu0 %v3696
        %v4589 = vpop.f32.mrf.mxu0
        %v4590 = vadd.f32 %v4290, %v4589
        %4591 = vdwg.mxu0
        %4592 = vmatpush.msra.mxu0 %v3949
        %4593 = vmatpush.msra.mxu0 %v3941
        %4594 = vmatpush.msra.mxu0 %v3933
        %4595 = vmatpush.msra.mxu0 %v3925
        %4596 = vmatpush.msra.mxu0 %v3917
        %4597 = vmatpush.msra.mxu0 %v3909
        %4598 = vmatpush.msra.mxu0 %v3901
        %4599 = vmatpush.msra.mxu0 %v3893
        %4600 = vmatpush.msra.mxu0 %v3885
        %4601 = vmatpush.msra.mxu0 %v3877
        %4602 = vmatpush.msra.mxu0 %v3869
        %4603 = vmatpush.msra.mxu0 %v3861
        %4604 = vmatpush.msra.mxu0 %v3853
        %4605 = vmatpush.msra.mxu0 %v3845
        %4606 = vmatpush.msra.mxu0 %v3837
        %4607 = vmatpush.msra.mxu0 %v3829
        %4608 = vmatmul.f32.gmra.mxu0 %v3697
        %v4609 = vpop.f32.mrf.mxu0
        %v4610 = vadd.f32 %v4590, %v4609
        %4611 = vdwg.mxu0
        %4612 = vmatpush.msra.mxu0 %v3822
        %4613 = vmatpush.msra.mxu0 %v3814
        %4614 = vmatpush.msra.mxu0 %v3806
        %4615 = vmatpush.msra.mxu0 %v3798
        %4616 = vmatpush.msra.mxu0 %v3790
        %4617 = vmatpush.msra.mxu0 %v3782
        %4618 = vmatpush.msra.mxu0 %v3774
        %4619 = vmatpush.msra.mxu0 %v3766
        %4620 = vmatpush.msra.mxu0 %v3758
        %4621 = vmatpush.msra.mxu0 %v3750
        %4622 = vmatpush.msra.mxu0 %v3742
        %4623 = vmatpush.msra.mxu0 %v3734
        %4624 = vmatpush.msra.mxu0 %v3726
        %4625 = vmatpush.msra.mxu0 %v3718
        %4626 = vmatpush.msra.mxu0 %v3710
        %4627 = vmatpush.msra.mxu0 %v3702
        %4628 = vmatmul.f32.gmra.mxu0 %v3696
        %v4629 = vpop.f32.mrf.mxu0
        %v4630 = vadd.f32 %v4330, %v4629
        %4631 = vdwg.mxu0
        %4632 = vmatpush.msra.mxu0 %v3950
        %4633 = vmatpush.msra.mxu0 %v3942
        %4634 = vmatpush.msra.mxu0 %v3934
        %4635 = vmatpush.msra.mxu0 %v3926
        %4636 = vmatpush.msra.mxu0 %v3918
        %4637 = vmatpush.msra.mxu0 %v3910
        %4638 = vmatpush.msra.mxu0 %v3902
        %4639 = vmatpush.msra.mxu0 %v3894
        %4640 = vmatpush.msra.mxu0 %v3886
        %4641 = vmatpush.msra.mxu0 %v3878
        %4642 = vmatpush.msra.mxu0 %v3870
        %4643 = vmatpush.msra.mxu0 %v3862
        %4644 = vmatpush.msra.mxu0 %v3854
        %4645 = vmatpush.msra.mxu0 %v3846
        %4646 = vmatpush.msra.mxu0 %v3838
        %4647 = vmatpush.msra.mxu0 %v3830
        %4648 = vmatmul.f32.gmra.mxu0 %v3697
        %v4649 = vpop.f32.mrf.mxu0
        %v4650 = vadd.f32 %v4630, %v4649
        %4651 = vdwg.mxu0
        %4652 = vmatpush.msra.mxu0 %v3823
        %4653 = vmatpush.msra.mxu0 %v3815
        %4654 = vmatpush.msra.mxu0 %v3807
        %4655 = vmatpush.msra.mxu0 %v3799
        %4656 = vmatpush.msra.mxu0 %v3791
        %4657 = vmatpush.msra.mxu0 %v3783
        %4658 = vmatpush.msra.mxu0 %v3775
        %4659 = vmatpush.msra.mxu0 %v3767
        %4660 = vmatpush.msra.mxu0 %v3759
        %4661 = vmatpush.msra.mxu0 %v3751
        %4662 = vmatpush.msra.mxu0 %v3743
        %4663 = vmatpush.msra.mxu0 %v3735
        %4664 = vmatpush.msra.mxu0 %v3727
        %4665 = vmatpush.msra.mxu0 %v3719
        %4666 = vmatpush.msra.mxu0 %v3711
        %4667 = vmatpush.msra.mxu0 %v3703
        %4668 = vmatmul.f32.gmra.mxu0 %v3696
        %v4669 = vpop.f32.mrf.mxu0
        %v4670 = vadd.f32 %v4370, %v4669
        %4671 = vdwg.mxu0
        %4672 = vmatpush.msra.mxu0 %v3951
        %4673 = vmatpush.msra.mxu0 %v3943
        %4674 = vmatpush.msra.mxu0 %v3935
        %4675 = vmatpush.msra.mxu0 %v3927
        %4676 = vmatpush.msra.mxu0 %v3919
        %4677 = vmatpush.msra.mxu0 %v3911
        %4678 = vmatpush.msra.mxu0 %v3903
        %4679 = vmatpush.msra.mxu0 %v3895
        %4680 = vmatpush.msra.mxu0 %v3887
        %4681 = vmatpush.msra.mxu0 %v3879
        %4682 = vmatpush.msra.mxu0 %v3871
        %4683 = vmatpush.msra.mxu0 %v3863
        %4684 = vmatpush.msra.mxu0 %v3855
        %4685 = vmatpush.msra.mxu0 %v3847
        %4686 = vmatpush.msra.mxu0 %v3839
        %4687 = vmatpush.msra.mxu0 %v3831
        %4688 = vmatmul.f32.gmra.mxu0 %v3697
        %v4689 = vpop.f32.mrf.mxu0
        %v4690 = vadd.f32 %v4670, %v4689
        %4691 = vdwg.mxu0
        %4692 = vmatpush.msra.mxu0 %v3824
        %4693 = vmatpush.msra.mxu0 %v3816
        %4694 = vmatpush.msra.mxu0 %v3808
        %4695 = vmatpush.msra.mxu0 %v3800
        %4696 = vmatpush.msra.mxu0 %v3792
        %4697 = vmatpush.msra.mxu0 %v3784
        %4698 = vmatpush.msra.mxu0 %v3776
        %4699 = vmatpush.msra.mxu0 %v3768
        %4700 = vmatpush.msra.mxu0 %v3760
        %4701 = vmatpush.msra.mxu0 %v3752
        %4702 = vmatpush.msra.mxu0 %v3744
        %4703 = vmatpush.msra.mxu0 %v3736
        %4704 = vmatpush.msra.mxu0 %v3728
        %4705 = vmatpush.msra.mxu0 %v3720
        %4706 = vmatpush.msra.mxu0 %v3712
        %4707 = vmatpush.msra.mxu0 %v3704
        %4708 = vmatmul.f32.gmra.mxu0 %v3696
        %v4709 = vpop.f32.mrf.mxu0
        %v4710 = vadd.f32 %v4410, %v4709
        %4711 = vdwg.mxu0
        %4712 = vmatpush.msra.mxu0 %v3952
        %4713 = vmatpush.msra.mxu0 %v3944
        %4714 = vmatpush.msra.mxu0 %v3936
        %4715 = vmatpush.msra.mxu0 %v3928
        %4716 = vmatpush.msra.mxu0 %v3920
        %4717 = vmatpush.msra.mxu0 %v3912
        %4718 = vmatpush.msra.mxu0 %v3904
        %4719 = vmatpush.msra.mxu0 %v3896
        %4720 = vmatpush.msra.mxu0 %v3888
        %4721 = vmatpush.msra.mxu0 %v3880
        %4722 = vmatpush.msra.mxu0 %v3872
        %4723 = vmatpush.msra.mxu0 %v3864
        %4724 = vmatpush.msra.mxu0 %v3856
        %4725 = vmatpush.msra.mxu0 %v3848
        %4726 = vmatpush.msra.mxu0 %v3840
        %4727 = vmatpush.msra.mxu0 %v3832
        %4728 = vmatmul.f32.gmra.mxu0 %v3697
        %v4729 = vpop.f32.mrf.mxu0
        %v4730 = vadd.f32 %v4710, %v4729
        %4731 = vdwg.mxu0
        %4732 = vmatpush.msra.mxu0 %v3825
        %4733 = vmatpush.msra.mxu0 %v3817
        %4734 = vmatpush.msra.mxu0 %v3809
        %4735 = vmatpush.msra.mxu0 %v3801
        %4736 = vmatpush.msra.mxu0 %v3793
        %4737 = vmatpush.msra.mxu0 %v3785
        %4738 = vmatpush.msra.mxu0 %v3777
        %4739 = vmatpush.msra.mxu0 %v3769
        %4740 = vmatpush.msra.mxu0 %v3761
        %4741 = vmatpush.msra.mxu0 %v3753
        %4742 = vmatpush.msra.mxu0 %v3745
        %4743 = vmatpush.msra.mxu0 %v3737
        %4744 = vmatpush.msra.mxu0 %v3729
        %4745 = vmatpush.msra.mxu0 %v3721
        %4746 = vmatpush.msra.mxu0 %v3713
        %4747 = vmatpush.msra.mxu0 %v3705
        %4748 = vmatmul.f32.gmra.mxu0 %v3696
        %v4749 = vpop.f32.mrf.mxu0
        %v4750 = vadd.f32 %v4450, %v4749
        %4751 = vdwg.mxu0
        %4752 = vmatpush.msra.mxu0 %v3953
        %4753 = vmatpush.msra.mxu0 %v3945
        %4754 = vmatpush.msra.mxu0 %v3937
        %4755 = vmatpush.msra.mxu0 %v3929
        %4756 = vmatpush.msra.mxu0 %v3921
        %4757 = vmatpush.msra.mxu0 %v3913
        %4758 = vmatpush.msra.mxu0 %v3905
        %4759 = vmatpush.msra.mxu0 %v3897
        %4760 = vmatpush.msra.mxu0 %v3889
        %4761 = vmatpush.msra.mxu0 %v3881
        %4762 = vmatpush.msra.mxu0 %v3873
        %4763 = vmatpush.msra.mxu0 %v3865
        %4764 = vmatpush.msra.mxu0 %v3857
        %4765 = vmatpush.msra.mxu0 %v3849
        %4766 = vmatpush.msra.mxu0 %v3841
        %4767 = vmatpush.msra.mxu0 %v3833
        %4768 = vmatmul.f32.gmra.mxu0 %v3697
        %v4769 = vpop.f32.mrf.mxu0
        %v4770 = vadd.f32 %v4750, %v4769
        %4771 = vdwg.mxu0
        %4772 = vmatpush.msra.mxu0 %v3826
        %4773 = vmatpush.msra.mxu0 %v3818
        %4774 = vmatpush.msra.mxu0 %v3810
        %4775 = vmatpush.msra.mxu0 %v3802
        %4776 = vmatpush.msra.mxu0 %v3794
        %4777 = vmatpush.msra.mxu0 %v3786
        %4778 = vmatpush.msra.mxu0 %v3778
        %4779 = vmatpush.msra.mxu0 %v3770
        %4780 = vmatpush.msra.mxu0 %v3762
        %4781 = vmatpush.msra.mxu0 %v3754
        %4782 = vmatpush.msra.mxu0 %v3746
        %4783 = vmatpush.msra.mxu0 %v3738
        %4784 = vmatpush.msra.mxu0 %v3730
        %4785 = vmatpush.msra.mxu0 %v3722
        %4786 = vmatpush.msra.mxu0 %v3714
        %4787 = vmatpush.msra.mxu0 %v3706
        %4788 = vmatmul.f32.gmra.mxu0 %v3696
        %v4789 = vpop.f32.mrf.mxu0
        %v4790 = vadd.f32 %v4490, %v4789
        %4791 = vdwg.mxu0
        %4792 = vmatpush.msra.mxu0 %v3954
        %4793 = vmatpush.msra.mxu0 %v3946
        %4794 = vmatpush.msra.mxu0 %v3938
        %4795 = vmatpush.msra.mxu0 %v3930
        %4796 = vmatpush.msra.mxu0 %v3922
        %4797 = vmatpush.msra.mxu0 %v3914
        %4798 = vmatpush.msra.mxu0 %v3906
        %4799 = vmatpush.msra.mxu0 %v3898
        %4800 = vmatpush.msra.mxu0 %v3890
        %4801 = vmatpush.msra.mxu0 %v3882
        %4802 = vmatpush.msra.mxu0 %v3874
        %4803 = vmatpush.msra.mxu0 %v3866
        %4804 = vmatpush.msra.mxu0 %v3858
        %4805 = vmatpush.msra.mxu0 %v3850
        %4806 = vmatpush.msra.mxu0 %v3842
        %4807 = vmatpush.msra.mxu0 %v3834
        %4808 = vmatmul.f32.gmra.mxu0 %v3697
        %v4809 = vpop.f32.mrf.mxu0
        %v4810 = vadd.f32 %v4790, %v4809
        %4811 = vdwg.mxu0
        %4812 = vmatpush.msra.mxu0 %v3827
        %4813 = vmatpush.msra.mxu0 %v3819
        %4814 = vmatpush.msra.mxu0 %v3811
        %4815 = vmatpush.msra.mxu0 %v3803
        %4816 = vmatpush.msra.mxu0 %v3795
        %4817 = vmatpush.msra.mxu0 %v3787
        %4818 = vmatpush.msra.mxu0 %v3779
        %4819 = vmatpush.msra.mxu0 %v3771
        %4820 = vmatpush.msra.mxu0 %v3763
        %4821 = vmatpush.msra.mxu0 %v3755
        %4822 = vmatpush.msra.mxu0 %v3747
        %4823 = vmatpush.msra.mxu0 %v3739
        %4824 = vmatpush.msra.mxu0 %v3731
        %4825 = vmatpush.msra.mxu0 %v3723
        %4826 = vmatpush.msra.mxu0 %v3715
        %4827 = vmatpush.msra.mxu0 %v3707
        %4828 = vmatmul.f32.gmra.mxu0 %v3696
        %v4829 = vpop.f32.mrf.mxu0
        %v4830 = vadd.f32 %v4530, %v4829
        %4831 = vdwg.mxu0
        %4832 = vmatpush.msra.mxu0 %v3955
        %4833 = vmatpush.msra.mxu0 %v3947
        %4834 = vmatpush.msra.mxu0 %v3939
        %4835 = vmatpush.msra.mxu0 %v3931
        %4836 = vmatpush.msra.mxu0 %v3923
        %4837 = vmatpush.msra.mxu0 %v3915
        %4838 = vmatpush.msra.mxu0 %v3907
        %4839 = vmatpush.msra.mxu0 %v3899
        %4840 = vmatpush.msra.mxu0 %v3891
        %4841 = vmatpush.msra.mxu0 %v3883
        %4842 = vmatpush.msra.mxu0 %v3875
        %4843 = vmatpush.msra.mxu0 %v3867
        %4844 = vmatpush.msra.mxu0 %v3859
        %4845 = vmatpush.msra.mxu0 %v3851
        %4846 = vmatpush.msra.mxu0 %v3843
        %4847 = vmatpush.msra.mxu0 %v3835
        %4848 = vmatmul.f32.gmra.mxu0 %v3697
        %v4849 = vpop.f32.mrf.mxu0
        %v4850 = vadd.f32 %v4830, %v4849
        %4851 = vdwg.mxu0
        %v4852 = vld [vmem:[#allocation20] sm:$0xff]
        %v4854 = vperm.slane %v4852, 0
        %v4855 = vperm.slane %v4852, 1
        %v4856 = vperm.slane %v4852, 2
        %v4857 = vperm.slane %v4852, 3
        %v4858 = vperm.slane %v4852, 4
        %v4859 = vperm.slane %v4852, 5
        %v4860 = vperm.slane %v4852, 6
        %v4861 = vperm.slane %v4852, 7
        %v4870 = vadd.f32 %v4570, %v4854
        %v4871 = vadd.f32 %v4610, %v4855
        %v4872 = vadd.f32 %v4650, %v4856
        %v4873 = vadd.f32 %v4690, %v4857
        %v4874 = vadd.f32 %v4730, %v4858
        %v4875 = vadd.f32 %v4770, %v4859
        %v4876 = vadd.f32 %v4810, %v4860
        %v4877 = vadd.f32 %v4850, %v4861
        %4878 = vst [vmem:[%s675] sm:$0xff] %v4870
        %4879 = vst [vmem:[%s675 + $0x8] sm:$0xff] %v4871
        %4880 = vst [vmem:[%s675 + $0x10] sm:$0xff] %v4872
        %4881 = vst [vmem:[%s675 + $0x18] sm:$0xff] %v4873
        %4882 = vst [vmem:[%s675 + $0x20] sm:$0xff] %v4874
        %4883 = vst [vmem:[%s675 + $0x28] sm:$0xff] %v4875
        %4884 = vst [vmem:[%s675 + $0x30] sm:$0xff] %v4876
        %4885 = vst [vmem:[%s675 + $0x38] sm:$0xff] %v4877
        %v4886 = vadd.s32 %v895, 128
        %v4887 = vadd.s32 %v895, 256
        %v4888 = vadd.s32 %v895, 384
        %v4889 = vadd.s32 %v895, 512
        %v4890 = vadd.s32 %v895, 640
        %v4891 = vadd.s32 %v895, 768
        %v4892 = vadd.s32 %v895, 896
        %vm4893 = vcmp.lt.s32.totalorder %v895, 1000
        %vm4894 = vcmp.lt.s32.totalorder %v4886, 1000
        %vm4895 = vcmp.lt.s32.totalorder %v4887, 1000
        %vm4896 = vcmp.lt.s32.totalorder %v4888, 1000
        %vm4897 = vcmp.lt.s32.totalorder %v4889, 1000
        %vm4898 = vcmp.lt.s32.totalorder %v4890, 1000
        %vm4899 = vcmp.lt.s32.totalorder %v4891, 1000
        %vm4900 = vcmp.lt.s32.totalorder %v4892, 1000
        %v4901 = vsel %vm4893, %v4870, -1e+30
        %v4902 = vsel %vm4894, %v4871, -1e+30
        %v4903 = vsel %vm4895, %v4872, -1e+30
        %v4904 = vsel %vm4896, %v4873, -1e+30
        %v4905 = vsel %vm4897, %v4874, -1e+30
        %v4906 = vsel %vm4898, %v4875, -1e+30
        %v4907 = vsel %vm4899, %v4876, -1e+30
        %v4908 = vsel %vm4900, %v4877, -1e+30
        %v4909 = vmax.f32 %v4901, %v4905
        %v4910 = vmax.f32 %v4902, %v4906
        %v4911 = vmax.f32 %v4903, %v4907
        %v4912 = vmax.f32 %v4904, %v4908
        %v4913 = vmax.f32 %v4909, %v4910
        %v4914 = vmax.f32 %v4911, %v4912
        %v4915 = vmax.f32 %v4913, %v4914
        %4916 = vmax.xlane.f32.xlu0 %v4915
        %v4917 = vpop.xlane.xlu0 %4916
        %vm4918 = vcmp.eq.f32.partialorder %v4901, %v4917
        %vm4919 = vcmp.eq.f32.partialorder %v4902, %v4917
        %vm4920 = vcmp.eq.f32.partialorder %v4903, %v4917
        %vm4921 = vcmp.eq.f32.partialorder %v4904, %v4917
        %vm4922 = vcmp.eq.f32.partialorder %v4905, %v4917
        %vm4923 = vcmp.eq.f32.partialorder %v4906, %v4917
        %vm4924 = vcmp.eq.f32.partialorder %v4907, %v4917
        %vm4925 = vcmp.eq.f32.partialorder %v4908, %v4917
        %v4926 = vsel %vm4918, %v895, 1024
        %v4927 = vsel %vm4919, %v4886, 1024
        %v4928 = vsel %vm4920, %v4887, 1024
        %v4929 = vsel %vm4921, %v4888, 1024
        %v4930 = vsel %vm4922, %v4889, 1024
        %v4931 = vsel %vm4923, %v4890, 1024
        %v4932 = vsel %vm4924, %v4891, 1024
        %v4933 = vsel %vm4925, %v4892, 1024
        %vm4934 = vcmp.lt.s32.totalorder %v4926, %v4930
        %v4935 = vsel %vm4934, %v4926, %v4930
        %vm4936 = vcmp.lt.s32.totalorder %v4927, %v4931
        %v4937 = vsel %vm4936, %v4927, %v4931
        %vm4938 = vcmp.lt.s32.totalorder %v4928, %v4932
        %v4939 = vsel %vm4938, %v4928, %v4932
        %vm4940 = vcmp.lt.s32.totalorder %v4929, %v4933
        %v4941 = vsel %vm4940, %v4929, %v4933
        %vm4942 = vcmp.lt.s32.totalorder %v4935, %v4937
        %v4943 = vsel %vm4942, %v4935, %v4937
        %vm4944 = vcmp.lt.s32.totalorder %v4939, %v4941
        %v4945 = vsel %vm4944, %v4939, %v4941
        %vm4946 = vcmp.lt.s32.totalorder %v4943, %v4945
        %v4947 = vsel %vm4946, %v4943, %v4945
        %v4948 = vand.u32 %v4947, 65535
        %v4949 = vshra.s32 %v4947, 16
        %v4950 = vcvt.s32.f32 %v4948
        %v4951 = vcvt.s32.f32 %v4949
        %4952 = vmin.xlane.f32.xlu0 %v4951
        %v4953 = vpop.xlane.xlu0 %4952
        %vm4954 = vcmp.eq.f32.partialorder %v4951, %v4953
        %v4955 = vsel %vm4954, %v4950, inf
        %4956 = vmin.xlane.f32.xlu0 %v4955
        %v4957 = vpop.xlane.xlu0 %4956
        %v4958 = vcvt.f32.s32 %v4957
        %v4959 = vcvt.f32.s32 %v4953
        %v4960 = vshll.u32 %v4959, 16
        %v4961 = vadd.s32 %v4960, %v4958
        %vm4962 = vcmp.eq.s32.totalorder %v895, %v4961
        %vm4963 = vcmp.eq.s32.totalorder %v4886, %v4961
        %vm4964 = vcmp.eq.s32.totalorder %v4887, %v4961
        %vm4965 = vcmp.eq.s32.totalorder %v4888, %v4961
        %vm4966 = vcmp.eq.s32.totalorder %v4889, %v4961
        %vm4967 = vcmp.eq.s32.totalorder %v4890, %v4961
        %vm4968 = vcmp.eq.s32.totalorder %v4891, %v4961
        %vm4969 = vcmp.eq.s32.totalorder %v4892, %v4961
        %v4970 = vsel %vm4962, 1, 0
        %v4971 = vsel %vm4963, 1, 0
        %v4972 = vsel %vm4964, 1, 0
        %v4973 = vsel %vm4965, 1, 0
        %v4974 = vsel %vm4966, 1, 0
        %v4975 = vsel %vm4967, 1, 0
        %v4976 = vsel %vm4968, 1, 0
        %v4977 = vsel %vm4969, 1, 0
        %v4978 = vcvt.s32.f32 %v4970
        %v4979 = vcvt.s32.f32 %v4971
        %v4980 = vcvt.s32.f32 %v4972
        %v4981 = vcvt.s32.f32 %v4973
        %v4982 = vcvt.s32.f32 %v4974
        %v4983 = vcvt.s32.f32 %v4975
        %v4984 = vcvt.s32.f32 %v4976
        %v4985 = vcvt.s32.f32 %v4977
        %4986 = vst [vmem:[#allocation3] sm:$0xff] %v4978
        %4987 = vst [vmem:[#allocation3 + $0x8] sm:$0xff] %v4979
        %4988 = vst [vmem:[#allocation3 + $0x10] sm:$0xff] %v4980
        %4989 = vst [vmem:[#allocation3 + $0x18] sm:$0xff] %v4981
        %4990 = vst [vmem:[#allocation3 + $0x20] sm:$0xff] %v4982
        %4991 = vst [vmem:[#allocation3 + $0x28] sm:$0xff] %v4983
        %4992 = vst [vmem:[#allocation3 + $0x30] sm:$0xff] %v4984
        %4993 = vst [vmem:[#allocation3 + $0x38] sm:$0xff] %v4985
        %p4994 = scmp.lt.s32.totalorder %s33, 6
        %s4995 = scalar_select %p4994, %s33, 6
        %s4996 = smul.addr %s4995, 8
        %s4997 = smul.addr %s4996, 8
        %s4998 = scalar_lea.vmem %s16, %s4997
        // Predicated region
        $region133: #{forward.3} parent=83 // pred_check
          %p4999 = pneg %p387
        $region134: #{forward.3} parent=83 // pred_check_branch
          %5001 = sbr.rel (%p4999) target = $region136
        $region135: #{forward.3} parent=83 // pred_region
          _
        $region136: #{forward.3} parent=83 // pred_fallthru
          _
      $region84: #{forward.3} parent=5 // pred_fallthru
        _
      %p5002 = scmp.le.s32.totalorder 2, %s28
      // Predicated region
      $region137: #{forward.3} parent=5 // pred_check
        %p5003 = pneg %p5002
      $region138: #{forward.3} parent=5 // pred_check_branch
        %5005 = sbr.rel (%p5003) target = $region140
      $region139: #{forward.3} parent=5 // pred_region
        %s5006 = ssub.s32 %s28, 2
        // Predicated region
        $region141: #{forward.3} parent=139 // pred_check
          %p5007 = pneg %p393
        $region142: #{forward.3} parent=139 // pred_check_branch
          %5009 = sbr.rel (%p5007) target = $region144
        $region143: #{forward.3} parent=139 // pred_region
          %p5010 = scmp.lt.s32.totalorder %s34, 6
          %s5011 = scalar_select %p5010, %s34, 6
          %s5012 = smul.addr %s5011, 8
          %s5013 = smul.addr %s5012, 8
          %s5014 = scalar_lea.vmem %s16, %s5013
        $region144: #{forward.3} parent=139 // pred_fallthru
          _
      $region140: #{forward.3} parent=5 // pred_fallthru
        _
    $region6: #{forward.3} parent=1 // loop_footer
      %s32 = sadd.s32 1, %s28
    $region7: #{forward.3} parent=1 // loop_footer_branch
      %27 = sbr.rel target = $region3
    $region8: #{forward.3} parent=1 // loop_exit
      _
    %5015 = vsyncpa [#allocation5], 1
    %s5016 = scalar_lea.sflag [#allocation5], 1
    %5017 = vsyncpa %s5016, 1
    %5018 = vsyncpa [#allocation7], 1
    %5019 = vsyncpa [#allocation10], 1
    %5020 = vsyncpa [#allocation13], 1
    %5021 = vsyncpa [#allocation16], 1
    %5022 = vsyncpa [#allocation19], 1

</llo_original>
